<compile_context>
chip_gen: v7x
topology: tpu7x:2x2x1
jax: 0.10.0
libtpu: 0.0.40
codegen_flags: <defaults>
</compile_context>

<pallas_src>
import functools

import jax
import jax.numpy as jnp
from jax import lax
from jax.experimental import pallas as pl
from jax.experimental.pallas import tpu as pltpu

BN_EPS = 1e-5  # torch.nn.BatchNorm2d default

# Zero padding of the per-image plane used by the pinwheel branches.
# Every side needs >= 3; PAD_L = 8 keeps the interior row starts 8-aligned,
# PAD_R = 8 makes Wp = W + 16 a multiple of 8, PAD_B = 5 covers the largest tap.
PAD_T, PAD_B, PAD_L, PAD_R = 3, 5, 8, 8


def _silu(x):
    return x * jax.nn.sigmoid(x)


# --------------------------- fused kernel builder --------------------------- #
def _make_kernel(n, H, W, c1, c, c2, shortcut):
    Wp = W + PAD_L + PAD_R            # padded width  (multiple of 8)
    Hp = H + PAD_T + PAD_B            # padded height
    NB = (H + 2) * Wp                 # branch-output rows (junk layout)
    NP = H * Wp                       # cat-conv output rows (junk layout)
    BASE = PAD_T * Wp + PAD_L         # flat offset of x[0, 0] inside the plane
    bf16, f32 = jnp.bfloat16, jnp.float32

    def kernel(*refs):
        x_ref = refs[0]
        cv1_w, cv1_b = refs[1], refs[2]
        blk = refs[3:3 + 4 * n]
        cv2_wt, cv2_bt = refs[3 + 4 * n], refs[4 + 4 * n]
        o_ref = refs[5 + 4 * n]
        xin_ref, xp_ref = refs[6 + 4 * n], refs[7 + 4 * n]

        # ----- cv1 : 1x1 conv + BN + SiLU (one MXU matmul, bf16 operands) ----
        y = jnp.dot(x_ref[0].astype(bf16), cv1_w[...],
                    preferred_element_type=f32) + cv1_b[...]
        y = _silu(y)                                         # (H*W, 2c)
        chunks = [y[:, :c], y[:, c:]]                        # torch .chunk(2, dim=1)

        # Zero the padded plane once per image: the pad bands are never written
        # again and the interior is fully overwritten by every block below.
        xp_ref[...] = jnp.zeros_like(xp_ref)

        # ----- n APBottleneck / PSConv blocks, entirely in VMEM -------------
        for i in range(n):
            wbd, g_b, cat_w, cat_b = blk[4 * i:4 * i + 4]
            xin = chunks[-1]                                 # (H*W, c) f32

            # Scatter xin rows into the junk-layout plane with 8-aligned dynamic
            # stores (no (2H+1)-way concatenate; fori-style loop bounds liveness).
            xin_ref[...] = xin

            @pl.loop(0, H)
            def _(r):
                src = xin_ref[pl.ds(pl.multiple_of(r * W, 8), W), :]
                xp_ref[pl.ds(pl.multiple_of(BASE + r * Wp, 8), W), :] = src

            def tap(a, b):                                   # shifted tap slab
                o = (a + PAD_T) * Wp + (b + PAD_L)
                return xp_ref[o:o + NB, :].astype(bf16)

            # All four asymmetric-padding branch convs in ONE matmul:
            #   rows    : [branch-0 outputs ; branch-1 outputs]   (2*NB)
            #   columns : [ (1,3) taps (3c)  |  (3,1) taps (3c) ] (6c)
            #   weight  : host-side block-diag(cw, ch)            (6c, c/2)
            p0 = jnp.concatenate([tap(-1, -3), tap(-1, -2), tap(-1, -1),  # yw0
                                  tap(-3, 0), tap(-2, 0), tap(-1, 0)],    # yh0
                                 axis=1)
            p1 = jnp.concatenate([tap(0, 0), tap(0, 1), tap(0, 2),        # yw1
                                  tap(0, -1), tap(1, -1), tap(2, -1)],    # yh1
                                 axis=1)
            pall = jnp.concatenate([p0, p1], axis=0)          # (2*NB, 6c) bf16
            yy = jnp.dot(pall, wbd[...], preferred_element_type=f32)  # (2*NB, c/2)

            # Channel concat -> presented order [yw0 | yh0 | yw1 | yh1]
            # (cat_w was permuted host-side); ONE fused bias + SiLU at c lanes.
            g = _silu(jnp.concatenate([yy[:NB], yy[NB:]], axis=1) + g_b[...])

            # 2x2 "cat" conv consumed straight from VMEM (no HBM round-trip)
            pc = jnp.concatenate(
                [g[dh * Wp + dw:dh * Wp + dw + NP, :]
                 for dh in range(2) for dw in range(2)], axis=1)          # (NP, 4c)
            ps = _silu(jnp.dot(pc.astype(bf16), cat_w[...],
                               preferred_element_type=f32) + cat_b[...])  # (NP, c)

            # drop the junk columns: (H*Wp, c) -> (H*W, c)  (8-aligned slices)
            chunk = jnp.concatenate(
                [ps[r * Wp:r * Wp + W, :] for r in range(H)], axis=0)
            if shortcut:                                     # APBottleneck residual
                chunk = chunk + xin
            chunks.append(chunk)

        # ----- cv2 : 1x1 conv over the implicit torch.cat of all chunks.
        # Computed transposed so bias + SiLU + the store are lane-dense (H*W
        # lanes) and the result is already NCHW (no wrapper transpose).
        ycat = jnp.concatenate(chunks, axis=1)               # (H*W, (2+n)*c)
        out_t = lax.dot_general(cv2_wt[...], ycat.astype(bf16),
                                (((1,), (1,)), ((), ())),
                                preferred_element_type=f32)  # (c2, H*W)
        out_t = _silu(out_t + cv2_bt[...])
        o_ref[0] = out_t.astype(o_ref.dtype)
        # TODO(synk): cv1 / branch activations still run with channels on lanes
        # (16-32 wide); a full channels-on-sublanes layout would make them
        # lane-dense too but needs lane-axis plane construction.

    return kernel


# --------------------------- host-side weight packing ------------------------ #
def _pack_params(params):
    """Fold the two branch convs into one block-diagonal matmul weight, fuse the
    branch biases into one vector, permute the cat-conv weight to the presented
    channel order and pre-cast every matmul weight to bf16."""
    c = params["cv1"]["w"].shape[-1] // 2
    c4 = c // 4
    bf16 = jnp.bfloat16
    packed = [params["cv1"]["w"].astype(bf16), params["cv1"]["b"]]
    for m in params["m"]:
        cw_w, cw_b = m["cw"]["w"], m["cw"]["b"]          # (3c, c/4), (1, c/4)
        ch_w, ch_b = m["ch"]["w"], m["ch"]["b"]
        z = jnp.zeros_like(cw_w)
        wbd = jnp.concatenate(
            [jnp.concatenate([cw_w, z], axis=1),
             jnp.concatenate([z, ch_w], axis=1)], axis=0)        # (6c, c/2)
        g_b = jnp.concatenate([cw_b, ch_b, cw_b, ch_b], axis=1)  # (1, c)
        # presented g order is [yw0|yh0|yw1|yh1]; torch.cat order is
        # [yw0|yw1|yh0|yh1] -> permute cin inside each (kh, kw) block of cat_w.
        perm = jnp.concatenate([jnp.arange(0, c4), jnp.arange(2 * c4, 3 * c4),
                                jnp.arange(c4, 2 * c4), jnp.arange(3 * c4, 4 * c4)])
        cat_w = m["cat"]["w"].reshape(4, c, c)[:, perm, :].reshape(4 * c, c)
        packed += [wbd.astype(bf16), g_b, cat_w.astype(bf16), m["cat"]["b"]]
    packed += [params["cv2"]["w"].T.astype(bf16),
               params["cv2"]["b"].reshape(-1, 1)]
    return packed


# --------------------------------- wrapper ---------------------------------- #
def c2f_psconv_forward(x_nchw, params, shortcut=False):
    N, c1, H, W = x_nchw.shape
    c = params["cv1"]["w"].shape[-1] // 2
    c2 = params["cv2"]["w"].shape[-1]
    n = len(params["m"])
    assert W % 8 == 0, "kernel assumes W is a multiple of 8 (tile-aligned slices)"
    assert c % 4 == 0

    Wp, Hp = W + PAD_L + PAD_R, H + PAD_T + PAD_B
    NB, NP = (H + 2) * Wp, H * Wp

    # NCHW -> (N, HW, C) for cv1 (the output side already leaves the kernel NCHW).
    x = jnp.transpose(x_nchw, (0, 2, 3, 1)).reshape(N, H * W, c1)

    wb = _pack_params(params)

    # Derive the VMEM budget from the actual device instead of hard-coding a cap.
    try:
        vmem_cap = int(pltpu.get_tpu_info().vmem_capacity_bytes)
    except Exception:
        vmem_cap = 64 * 1024 * 1024                    # conservative (v7x per-TC)
    work_set = 4 * (Hp * Wp * c + H * W * c            # xp / xin scratch (f32)
                    + NB * c + NP * 4 * c              # g, pc slabs
                    + (2 + n) * H * W * c              # chunks / ycat
                    + H * W * c2                       # transposed output
                    + 2 * H * W * c1)                  # double-buffered input
    work_set += 2 * (2 * NB * 6 * c)                   # bf16 im2col slab
    assert work_set < 0.6 * vmem_cap, (
        "per-image working set does not fit VMEM; add spatial row-band tiling")
    # TODO(synk): for large YOLO maps (e.g. 80x80) on v7x, split the grid into
    # (batch, row-band) with a 3-row halo instead of one image per grid step.
    vmem_limit = int(min(0.85 * vmem_cap, max(4 * work_set, 32 * 1024 * 1024)))

    in_specs = [pl.BlockSpec((1, H * W, c1), lambda b: (b, 0, 0))]
    in_specs += [pl.BlockSpec(a.shape, lambda b: (0, 0)) for a in wb]  # resident

    out = pl.pallas_call(
        _make_kernel(n, H, W, c1, c, c2, shortcut),
        out_shape=jax.ShapeDtypeStruct((N, c2, H * W), jnp.float32),
        grid_spec=pltpu.PrefetchScalarGridSpec(
            num_scalar_prefetch=0,
            grid=(N,),                                 # one image per grid step
            in_specs=in_specs,
            out_specs=pl.BlockSpec((1, c2, H * W), lambda b: (b, 0, 0)),
            scratch_shapes=[pltpu.VMEM((H * W, c), jnp.float32),      # xin_ref
                            pltpu.VMEM((Hp * Wp, c), jnp.float32)],   # xp_ref
        ),
        compiler_params=pltpu.CompilerParams(
            dimension_semantics=("parallel",),
            vmem_limit_bytes=vmem_limit,
        ),
    )(x, *wb)

    return out.reshape(N, c2, H, W)                    # already NCHW


# --------------------------- parameter construction ------------------------- #
def _fold_bn(wconv, gamma, beta, mean, var):
    """Fold eval-mode BN into a conv (torch weight layout (cout, cin, kh, kw)).
    Returns ((kh*kw*cin, cout) weight with K order (kh, kw, cin), (1, cout) bias)."""
    cout, cin, kh, kw = wconv.shape
    scale = gamma * jax.lax.rsqrt(var + BN_EPS)
    wm = jnp.transpose(wconv, (2, 3, 1, 0)).reshape(kh * kw * cin, cout) * scale[None, :]
    return wm.astype(jnp.float32), (beta - mean * scale).reshape(1, cout).astype(jnp.float32)


def make_conv_params(key, cin, cout, kh, kw):
    kconv, k1, k2, k3, k4 = jax.random.split(key, 5)
    w = jax.random.normal(kconv, (cout, cin, kh, kw), jnp.float32)
    w = w * (1.0 / (cin * kh * kw)) ** 0.5
    gamma = 1.0 + 0.1 * jax.random.normal(k1, (cout,), jnp.float32)
    beta = 0.1 * jax.random.normal(k2, (cout,), jnp.float32)
    mean = 0.1 * jax.random.normal(k3, (cout,), jnp.float32)
    var = jnp.abs(jax.random.normal(k4, (cout,), jnp.float32)) + 0.5
    wm, b = _fold_bn(w, gamma, beta, mean, var)
    return {"w": wm, "b": b}


def init_c2f_psconv(key, c1, c2, n=1, e=0.5):
    c = int(c2 * e)
    assert c % 4 == 0, "PSConv needs hidden channels divisible by 4"
    keys = jax.random.split(key, 2 + 3 * n)
    params = {
        "cv1": make_conv_params(keys[0], c1, 2 * c, 1, 1),
        "cv2": make_conv_params(keys[1], (2 + n) * c, c2, 1, 1),
        "m": [],
    }
    for i in range(n):
        params["m"].append({
            "cw":  make_conv_params(keys[2 + 3 * i + 0], c, c // 4, 1, 3),
            "ch":  make_conv_params(keys[2 + 3 * i + 1], c, c // 4, 3, 1),
            "cat": make_conv_params(keys[2 + 3 * i + 2], c, c, 2, 2),
        })
    return params


# ------------------------ pure-JAX reference (sanity) ----------------------- #
def _ref_forward(x_nchw, params, shortcut=False):
    """XLA reference with the same folded params and the same bf16 operand
    quantisation points as the kernel (f32 accumulation)."""
    bf16 = jnp.bfloat16

    def conv(x, layer, kh, kw, pad):                  # x: NHWC f32, pad = (l, r, t, b)
        l, r, t, b = pad
        K, cout = layer["w"].shape
        cin = K // (kh * kw)
        w = layer["w"].reshape(kh, kw, cin, cout)
        xpad = jnp.pad(x, ((0, 0), (t, b), (l, r), (0, 0)))
        y = jax.lax.conv_general_dilated(
            xpad.astype(bf16), w.astype(bf16), window_strides=(1, 1),
            padding="VALID", dimension_numbers=("NHWC", "HWIO", "NHWC"),
            preferred_element_type=jnp.float32) + layer["b"][0]
        return y * jax.nn.sigmoid(y)

    x = jnp.transpose(x_nchw, (0, 2, 3, 1))
    y = conv(x, params["cv1"], 1, 1, (0, 0, 0, 0))
    c = params["cv1"]["w"].shape[-1] // 2
    ys = [y[..., :c], y[..., c:]]
    for m in params["m"]:
        xin = ys[-1]
        yw0 = conv(xin, m["cw"], 1, 3, (3, 0, 1, 0))
        yw1 = conv(xin, m["cw"], 1, 3, (0, 3, 0, 1))
        yh0 = conv(xin, m["ch"], 3, 1, (0, 1, 3, 0))
        yh1 = conv(xin, m["ch"], 3, 1, (1, 0, 0, 3))
        g = jnp.concatenate([yw0, yw1, yh0, yh1], axis=-1)
        ps = conv(g, m["cat"], 2, 2, (0, 0, 0, 0))
        ys.append(xin + ps if shortcut else ps)
    out = conv(jnp.concatenate(ys, axis=-1), params["cv2"], 1, 1, (0, 0, 0, 0))
    return jnp.transpose(out, (0, 3, 1, 2))


# ----------------------------------- main ----------------------------------- #
if __name__ == "__main__":
    key = jax.random.PRNGKey(0)
    kx, kp = jax.random.split(key)

    c1, c2, n = 8, 32, 1                       # hidden c = 16, branch width c//4 = 4
    x = jax.random.normal(kx, (2, c1, 16, 16), jnp.float32)    # NCHW like PyTorch
    params = init_c2f_psconv(kp, c1, c2, n=n)

    fwd = jax.jit(functools.partial(c2f_psconv_forward, shortcut=False))
    out = jax.block_until_ready(fwd(x, params))
    assert out.shape == (2, c2, 16, 16), out.shape
    assert bool(jnp.all(jnp.isfinite(out)))

    ref = _ref_forward(x, params, shortcut=False)
    err = float(jnp.max(jnp.abs(out - ref)))
    assert err < 2e-2, f"mismatch vs XLA reference: {err}"

    print("KERNEL_OK")
</pallas_src>

<mosaic_0001>
module attributes {stable_mosaic.version = 11 : i64} {
  func.func @kernel(%arg0: i32, %arg1: memref<1x256x8xf32, #tpu.memory_space<vmem>>, %arg2: memref<8x32xbf16, #tpu.memory_space<vmem>>, %arg3: memref<1x32xf32, #tpu.memory_space<vmem>>, %arg4: memref<96x8xbf16, #tpu.memory_space<vmem>>, %arg5: memref<1x16xf32, #tpu.memory_space<vmem>>, %arg6: memref<64x16xbf16, #tpu.memory_space<vmem>>, %arg7: memref<1x16xf32, #tpu.memory_space<vmem>>, %arg8: memref<32x48xbf16, #tpu.memory_space<vmem>>, %arg9: memref<32x1xf32, #tpu.memory_space<vmem>>, %arg10: memref<1x32x256xf32, #tpu.memory_space<vmem>>, %arg11: memref<256x16xf32, #tpu.memory_space<vmem>>, %arg12: memref<768x16xf32, #tpu.memory_space<vmem>>) attributes {dimension_semantics = [#tpu.dimension_semantics<parallel>], iteration_bounds = array<i64: 2>, scalar_prefetch = 0 : i64, scratch_operands = 2 : i64, tpu.core_type = #tpu.core_type<tc>, window_params = [{transform_indices = @transform_0, window_bounds = array<i64: 1, 256, 8>}, {pipeline_mode = #tpu.pipeline_mode<synchronous>, transform_indices = @transform_1, window_bounds = array<i64: 8, 32>}, {pipeline_mode = #tpu.pipeline_mode<synchronous>, transform_indices = @transform_2, window_bounds = array<i64: 1, 32>}, {pipeline_mode = #tpu.pipeline_mode<synchronous>, transform_indices = @transform_3, window_bounds = array<i64: 96, 8>}, {pipeline_mode = #tpu.pipeline_mode<synchronous>, transform_indices = @transform_4, window_bounds = array<i64: 1, 16>}, {pipeline_mode = #tpu.pipeline_mode<synchronous>, transform_indices = @transform_5, window_bounds = array<i64: 64, 16>}, {pipeline_mode = #tpu.pipeline_mode<synchronous>, transform_indices = @transform_6, window_bounds = array<i64: 1, 16>}, {pipeline_mode = #tpu.pipeline_mode<synchronous>, transform_indices = @transform_7, window_bounds = array<i64: 32, 48>}, {pipeline_mode = #tpu.pipeline_mode<synchronous>, transform_indices = @transform_8, window_bounds = array<i64: 32, 1>}, {transform_indices = @transform_9, window_bounds = array<i64: 1, 32, 256>}]} {
    %c0 = arith.constant 0 : index
    %c0_0 = arith.constant 0 : index
    %c0_1 = arith.constant 0 : index
    %0 = vector.load %arg1[%c0, %c0_0, %c0_1] : memref<1x256x8xf32, #tpu.memory_space<vmem>>, vector<1x256x8xf32>
    %1 = vector.shape_cast %0 : vector<1x256x8xf32> to vector<256x8xf32>
    %2 = arith.truncf %1 : vector<256x8xf32> to vector<256x8xbf16>
    %c0_2 = arith.constant 0 : index
    %c0_3 = arith.constant 0 : index
    %3 = vector.load %arg2[%c0_2, %c0_3] : memref<8x32xbf16, #tpu.memory_space<vmem>>, vector<8x32xbf16>
    %cst = arith.constant dense<0.000000e+00> : vector<256x32xf32>
    %4 = tpu.matmul %2, %3, %cst {dimension_numbers = #tpu.dot_dimension_numbers<[1], [0], [0], [1], [0, 0, 1, 1], [], []>} : vector<256x8xbf16>, vector<8x32xbf16>, vector<256x32xf32> -> vector<256x32xf32>
    %c0_4 = arith.constant 0 : index
    %c0_5 = arith.constant 0 : index
    %5 = vector.load %arg3[%c0_4, %c0_5] : memref<1x32xf32, #tpu.memory_space<vmem>>, vector<1x32xf32>
    %6 = vector.broadcast %5 : vector<1x32xf32> to vector<256x32xf32>
    %7 = arith.addf %4, %6 : vector<256x32xf32>
    %8 = arith.negf %7 : vector<256x32xf32>
    %9 = math.exp %8 : vector<256x32xf32>
    %cst_6 = arith.constant 1.000000e+00 : f32
    %10 = vector.broadcast %cst_6 : f32 to vector<256x32xf32>
    %11 = arith.addf %10, %9 : vector<256x32xf32>
    %12 = arith.divf %10, %11 : vector<256x32xf32>
    %13 = arith.mulf %7, %12 : vector<256x32xf32>
    %14 = vector.extract_strided_slice %13 {offsets = [0, 0], sizes = [256, 16], strides = [1, 1]} : vector<256x32xf32> to vector<256x16xf32>
    %15 = vector.extract_strided_slice %13 {offsets = [0, 16], sizes = [256, 16], strides = [1, 1]} : vector<256x32xf32> to vector<256x16xf32>
    %cst_7 = arith.constant 0.000000e+00 : f32
    %16 = vector.broadcast %cst_7 : f32 to vector<768x16xf32>
    %c0_8 = arith.constant 0 : index
    %c0_9 = arith.constant 0 : index
    %17 = vector.load %arg12[%c0_8, %c0_9] : memref<768x16xf32, #tpu.memory_space<vmem>>, vector<768x16xf32>
    tpu.vector_store %arg12[%c0_8, %c0_9], %16 {strides = array<i32>} : memref<768x16xf32, #tpu.memory_space<vmem>>, vector<768x16xf32>,
    %c0_10 = arith.constant 0 : index
    %c0_11 = arith.constant 0 : index
    %18 = vector.load %arg11[%c0_10, %c0_11] : memref<256x16xf32, #tpu.memory_space<vmem>>, vector<256x16xf32>
    tpu.vector_store %arg11[%c0_10, %c0_11], %15 {strides = array<i32>} : memref<256x16xf32, #tpu.memory_space<vmem>>, vector<256x16xf32>,
    %c0_i32 = arith.constant 0 : i32
    %c16_i32 = arith.constant 16 : i32
    %19 = arith.addi %c0_i32, %c16_i32 : i32
    %c1_i32 = arith.constant 1 : i32
    scf.for %arg13 = %c0_i32 to %19 step %c1_i32  : i32 {
      %c1_i32_46 = arith.constant 1 : i32
      %111 = arith.muli %arg13, %c1_i32_46 : i32
      %c0_i32_47 = arith.constant 0 : i32
      %112 = arith.addi %c0_i32_47, %111 : i32
      %c16_i32_48 = arith.constant 16 : i32
      %113 = arith.muli %112, %c16_i32_48 : i32
      %114 = tpu.assume_multiple %113, 8 : i32
      %115 = arith.index_cast %114 : i32 to index
      %c0_49 = arith.constant 0 : index
      %116 = vector.load %arg11[%115, %c0_49] : memref<256x16xf32, #tpu.memory_space<vmem>>, vector<16x16xf32>
      %c32_i32 = arith.constant 32 : i32
      %117 = arith.muli %112, %c32_i32 : i32
      %c104_i32 = arith.constant 104 : i32
      %118 = arith.addi %c104_i32, %117 : i32
      %119 = tpu.assume_multiple %118, 8 : i32
      %120 = arith.index_cast %119 : i32 to index
      %c0_50 = arith.constant 0 : index
      %121 = vector.load %arg12[%120, %c0_50] : memref<768x16xf32, #tpu.memory_space<vmem>>, vector<16x16xf32>
      tpu.vector_store %arg12[%120, %c0_50], %116 {strides = array<i32>} : memref<768x16xf32, #tpu.memory_space<vmem>>, vector<16x16xf32>,
    }
    %c16_i32_12 = arith.constant 16 : i32
    %c69 = arith.constant 69 : index
    %c0_13 = arith.constant 0 : index
    %20 = vector.load %arg12[%c69, %c0_13] : memref<768x16xf32, #tpu.memory_space<vmem>>, vector<576x16xf32>
    %21 = arith.truncf %20 : vector<576x16xf32> to vector<576x16xbf16>
    %c70 = arith.constant 70 : index
    %c0_14 = arith.constant 0 : index
    %22 = vector.load %arg12[%c70, %c0_14] : memref<768x16xf32, #tpu.memory_space<vmem>>, vector<576x16xf32>
    %23 = arith.truncf %22 : vector<576x16xf32> to vector<576x16xbf16>
    %c71 = arith.constant 71 : index
    %c0_15 = arith.constant 0 : index
    %24 = vector.load %arg12[%c71, %c0_15] : memref<768x16xf32, #tpu.memory_space<vmem>>, vector<576x16xf32>
    %25 = arith.truncf %24 : vector<576x16xf32> to vector<576x16xbf16>
    %c8 = arith.constant 8 : index
    %c0_16 = arith.constant 0 : index
    %26 = vector.load %arg12[%c8, %c0_16] : memref<768x16xf32, #tpu.memory_space<vmem>>, vector<576x16xf32>
    %27 = arith.truncf %26 : vector<576x16xf32> to vector<576x16xbf16>
    %c40 = arith.constant 40 : index
    %c0_17 = arith.constant 0 : index
    %28 = vector.load %arg12[%c40, %c0_17] : memref<768x16xf32, #tpu.memory_space<vmem>>, vector<576x16xf32>
    %29 = arith.truncf %28 : vector<576x16xf32> to vector<576x16xbf16>
    %c72 = arith.constant 72 : index
    %c0_18 = arith.constant 0 : index
    %30 = vector.load %arg12[%c72, %c0_18] : memref<768x16xf32, #tpu.memory_space<vmem>>, vector<576x16xf32>
    %31 = arith.truncf %30 : vector<576x16xf32> to vector<576x16xbf16>
    %32 = tpu.concatenate %21, %23, %25, %27, %29, %31 in 1 : vector<576x16xbf16>, vector<576x16xbf16>, vector<576x16xbf16>, vector<576x16xbf16>, vector<576x16xbf16>, vector<576x16xbf16> -> vector<576x96xbf16>
    %c104 = arith.constant 104 : index
    %c0_19 = arith.constant 0 : index
    %33 = vector.load %arg12[%c104, %c0_19] : memref<768x16xf32, #tpu.memory_space<vmem>>, vector<576x16xf32>
    %34 = arith.truncf %33 : vector<576x16xf32> to vector<576x16xbf16>
    %c105 = arith.constant 105 : index
    %c0_20 = arith.constant 0 : index
    %35 = vector.load %arg12[%c105, %c0_20] : memref<768x16xf32, #tpu.memory_space<vmem>>, vector<576x16xf32>
    %36 = arith.truncf %35 : vector<576x16xf32> to vector<576x16xbf16>
    %c106 = arith.constant 106 : index
    %c0_21 = arith.constant 0 : index
    %37 = vector.load %arg12[%c106, %c0_21] : memref<768x16xf32, #tpu.memory_space<vmem>>, vector<576x16xf32>
    %38 = arith.truncf %37 : vector<576x16xf32> to vector<576x16xbf16>
    %c103 = arith.constant 103 : index
    %c0_22 = arith.constant 0 : index
    %39 = vector.load %arg12[%c103, %c0_22] : memref<768x16xf32, #tpu.memory_space<vmem>>, vector<576x16xf32>
    %40 = arith.truncf %39 : vector<576x16xf32> to vector<576x16xbf16>
    %c135 = arith.constant 135 : index
    %c0_23 = arith.constant 0 : index
    %41 = vector.load %arg12[%c135, %c0_23] : memref<768x16xf32, #tpu.memory_space<vmem>>, vector<576x16xf32>
    %42 = arith.truncf %41 : vector<576x16xf32> to vector<576x16xbf16>
    %c167 = arith.constant 167 : index
    %c0_24 = arith.constant 0 : index
    %43 = vector.load %arg12[%c167, %c0_24] : memref<768x16xf32, #tpu.memory_space<vmem>>, vector<576x16xf32>
    %44 = arith.truncf %43 : vector<576x16xf32> to vector<576x16xbf16>
    %45 = tpu.concatenate %34, %36, %38, %40, %42, %44 in 1 : vector<576x16xbf16>, vector<576x16xbf16>, vector<576x16xbf16>, vector<576x16xbf16>, vector<576x16xbf16>, vector<576x16xbf16> -> vector<576x96xbf16>
    %46 = tpu.concatenate %32, %45 in 0 : vector<576x96xbf16>, vector<576x96xbf16> -> vector<1152x96xbf16>
    %c0_25 = arith.constant 0 : index
    %c0_26 = arith.constant 0 : index
    %47 = vector.load %arg4[%c0_25, %c0_26] : memref<96x8xbf16, #tpu.memory_space<vmem>>, vector<96x8xbf16>
    %cst_27 = arith.constant dense<0.000000e+00> : vector<1152x8xf32>
    %48 = tpu.matmul %46, %47, %cst_27 {dimension_numbers = #tpu.dot_dimension_numbers<[1], [0], [0], [1], [0, 0, 1, 1], [], []>} : vector<1152x96xbf16>, vector<96x8xbf16>, vector<1152x8xf32> -> vector<1152x8xf32>
    %49 = vector.extract_strided_slice %48 {offsets = [0, 0], sizes = [576, 8], strides = [1, 1]} : vector<1152x8xf32> to vector<576x8xf32>
    %50 = vector.extract_strided_slice %48 {offsets = [576, 0], sizes = [576, 8], strides = [1, 1]} : vector<1152x8xf32> to vector<576x8xf32>
    %51 = tpu.concatenate %49, %50 in 1 : vector<576x8xf32>, vector<576x8xf32> -> vector<576x16xf32>
    %c0_28 = arith.constant 0 : index
    %c0_29 = arith.constant 0 : index
    %52 = vector.load %arg5[%c0_28, %c0_29] : memref<1x16xf32, #tpu.memory_space<vmem>>, vector<1x16xf32>
    %53 = vector.broadcast %52 : vector<1x16xf32> to vector<576x16xf32>
    %54 = arith.addf %51, %53 : vector<576x16xf32>
    %55 = arith.negf %54 : vector<576x16xf32>
    %56 = math.exp %55 : vector<576x16xf32>
    %cst_30 = arith.constant 1.000000e+00 : f32
    %57 = vector.broadcast %cst_30 : f32 to vector<576x16xf32>
    %58 = arith.addf %57, %56 : vector<576x16xf32>
    %59 = arith.divf %57, %58 : vector<576x16xf32>
    %60 = arith.mulf %54, %59 : vector<576x16xf32>
    %61 = vector.extract_strided_slice %60 {offsets = [0, 0], sizes = [512, 16], strides = [1, 1]} : vector<576x16xf32> to vector<512x16xf32>
    %62 = vector.extract_strided_slice %60 {offsets = [1, 0], sizes = [512, 16], strides = [1, 1]} : vector<576x16xf32> to vector<512x16xf32>
    %63 = vector.extract_strided_slice %60 {offsets = [32, 0], sizes = [512, 16], strides = [1, 1]} : vector<576x16xf32> to vector<512x16xf32>
    %64 = vector.extract_strided_slice %60 {offsets = [33, 0], sizes = [512, 16], strides = [1, 1]} : vector<576x16xf32> to vector<512x16xf32>
    %65 = tpu.concatenate %61, %62, %63, %64 in 1 : vector<512x16xf32>, vector<512x16xf32>, vector<512x16xf32>, vector<512x16xf32> -> vector<512x64xf32>
    %66 = arith.truncf %65 : vector<512x64xf32> to vector<512x64xbf16>
    %c0_31 = arith.constant 0 : index
    %c0_32 = arith.constant 0 : index
    %67 = vector.load %arg6[%c0_31, %c0_32] : memref<64x16xbf16, #tpu.memory_space<vmem>>, vector<64x16xbf16>
    %cst_33 = arith.constant dense<0.000000e+00> : vector<512x16xf32>
    %68 = tpu.matmul %66, %67, %cst_33 {dimension_numbers = #tpu.dot_dimension_numbers<[1], [0], [0], [1], [0, 0, 1, 1], [], []>} : vector<512x64xbf16>, vector<64x16xbf16>, vector<512x16xf32> -> vector<512x16xf32>
    %c0_34 = arith.constant 0 : index
    %c0_35 = arith.constant 0 : index
    %69 = vector.load %arg7[%c0_34, %c0_35] : memref<1x16xf32, #tpu.memory_space<vmem>>, vector<1x16xf32>
    %70 = vector.broadcast %69 : vector<1x16xf32> to vector<512x16xf32>
    %71 = arith.addf %68, %70 : vector<512x16xf32>
    %72 = arith.negf %71 : vector<512x16xf32>
    %73 = math.exp %72 : vector<512x16xf32>
    %cst_36 = arith.constant 1.000000e+00 : f32
    %74 = vector.broadcast %cst_36 : f32 to vector<512x16xf32>
    %75 = arith.addf %74, %73 : vector<512x16xf32>
    %76 = arith.divf %74, %75 : vector<512x16xf32>
    %77 = arith.mulf %71, %76 : vector<512x16xf32>
    %78 = vector.extract_strided_slice %77 {offsets = [0, 0], sizes = [16, 16], strides = [1, 1]} : vector<512x16xf32> to vector<16x16xf32>
    %79 = vector.extract_strided_slice %77 {offsets = [32, 0], sizes = [16, 16], strides = [1, 1]} : vector<512x16xf32> to vector<16x16xf32>
    %80 = vector.extract_strided_slice %77 {offsets = [64, 0], sizes = [16, 16], strides = [1, 1]} : vector<512x16xf32> to vector<16x16xf32>
    %81 = vector.extract_strided_slice %77 {offsets = [96, 0], sizes = [16, 16], strides = [1, 1]} : vector<512x16xf32> to vector<16x16xf32>
    %82 = vector.extract_strided_slice %77 {offsets = [128, 0], sizes = [16, 16], strides = [1, 1]} : vector<512x16xf32> to vector<16x16xf32>
    %83 = vector.extract_strided_slice %77 {offsets = [160, 0], sizes = [16, 16], strides = [1, 1]} : vector<512x16xf32> to vector<16x16xf32>
    %84 = vector.extract_strided_slice %77 {offsets = [192, 0], sizes = [16, 16], strides = [1, 1]} : vector<512x16xf32> to vector<16x16xf32>
    %85 = vector.extract_strided_slice %77 {offsets = [224, 0], sizes = [16, 16], strides = [1, 1]} : vector<512x16xf32> to vector<16x16xf32>
    %86 = vector.extract_strided_slice %77 {offsets = [256, 0], sizes = [16, 16], strides = [1, 1]} : vector<512x16xf32> to vector<16x16xf32>
    %87 = vector.extract_strided_slice %77 {offsets = [288, 0], sizes = [16, 16], strides = [1, 1]} : vector<512x16xf32> to vector<16x16xf32>
    %88 = vector.extract_strided_slice %77 {offsets = [320, 0], sizes = [16, 16], strides = [1, 1]} : vector<512x16xf32> to vector<16x16xf32>
    %89 = vector.extract_strided_slice %77 {offsets = [352, 0], sizes = [16, 16], strides = [1, 1]} : vector<512x16xf32> to vector<16x16xf32>
    %90 = vector.extract_strided_slice %77 {offsets = [384, 0], sizes = [16, 16], strides = [1, 1]} : vector<512x16xf32> to vector<16x16xf32>
    %91 = vector.extract_strided_slice %77 {offsets = [416, 0], sizes = [16, 16], strides = [1, 1]} : vector<512x16xf32> to vector<16x16xf32>
    %92 = vector.extract_strided_slice %77 {offsets = [448, 0], sizes = [16, 16], strides = [1, 1]} : vector<512x16xf32> to vector<16x16xf32>
    %93 = vector.extract_strided_slice %77 {offsets = [480, 0], sizes = [16, 16], strides = [1, 1]} : vector<512x16xf32> to vector<16x16xf32>
    %94 = tpu.concatenate %78, %79, %80, %81, %82, %83, %84, %85, %86, %87, %88, %89, %90, %91, %92, %93 in 0 : vector<16x16xf32>, vector<16x16xf32>, vector<16x16xf32>, vector<16x16xf32>, vector<16x16xf32>, vector<16x16xf32>, vector<16x16xf32>, vector<16x16xf32>, vector<16x16xf32>, vector<16x16xf32>, vector<16x16xf32>, vector<16x16xf32>, vector<16x16xf32>, vector<16x16xf32>, vector<16x16xf32>, vector<16x16xf32> -> vector<256x16xf32>
    %95 = tpu.concatenate %14, %15, %94 in 1 : vector<256x16xf32>, vector<256x16xf32>, vector<256x16xf32> -> vector<256x48xf32>
    %c0_37 = arith.constant 0 : index
    %c0_38 = arith.constant 0 : index
    %96 = vector.load %arg8[%c0_37, %c0_38] : memref<32x48xbf16, #tpu.memory_space<vmem>>, vector<32x48xbf16>
    %97 = arith.truncf %95 : vector<256x48xf32> to vector<256x48xbf16>
    %cst_39 = arith.constant dense<0.000000e+00> : vector<32x256xf32>
    %98 = tpu.matmul %96, %97, %cst_39 {dimension_numbers = #tpu.dot_dimension_numbers<[1], [1], [0], [0], [0, 0, 1, 0], [], []>} : vector<32x48xbf16>, vector<256x48xbf16>, vector<32x256xf32> -> vector<32x256xf32>
    %c0_40 = arith.constant 0 : index
    %c0_41 = arith.constant 0 : index
    %99 = vector.load %arg9[%c0_40, %c0_41] : memref<32x1xf32, #tpu.memory_space<vmem>>, vector<32x1xf32>
    %100 = vector.broadcast %99 : vector<32x1xf32> to vector<32x256xf32>
    %101 = arith.addf %98, %100 : vector<32x256xf32>
    %102 = arith.negf %101 : vector<32x256xf32>
    %103 = math.exp %102 : vector<32x256xf32>
    %cst_42 = arith.constant 1.000000e+00 : f32
    %104 = vector.broadcast %cst_42 : f32 to vector<32x256xf32>
    %105 = arith.addf %104, %103 : vector<32x256xf32>
    %106 = arith.divf %104, %105 : vector<32x256xf32>
    %107 = arith.mulf %101, %106 : vector<32x256xf32>
    %c0_43 = arith.constant 0 : index
    %c0_44 = arith.constant 0 : index
    %c0_45 = arith.constant 0 : index
    %108 = vector.load %arg10[%c0_43, %c0_44, %c0_45] : memref<1x32x256xf32, #tpu.memory_space<vmem>>, vector<1x32x256xf32>
    %109 = vector.shape_cast %108 : vector<1x32x256xf32> to vector<32x256xf32>
    %110 = vector.shape_cast %107 : vector<32x256xf32> to vector<1x32x256xf32>
    tpu.vector_store %arg10[%c0_43, %c0_44, %c0_45], %110 {strides = array<i32>} : memref<1x32x256xf32, #tpu.memory_space<vmem>>, vector<1x32x256xf32>,
    return
  }
  func.func @transform_0(%arg0: i32) -> (i32, i32, i32) {
    %c0_i32 = arith.constant 0 : i32
    %c0_i32_0 = arith.constant 0 : i32
    %c0_i32_1 = arith.constant 0 : i32
    return %arg0, %c0_i32, %c0_i32_0 : i32, i32, i32
  }
  func.func @transform_1(%arg0: i32) -> (i32, i32) {
    %c0_i32 = arith.constant 0 : i32
    %c0_i32_0 = arith.constant 0 : i32
    %c0_i32_1 = arith.constant 0 : i32
    return %c0_i32, %c0_i32_0 : i32, i32
  }
  func.func @transform_2(%arg0: i32) -> (i32, i32) {
    %c0_i32 = arith.constant 0 : i32
    %c0_i32_0 = arith.constant 0 : i32
    %c0_i32_1 = arith.constant 0 : i32
    return %c0_i32, %c0_i32_0 : i32, i32
  }
  func.func @transform_3(%arg0: i32) -> (i32, i32) {
    %c0_i32 = arith.constant 0 : i32
    %c0_i32_0 = arith.constant 0 : i32
    %c0_i32_1 = arith.constant 0 : i32
    return %c0_i32, %c0_i32_0 : i32, i32
  }
  func.func @transform_4(%arg0: i32) -> (i32, i32) {
    %c0_i32 = arith.constant 0 : i32
    %c0_i32_0 = arith.constant 0 : i32
    %c0_i32_1 = arith.constant 0 : i32
    return %c0_i32, %c0_i32_0 : i32, i32
  }
  func.func @transform_5(%arg0: i32) -> (i32, i32) {
    %c0_i32 = arith.constant 0 : i32
    %c0_i32_0 = arith.constant 0 : i32
    %c0_i32_1 = arith.constant 0 : i32
    return %c0_i32, %c0_i32_0 : i32, i32
  }
  func.func @transform_6(%arg0: i32) -> (i32, i32) {
    %c0_i32 = arith.constant 0 : i32
    %c0_i32_0 = arith.constant 0 : i32
    %c0_i32_1 = arith.constant 0 : i32
    return %c0_i32, %c0_i32_0 : i32, i32
  }
  func.func @transform_7(%arg0: i32) -> (i32, i32) {
    %c0_i32 = arith.constant 0 : i32
    %c0_i32_0 = arith.constant 0 : i32
    %c0_i32_1 = arith.constant 0 : i32
    return %c0_i32, %c0_i32_0 : i32, i32
  }
  func.func @transform_8(%arg0: i32) -> (i32, i32) {
    %c0_i32 = arith.constant 0 : i32
    %c0_i32_0 = arith.constant 0 : i32
    %c0_i32_1 = arith.constant 0 : i32
    return %c0_i32, %c0_i32_0 : i32, i32
  }
  func.func @transform_9(%arg0: i32) -> (i32, i32, i32) {
    %c0_i32 = arith.constant 0 : i32
    %c0_i32_0 = arith.constant 0 : i32
    %c0_i32_1 = arith.constant 0 : i32
    return %arg0, %c0_i32, %c0_i32_0 : i32, i32, i32
  }
}

</mosaic_0001>

<llo_original>
// kernel: c2f_psconv_forward.1
$region0: #{c2f_psconv_forward.1}
  #allocation0 [shape = 'u32[]', space=smem, size = 0x4, offset = 0x4, fixed_abs, tag = 'smem constant byte address 0x4 - core index']
  #allocation1 [shape = 'u32[144,128]{1,0:T(1,128)}', space=vmem, size = 0x12000, scoped, tag = 'internal scratch']
  #allocation2 [shape = 'f32[256,16]{1,0:T(8,128)}', space=vmem, size = 0x20000, scoped, tag = 'scratch operand']
  #allocation3 [shape = 'f32[768,16]{1,0:T(8,128)}', space=vmem, size = 0x60000, scoped, tag = 'scratch operand']
  %s0 = inlined_call_operand.vmem [shape: f32[2,256,8], index: 0, kind: input, shape index: {}]
  %s1 = inlined_call_operand.vmem [shape: bf16[8,32], index: 1, kind: input, shape index: {}]
  %s2 = inlined_call_operand.vmem [shape: f32[1,32], index: 2, kind: input, shape index: {}]
  %s3 = inlined_call_operand.vmem [shape: bf16[96,8], index: 3, kind: input, shape index: {}]
  %s4 = inlined_call_operand.vmem [shape: f32[1,16], index: 4, kind: input, shape index: {}]
  %s5 = inlined_call_operand.vmem [shape: bf16[64,16], index: 5, kind: input, shape index: {}]
  %s6 = inlined_call_operand.vmem [shape: f32[1,16], index: 6, kind: input, shape index: {}]
  %s7 = inlined_call_operand.vmem [shape: bf16[32,48], index: 7, kind: input, shape index: {}]
  %s8 = inlined_call_operand.vmem [shape: f32[32,1], index: 8, kind: input, shape index: {}]
  %s9 = inlined_call_operand.vmem [shape: f32[2,32,256], index: 9, kind: output, shape index: {}]
  %s10 = sld [smem:[#allocation0]]
  $region76: #{c2f_psconv_forward.1} parent=0
    _
  %s12 = ssub.s32 1, %s10
  %s13 = scalar_select 0, %s12, %s10
  loop: start=0, step=1, limit=4
  $region2: #{c2f_psconv_forward.1} parent=0 // loop_pre_header
    _
  $region3: #{c2f_psconv_forward.1} parent=0 // loop_header
    %s15 = sphi 0, %s19
    %p16 = scmp.ge.s32.totalorder %s15, 4
    %s25 = sphi 0, %s27
    %s28 = sphi 0, %s25
    %s29 = sphi 0, %s28
    %s45 = sphi 0, %s29
    %s49 = sphi 0, %s49
    %s51 = sphi 0, %s49
    %s52 = sphi 0, %s51
    %s66 = sphi 0, %s52
    %s70 = sphi 0, %s70
    %s72 = sphi 0, %s70
    %s73 = sphi 0, %s72
    %s87 = sphi 0, %s73
    %s91 = sphi 0, %s91
    %s93 = sphi 0, %s91
    %s94 = sphi 0, %s93
    %s108 = sphi 0, %s94
    %s112 = sphi 0, %s112
    %s114 = sphi 0, %s112
    %s115 = sphi 0, %s114
    %s129 = sphi 0, %s115
    %s133 = sphi 0, %s133
    %s135 = sphi 0, %s133
    %s136 = sphi 0, %s135
    %s150 = sphi 0, %s136
    %s154 = sphi 0, %s154
    %s156 = sphi 0, %s154
    %s157 = sphi 0, %s156
    %s171 = sphi 0, %s157
    %s175 = sphi 0, %s175
    %s177 = sphi 0, %s175
    %s178 = sphi 0, %s177
    %s192 = sphi 0, %s178
    %s196 = sphi 0, %s196
    %s198 = sphi 0, %s196
    %s199 = sphi 0, %s198
    %s213 = sphi 0, %s199
    %s219 = sphi 0, %s221
    %s222 = sphi 0, %s219
    %s223 = sphi 0, %s222
    %s239 = sphi 0, %s223
  $region4: #{c2f_psconv_forward.1} parent=0 // loop_header_branch
    %18 = sbr.rel (%p16) target = $region8
  $region5: #{c2f_psconv_forward.1} parent=0 // loop_body
    %s20 = ssub.s32 %s15, 1
    %s21 = ssub.s32 %s15, 2
    %s22 = sadd.s32 %s15, 1
    %s23 = ssub.s32 %s15, %s22
    %p24 = scmp.eq.s32.totalorder %s23, 0
    %s26 = sadd.s32 %s25, 1
    %s27 = scalar_select %p24, %s25, %s26
    %p30 = pneg %p24
    %p31 = scmp.eq.s32.totalorder %s15, 1
    %p32 = por %p30, %p31
    %p33 = scmp.ne.s32.totalorder %s25, %s28
    %p34 = scmp.eq.s32.totalorder %s15, 0
    %p35 = por %p33, %p34
    %p36 = scmp.ne.s32.totalorder %s25, %s28
    %p37 = scmp.eq.s32.totalorder %s20, 1
    %p38 = por %p36, %p37
    %p39 = scmp.ne.s32.totalorder %s28, %s29
    %p40 = scmp.eq.s32.totalorder %s20, 0
    %p41 = por %p39, %p40
    %p42 = scmp.ne.s32.totalorder %s28, %s29
    %p43 = scmp.eq.s32.totalorder %s21, 1
    %p44 = por %p42, %p43
    %p46 = scmp.ne.s32.totalorder %s29, %s45
    %p47 = scmp.eq.s32.totalorder %s21, 0
    %p48 = por %p46, %p47
    %s50 = sadd.s32 %s49, 1
    %p53 = scmp.eq.s32.totalorder %s15, 1
    %p54 = scmp.ne.s32.totalorder %s49, %s51
    %p55 = scmp.eq.s32.totalorder %s15, 0
    %p56 = por %p54, %p55
    %p57 = scmp.ne.s32.totalorder %s49, %s51
    %p58 = scmp.eq.s32.totalorder %s20, 1
    %p59 = por %p57, %p58
    %p60 = scmp.ne.s32.totalorder %s51, %s52
    %p61 = scmp.eq.s32.totalorder %s20, 0
    %p62 = por %p60, %p61
    %p63 = scmp.ne.s32.totalorder %s51, %s52
    %p64 = scmp.eq.s32.totalorder %s21, 1
    %p65 = por %p63, %p64
    %p67 = scmp.ne.s32.totalorder %s52, %s66
    %p68 = scmp.eq.s32.totalorder %s21, 0
    %p69 = por %p67, %p68
    %s71 = sadd.s32 %s70, 1
    %p74 = scmp.eq.s32.totalorder %s15, 1
    %p75 = scmp.ne.s32.totalorder %s70, %s72
    %p76 = scmp.eq.s32.totalorder %s15, 0
    %p77 = por %p75, %p76
    %p78 = scmp.ne.s32.totalorder %s70, %s72
    %p79 = scmp.eq.s32.totalorder %s20, 1
    %p80 = por %p78, %p79
    %p81 = scmp.ne.s32.totalorder %s72, %s73
    %p82 = scmp.eq.s32.totalorder %s20, 0
    %p83 = por %p81, %p82
    %p84 = scmp.ne.s32.totalorder %s72, %s73
    %p85 = scmp.eq.s32.totalorder %s21, 1
    %p86 = por %p84, %p85
    %p88 = scmp.ne.s32.totalorder %s73, %s87
    %p89 = scmp.eq.s32.totalorder %s21, 0
    %p90 = por %p88, %p89
    %s92 = sadd.s32 %s91, 1
    %p95 = scmp.eq.s32.totalorder %s15, 1
    %p96 = scmp.ne.s32.totalorder %s91, %s93
    %p97 = scmp.eq.s32.totalorder %s15, 0
    %p98 = por %p96, %p97
    %p99 = scmp.ne.s32.totalorder %s91, %s93
    %p100 = scmp.eq.s32.totalorder %s20, 1
    %p101 = por %p99, %p100
    %p102 = scmp.ne.s32.totalorder %s93, %s94
    %p103 = scmp.eq.s32.totalorder %s20, 0
    %p104 = por %p102, %p103
    %p105 = scmp.ne.s32.totalorder %s93, %s94
    %p106 = scmp.eq.s32.totalorder %s21, 1
    %p107 = por %p105, %p106
    %p109 = scmp.ne.s32.totalorder %s94, %s108
    %p110 = scmp.eq.s32.totalorder %s21, 0
    %p111 = por %p109, %p110
    %s113 = sadd.s32 %s112, 1
    %p116 = scmp.eq.s32.totalorder %s15, 1
    %p117 = scmp.ne.s32.totalorder %s112, %s114
    %p118 = scmp.eq.s32.totalorder %s15, 0
    %p119 = por %p117, %p118
    %p120 = scmp.ne.s32.totalorder %s112, %s114
    %p121 = scmp.eq.s32.totalorder %s20, 1
    %p122 = por %p120, %p121
    %p123 = scmp.ne.s32.totalorder %s114, %s115
    %p124 = scmp.eq.s32.totalorder %s20, 0
    %p125 = por %p123, %p124
    %p126 = scmp.ne.s32.totalorder %s114, %s115
    %p127 = scmp.eq.s32.totalorder %s21, 1
    %p128 = por %p126, %p127
    %p130 = scmp.ne.s32.totalorder %s115, %s129
    %p131 = scmp.eq.s32.totalorder %s21, 0
    %p132 = por %p130, %p131
    %s134 = sadd.s32 %s133, 1
    %p137 = scmp.eq.s32.totalorder %s15, 1
    %p138 = scmp.ne.s32.totalorder %s133, %s135
    %p139 = scmp.eq.s32.totalorder %s15, 0
    %p140 = por %p138, %p139
    %p141 = scmp.ne.s32.totalorder %s133, %s135
    %p142 = scmp.eq.s32.totalorder %s20, 1
    %p143 = por %p141, %p142
    %p144 = scmp.ne.s32.totalorder %s135, %s136
    %p145 = scmp.eq.s32.totalorder %s20, 0
    %p146 = por %p144, %p145
    %p147 = scmp.ne.s32.totalorder %s135, %s136
    %p148 = scmp.eq.s32.totalorder %s21, 1
    %p149 = por %p147, %p148
    %p151 = scmp.ne.s32.totalorder %s136, %s150
    %p152 = scmp.eq.s32.totalorder %s21, 0
    %p153 = por %p151, %p152
    %s155 = sadd.s32 %s154, 1
    %p158 = scmp.eq.s32.totalorder %s15, 1
    %p159 = scmp.ne.s32.totalorder %s154, %s156
    %p160 = scmp.eq.s32.totalorder %s15, 0
    %p161 = por %p159, %p160
    %p162 = scmp.ne.s32.totalorder %s154, %s156
    %p163 = scmp.eq.s32.totalorder %s20, 1
    %p164 = por %p162, %p163
    %p165 = scmp.ne.s32.totalorder %s156, %s157
    %p166 = scmp.eq.s32.totalorder %s20, 0
    %p167 = por %p165, %p166
    %p168 = scmp.ne.s32.totalorder %s156, %s157
    %p169 = scmp.eq.s32.totalorder %s21, 1
    %p170 = por %p168, %p169
    %p172 = scmp.ne.s32.totalorder %s157, %s171
    %p173 = scmp.eq.s32.totalorder %s21, 0
    %p174 = por %p172, %p173
    %s176 = sadd.s32 %s175, 1
    %p179 = scmp.eq.s32.totalorder %s15, 1
    %p180 = scmp.ne.s32.totalorder %s175, %s177
    %p181 = scmp.eq.s32.totalorder %s15, 0
    %p182 = por %p180, %p181
    %p183 = scmp.ne.s32.totalorder %s175, %s177
    %p184 = scmp.eq.s32.totalorder %s20, 1
    %p185 = por %p183, %p184
    %p186 = scmp.ne.s32.totalorder %s177, %s178
    %p187 = scmp.eq.s32.totalorder %s20, 0
    %p188 = por %p186, %p187
    %p189 = scmp.ne.s32.totalorder %s177, %s178
    %p190 = scmp.eq.s32.totalorder %s21, 1
    %p191 = por %p189, %p190
    %p193 = scmp.ne.s32.totalorder %s178, %s192
    %p194 = scmp.eq.s32.totalorder %s21, 0
    %p195 = por %p193, %p194
    %s197 = sadd.s32 %s196, 1
    %p200 = scmp.eq.s32.totalorder %s15, 1
    %p201 = scmp.ne.s32.totalorder %s196, %s198
    %p202 = scmp.eq.s32.totalorder %s15, 0
    %p203 = por %p201, %p202
    %p204 = scmp.ne.s32.totalorder %s196, %s198
    %p205 = scmp.eq.s32.totalorder %s20, 1
    %p206 = por %p204, %p205
    %p207 = scmp.ne.s32.totalorder %s198, %s199
    %p208 = scmp.eq.s32.totalorder %s20, 0
    %p209 = por %p207, %p208
    %p210 = scmp.ne.s32.totalorder %s198, %s199
    %p211 = scmp.eq.s32.totalorder %s21, 1
    %p212 = por %p210, %p211
    %p214 = scmp.ne.s32.totalorder %s199, %s213
    %p215 = scmp.eq.s32.totalorder %s21, 0
    %p216 = por %p214, %p215
    %s217 = ssub.s32 %s15, %s22
    %p218 = scmp.eq.s32.totalorder %s217, 0
    %s220 = sadd.s32 %s219, 1
    %s221 = scalar_select %p218, %s219, %s220
    %p224 = pneg %p218
    %p225 = scmp.eq.s32.totalorder %s15, 1
    %p226 = por %p224, %p225
    %p227 = scmp.ne.s32.totalorder %s219, %s222
    %p228 = scmp.eq.s32.totalorder %s15, 0
    %p229 = por %p227, %p228
    %p230 = scmp.ne.s32.totalorder %s219, %s222
    %p231 = scmp.eq.s32.totalorder %s20, 1
    %p232 = por %p230, %p231
    %p233 = scmp.ne.s32.totalorder %s222, %s223
    %p234 = scmp.eq.s32.totalorder %s20, 0
    %p235 = por %p233, %p234
    %p236 = scmp.ne.s32.totalorder %s222, %s223
    %p237 = scmp.eq.s32.totalorder %s21, 1
    %p238 = por %p236, %p237
    %p240 = scmp.ne.s32.totalorder %s223, %s239
    %p241 = scmp.eq.s32.totalorder %s21, 0
    %p242 = por %p240, %p241
    %p243 = scmp.le.s32.totalorder 1, %s15
    %p244 = scmp.lt.s32.totalorder %s15, 3
    %p245 = pnand %p243, %p244
    %p246 = pneg %p245
    // Predicated region
    $region9: #{c2f_psconv_forward.1} parent=5 // pred_check
      _
    $region10: #{c2f_psconv_forward.1} parent=5 // pred_check_branch
      %248 = sbr.rel (%p245) target = $region12
    $region11: #{c2f_psconv_forward.1} parent=5 // pred_region
      %s249 = ssub.s32 %s15, 1
      // Predicated region
      $region13: #{c2f_psconv_forward.1} parent=11 // pred_check
        %p250 = pneg %p62
      $region14: #{c2f_psconv_forward.1} parent=11 // pred_check_branch
        %252 = sbr.rel (%p250) target = $region16
      $region15: #{c2f_psconv_forward.1} parent=11 // pred_region
        _
      $region16: #{c2f_psconv_forward.1} parent=11 // pred_fallthru
        _
      // Predicated region
      $region17: #{c2f_psconv_forward.1} parent=11 // pred_check
        %p253 = pneg %p83
      $region18: #{c2f_psconv_forward.1} parent=11 // pred_check_branch
        %255 = sbr.rel (%p253) target = $region20
      $region19: #{c2f_psconv_forward.1} parent=11 // pred_region
        _
      $region20: #{c2f_psconv_forward.1} parent=11 // pred_fallthru
        _
      // Predicated region
      $region21: #{c2f_psconv_forward.1} parent=11 // pred_check
        %p256 = pneg %p104
      $region22: #{c2f_psconv_forward.1} parent=11 // pred_check_branch
        %258 = sbr.rel (%p256) target = $region24
      $region23: #{c2f_psconv_forward.1} parent=11 // pred_region
        _
      $region24: #{c2f_psconv_forward.1} parent=11 // pred_fallthru
        _
      // Predicated region
      $region25: #{c2f_psconv_forward.1} parent=11 // pred_check
        %p259 = pneg %p125
      $region26: #{c2f_psconv_forward.1} parent=11 // pred_check_branch
        %261 = sbr.rel (%p259) target = $region28
      $region27: #{c2f_psconv_forward.1} parent=11 // pred_region
        _
      $region28: #{c2f_psconv_forward.1} parent=11 // pred_fallthru
        _
      // Predicated region
      $region29: #{c2f_psconv_forward.1} parent=11 // pred_check
        %p262 = pneg %p146
      $region30: #{c2f_psconv_forward.1} parent=11 // pred_check_branch
        %264 = sbr.rel (%p262) target = $region32
      $region31: #{c2f_psconv_forward.1} parent=11 // pred_region
        _
      $region32: #{c2f_psconv_forward.1} parent=11 // pred_fallthru
        _
      // Predicated region
      $region33: #{c2f_psconv_forward.1} parent=11 // pred_check
        %p265 = pneg %p167
      $region34: #{c2f_psconv_forward.1} parent=11 // pred_check_branch
        %267 = sbr.rel (%p265) target = $region36
      $region35: #{c2f_psconv_forward.1} parent=11 // pred_region
        _
      $region36: #{c2f_psconv_forward.1} parent=11 // pred_fallthru
        _
      // Predicated region
      $region37: #{c2f_psconv_forward.1} parent=11 // pred_check
        %p268 = pneg %p188
      $region38: #{c2f_psconv_forward.1} parent=11 // pred_check_branch
        %270 = sbr.rel (%p268) target = $region40
      $region39: #{c2f_psconv_forward.1} parent=11 // pred_region
        _
      $region40: #{c2f_psconv_forward.1} parent=11 // pred_fallthru
        _
      // Predicated region
      $region41: #{c2f_psconv_forward.1} parent=11 // pred_check
        %p271 = pneg %p209
      $region42: #{c2f_psconv_forward.1} parent=11 // pred_check_branch
        %273 = sbr.rel (%p271) target = $region44
      $region43: #{c2f_psconv_forward.1} parent=11 // pred_region
        _
      $region44: #{c2f_psconv_forward.1} parent=11 // pred_fallthru
        _
    $region12: #{c2f_psconv_forward.1} parent=5 // pred_fallthru
      _
    %p274 = scmp.lt.s32.totalorder %s15, 2
    // Predicated region
    $region45: #{c2f_psconv_forward.1} parent=5 // pred_check
      %p275 = pneg %p274
    $region46: #{c2f_psconv_forward.1} parent=5 // pred_check_branch
      %277 = sbr.rel (%p275) target = $region48
    $region47: #{c2f_psconv_forward.1} parent=5 // pred_region
      // Predicated region
      $region49: #{c2f_psconv_forward.1} parent=47 // pred_check
        %p278 = pneg %p35
      $region50: #{c2f_psconv_forward.1} parent=47 // pred_check_branch
        %280 = sbr.rel (%p278) target = $region52
      $region51: #{c2f_psconv_forward.1} parent=47 // pred_region
        %p281 = scmp.lt.s32.totalorder %s15, 1
        %s282 = scalar_select %p281, %s15, 1
        %s283 = smul.addr %s282, 32
        %s284 = smul.addr %s283, 8
        %s285 = scalar_lea.vmem %s0, %s284
      $region52: #{c2f_psconv_forward.1} parent=47 // pred_fallthru
        _
    $region48: #{c2f_psconv_forward.1} parent=5 // pred_fallthru
      _
    %p286 = scmp.le.s32.totalorder 1, %s15
    %p287 = scmp.lt.s32.totalorder %s15, 3
    %p288 = pnand %p286, %p287
    %p289 = pneg %p288
    // Predicated region
    $region53: #{c2f_psconv_forward.1} parent=5 // pred_check
      _
    $region54: #{c2f_psconv_forward.1} parent=5 // pred_check_branch
      %291 = sbr.rel (%p288) target = $region56
    $region55: #{c2f_psconv_forward.1} parent=5 // pred_region
      %s292 = ssub.s32 %s15, 1
      %p293 = scmp.lt.s32.totalorder %s20, 1
      %s294 = scalar_select %p293, %s20, 1
      %s295 = smul.addr %s294, 32
      %s296 = smul.addr %s295, 8
      %s297 = scalar_lea.vmem %s0, %s296
      %p298 = pneg %p41
      %p299 = pneg %p38
      %p300 = pneg %p62
      %p301 = pneg %p59
      %p302 = pneg %p83
      %p303 = pneg %p80
      %p304 = pneg %p104
      %p305 = pneg %p101
      %p306 = pneg %p125
      %p307 = pneg %p122
      %p308 = pneg %p146
      %p309 = pneg %p143
      %p310 = pneg %p167
      %p311 = pneg %p164
      %p312 = pneg %p188
      %p313 = pneg %p185
      %p314 = pneg %p209
      %p315 = pneg %p206
      %p316 = pneg %p235
      %p317 = pneg %p232
      %p318 = scmp.lt.s32.totalorder %s20, 1
      %s319 = scalar_select %p318, %s20, 1
      %s320 = smul.addr %s319, 8
      %s321 = smul.addr %s320, 8
      %s322 = scalar_lea.vmem %s9, %s321
      %p323 = scmp.lt.s32.totalorder %s20, 1
      %s324 = scalar_select %p323, %s20, 1
      %s325 = smul.addr %s324, 32
      %s326 = smul.addr %s325, 8
      %s327 = scalar_lea.vmem %s0, %s326
      %p328 = scmp.lt.s32.totalorder %s20, 1
      %s329 = scalar_select %p328, %s20, 1
      %s330 = smul.addr %s329, 8
      %s331 = smul.addr %s330, 8
      %s332 = scalar_lea.vmem %s9, %s331
      %v334 = vld [vmem:[%s327] sm:$0xff]
      %v335 = vld [vmem:[%s327 + $0x8] sm:$0xff]
      %v336 = vld [vmem:[%s327 + $0x10] sm:$0xff]
      %v337 = vld [vmem:[%s327 + $0x18] sm:$0xff]
      %v338 = vld [vmem:[%s327 + $0x20] sm:$0xff]
      %v339 = vld [vmem:[%s327 + $0x28] sm:$0xff]
      %v340 = vld [vmem:[%s327 + $0x30] sm:$0xff]
      %v341 = vld [vmem:[%s327 + $0x38] sm:$0xff]
      %v342 = vld [vmem:[%s327 + $0x40] sm:$0xff]
      %v343 = vld [vmem:[%s327 + $0x48] sm:$0xff]
      %v344 = vld [vmem:[%s327 + $0x50] sm:$0xff]
      %v345 = vld [vmem:[%s327 + $0x58] sm:$0xff]
      %v346 = vld [vmem:[%s327 + $0x60] sm:$0xff]
      %v347 = vld [vmem:[%s327 + $0x68] sm:$0xff]
      %v348 = vld [vmem:[%s327 + $0x70] sm:$0xff]
      %v349 = vld [vmem:[%s327 + $0x78] sm:$0xff]
      %v350 = vld [vmem:[%s327 + $0x80] sm:$0xff]
      %v351 = vld [vmem:[%s327 + $0x88] sm:$0xff]
      %v352 = vld [vmem:[%s327 + $0x90] sm:$0xff]
      %v353 = vld [vmem:[%s327 + $0x98] sm:$0xff]
      %v354 = vld [vmem:[%s327 + $0xa0] sm:$0xff]
      %v355 = vld [vmem:[%s327 + $0xa8] sm:$0xff]
      %v356 = vld [vmem:[%s327 + $0xb0] sm:$0xff]
      %v357 = vld [vmem:[%s327 + $0xb8] sm:$0xff]
      %v358 = vld [vmem:[%s327 + $0xc0] sm:$0xff]
      %v359 = vld [vmem:[%s327 + $0xc8] sm:$0xff]
      %v360 = vld [vmem:[%s327 + $0xd0] sm:$0xff]
      %v361 = vld [vmem:[%s327 + $0xd8] sm:$0xff]
      %v362 = vld [vmem:[%s327 + $0xe0] sm:$0xff]
      %v363 = vld [vmem:[%s327 + $0xe8] sm:$0xff]
      %v364 = vld [vmem:[%s327 + $0xf0] sm:$0xff]
      %v365 = vld [vmem:[%s327 + $0xf8] sm:$0xff]
      %v366 = vpack.c.bf16 %v335, %v334
      %v367 = vpack.c.bf16 %v337, %v336
      %v368 = vpack.c.bf16 %v339, %v338
      %v369 = vpack.c.bf16 %v341, %v340
      %v370 = vpack.c.bf16 %v343, %v342
      %v371 = vpack.c.bf16 %v345, %v344
      %v372 = vpack.c.bf16 %v347, %v346
      %v373 = vpack.c.bf16 %v349, %v348
      %v374 = vpack.c.bf16 %v351, %v350
      %v375 = vpack.c.bf16 %v353, %v352
      %v376 = vpack.c.bf16 %v355, %v354
      %v377 = vpack.c.bf16 %v357, %v356
      %v378 = vpack.c.bf16 %v359, %v358
      %v379 = vpack.c.bf16 %v361, %v360
      %v380 = vpack.c.bf16 %v363, %v362
      %v381 = vpack.c.bf16 %v365, %v364
      %v382 = vld [vmem:[%s1] sm:$0xf]
      %v383 = vld [vmem:[%s2] sm:$0x1]
      %v385 = vlaneseq
      %v386 = vshrl.u32 %v385, 7
      %v387 = vsub.s32 0, %v386
      %v388 = vrot.slane %v383, %v387
      %vm390 = vcmask 64512
      %v392 = vsel %vm390, %v366, 0
      %v395 = vsel %vm390, %v367, 0
      %v398 = vsel %vm390, %v368, 0
      %v401 = vsel %vm390, %v369, 0
      %v404 = vsel %vm390, %v370, 0
      %v407 = vsel %vm390, %v371, 0
      %v410 = vsel %vm390, %v372, 0
      %v413 = vsel %vm390, %v373, 0
      %v416 = vsel %vm390, %v374, 0
      %v419 = vsel %vm390, %v375, 0
      %v422 = vsel %vm390, %v376, 0
      %v425 = vsel %vm390, %v377, 0
      %v428 = vsel %vm390, %v378, 0
      %v431 = vsel %vm390, %v379, 0
      %v434 = vsel %vm390, %v380, 0
      %v437 = vsel %vm390, %v381, 0
      %vm439 = vcmask 1043456
      %v441 = vsel %vm439, %v382, 0
      %443 = vmatprep.subr.bf16.mxu0 0
      %444 = vmatpush1.bf16.msra.mxu0 %v441
      %445 = vmatprep.subr.bf16.mxu0 0
      %446 = vmatpush1.bf16.msra.mxu0 0
      %447 = vmatprep.subr.bf16.mxu0 0
      %448 = vmatpush1.bf16.msra.mxu0 0
      %449 = vmatprep.subr.bf16.mxu0 0
      %450 = vmatpush1.bf16.msra.mxu0 0
      %451 = vmatprep.subr.bf16.mxu0 0
      %452 = vmatpush1.bf16.msra.mxu0 0
      %453 = vmatprep.subr.bf16.mxu0 0
      %454 = vmatpush1.bf16.msra.mxu0 0
      %455 = vmatprep.subr.bf16.mxu0 0
      %456 = vmatpush1.bf16.msra.mxu0 0
      %457 = vmatprep.subr.bf16.mxu0 0
      %458 = vmatpush1.bf16.msra.mxu0 0
      %459 = vmatprep.subr.bf16.mxu0 0
      %460 = vmatpush1.bf16.msra.mxu0 0
      %461 = vmatprep.subr.bf16.mxu0 0
      %462 = vmatpush1.bf16.msra.mxu0 0
      %463 = vmatprep.subr.bf16.mxu0 0
      %464 = vmatpush1.bf16.msra.mxu0 0
      %465 = vmatprep.subr.bf16.mxu0 0
      %466 = vmatpush1.bf16.msra.mxu0 0
      %467 = vmatprep.subr.bf16.mxu0 0
      %468 = vmatpush1.bf16.msra.mxu0 0
      %469 = vmatprep.subr.bf16.mxu0 0
      %470 = vmatpush1.bf16.msra.mxu0 0
      %471 = vmatprep.subr.bf16.mxu0 0
      %472 = vmatpush1.bf16.msra.mxu0 0
      %473 = vmatprep.subr.bf16.mxu0 0
      %474 = vmatpush1.bf16.msra.mxu0 0
      %475 = vmatprep.mubr.bf16.mxu0 0
      %476 = vmatmul.mubr.bf16.gmra.mrb[0].mxu0 %v392
      %v477 = vpop.f32.mrb[0].mxu0
      %v478 = vadd.f32 %v388, %v477
      %v479 = vpop.f32.mrb[0].mxu0
      %v480 = vpop.f32.mrb[0].mxu0
      %v481 = vadd.f32 %v388, %v480
      %v482 = vpop.f32.mrb[0].mxu0
      %483 = vmatprep.mubr.bf16.mxu0 0
      %484 = vmatmul.mubr.bf16.gmra.mrb[0].mxu0 %v395
      %v485 = vpop.f32.mrb[0].mxu0
      %v486 = vadd.f32 %v388, %v485
      %v487 = vpop.f32.mrb[0].mxu0
      %v488 = vpop.f32.mrb[0].mxu0
      %v489 = vadd.f32 %v388, %v488
      %v490 = vpop.f32.mrb[0].mxu0
      %491 = vmatprep.mubr.bf16.mxu0 0
      %492 = vmatmul.mubr.bf16.gmra.mrb[0].mxu0 %v398
      %v493 = vpop.f32.mrb[0].mxu0
      %v494 = vadd.f32 %v388, %v493
      %v495 = vpop.f32.mrb[0].mxu0
      %v496 = vpop.f32.mrb[0].mxu0
      %v497 = vadd.f32 %v388, %v496
      %v498 = vpop.f32.mrb[0].mxu0
      %499 = vmatprep.mubr.bf16.mxu0 0
      %500 = vmatmul.mubr.bf16.gmra.mrb[0].mxu0 %v401
      %v501 = vpop.f32.mrb[0].mxu0
      %v502 = vadd.f32 %v388, %v501
      %v503 = vpop.f32.mrb[0].mxu0
      %v504 = vpop.f32.mrb[0].mxu0
      %v505 = vadd.f32 %v388, %v504
      %v506 = vpop.f32.mrb[0].mxu0
      %507 = vmatprep.mubr.bf16.mxu0 0
      %508 = vmatmul.mubr.bf16.gmra.mrb[0].mxu0 %v404
      %v509 = vpop.f32.mrb[0].mxu0
      %v510 = vadd.f32 %v388, %v509
      %v511 = vpop.f32.mrb[0].mxu0
      %v512 = vpop.f32.mrb[0].mxu0
      %v513 = vadd.f32 %v388, %v512
      %v514 = vpop.f32.mrb[0].mxu0
      %515 = vmatprep.mubr.bf16.mxu0 0
      %516 = vmatmul.mubr.bf16.gmra.mrb[0].mxu0 %v407
      %v517 = vpop.f32.mrb[0].mxu0
      %v518 = vadd.f32 %v388, %v517
      %v519 = vpop.f32.mrb[0].mxu0
      %v520 = vpop.f32.mrb[0].mxu0
      %v521 = vadd.f32 %v388, %v520
      %v522 = vpop.f32.mrb[0].mxu0
      %523 = vmatprep.mubr.bf16.mxu0 0
      %524 = vmatmul.mubr.bf16.gmra.mrb[0].mxu0 %v410
      %v525 = vpop.f32.mrb[0].mxu0
      %v526 = vadd.f32 %v388, %v525
      %v527 = vpop.f32.mrb[0].mxu0
      %v528 = vpop.f32.mrb[0].mxu0
      %v529 = vadd.f32 %v388, %v528
      %v530 = vpop.f32.mrb[0].mxu0
      %531 = vmatprep.mubr.bf16.mxu0 0
      %532 = vmatmul.mubr.bf16.gmra.mrb[0].mxu0 %v413
      %v533 = vpop.f32.mrb[0].mxu0
      %v534 = vadd.f32 %v388, %v533
      %v535 = vpop.f32.mrb[0].mxu0
      %v536 = vpop.f32.mrb[0].mxu0
      %v537 = vadd.f32 %v388, %v536
      %v538 = vpop.f32.mrb[0].mxu0
      %539 = vmatprep.mubr.bf16.mxu0 0
      %540 = vmatmul.mubr.bf16.gmra.mrb[0].mxu0 %v416
      %v541 = vpop.f32.mrb[0].mxu0
      %v542 = vadd.f32 %v388, %v541
      %v543 = vpop.f32.mrb[0].mxu0
      %v544 = vpop.f32.mrb[0].mxu0
      %v545 = vadd.f32 %v388, %v544
      %v546 = vpop.f32.mrb[0].mxu0
      %547 = vmatprep.mubr.bf16.mxu0 0
      %548 = vmatmul.mubr.bf16.gmra.mrb[0].mxu0 %v419
      %v549 = vpop.f32.mrb[0].mxu0
      %v550 = vadd.f32 %v388, %v549
      %v551 = vpop.f32.mrb[0].mxu0
      %v552 = vpop.f32.mrb[0].mxu0
      %v553 = vadd.f32 %v388, %v552
      %v554 = vpop.f32.mrb[0].mxu0
      %555 = vmatprep.mubr.bf16.mxu0 0
      %556 = vmatmul.mubr.bf16.gmra.mrb[0].mxu0 %v422
      %v557 = vpop.f32.mrb[0].mxu0
      %v558 = vadd.f32 %v388, %v557
      %v559 = vpop.f32.mrb[0].mxu0
      %v560 = vpop.f32.mrb[0].mxu0
      %v561 = vadd.f32 %v388, %v560
      %v562 = vpop.f32.mrb[0].mxu0
      %563 = vmatprep.mubr.bf16.mxu0 0
      %564 = vmatmul.mubr.bf16.gmra.mrb[0].mxu0 %v425
      %v565 = vpop.f32.mrb[0].mxu0
      %v566 = vadd.f32 %v388, %v565
      %v567 = vpop.f32.mrb[0].mxu0
      %v568 = vpop.f32.mrb[0].mxu0
      %v569 = vadd.f32 %v388, %v568
      %v570 = vpop.f32.mrb[0].mxu0
      %571 = vmatprep.mubr.bf16.mxu0 0
      %572 = vmatmul.mubr.bf16.gmra.mrb[0].mxu0 %v428
      %v573 = vpop.f32.mrb[0].mxu0
      %v574 = vadd.f32 %v388, %v573
      %v575 = vpop.f32.mrb[0].mxu0
      %v576 = vpop.f32.mrb[0].mxu0
      %v577 = vadd.f32 %v388, %v576
      %v578 = vpop.f32.mrb[0].mxu0
      %579 = vmatprep.mubr.bf16.mxu0 0
      %580 = vmatmul.mubr.bf16.gmra.mrb[0].mxu0 %v431
      %v581 = vpop.f32.mrb[0].mxu0
      %v582 = vadd.f32 %v388, %v581
      %v583 = vpop.f32.mrb[0].mxu0
      %v584 = vpop.f32.mrb[0].mxu0
      %v585 = vadd.f32 %v388, %v584
      %v586 = vpop.f32.mrb[0].mxu0
      %587 = vmatprep.mubr.bf16.mxu0 0
      %588 = vmatmul.mubr.bf16.gmra.mrb[0].mxu0 %v434
      %v589 = vpop.f32.mrb[0].mxu0
      %v590 = vadd.f32 %v388, %v589
      %v591 = vpop.f32.mrb[0].mxu0
      %v592 = vpop.f32.mrb[0].mxu0
      %v593 = vadd.f32 %v388, %v592
      %v594 = vpop.f32.mrb[0].mxu0
      %595 = vmatprep.mubr.bf16.mxu0 0
      %596 = vmatmul.mubr.bf16.gmra.mrb[0].mxu0 %v437
      %v597 = vpop.f32.mrb[0].mxu0
      %v598 = vadd.f32 %v388, %v597
      %v599 = vpop.f32.mrb[0].mxu0
      %v600 = vpop.f32.mrb[0].mxu0
      %v601 = vadd.f32 %v388, %v600
      %v602 = vpop.f32.mrb[0].mxu0
      %603 = vdwg.mxu0
      %v604 = vxor.u32 %v478, 2147483648
      %v605 = vxor.u32 %v481, 2147483648
      %v606 = vxor.u32 %v486, 2147483648
      %v607 = vxor.u32 %v489, 2147483648
      %v608 = vxor.u32 %v494, 2147483648
      %v609 = vxor.u32 %v497, 2147483648
      %v610 = vxor.u32 %v502, 2147483648
      %v611 = vxor.u32 %v505, 2147483648
      %v612 = vxor.u32 %v510, 2147483648
      %v613 = vxor.u32 %v513, 2147483648
      %v614 = vxor.u32 %v518, 2147483648
      %v615 = vxor.u32 %v521, 2147483648
      %v616 = vxor.u32 %v526, 2147483648
      %v617 = vxor.u32 %v529, 2147483648
      %v618 = vxor.u32 %v534, 2147483648
      %v619 = vxor.u32 %v537, 2147483648
      %v620 = vxor.u32 %v542, 2147483648
      %v621 = vxor.u32 %v545, 2147483648
      %v622 = vxor.u32 %v550, 2147483648
      %v623 = vxor.u32 %v553, 2147483648
      %v624 = vxor.u32 %v558, 2147483648
      %v625 = vxor.u32 %v561, 2147483648
      %v626 = vxor.u32 %v566, 2147483648
      %v627 = vxor.u32 %v569, 2147483648
      %v628 = vxor.u32 %v574, 2147483648
      %v629 = vxor.u32 %v577, 2147483648
      %v630 = vxor.u32 %v582, 2147483648
      %v631 = vxor.u32 %v585, 2147483648
      %v632 = vxor.u32 %v590, 2147483648
      %v633 = vxor.u32 %v593, 2147483648
      %v634 = vxor.u32 %v598, 2147483648
      %v635 = vxor.u32 %v601, 2147483648
      %v636 = vmul.f32 %v604, 1.442695
      %v637 = vpow.pop %v636
      %v638 = vmul.f32 %v605, 1.442695
      %v639 = vpow.pop %v638
      %v640 = vmul.f32 %v606, 1.442695
      %v641 = vpow.pop %v640
      %v642 = vmul.f32 %v607, 1.442695
      %v643 = vpow.pop %v642
      %v644 = vmul.f32 %v608, 1.442695
      %v645 = vpow.pop %v644
      %v646 = vmul.f32 %v609, 1.442695
      %v647 = vpow.pop %v646
      %v648 = vmul.f32 %v610, 1.442695
      %v649 = vpow.pop %v648
      %v650 = vmul.f32 %v611, 1.442695
      %v651 = vpow.pop %v650
      %v652 = vmul.f32 %v612, 1.442695
      %v653 = vpow.pop %v652
      %v654 = vmul.f32 %v613, 1.442695
      %v655 = vpow.pop %v654
      %v656 = vmul.f32 %v614, 1.442695
      %v657 = vpow.pop %v656
      %v658 = vmul.f32 %v615, 1.442695
      %v659 = vpow.pop %v658
      %v660 = vmul.f32 %v616, 1.442695
      %v661 = vpow.pop %v660
      %v662 = vmul.f32 %v617, 1.442695
      %v663 = vpow.pop %v662
      %v664 = vmul.f32 %v618, 1.442695
      %v665 = vpow.pop %v664
      %v666 = vmul.f32 %v619, 1.442695
      %v667 = vpow.pop %v666
      %v668 = vmul.f32 %v620, 1.442695
      %v669 = vpow.pop %v668
      %v670 = vmul.f32 %v621, 1.442695
      %v671 = vpow.pop %v670
      %v672 = vmul.f32 %v622, 1.442695
      %v673 = vpow.pop %v672
      %v674 = vmul.f32 %v623, 1.442695
      %v675 = vpow.pop %v674
      %v676 = vmul.f32 %v624, 1.442695
      %v677 = vpow.pop %v676
      %v678 = vmul.f32 %v625, 1.442695
      %v679 = vpow.pop %v678
      %v680 = vmul.f32 %v626, 1.442695
      %v681 = vpow.pop %v680
      %v682 = vmul.f32 %v627, 1.442695
      %v683 = vpow.pop %v682
      %v684 = vmul.f32 %v628, 1.442695
      %v685 = vpow.pop %v684
      %v686 = vmul.f32 %v629, 1.442695
      %v687 = vpow.pop %v686
      %v688 = vmul.f32 %v630, 1.442695
      %v689 = vpow.pop %v688
      %v690 = vmul.f32 %v631, 1.442695
      %v691 = vpow.pop %v690
      %v692 = vmul.f32 %v632, 1.442695
      %v693 = vpow.pop %v692
      %v694 = vmul.f32 %v633, 1.442695
      %v695 = vpow.pop %v694
      %v696 = vmul.f32 %v634, 1.442695
      %v697 = vpow.pop %v696
      %v698 = vmul.f32 %v635, 1.442695
      %v699 = vpow.pop %v698
      %v700 = vadd.f32 %v637, 1.0
      %v701 = vadd.f32 %v639, 1.0
      %v702 = vadd.f32 %v641, 1.0
      %v703 = vadd.f32 %v643, 1.0
      %v704 = vadd.f32 %v645, 1.0
      %v705 = vadd.f32 %v647, 1.0
      %v706 = vadd.f32 %v649, 1.0
      %v707 = vadd.f32 %v651, 1.0
      %v708 = vadd.f32 %v653, 1.0
      %v709 = vadd.f32 %v655, 1.0
      %v710 = vadd.f32 %v657, 1.0
      %v711 = vadd.f32 %v659, 1.0
      %v712 = vadd.f32 %v661, 1.0
      %v713 = vadd.f32 %v663, 1.0
      %v714 = vadd.f32 %v665, 1.0
      %v715 = vadd.f32 %v667, 1.0
      %v716 = vadd.f32 %v669, 1.0
      %v717 = vadd.f32 %v671, 1.0
      %v718 = vadd.f32 %v673, 1.0
      %v719 = vadd.f32 %v675, 1.0
      %v720 = vadd.f32 %v677, 1.0
      %v721 = vadd.f32 %v679, 1.0
      %v722 = vadd.f32 %v681, 1.0
      %v723 = vadd.f32 %v683, 1.0
      %v724 = vadd.f32 %v685, 1.0
      %v725 = vadd.f32 %v687, 1.0
      %v726 = vadd.f32 %v689, 1.0
      %v727 = vadd.f32 %v691, 1.0
      %v728 = vadd.f32 %v693, 1.0
      %v729 = vadd.f32 %v695, 1.0
      %v730 = vadd.f32 %v697, 1.0
      %v731 = vadd.f32 %v699, 1.0
      %v732 = vrcp.pop %v700
      %v733 = vmul.f32 1.0, %v732
      %v734 = vrcp.pop %v701
      %v735 = vmul.f32 1.0, %v734
      %v736 = vrcp.pop %v702
      %v737 = vmul.f32 1.0, %v736
      %v738 = vrcp.pop %v703
      %v739 = vmul.f32 1.0, %v738
      %v740 = vrcp.pop %v704
      %v741 = vmul.f32 1.0, %v740
      %v742 = vrcp.pop %v705
      %v743 = vmul.f32 1.0, %v742
      %v744 = vrcp.pop %v706
      %v745 = vmul.f32 1.0, %v744
      %v746 = vrcp.pop %v707
      %v747 = vmul.f32 1.0, %v746
      %v748 = vrcp.pop %v708
      %v749 = vmul.f32 1.0, %v748
      %v750 = vrcp.pop %v709
      %v751 = vmul.f32 1.0, %v750
      %v752 = vrcp.pop %v710
      %v753 = vmul.f32 1.0, %v752
      %v754 = vrcp.pop %v711
      %v755 = vmul.f32 1.0, %v754
      %v756 = vrcp.pop %v712
      %v757 = vmul.f32 1.0, %v756
      %v758 = vrcp.pop %v713
      %v759 = vmul.f32 1.0, %v758
      %v760 = vrcp.pop %v714
      %v761 = vmul.f32 1.0, %v760
      %v762 = vrcp.pop %v715
      %v763 = vmul.f32 1.0, %v762
      %v764 = vrcp.pop %v716
      %v765 = vmul.f32 1.0, %v764
      %v766 = vrcp.pop %v717
      %v767 = vmul.f32 1.0, %v766
      %v768 = vrcp.pop %v718
      %v769 = vmul.f32 1.0, %v768
      %v770 = vrcp.pop %v719
      %v771 = vmul.f32 1.0, %v770
      %v772 = vrcp.pop %v720
      %v773 = vmul.f32 1.0, %v772
      %v774 = vrcp.pop %v721
      %v775 = vmul.f32 1.0, %v774
      %v776 = vrcp.pop %v722
      %v777 = vmul.f32 1.0, %v776
      %v778 = vrcp.pop %v723
      %v779 = vmul.f32 1.0, %v778
      %v780 = vrcp.pop %v724
      %v781 = vmul.f32 1.0, %v780
      %v782 = vrcp.pop %v725
      %v783 = vmul.f32 1.0, %v782
      %v784 = vrcp.pop %v726
      %v785 = vmul.f32 1.0, %v784
      %v786 = vrcp.pop %v727
      %v787 = vmul.f32 1.0, %v786
      %v788 = vrcp.pop %v728
      %v789 = vmul.f32 1.0, %v788
      %v790 = vrcp.pop %v729
      %v791 = vmul.f32 1.0, %v790
      %v792 = vrcp.pop %v730
      %v793 = vmul.f32 1.0, %v792
      %v794 = vrcp.pop %v731
      %v795 = vmul.f32 1.0, %v794
      %v796 = vmul.f32 %v478, %v733
      %v797 = vmul.f32 %v481, %v735
      %v798 = vmul.f32 %v486, %v737
      %v799 = vmul.f32 %v489, %v739
      %v800 = vmul.f32 %v494, %v741
      %v801 = vmul.f32 %v497, %v743
      %v802 = vmul.f32 %v502, %v745
      %v803 = vmul.f32 %v505, %v747
      %v804 = vmul.f32 %v510, %v749
      %v805 = vmul.f32 %v513, %v751
      %v806 = vmul.f32 %v518, %v753
      %v807 = vmul.f32 %v521, %v755
      %v808 = vmul.f32 %v526, %v757
      %v809 = vmul.f32 %v529, %v759
      %v810 = vmul.f32 %v534, %v761
      %v811 = vmul.f32 %v537, %v763
      %v812 = vmul.f32 %v542, %v765
      %v813 = vmul.f32 %v545, %v767
      %v814 = vmul.f32 %v550, %v769
      %v815 = vmul.f32 %v553, %v771
      %v816 = vmul.f32 %v558, %v773
      %v817 = vmul.f32 %v561, %v775
      %v818 = vmul.f32 %v566, %v777
      %v819 = vmul.f32 %v569, %v779
      %v820 = vmul.f32 %v574, %v781
      %v821 = vmul.f32 %v577, %v783
      %v822 = vmul.f32 %v582, %v785
      %v823 = vmul.f32 %v585, %v787
      %v824 = vmul.f32 %v590, %v789
      %v825 = vmul.f32 %v593, %v791
      %v826 = vmul.f32 %v598, %v793
      %v827 = vmul.f32 %v601, %v795
      %vm828 = vcmask 130048
      %829 = vst.msk [vmem:[#allocation3] sm:$0xff] %vm828, 0.0
      %830 = vst.msk [vmem:[#allocation3 + $0x8] sm:$0xff] %vm828, 0.0
      %831 = vst.msk [vmem:[#allocation3 + $0x10] sm:$0xff] %vm828, 0.0
      %832 = vst.msk [vmem:[#allocation3 + $0x18] sm:$0xff] %vm828, 0.0
      %833 = vst.msk [vmem:[#allocation3 + $0x20] sm:$0xff] %vm828, 0.0
      %834 = vst.msk [vmem:[#allocation3 + $0x28] sm:$0xff] %vm828, 0.0
      %835 = vst.msk [vmem:[#allocation3 + $0x30] sm:$0xff] %vm828, 0.0
      %836 = vst.msk [vmem:[#allocation3 + $0x38] sm:$0xff] %vm828, 0.0
      %837 = vst.msk [vmem:[#allocation3 + $0x40] sm:$0xff] %vm828, 0.0
      %838 = vst.msk [vmem:[#allocation3 + $0x48] sm:$0xff] %vm828, 0.0
      %839 = vst.msk [vmem:[#allocation3 + $0x50] sm:$0xff] %vm828, 0.0
      %840 = vst.msk [vmem:[#allocation3 + $0x58] sm:$0xff] %vm828, 0.0
      %841 = vst.msk [vmem:[#allocation3 + $0x60] sm:$0xff] %vm828, 0.0
      %842 = vst.msk [vmem:[#allocation3 + $0x68] sm:$0xff] %vm828, 0.0
      %843 = vst.msk [vmem:[#allocation3 + $0x70] sm:$0xff] %vm828, 0.0
      %844 = vst.msk [vmem:[#allocation3 + $0x78] sm:$0xff] %vm828, 0.0
      %845 = vst.msk [vmem:[#allocation3 + $0x80] sm:$0xff] %vm828, 0.0
      %846 = vst.msk [vmem:[#allocation3 + $0x88] sm:$0xff] %vm828, 0.0
      %847 = vst.msk [vmem:[#allocation3 + $0x90] sm:$0xff] %vm828, 0.0
      %848 = vst.msk [vmem:[#allocation3 + $0x98] sm:$0xff] %vm828, 0.0
      %849 = vst.msk [vmem:[#allocation3 + $0xa0] sm:$0xff] %vm828, 0.0
      %850 = vst.msk [vmem:[#allocation3 + $0xa8] sm:$0xff] %vm828, 0.0
      %851 = vst.msk [vmem:[#allocation3 + $0xb0] sm:$0xff] %vm828, 0.0
      %852 = vst.msk [vmem:[#allocation3 + $0xb8] sm:$0xff] %vm828, 0.0
      %853 = vst.msk [vmem:[#allocation3 + $0xc0] sm:$0xff] %vm828, 0.0
      %854 = vst.msk [vmem:[#allocation3 + $0xc8] sm:$0xff] %vm828, 0.0
      %855 = vst.msk [vmem:[#allocation3 + $0xd0] sm:$0xff] %vm828, 0.0
      %856 = vst.msk [vmem:[#allocation3 + $0xd8] sm:$0xff] %vm828, 0.0
      %857 = vst.msk [vmem:[#allocation3 + $0xe0] sm:$0xff] %vm828, 0.0
      %858 = vst.msk [vmem:[#allocation3 + $0xe8] sm:$0xff] %vm828, 0.0
      %859 = vst.msk [vmem:[#allocation3 + $0xf0] sm:$0xff] %vm828, 0.0
      %860 = vst.msk [vmem:[#allocation3 + $0xf8] sm:$0xff] %vm828, 0.0
      %861 = vst.msk [vmem:[#allocation3 + $0x100] sm:$0xff] %vm828, 0.0
      %862 = vst.msk [vmem:[#allocation3 + $0x108] sm:$0xff] %vm828, 0.0
      %863 = vst.msk [vmem:[#allocation3 + $0x110] sm:$0xff] %vm828, 0.0
      %864 = vst.msk [vmem:[#allocation3 + $0x118] sm:$0xff] %vm828, 0.0
      %865 = vst.msk [vmem:[#allocation3 + $0x120] sm:$0xff] %vm828, 0.0
      %866 = vst.msk [vmem:[#allocation3 + $0x128] sm:$0xff] %vm828, 0.0
      %867 = vst.msk [vmem:[#allocation3 + $0x130] sm:$0xff] %vm828, 0.0
      %868 = vst.msk [vmem:[#allocation3 + $0x138] sm:$0xff] %vm828, 0.0
      %869 = vst.msk [vmem:[#allocation3 + $0x140] sm:$0xff] %vm828, 0.0
      %870 = vst.msk [vmem:[#allocation3 + $0x148] sm:$0xff] %vm828, 0.0
      %871 = vst.msk [vmem:[#allocation3 + $0x150] sm:$0xff] %vm828, 0.0
      %872 = vst.msk [vmem:[#allocation3 + $0x158] sm:$0xff] %vm828, 0.0
      %873 = vst.msk [vmem:[#allocation3 + $0x160] sm:$0xff] %vm828, 0.0
      %874 = vst.msk [vmem:[#allocation3 + $0x168] sm:$0xff] %vm828, 0.0
      %875 = vst.msk [vmem:[#allocation3 + $0x170] sm:$0xff] %vm828, 0.0
      %876 = vst.msk [vmem:[#allocation3 + $0x178] sm:$0xff] %vm828, 0.0
      %877 = vst.msk [vmem:[#allocation3 + $0x180] sm:$0xff] %vm828, 0.0
      %878 = vst.msk [vmem:[#allocation3 + $0x188] sm:$0xff] %vm828, 0.0
      %879 = vst.msk [vmem:[#allocation3 + $0x190] sm:$0xff] %vm828, 0.0
      %880 = vst.msk [vmem:[#allocation3 + $0x198] sm:$0xff] %vm828, 0.0
      %881 = vst.msk [vmem:[#allocation3 + $0x1a0] sm:$0xff] %vm828, 0.0
      %882 = vst.msk [vmem:[#allocation3 + $0x1a8] sm:$0xff] %vm828, 0.0
      %883 = vst.msk [vmem:[#allocation3 + $0x1b0] sm:$0xff] %vm828, 0.0
      %884 = vst.msk [vmem:[#allocation3 + $0x1b8] sm:$0xff] %vm828, 0.0
      %885 = vst.msk [vmem:[#allocation3 + $0x1c0] sm:$0xff] %vm828, 0.0
      %886 = vst.msk [vmem:[#allocation3 + $0x1c8] sm:$0xff] %vm828, 0.0
      %887 = vst.msk [vmem:[#allocation3 + $0x1d0] sm:$0xff] %vm828, 0.0
      %888 = vst.msk [vmem:[#allocation3 + $0x1d8] sm:$0xff] %vm828, 0.0
      %889 = vst.msk [vmem:[#allocation3 + $0x1e0] sm:$0xff] %vm828, 0.0
      %890 = vst.msk [vmem:[#allocation3 + $0x1e8] sm:$0xff] %vm828, 0.0
      %891 = vst.msk [vmem:[#allocation3 + $0x1f0] sm:$0xff] %vm828, 0.0
      %892 = vst.msk [vmem:[#allocation3 + $0x1f8] sm:$0xff] %vm828, 0.0
      %893 = vst.msk [vmem:[#allocation3 + $0x200] sm:$0xff] %vm828, 0.0
      %894 = vst.msk [vmem:[#allocation3 + $0x208] sm:$0xff] %vm828, 0.0
      %895 = vst.msk [vmem:[#allocation3 + $0x210] sm:$0xff] %vm828, 0.0
      %896 = vst.msk [vmem:[#allocation3 + $0x218] sm:$0xff] %vm828, 0.0
      %897 = vst.msk [vmem:[#allocation3 + $0x220] sm:$0xff] %vm828, 0.0
      %898 = vst.msk [vmem:[#allocation3 + $0x228] sm:$0xff] %vm828, 0.0
      %899 = vst.msk [vmem:[#allocation3 + $0x230] sm:$0xff] %vm828, 0.0
      %900 = vst.msk [vmem:[#allocation3 + $0x238] sm:$0xff] %vm828, 0.0
      %901 = vst.msk [vmem:[#allocation3 + $0x240] sm:$0xff] %vm828, 0.0
      %902 = vst.msk [vmem:[#allocation3 + $0x248] sm:$0xff] %vm828, 0.0
      %903 = vst.msk [vmem:[#allocation3 + $0x250] sm:$0xff] %vm828, 0.0
      %904 = vst.msk [vmem:[#allocation3 + $0x258] sm:$0xff] %vm828, 0.0
      %905 = vst.msk [vmem:[#allocation3 + $0x260] sm:$0xff] %vm828, 0.0
      %906 = vst.msk [vmem:[#allocation3 + $0x268] sm:$0xff] %vm828, 0.0
      %907 = vst.msk [vmem:[#allocation3 + $0x270] sm:$0xff] %vm828, 0.0
      %908 = vst.msk [vmem:[#allocation3 + $0x278] sm:$0xff] %vm828, 0.0
      %909 = vst.msk [vmem:[#allocation3 + $0x280] sm:$0xff] %vm828, 0.0
      %910 = vst.msk [vmem:[#allocation3 + $0x288] sm:$0xff] %vm828, 0.0
      %911 = vst.msk [vmem:[#allocation3 + $0x290] sm:$0xff] %vm828, 0.0
      %912 = vst.msk [vmem:[#allocation3 + $0x298] sm:$0xff] %vm828, 0.0
      %913 = vst.msk [vmem:[#allocation3 + $0x2a0] sm:$0xff] %vm828, 0.0
      %914 = vst.msk [vmem:[#allocation3 + $0x2a8] sm:$0xff] %vm828, 0.0
      %915 = vst.msk [vmem:[#allocation3 + $0x2b0] sm:$0xff] %vm828, 0.0
      %916 = vst.msk [vmem:[#allocation3 + $0x2b8] sm:$0xff] %vm828, 0.0
      %917 = vst.msk [vmem:[#allocation3 + $0x2c0] sm:$0xff] %vm828, 0.0
      %918 = vst.msk [vmem:[#allocation3 + $0x2c8] sm:$0xff] %vm828, 0.0
      %919 = vst.msk [vmem:[#allocation3 + $0x2d0] sm:$0xff] %vm828, 0.0
      %920 = vst.msk [vmem:[#allocation3 + $0x2d8] sm:$0xff] %vm828, 0.0
      %921 = vst.msk [vmem:[#allocation3 + $0x2e0] sm:$0xff] %vm828, 0.0
      %922 = vst.msk [vmem:[#allocation3 + $0x2e8] sm:$0xff] %vm828, 0.0
      %923 = vst.msk [vmem:[#allocation3 + $0x2f0] sm:$0xff] %vm828, 0.0
      %924 = vst.msk [vmem:[#allocation3 + $0x2f8] sm:$0xff] %vm828, 0.0
      %957 = vrot.lane.b32.xlu0 %v796, 112
      %v958 = vpop.permute.xlu0 %957
      %959 = vrot.lane.b32.xlu0 %v797, 112
      %v960 = vpop.permute.xlu0 %959
      %961 = vrot.lane.b32.xlu0 %v798, 112
      %v962 = vpop.permute.xlu0 %961
      %963 = vrot.lane.b32.xlu0 %v799, 112
      %v964 = vpop.permute.xlu0 %963
      %965 = vrot.lane.b32.xlu0 %v800, 112
      %v966 = vpop.permute.xlu0 %965
      %967 = vrot.lane.b32.xlu0 %v801, 112
      %v968 = vpop.permute.xlu0 %967
      %969 = vrot.lane.b32.xlu0 %v802, 112
      %v970 = vpop.permute.xlu0 %969
      %971 = vrot.lane.b32.xlu0 %v803, 112
      %v972 = vpop.permute.xlu0 %971
      %973 = vrot.lane.b32.xlu0 %v804, 112
      %v974 = vpop.permute.xlu0 %973
      %975 = vrot.lane.b32.xlu0 %v805, 112
      %v976 = vpop.permute.xlu0 %975
      %977 = vrot.lane.b32.xlu0 %v806, 112
      %v978 = vpop.permute.xlu0 %977
      %979 = vrot.lane.b32.xlu0 %v807, 112
      %v980 = vpop.permute.xlu0 %979
      %981 = vrot.lane.b32.xlu0 %v808, 112
      %v982 = vpop.permute.xlu0 %981
      %983 = vrot.lane.b32.xlu0 %v809, 112
      %v984 = vpop.permute.xlu0 %983
      %985 = vrot.lane.b32.xlu0 %v810, 112
      %v986 = vpop.permute.xlu0 %985
      %987 = vrot.lane.b32.xlu0 %v811, 112
      %v988 = vpop.permute.xlu0 %987
      %989 = vrot.lane.b32.xlu0 %v812, 112
      %v990 = vpop.permute.xlu0 %989
      %991 = vrot.lane.b32.xlu0 %v813, 112
      %v992 = vpop.permute.xlu0 %991
      %993 = vrot.lane.b32.xlu0 %v814, 112
      %v994 = vpop.permute.xlu0 %993
      %995 = vrot.lane.b32.xlu0 %v815, 112
      %v996 = vpop.permute.xlu0 %995
      %997 = vrot.lane.b32.xlu0 %v816, 112
      %v998 = vpop.permute.xlu0 %997
      %999 = vrot.lane.b32.xlu0 %v817, 112
      %v1000 = vpop.permute.xlu0 %999
      %1001 = vrot.lane.b32.xlu0 %v818, 112
      %v1002 = vpop.permute.xlu0 %1001
      %1003 = vrot.lane.b32.xlu0 %v819, 112
      %v1004 = vpop.permute.xlu0 %1003
      %1005 = vrot.lane.b32.xlu0 %v820, 112
      %v1006 = vpop.permute.xlu0 %1005
      %1007 = vrot.lane.b32.xlu0 %v821, 112
      %v1008 = vpop.permute.xlu0 %1007
      %1009 = vrot.lane.b32.xlu0 %v822, 112
      %v1010 = vpop.permute.xlu0 %1009
      %1011 = vrot.lane.b32.xlu0 %v823, 112
      %v1012 = vpop.permute.xlu0 %1011
      %1013 = vrot.lane.b32.xlu0 %v824, 112
      %v1014 = vpop.permute.xlu0 %1013
      %1015 = vrot.lane.b32.xlu0 %v825, 112
      %v1016 = vpop.permute.xlu0 %1015
      %1017 = vrot.lane.b32.xlu0 %v826, 112
      %v1018 = vpop.permute.xlu0 %1017
      %1019 = vrot.lane.b32.xlu0 %v827, 112
      %v1020 = vpop.permute.xlu0 %1019
      %1053 = vst.msk [vmem:[#allocation2] sm:$0xff] %vm828, %v958
      %1054 = vst.msk [vmem:[#allocation2 + $0x8] sm:$0xff] %vm828, %v960
      %1055 = vst.msk [vmem:[#allocation2 + $0x10] sm:$0xff] %vm828, %v962
      %1056 = vst.msk [vmem:[#allocation2 + $0x18] sm:$0xff] %vm828, %v964
      %1057 = vst.msk [vmem:[#allocation2 + $0x20] sm:$0xff] %vm828, %v966
      %1058 = vst.msk [vmem:[#allocation2 + $0x28] sm:$0xff] %vm828, %v968
      %1059 = vst.msk [vmem:[#allocation2 + $0x30] sm:$0xff] %vm828, %v970
      %1060 = vst.msk [vmem:[#allocation2 + $0x38] sm:$0xff] %vm828, %v972
      %1061 = vst.msk [vmem:[#allocation2 + $0x40] sm:$0xff] %vm828, %v974
      %1062 = vst.msk [vmem:[#allocation2 + $0x48] sm:$0xff] %vm828, %v976
      %1063 = vst.msk [vmem:[#allocation2 + $0x50] sm:$0xff] %vm828, %v978
      %1064 = vst.msk [vmem:[#allocation2 + $0x58] sm:$0xff] %vm828, %v980
      %1065 = vst.msk [vmem:[#allocation2 + $0x60] sm:$0xff] %vm828, %v982
      %1066 = vst.msk [vmem:[#allocation2 + $0x68] sm:$0xff] %vm828, %v984
      %1067 = vst.msk [vmem:[#allocation2 + $0x70] sm:$0xff] %vm828, %v986
      %1068 = vst.msk [vmem:[#allocation2 + $0x78] sm:$0xff] %vm828, %v988
      %1069 = vst.msk [vmem:[#allocation2 + $0x80] sm:$0xff] %vm828, %v990
      %1070 = vst.msk [vmem:[#allocation2 + $0x88] sm:$0xff] %vm828, %v992
      %1071 = vst.msk [vmem:[#allocation2 + $0x90] sm:$0xff] %vm828, %v994
      %1072 = vst.msk [vmem:[#allocation2 + $0x98] sm:$0xff] %vm828, %v996
      %1073 = vst.msk [vmem:[#allocation2 + $0xa0] sm:$0xff] %vm828, %v998
      %1074 = vst.msk [vmem:[#allocation2 + $0xa8] sm:$0xff] %vm828, %v1000
      %1075 = vst.msk [vmem:[#allocation2 + $0xb0] sm:$0xff] %vm828, %v1002
      %1076 = vst.msk [vmem:[#allocation2 + $0xb8] sm:$0xff] %vm828, %v1004
      %1077 = vst.msk [vmem:[#allocation2 + $0xc0] sm:$0xff] %vm828, %v1006
      %1078 = vst.msk [vmem:[#allocation2 + $0xc8] sm:$0xff] %vm828, %v1008
      %1079 = vst.msk [vmem:[#allocation2 + $0xd0] sm:$0xff] %vm828, %v1010
      %1080 = vst.msk [vmem:[#allocation2 + $0xd8] sm:$0xff] %vm828, %v1012
      %1081 = vst.msk [vmem:[#allocation2 + $0xe0] sm:$0xff] %vm828, %v1014
      %1082 = vst.msk [vmem:[#allocation2 + $0xe8] sm:$0xff] %vm828, %v1016
      %1083 = vst.msk [vmem:[#allocation2 + $0xf0] sm:$0xff] %vm828, %v1018
      %1084 = vst.msk [vmem:[#allocation2 + $0xf8] sm:$0xff] %vm828, %v1020
      loop: start=0, step=1, limit=16
      $region57: #{c2f_psconv_forward.1} parent=55 // loop_pre_header
        _
      $region58: #{c2f_psconv_forward.1} parent=55 // loop_header
        %s1086 = sphi 0, %s1090
        %p1087 = scmp.ge.s32.totalorder %s1086, 16
      $region59: #{c2f_psconv_forward.1} parent=55 // loop_header_branch
        %1089 = sbr.rel (%p1087) target = $region63
      $region60: #{c2f_psconv_forward.1} parent=55 // loop_body
        %s1091 = smul.u32 %s1086, 16
        %s1092 = scalar_lea.vmem [#allocation2], %s1091
        %v1093 = vld [vmem:[%s1092] sm:$0xff]
        %v1094 = vld [vmem:[%s1092 + $0x8] sm:$0xff]
        %s1095 = smul.u32 %s1086, 32
        %s1096 = sadd.s32 %s1095, 104
        %s1097 = scalar_lea.vmem [#allocation3], %s1096
        %1098 = vst.msk [vmem:[%s1097] sm:$0xff] %vm828, %v1093
        %1099 = vst.msk [vmem:[%s1097 + $0x8] sm:$0xff] %vm828, %v1094
      $region61: #{c2f_psconv_forward.1} parent=55 // loop_footer
        %s1090 = sadd.s32 1, %s1086
      $region62: #{c2f_psconv_forward.1} parent=55 // loop_footer_branch
        %1085 = sbr.rel target = $region58
      $region63: #{c2f_psconv_forward.1} parent=55 // loop_exit
        _
      %v1100 = vld [vmem:[#allocation3 + $0x45] sm:$0xff]
      %v1101 = vld [vmem:[#allocation3 + $0x4d] sm:$0xff]
      %v1102 = vld [vmem:[#allocation3 + $0x55] sm:$0xff]
      %v1103 = vld [vmem:[#allocation3 + $0x5d] sm:$0xff]
      %v1104 = vld [vmem:[#allocation3 + $0x65] sm:$0xff]
      %v1105 = vld [vmem:[#allocation3 + $0x6d] sm:$0xff]
      %v1106 = vld [vmem:[#allocation3 + $0x75] sm:$0xff]
      %v1107 = vld [vmem:[#allocation3 + $0x7d] sm:$0xff]
      %v1108 = vld [vmem:[#allocation3 + $0x85] sm:$0xff]
      %v1109 = vld [vmem:[#allocation3 + $0x8d] sm:$0xff]
      %v1110 = vld [vmem:[#allocation3 + $0x95] sm:$0xff]
      %v1111 = vld [vmem:[#allocation3 + $0x9d] sm:$0xff]
      %v1112 = vld [vmem:[#allocation3 + $0xa5] sm:$0xff]
      %v1113 = vld [vmem:[#allocation3 + $0xad] sm:$0xff]
      %v1114 = vld [vmem:[#allocation3 + $0xb5] sm:$0xff]
      %v1115 = vld [vmem:[#allocation3 + $0xbd] sm:$0xff]
      %v1116 = vld [vmem:[#allocation3 + $0xc5] sm:$0xff]
      %v1117 = vld [vmem:[#allocation3 + $0xcd] sm:$0xff]
      %v1118 = vld [vmem:[#allocation3 + $0xd5] sm:$0xff]
      %v1119 = vld [vmem:[#allocation3 + $0xdd] sm:$0xff]
      %v1120 = vld [vmem:[#allocation3 + $0xe5] sm:$0xff]
      %v1121 = vld [vmem:[#allocation3 + $0xed] sm:$0xff]
      %v1122 = vld [vmem:[#allocation3 + $0xf5] sm:$0xff]
      %v1123 = vld [vmem:[#allocation3 + $0xfd] sm:$0xff]
      %v1124 = vld [vmem:[#allocation3 + $0x105] sm:$0xff]
      %v1125 = vld [vmem:[#allocation3 + $0x10d] sm:$0xff]
      %v1126 = vld [vmem:[#allocation3 + $0x115] sm:$0xff]
      %v1127 = vld [vmem:[#allocation3 + $0x11d] sm:$0xff]
      %v1128 = vld [vmem:[#allocation3 + $0x125] sm:$0xff]
      %v1129 = vld [vmem:[#allocation3 + $0x12d] sm:$0xff]
      %v1130 = vld [vmem:[#allocation3 + $0x135] sm:$0xff]
      %v1131 = vld [vmem:[#allocation3 + $0x13d] sm:$0xff]
      %v1132 = vld [vmem:[#allocation3 + $0x145] sm:$0xff]
      %v1133 = vld [vmem:[#allocation3 + $0x14d] sm:$0xff]
      %v1134 = vld [vmem:[#allocation3 + $0x155] sm:$0xff]
      %v1135 = vld [vmem:[#allocation3 + $0x15d] sm:$0xff]
      %v1136 = vld [vmem:[#allocation3 + $0x165] sm:$0xff]
      %v1137 = vld [vmem:[#allocation3 + $0x16d] sm:$0xff]
      %v1138 = vld [vmem:[#allocation3 + $0x175] sm:$0xff]
      %v1139 = vld [vmem:[#allocation3 + $0x17d] sm:$0xff]
      %v1140 = vld [vmem:[#allocation3 + $0x185] sm:$0xff]
      %v1141 = vld [vmem:[#allocation3 + $0x18d] sm:$0xff]
      %v1142 = vld [vmem:[#allocation3 + $0x195] sm:$0xff]
      %v1143 = vld [vmem:[#allocation3 + $0x19d] sm:$0xff]
      %v1144 = vld [vmem:[#allocation3 + $0x1a5] sm:$0xff]
      %v1145 = vld [vmem:[#allocation3 + $0x1ad] sm:$0xff]
      %v1146 = vld [vmem:[#allocation3 + $0x1b5] sm:$0xff]
      %v1147 = vld [vmem:[#allocation3 + $0x1bd] sm:$0xff]
      %v1148 = vld [vmem:[#allocation3 + $0x1c5] sm:$0xff]
      %v1149 = vld [vmem:[#allocation3 + $0x1cd] sm:$0xff]
      %v1150 = vld [vmem:[#allocation3 + $0x1d5] sm:$0xff]
      %v1151 = vld [vmem:[#allocation3 + $0x1dd] sm:$0xff]
      %v1152 = vld [vmem:[#allocation3 + $0x1e5] sm:$0xff]
      %v1153 = vld [vmem:[#allocation3 + $0x1ed] sm:$0xff]
      %v1154 = vld [vmem:[#allocation3 + $0x1f5] sm:$0xff]
      %v1155 = vld [vmem:[#allocation3 + $0x1fd] sm:$0xff]
      %v1156 = vld [vmem:[#allocation3 + $0x205] sm:$0xff]
      %v1157 = vld [vmem:[#allocation3 + $0x20d] sm:$0xff]
      %v1158 = vld [vmem:[#allocation3 + $0x215] sm:$0xff]
      %v1159 = vld [vmem:[#allocation3 + $0x21d] sm:$0xff]
      %v1160 = vld [vmem:[#allocation3 + $0x225] sm:$0xff]
      %v1161 = vld [vmem:[#allocation3 + $0x22d] sm:$0xff]
      %v1162 = vld [vmem:[#allocation3 + $0x235] sm:$0xff]
      %v1163 = vld [vmem:[#allocation3 + $0x23d] sm:$0xff]
      %v1164 = vld [vmem:[#allocation3 + $0x245] sm:$0xff]
      %v1165 = vld [vmem:[#allocation3 + $0x24d] sm:$0xff]
      %v1166 = vld [vmem:[#allocation3 + $0x255] sm:$0xff]
      %v1167 = vld [vmem:[#allocation3 + $0x25d] sm:$0xff]
      %v1168 = vld [vmem:[#allocation3 + $0x265] sm:$0xff]
      %v1169 = vld [vmem:[#allocation3 + $0x26d] sm:$0xff]
      %v1170 = vld [vmem:[#allocation3 + $0x275] sm:$0xff]
      %v1171 = vld [vmem:[#allocation3 + $0x27d] sm:$0xff]
      %v1172 = vpack.c.bf16 %v1101, %v1100
      %v1173 = vpack.c.bf16 %v1103, %v1102
      %v1174 = vpack.c.bf16 %v1105, %v1104
      %v1175 = vpack.c.bf16 %v1107, %v1106
      %v1176 = vpack.c.bf16 %v1109, %v1108
      %v1177 = vpack.c.bf16 %v1111, %v1110
      %v1178 = vpack.c.bf16 %v1113, %v1112
      %v1179 = vpack.c.bf16 %v1115, %v1114
      %v1180 = vpack.c.bf16 %v1117, %v1116
      %v1181 = vpack.c.bf16 %v1119, %v1118
      %v1182 = vpack.c.bf16 %v1121, %v1120
      %v1183 = vpack.c.bf16 %v1123, %v1122
      %v1184 = vpack.c.bf16 %v1125, %v1124
      %v1185 = vpack.c.bf16 %v1127, %v1126
      %v1186 = vpack.c.bf16 %v1129, %v1128
      %v1187 = vpack.c.bf16 %v1131, %v1130
      %v1188 = vpack.c.bf16 %v1133, %v1132
      %v1189 = vpack.c.bf16 %v1135, %v1134
      %v1190 = vpack.c.bf16 %v1137, %v1136
      %v1191 = vpack.c.bf16 %v1139, %v1138
      %v1192 = vpack.c.bf16 %v1141, %v1140
      %v1193 = vpack.c.bf16 %v1143, %v1142
      %v1194 = vpack.c.bf16 %v1145, %v1144
      %v1195 = vpack.c.bf16 %v1147, %v1146
      %v1196 = vpack.c.bf16 %v1149, %v1148
      %v1197 = vpack.c.bf16 %v1151, %v1150
      %v1198 = vpack.c.bf16 %v1153, %v1152
      %v1199 = vpack.c.bf16 %v1155, %v1154
      %v1200 = vpack.c.bf16 %v1157, %v1156
      %v1201 = vpack.c.bf16 %v1159, %v1158
      %v1202 = vpack.c.bf16 %v1161, %v1160
      %v1203 = vpack.c.bf16 %v1163, %v1162
      %v1204 = vpack.c.bf16 %v1165, %v1164
      %v1205 = vpack.c.bf16 %v1167, %v1166
      %v1206 = vpack.c.bf16 %v1169, %v1168
      %v1207 = vpack.c.bf16 %v1171, %v1170
      %v1208 = vld [vmem:[#allocation3 + $0x46] sm:$0xff]
      %v1209 = vld [vmem:[#allocation3 + $0x4e] sm:$0xff]
      %v1210 = vld [vmem:[#allocation3 + $0x56] sm:$0xff]
      %v1211 = vld [vmem:[#allocation3 + $0x5e] sm:$0xff]
      %v1212 = vld [vmem:[#allocation3 + $0x66] sm:$0xff]
      %v1213 = vld [vmem:[#allocation3 + $0x6e] sm:$0xff]
      %v1214 = vld [vmem:[#allocation3 + $0x76] sm:$0xff]
      %v1215 = vld [vmem:[#allocation3 + $0x7e] sm:$0xff]
      %v1216 = vld [vmem:[#allocation3 + $0x86] sm:$0xff]
      %v1217 = vld [vmem:[#allocation3 + $0x8e] sm:$0xff]
      %v1218 = vld [vmem:[#allocation3 + $0x96] sm:$0xff]
      %v1219 = vld [vmem:[#allocation3 + $0x9e] sm:$0xff]
      %v1220 = vld [vmem:[#allocation3 + $0xa6] sm:$0xff]
      %v1221 = vld [vmem:[#allocation3 + $0xae] sm:$0xff]
      %v1222 = vld [vmem:[#allocation3 + $0xb6] sm:$0xff]
      %v1223 = vld [vmem:[#allocation3 + $0xbe] sm:$0xff]
      %v1224 = vld [vmem:[#allocation3 + $0xc6] sm:$0xff]
      %v1225 = vld [vmem:[#allocation3 + $0xce] sm:$0xff]
      %v1226 = vld [vmem:[#allocation3 + $0xd6] sm:$0xff]
      %v1227 = vld [vmem:[#allocation3 + $0xde] sm:$0xff]
      %v1228 = vld [vmem:[#allocation3 + $0xe6] sm:$0xff]
      %v1229 = vld [vmem:[#allocation3 + $0xee] sm:$0xff]
      %v1230 = vld [vmem:[#allocation3 + $0xf6] sm:$0xff]
      %v1231 = vld [vmem:[#allocation3 + $0xfe] sm:$0xff]
      %v1232 = vld [vmem:[#allocation3 + $0x106] sm:$0xff]
      %v1233 = vld [vmem:[#allocation3 + $0x10e] sm:$0xff]
      %v1234 = vld [vmem:[#allocation3 + $0x116] sm:$0xff]
      %v1235 = vld [vmem:[#allocation3 + $0x11e] sm:$0xff]
      %v1236 = vld [vmem:[#allocation3 + $0x126] sm:$0xff]
      %v1237 = vld [vmem:[#allocation3 + $0x12e] sm:$0xff]
      %v1238 = vld [vmem:[#allocation3 + $0x136] sm:$0xff]
      %v1239 = vld [vmem:[#allocation3 + $0x13e] sm:$0xff]
      %v1240 = vld [vmem:[#allocation3 + $0x146] sm:$0xff]
      %v1241 = vld [vmem:[#allocation3 + $0x14e] sm:$0xff]
      %v1242 = vld [vmem:[#allocation3 + $0x156] sm:$0xff]
      %v1243 = vld [vmem:[#allocation3 + $0x15e] sm:$0xff]
      %v1244 = vld [vmem:[#allocation3 + $0x166] sm:$0xff]
      %v1245 = vld [vmem:[#allocation3 + $0x16e] sm:$0xff]
      %v1246 = vld [vmem:[#allocation3 + $0x176] sm:$0xff]
      %v1247 = vld [vmem:[#allocation3 + $0x17e] sm:$0xff]
      %v1248 = vld [vmem:[#allocation3 + $0x186] sm:$0xff]
      %v1249 = vld [vmem:[#allocation3 + $0x18e] sm:$0xff]
      %v1250 = vld [vmem:[#allocation3 + $0x196] sm:$0xff]
      %v1251 = vld [vmem:[#allocation3 + $0x19e] sm:$0xff]
      %v1252 = vld [vmem:[#allocation3 + $0x1a6] sm:$0xff]
      %v1253 = vld [vmem:[#allocation3 + $0x1ae] sm:$0xff]
      %v1254 = vld [vmem:[#allocation3 + $0x1b6] sm:$0xff]
      %v1255 = vld [vmem:[#allocation3 + $0x1be] sm:$0xff]
      %v1256 = vld [vmem:[#allocation3 + $0x1c6] sm:$0xff]
      %v1257 = vld [vmem:[#allocation3 + $0x1ce] sm:$0xff]
      %v1258 = vld [vmem:[#allocation3 + $0x1d6] sm:$0xff]
      %v1259 = vld [vmem:[#allocation3 + $0x1de] sm:$0xff]
      %v1260 = vld [vmem:[#allocation3 + $0x1e6] sm:$0xff]
      %v1261 = vld [vmem:[#allocation3 + $0x1ee] sm:$0xff]
      %v1262 = vld [vmem:[#allocation3 + $0x1f6] sm:$0xff]
      %v1263 = vld [vmem:[#allocation3 + $0x1fe] sm:$0xff]
      %v1264 = vld [vmem:[#allocation3 + $0x206] sm:$0xff]
      %v1265 = vld [vmem:[#allocation3 + $0x20e] sm:$0xff]
      %v1266 = vld [vmem:[#allocation3 + $0x216] sm:$0xff]
      %v1267 = vld [vmem:[#allocation3 + $0x21e] sm:$0xff]
      %v1268 = vld [vmem:[#allocation3 + $0x226] sm:$0xff]
      %v1269 = vld [vmem:[#allocation3 + $0x22e] sm:$0xff]
      %v1270 = vld [vmem:[#allocation3 + $0x236] sm:$0xff]
      %v1271 = vld [vmem:[#allocation3 + $0x23e] sm:$0xff]
      %v1272 = vld [vmem:[#allocation3 + $0x246] sm:$0xff]
      %v1273 = vld [vmem:[#allocation3 + $0x24e] sm:$0xff]
      %v1274 = vld [vmem:[#allocation3 + $0x256] sm:$0xff]
      %v1275 = vld [vmem:[#allocation3 + $0x25e] sm:$0xff]
      %v1276 = vld [vmem:[#allocation3 + $0x266] sm:$0xff]
      %v1277 = vld [vmem:[#allocation3 + $0x26e] sm:$0xff]
      %v1278 = vld [vmem:[#allocation3 + $0x276] sm:$0xff]
      %v1279 = vld [vmem:[#allocation3 + $0x27e] sm:$0xff]
      %v1280 = vpack.c.bf16 %v1209, %v1208
      %v1281 = vpack.c.bf16 %v1211, %v1210
      %v1282 = vpack.c.bf16 %v1213, %v1212
      %v1283 = vpack.c.bf16 %v1215, %v1214
      %v1284 = vpack.c.bf16 %v1217, %v1216
      %v1285 = vpack.c.bf16 %v1219, %v1218
      %v1286 = vpack.c.bf16 %v1221, %v1220
      %v1287 = vpack.c.bf16 %v1223, %v1222
      %v1288 = vpack.c.bf16 %v1225, %v1224
      %v1289 = vpack.c.bf16 %v1227, %v1226
      %v1290 = vpack.c.bf16 %v1229, %v1228
      %v1291 = vpack.c.bf16 %v1231, %v1230
      %v1292 = vpack.c.bf16 %v1233, %v1232
      %v1293 = vpack.c.bf16 %v1235, %v1234
      %v1294 = vpack.c.bf16 %v1237, %v1236
      %v1295 = vpack.c.bf16 %v1239, %v1238
      %v1296 = vpack.c.bf16 %v1241, %v1240
      %v1297 = vpack.c.bf16 %v1243, %v1242
      %v1298 = vpack.c.bf16 %v1245, %v1244
      %v1299 = vpack.c.bf16 %v1247, %v1246
      %v1300 = vpack.c.bf16 %v1249, %v1248
      %v1301 = vpack.c.bf16 %v1251, %v1250
      %v1302 = vpack.c.bf16 %v1253, %v1252
      %v1303 = vpack.c.bf16 %v1255, %v1254
      %v1304 = vpack.c.bf16 %v1257, %v1256
      %v1305 = vpack.c.bf16 %v1259, %v1258
      %v1306 = vpack.c.bf16 %v1261, %v1260
      %v1307 = vpack.c.bf16 %v1263, %v1262
      %v1308 = vpack.c.bf16 %v1265, %v1264
      %v1309 = vpack.c.bf16 %v1267, %v1266
      %v1310 = vpack.c.bf16 %v1269, %v1268
      %v1311 = vpack.c.bf16 %v1271, %v1270
      %v1312 = vpack.c.bf16 %v1273, %v1272
      %v1313 = vpack.c.bf16 %v1275, %v1274
      %v1314 = vpack.c.bf16 %v1277, %v1276
      %v1315 = vpack.c.bf16 %v1279, %v1278
      %v1316 = vld [vmem:[#allocation3 + $0x47] sm:$0xff]
      %v1317 = vld [vmem:[#allocation3 + $0x4f] sm:$0xff]
      %v1318 = vld [vmem:[#allocation3 + $0x57] sm:$0xff]
      %v1319 = vld [vmem:[#allocation3 + $0x5f] sm:$0xff]
      %v1320 = vld [vmem:[#allocation3 + $0x67] sm:$0xff]
      %v1321 = vld [vmem:[#allocation3 + $0x6f] sm:$0xff]
      %v1322 = vld [vmem:[#allocation3 + $0x77] sm:$0xff]
      %v1323 = vld [vmem:[#allocation3 + $0x7f] sm:$0xff]
      %v1324 = vld [vmem:[#allocation3 + $0x87] sm:$0xff]
      %v1325 = vld [vmem:[#allocation3 + $0x8f] sm:$0xff]
      %v1326 = vld [vmem:[#allocation3 + $0x97] sm:$0xff]
      %v1327 = vld [vmem:[#allocation3 + $0x9f] sm:$0xff]
      %v1328 = vld [vmem:[#allocation3 + $0xa7] sm:$0xff]
      %v1329 = vld [vmem:[#allocation3 + $0xaf] sm:$0xff]
      %v1330 = vld [vmem:[#allocation3 + $0xb7] sm:$0xff]
      %v1331 = vld [vmem:[#allocation3 + $0xbf] sm:$0xff]
      %v1332 = vld [vmem:[#allocation3 + $0xc7] sm:$0xff]
      %v1333 = vld [vmem:[#allocation3 + $0xcf] sm:$0xff]
      %v1334 = vld [vmem:[#allocation3 + $0xd7] sm:$0xff]
      %v1335 = vld [vmem:[#allocation3 + $0xdf] sm:$0xff]
      %v1336 = vld [vmem:[#allocation3 + $0xe7] sm:$0xff]
      %v1337 = vld [vmem:[#allocation3 + $0xef] sm:$0xff]
      %v1338 = vld [vmem:[#allocation3 + $0xf7] sm:$0xff]
      %v1339 = vld [vmem:[#allocation3 + $0xff] sm:$0xff]
      %v1340 = vld [vmem:[#allocation3 + $0x107] sm:$0xff]
      %v1341 = vld [vmem:[#allocation3 + $0x10f] sm:$0xff]
      %v1342 = vld [vmem:[#allocation3 + $0x117] sm:$0xff]
      %v1343 = vld [vmem:[#allocation3 + $0x11f] sm:$0xff]
      %v1344 = vld [vmem:[#allocation3 + $0x127] sm:$0xff]
      %v1345 = vld [vmem:[#allocation3 + $0x12f] sm:$0xff]
      %v1346 = vld [vmem:[#allocation3 + $0x137] sm:$0xff]
      %v1347 = vld [vmem:[#allocation3 + $0x13f] sm:$0xff]
      %v1348 = vld [vmem:[#allocation3 + $0x147] sm:$0xff]
      %v1349 = vld [vmem:[#allocation3 + $0x14f] sm:$0xff]
      %v1350 = vld [vmem:[#allocation3 + $0x157] sm:$0xff]
      %v1351 = vld [vmem:[#allocation3 + $0x15f] sm:$0xff]
      %v1352 = vld [vmem:[#allocation3 + $0x167] sm:$0xff]
      %v1353 = vld [vmem:[#allocation3 + $0x16f] sm:$0xff]
      %v1354 = vld [vmem:[#allocation3 + $0x177] sm:$0xff]
      %v1355 = vld [vmem:[#allocation3 + $0x17f] sm:$0xff]
      %v1356 = vld [vmem:[#allocation3 + $0x187] sm:$0xff]
      %v1357 = vld [vmem:[#allocation3 + $0x18f] sm:$0xff]
      %v1358 = vld [vmem:[#allocation3 + $0x197] sm:$0xff]
      %v1359 = vld [vmem:[#allocation3 + $0x19f] sm:$0xff]
      %v1360 = vld [vmem:[#allocation3 + $0x1a7] sm:$0xff]
      %v1361 = vld [vmem:[#allocation3 + $0x1af] sm:$0xff]
      %v1362 = vld [vmem:[#allocation3 + $0x1b7] sm:$0xff]
      %v1363 = vld [vmem:[#allocation3 + $0x1bf] sm:$0xff]
      %v1364 = vld [vmem:[#allocation3 + $0x1c7] sm:$0xff]
      %v1365 = vld [vmem:[#allocation3 + $0x1cf] sm:$0xff]
      %v1366 = vld [vmem:[#allocation3 + $0x1d7] sm:$0xff]
      %v1367 = vld [vmem:[#allocation3 + $0x1df] sm:$0xff]
      %v1368 = vld [vmem:[#allocation3 + $0x1e7] sm:$0xff]
      %v1369 = vld [vmem:[#allocation3 + $0x1ef] sm:$0xff]
      %v1370 = vld [vmem:[#allocation3 + $0x1f7] sm:$0xff]
      %v1371 = vld [vmem:[#allocation3 + $0x1ff] sm:$0xff]
      %v1372 = vld [vmem:[#allocation3 + $0x207] sm:$0xff]
      %v1373 = vld [vmem:[#allocation3 + $0x20f] sm:$0xff]
      %v1374 = vld [vmem:[#allocation3 + $0x217] sm:$0xff]
      %v1375 = vld [vmem:[#allocation3 + $0x21f] sm:$0xff]
      %v1376 = vld [vmem:[#allocation3 + $0x227] sm:$0xff]
      %v1377 = vld [vmem:[#allocation3 + $0x22f] sm:$0xff]
      %v1378 = vld [vmem:[#allocation3 + $0x237] sm:$0xff]
      %v1379 = vld [vmem:[#allocation3 + $0x23f] sm:$0xff]
      %v1380 = vld [vmem:[#allocation3 + $0x247] sm:$0xff]
      %v1381 = vld [vmem:[#allocation3 + $0x24f] sm:$0xff]
      %v1382 = vld [vmem:[#allocation3 + $0x257] sm:$0xff]
      %v1383 = vld [vmem:[#allocation3 + $0x25f] sm:$0xff]
      %v1384 = vld [vmem:[#allocation3 + $0x267] sm:$0xff]
      %v1385 = vld [vmem:[#allocation3 + $0x26f] sm:$0xff]
      %v1386 = vld [vmem:[#allocation3 + $0x277] sm:$0xff]
      %v1387 = vld [vmem:[#allocation3 + $0x27f] sm:$0xff]
      %v1388 = vpack.c.bf16 %v1317, %v1316
      %v1389 = vpack.c.bf16 %v1319, %v1318
      %v1390 = vpack.c.bf16 %v1321, %v1320
      %v1391 = vpack.c.bf16 %v1323, %v1322
      %v1392 = vpack.c.bf16 %v1325, %v1324
      %v1393 = vpack.c.bf16 %v1327, %v1326
      %v1394 = vpack.c.bf16 %v1329, %v1328
      %v1395 = vpack.c.bf16 %v1331, %v1330
      %v1396 = vpack.c.bf16 %v1333, %v1332
      %v1397 = vpack.c.bf16 %v1335, %v1334
      %v1398 = vpack.c.bf16 %v1337, %v1336
      %v1399 = vpack.c.bf16 %v1339, %v1338
      %v1400 = vpack.c.bf16 %v1341, %v1340
      %v1401 = vpack.c.bf16 %v1343, %v1342
      %v1402 = vpack.c.bf16 %v1345, %v1344
      %v1403 = vpack.c.bf16 %v1347, %v1346
      %v1404 = vpack.c.bf16 %v1349, %v1348
      %v1405 = vpack.c.bf16 %v1351, %v1350
      %v1406 = vpack.c.bf16 %v1353, %v1352
      %v1407 = vpack.c.bf16 %v1355, %v1354
      %v1408 = vpack.c.bf16 %v1357, %v1356
      %v1409 = vpack.c.bf16 %v1359, %v1358
      %v1410 = vpack.c.bf16 %v1361, %v1360
      %v1411 = vpack.c.bf16 %v1363, %v1362
      %v1412 = vpack.c.bf16 %v1365, %v1364
      %v1413 = vpack.c.bf16 %v1367, %v1366
      %v1414 = vpack.c.bf16 %v1369, %v1368
      %v1415 = vpack.c.bf16 %v1371, %v1370
      %v1416 = vpack.c.bf16 %v1373, %v1372
      %v1417 = vpack.c.bf16 %v1375, %v1374
      %v1418 = vpack.c.bf16 %v1377, %v1376
      %v1419 = vpack.c.bf16 %v1379, %v1378
      %v1420 = vpack.c.bf16 %v1381, %v1380
      %v1421 = vpack.c.bf16 %v1383, %v1382
      %v1422 = vpack.c.bf16 %v1385, %v1384
      %v1423 = vpack.c.bf16 %v1387, %v1386
      %v1424 = vld [vmem:[#allocation3 + $0x8] sm:$0xff]
      %v1425 = vld [vmem:[#allocation3 + $0x10] sm:$0xff]
      %v1426 = vld [vmem:[#allocation3 + $0x18] sm:$0xff]
      %v1427 = vld [vmem:[#allocation3 + $0x20] sm:$0xff]
      %v1428 = vld [vmem:[#allocation3 + $0x28] sm:$0xff]
      %v1429 = vld [vmem:[#allocation3 + $0x30] sm:$0xff]
      %v1430 = vld [vmem:[#allocation3 + $0x38] sm:$0xff]
      %v1431 = vld [vmem:[#allocation3 + $0x40] sm:$0xff]
      %v1432 = vld [vmem:[#allocation3 + $0x48] sm:$0xff]
      %v1433 = vld [vmem:[#allocation3 + $0x50] sm:$0xff]
      %v1434 = vld [vmem:[#allocation3 + $0x58] sm:$0xff]
      %v1435 = vld [vmem:[#allocation3 + $0x60] sm:$0xff]
      %v1436 = vld [vmem:[#allocation3 + $0x68] sm:$0xff]
      %v1437 = vld [vmem:[#allocation3 + $0x70] sm:$0xff]
      %v1438 = vld [vmem:[#allocation3 + $0x78] sm:$0xff]
      %v1439 = vld [vmem:[#allocation3 + $0x80] sm:$0xff]
      %v1440 = vld [vmem:[#allocation3 + $0x88] sm:$0xff]
      %v1441 = vld [vmem:[#allocation3 + $0x90] sm:$0xff]
      %v1442 = vld [vmem:[#allocation3 + $0x98] sm:$0xff]
      %v1443 = vld [vmem:[#allocation3 + $0xa0] sm:$0xff]
      %v1444 = vld [vmem:[#allocation3 + $0xa8] sm:$0xff]
      %v1445 = vld [vmem:[#allocation3 + $0xb0] sm:$0xff]
      %v1446 = vld [vmem:[#allocation3 + $0xb8] sm:$0xff]
      %v1447 = vld [vmem:[#allocation3 + $0xc0] sm:$0xff]
      %v1448 = vld [vmem:[#allocation3 + $0xc8] sm:$0xff]
      %v1449 = vld [vmem:[#allocation3 + $0xd0] sm:$0xff]
      %v1450 = vld [vmem:[#allocation3 + $0xd8] sm:$0xff]
      %v1451 = vld [vmem:[#allocation3 + $0xe0] sm:$0xff]
      %v1452 = vld [vmem:[#allocation3 + $0xe8] sm:$0xff]
      %v1453 = vld [vmem:[#allocation3 + $0xf0] sm:$0xff]
      %v1454 = vld [vmem:[#allocation3 + $0xf8] sm:$0xff]
      %v1455 = vld [vmem:[#allocation3 + $0x100] sm:$0xff]
      %v1456 = vld [vmem:[#allocation3 + $0x108] sm:$0xff]
      %v1457 = vld [vmem:[#allocation3 + $0x110] sm:$0xff]
      %v1458 = vld [vmem:[#allocation3 + $0x118] sm:$0xff]
      %v1459 = vld [vmem:[#allocation3 + $0x120] sm:$0xff]
      %v1460 = vld [vmem:[#allocation3 + $0x128] sm:$0xff]
      %v1461 = vld [vmem:[#allocation3 + $0x130] sm:$0xff]
      %v1462 = vld [vmem:[#allocation3 + $0x138] sm:$0xff]
      %v1463 = vld [vmem:[#allocation3 + $0x140] sm:$0xff]
      %v1464 = vld [vmem:[#allocation3 + $0x148] sm:$0xff]
      %v1465 = vld [vmem:[#allocation3 + $0x150] sm:$0xff]
      %v1466 = vld [vmem:[#allocation3 + $0x158] sm:$0xff]
      %v1467 = vld [vmem:[#allocation3 + $0x160] sm:$0xff]
      %v1468 = vld [vmem:[#allocation3 + $0x168] sm:$0xff]
      %v1469 = vld [vmem:[#allocation3 + $0x170] sm:$0xff]
      %v1470 = vld [vmem:[#allocation3 + $0x178] sm:$0xff]
      %v1471 = vld [vmem:[#allocation3 + $0x180] sm:$0xff]
      %v1472 = vld [vmem:[#allocation3 + $0x188] sm:$0xff]
      %v1473 = vld [vmem:[#allocation3 + $0x190] sm:$0xff]
      %v1474 = vld [vmem:[#allocation3 + $0x198] sm:$0xff]
      %v1475 = vld [vmem:[#allocation3 + $0x1a0] sm:$0xff]
      %v1476 = vld [vmem:[#allocation3 + $0x1a8] sm:$0xff]
      %v1477 = vld [vmem:[#allocation3 + $0x1b0] sm:$0xff]
      %v1478 = vld [vmem:[#allocation3 + $0x1b8] sm:$0xff]
      %v1479 = vld [vmem:[#allocation3 + $0x1c0] sm:$0xff]
      %v1480 = vld [vmem:[#allocation3 + $0x1c8] sm:$0xff]
      %v1481 = vld [vmem:[#allocation3 + $0x1d0] sm:$0xff]
      %v1482 = vld [vmem:[#allocation3 + $0x1d8] sm:$0xff]
      %v1483 = vld [vmem:[#allocation3 + $0x1e0] sm:$0xff]
      %v1484 = vld [vmem:[#allocation3 + $0x1e8] sm:$0xff]
      %v1485 = vld [vmem:[#allocation3 + $0x1f0] sm:$0xff]
      %v1486 = vld [vmem:[#allocation3 + $0x1f8] sm:$0xff]
      %v1487 = vld [vmem:[#allocation3 + $0x200] sm:$0xff]
      %v1488 = vld [vmem:[#allocation3 + $0x208] sm:$0xff]
      %v1489 = vld [vmem:[#allocation3 + $0x210] sm:$0xff]
      %v1490 = vld [vmem:[#allocation3 + $0x218] sm:$0xff]
      %v1491 = vld [vmem:[#allocation3 + $0x220] sm:$0xff]
      %v1492 = vld [vmem:[#allocation3 + $0x228] sm:$0xff]
      %v1493 = vld [vmem:[#allocation3 + $0x230] sm:$0xff]
      %v1494 = vld [vmem:[#allocation3 + $0x238] sm:$0xff]
      %v1495 = vld [vmem:[#allocation3 + $0x240] sm:$0xff]
      %v1496 = vpack.c.bf16 %v1425, %v1424
      %v1497 = vpack.c.bf16 %v1427, %v1426
      %v1498 = vpack.c.bf16 %v1429, %v1428
      %v1499 = vpack.c.bf16 %v1431, %v1430
      %v1500 = vpack.c.bf16 %v1433, %v1432
      %v1501 = vpack.c.bf16 %v1435, %v1434
      %v1502 = vpack.c.bf16 %v1437, %v1436
      %v1503 = vpack.c.bf16 %v1439, %v1438
      %v1504 = vpack.c.bf16 %v1441, %v1440
      %v1505 = vpack.c.bf16 %v1443, %v1442
      %v1506 = vpack.c.bf16 %v1445, %v1444
      %v1507 = vpack.c.bf16 %v1447, %v1446
      %v1508 = vpack.c.bf16 %v1449, %v1448
      %v1509 = vpack.c.bf16 %v1451, %v1450
      %v1510 = vpack.c.bf16 %v1453, %v1452
      %v1511 = vpack.c.bf16 %v1455, %v1454
      %v1512 = vpack.c.bf16 %v1457, %v1456
      %v1513 = vpack.c.bf16 %v1459, %v1458
      %v1514 = vpack.c.bf16 %v1461, %v1460
      %v1515 = vpack.c.bf16 %v1463, %v1462
      %v1516 = vpack.c.bf16 %v1465, %v1464
      %v1517 = vpack.c.bf16 %v1467, %v1466
      %v1518 = vpack.c.bf16 %v1469, %v1468
      %v1519 = vpack.c.bf16 %v1471, %v1470
      %v1520 = vpack.c.bf16 %v1473, %v1472
      %v1521 = vpack.c.bf16 %v1475, %v1474
      %v1522 = vpack.c.bf16 %v1477, %v1476
      %v1523 = vpack.c.bf16 %v1479, %v1478
      %v1524 = vpack.c.bf16 %v1481, %v1480
      %v1525 = vpack.c.bf16 %v1483, %v1482
      %v1526 = vpack.c.bf16 %v1485, %v1484
      %v1527 = vpack.c.bf16 %v1487, %v1486
      %v1528 = vpack.c.bf16 %v1489, %v1488
      %v1529 = vpack.c.bf16 %v1491, %v1490
      %v1530 = vpack.c.bf16 %v1493, %v1492
      %v1531 = vpack.c.bf16 %v1495, %v1494
      %v1532 = vld [vmem:[#allocation3 + $0x248] sm:$0xff]
      %v1533 = vld [vmem:[#allocation3 + $0x250] sm:$0xff]
      %v1534 = vld [vmem:[#allocation3 + $0x258] sm:$0xff]
      %v1535 = vld [vmem:[#allocation3 + $0x260] sm:$0xff]
      %v1536 = vpack.c.bf16 %v1533, %v1532
      %v1537 = vpack.c.bf16 %v1535, %v1534
      %v1538 = vld [vmem:[#allocation3 + $0x268] sm:$0xff]
      %v1539 = vld [vmem:[#allocation3 + $0x270] sm:$0xff]
      %v1540 = vld [vmem:[#allocation3 + $0x278] sm:$0xff]
      %v1541 = vld [vmem:[#allocation3 + $0x280] sm:$0xff]
      %v1542 = vpack.c.bf16 %v1539, %v1538
      %v1543 = vpack.c.bf16 %v1541, %v1540
      %1580 = vrot.lane.b32.xlu0 %v1280, 16
      %v1581 = vpop.permute.xlu0 %1580
      %1582 = vrot.lane.b32.xlu0 %v1281, 16
      %v1583 = vpop.permute.xlu0 %1582
      %1584 = vrot.lane.b32.xlu0 %v1282, 16
      %v1585 = vpop.permute.xlu0 %1584
      %1586 = vrot.lane.b32.xlu0 %v1283, 16
      %v1587 = vpop.permute.xlu0 %1586
      %1588 = vrot.lane.b32.xlu0 %v1284, 16
      %v1589 = vpop.permute.xlu0 %1588
      %1590 = vrot.lane.b32.xlu0 %v1285, 16
      %v1591 = vpop.permute.xlu0 %1590
      %1592 = vrot.lane.b32.xlu0 %v1286, 16
      %v1593 = vpop.permute.xlu0 %1592
      %1594 = vrot.lane.b32.xlu0 %v1287, 16
      %v1595 = vpop.permute.xlu0 %1594
      %1596 = vrot.lane.b32.xlu0 %v1288, 16
      %v1597 = vpop.permute.xlu0 %1596
      %1598 = vrot.lane.b32.xlu0 %v1289, 16
      %v1599 = vpop.permute.xlu0 %1598
      %1600 = vrot.lane.b32.xlu0 %v1290, 16
      %v1601 = vpop.permute.xlu0 %1600
      %1602 = vrot.lane.b32.xlu0 %v1291, 16
      %v1603 = vpop.permute.xlu0 %1602
      %1604 = vrot.lane.b32.xlu0 %v1292, 16
      %v1605 = vpop.permute.xlu0 %1604
      %1606 = vrot.lane.b32.xlu0 %v1293, 16
      %v1607 = vpop.permute.xlu0 %1606
      %1608 = vrot.lane.b32.xlu0 %v1294, 16
      %v1609 = vpop.permute.xlu0 %1608
      %1610 = vrot.lane.b32.xlu0 %v1295, 16
      %v1611 = vpop.permute.xlu0 %1610
      %1612 = vrot.lane.b32.xlu0 %v1296, 16
      %v1613 = vpop.permute.xlu0 %1612
      %1614 = vrot.lane.b32.xlu0 %v1297, 16
      %v1615 = vpop.permute.xlu0 %1614
      %1616 = vrot.lane.b32.xlu0 %v1298, 16
      %v1617 = vpop.permute.xlu0 %1616
      %1618 = vrot.lane.b32.xlu0 %v1299, 16
      %v1619 = vpop.permute.xlu0 %1618
      %1620 = vrot.lane.b32.xlu0 %v1300, 16
      %v1621 = vpop.permute.xlu0 %1620
      %1622 = vrot.lane.b32.xlu0 %v1301, 16
      %v1623 = vpop.permute.xlu0 %1622
      %1624 = vrot.lane.b32.xlu0 %v1302, 16
      %v1625 = vpop.permute.xlu0 %1624
      %1626 = vrot.lane.b32.xlu0 %v1303, 16
      %v1627 = vpop.permute.xlu0 %1626
      %1628 = vrot.lane.b32.xlu0 %v1304, 16
      %v1629 = vpop.permute.xlu0 %1628
      %1630 = vrot.lane.b32.xlu0 %v1305, 16
      %v1631 = vpop.permute.xlu0 %1630
      %1632 = vrot.lane.b32.xlu0 %v1306, 16
      %v1633 = vpop.permute.xlu0 %1632
      %1634 = vrot.lane.b32.xlu0 %v1307, 16
      %v1635 = vpop.permute.xlu0 %1634
      %1636 = vrot.lane.b32.xlu0 %v1308, 16
      %v1637 = vpop.permute.xlu0 %1636
      %1638 = vrot.lane.b32.xlu0 %v1309, 16
      %v1639 = vpop.permute.xlu0 %1638
      %1640 = vrot.lane.b32.xlu0 %v1310, 16
      %v1641 = vpop.permute.xlu0 %1640
      %1642 = vrot.lane.b32.xlu0 %v1311, 16
      %v1643 = vpop.permute.xlu0 %1642
      %1644 = vrot.lane.b32.xlu0 %v1312, 16
      %v1645 = vpop.permute.xlu0 %1644
      %1646 = vrot.lane.b32.xlu0 %v1313, 16
      %v1647 = vpop.permute.xlu0 %1646
      %1648 = vrot.lane.b32.xlu0 %v1314, 16
      %v1649 = vpop.permute.xlu0 %1648
      %1650 = vrot.lane.b32.xlu0 %v1315, 16
      %v1651 = vpop.permute.xlu0 %1650
      %1688 = vrot.lane.b32.xlu0 %v1388, 32
      %v1689 = vpop.permute.xlu0 %1688
      %1690 = vrot.lane.b32.xlu0 %v1389, 32
      %v1691 = vpop.permute.xlu0 %1690
      %1692 = vrot.lane.b32.xlu0 %v1390, 32
      %v1693 = vpop.permute.xlu0 %1692
      %1694 = vrot.lane.b32.xlu0 %v1391, 32
      %v1695 = vpop.permute.xlu0 %1694
      %1696 = vrot.lane.b32.xlu0 %v1392, 32
      %v1697 = vpop.permute.xlu0 %1696
      %1698 = vrot.lane.b32.xlu0 %v1393, 32
      %v1699 = vpop.permute.xlu0 %1698
      %1700 = vrot.lane.b32.xlu0 %v1394, 32
      %v1701 = vpop.permute.xlu0 %1700
      %1702 = vrot.lane.b32.xlu0 %v1395, 32
      %v1703 = vpop.permute.xlu0 %1702
      %1704 = vrot.lane.b32.xlu0 %v1396, 32
      %v1705 = vpop.permute.xlu0 %1704
      %1706 = vrot.lane.b32.xlu0 %v1397, 32
      %v1707 = vpop.permute.xlu0 %1706
      %1708 = vrot.lane.b32.xlu0 %v1398, 32
      %v1709 = vpop.permute.xlu0 %1708
      %1710 = vrot.lane.b32.xlu0 %v1399, 32
      %v1711 = vpop.permute.xlu0 %1710
      %1712 = vrot.lane.b32.xlu0 %v1400, 32
      %v1713 = vpop.permute.xlu0 %1712
      %1714 = vrot.lane.b32.xlu0 %v1401, 32
      %v1715 = vpop.permute.xlu0 %1714
      %1716 = vrot.lane.b32.xlu0 %v1402, 32
      %v1717 = vpop.permute.xlu0 %1716
      %1718 = vrot.lane.b32.xlu0 %v1403, 32
      %v1719 = vpop.permute.xlu0 %1718
      %1720 = vrot.lane.b32.xlu0 %v1404, 32
      %v1721 = vpop.permute.xlu0 %1720
      %1722 = vrot.lane.b32.xlu0 %v1405, 32
      %v1723 = vpop.permute.xlu0 %1722
      %1724 = vrot.lane.b32.xlu0 %v1406, 32
      %v1725 = vpop.permute.xlu0 %1724
      %1726 = vrot.lane.b32.xlu0 %v1407, 32
      %v1727 = vpop.permute.xlu0 %1726
      %1728 = vrot.lane.b32.xlu0 %v1408, 32
      %v1729 = vpop.permute.xlu0 %1728
      %1730 = vrot.lane.b32.xlu0 %v1409, 32
      %v1731 = vpop.permute.xlu0 %1730
      %1732 = vrot.lane.b32.xlu0 %v1410, 32
      %v1733 = vpop.permute.xlu0 %1732
      %1734 = vrot.lane.b32.xlu0 %v1411, 32
      %v1735 = vpop.permute.xlu0 %1734
      %1736 = vrot.lane.b32.xlu0 %v1412, 32
      %v1737 = vpop.permute.xlu0 %1736
      %1738 = vrot.lane.b32.xlu0 %v1413, 32
      %v1739 = vpop.permute.xlu0 %1738
      %1740 = vrot.lane.b32.xlu0 %v1414, 32
      %v1741 = vpop.permute.xlu0 %1740
      %1742 = vrot.lane.b32.xlu0 %v1415, 32
      %v1743 = vpop.permute.xlu0 %1742
      %1744 = vrot.lane.b32.xlu0 %v1416, 32
      %v1745 = vpop.permute.xlu0 %1744
      %1746 = vrot.lane.b32.xlu0 %v1417, 32
      %v1747 = vpop.permute.xlu0 %1746
      %1748 = vrot.lane.b32.xlu0 %v1418, 32
      %v1749 = vpop.permute.xlu0 %1748
      %1750 = vrot.lane.b32.xlu0 %v1419, 32
      %v1751 = vpop.permute.xlu0 %1750
      %1752 = vrot.lane.b32.xlu0 %v1420, 32
      %v1753 = vpop.permute.xlu0 %1752
      %1754 = vrot.lane.b32.xlu0 %v1421, 32
      %v1755 = vpop.permute.xlu0 %1754
      %1756 = vrot.lane.b32.xlu0 %v1422, 32
      %v1757 = vpop.permute.xlu0 %1756
      %1758 = vrot.lane.b32.xlu0 %v1423, 32
      %v1759 = vpop.permute.xlu0 %1758
      %1796 = vrot.lane.b32.xlu0 %v1496, 48
      %v1797 = vpop.permute.xlu0 %1796
      %1798 = vrot.lane.b32.xlu0 %v1497, 48
      %v1799 = vpop.permute.xlu0 %1798
      %1800 = vrot.lane.b32.xlu0 %v1498, 48
      %v1801 = vpop.permute.xlu0 %1800
      %1802 = vrot.lane.b32.xlu0 %v1499, 48
      %v1803 = vpop.permute.xlu0 %1802
      %1804 = vrot.lane.b32.xlu0 %v1500, 48
      %v1805 = vpop.permute.xlu0 %1804
      %1806 = vrot.lane.b32.xlu0 %v1501, 48
      %v1807 = vpop.permute.xlu0 %1806
      %1808 = vrot.lane.b32.xlu0 %v1502, 48
      %v1809 = vpop.permute.xlu0 %1808
      %1810 = vrot.lane.b32.xlu0 %v1503, 48
      %v1811 = vpop.permute.xlu0 %1810
      %1812 = vrot.lane.b32.xlu0 %v1504, 48
      %v1813 = vpop.permute.xlu0 %1812
      %1814 = vrot.lane.b32.xlu0 %v1505, 48
      %v1815 = vpop.permute.xlu0 %1814
      %1816 = vrot.lane.b32.xlu0 %v1506, 48
      %v1817 = vpop.permute.xlu0 %1816
      %1818 = vrot.lane.b32.xlu0 %v1507, 48
      %v1819 = vpop.permute.xlu0 %1818
      %1820 = vrot.lane.b32.xlu0 %v1508, 48
      %v1821 = vpop.permute.xlu0 %1820
      %1822 = vrot.lane.b32.xlu0 %v1509, 48
      %v1823 = vpop.permute.xlu0 %1822
      %1824 = vrot.lane.b32.xlu0 %v1510, 48
      %v1825 = vpop.permute.xlu0 %1824
      %1826 = vrot.lane.b32.xlu0 %v1511, 48
      %v1827 = vpop.permute.xlu0 %1826
      %1828 = vrot.lane.b32.xlu0 %v1512, 48
      %v1829 = vpop.permute.xlu0 %1828
      %1830 = vrot.lane.b32.xlu0 %v1513, 48
      %v1831 = vpop.permute.xlu0 %1830
      %1832 = vrot.lane.b32.xlu0 %v1514, 48
      %v1833 = vpop.permute.xlu0 %1832
      %1834 = vrot.lane.b32.xlu0 %v1515, 48
      %v1835 = vpop.permute.xlu0 %1834
      %1836 = vrot.lane.b32.xlu0 %v1516, 48
      %v1837 = vpop.permute.xlu0 %1836
      %1838 = vrot.lane.b32.xlu0 %v1517, 48
      %v1839 = vpop.permute.xlu0 %1838
      %1840 = vrot.lane.b32.xlu0 %v1518, 48
      %v1841 = vpop.permute.xlu0 %1840
      %1842 = vrot.lane.b32.xlu0 %v1519, 48
      %v1843 = vpop.permute.xlu0 %1842
      %1844 = vrot.lane.b32.xlu0 %v1520, 48
      %v1845 = vpop.permute.xlu0 %1844
      %1846 = vrot.lane.b32.xlu0 %v1521, 48
      %v1847 = vpop.permute.xlu0 %1846
      %1848 = vrot.lane.b32.xlu0 %v1522, 48
      %v1849 = vpop.permute.xlu0 %1848
      %1850 = vrot.lane.b32.xlu0 %v1523, 48
      %v1851 = vpop.permute.xlu0 %1850
      %1852 = vrot.lane.b32.xlu0 %v1524, 48
      %v1853 = vpop.permute.xlu0 %1852
      %1854 = vrot.lane.b32.xlu0 %v1525, 48
      %v1855 = vpop.permute.xlu0 %1854
      %1856 = vrot.lane.b32.xlu0 %v1526, 48
      %v1857 = vpop.permute.xlu0 %1856
      %1858 = vrot.lane.b32.xlu0 %v1527, 48
      %v1859 = vpop.permute.xlu0 %1858
      %1860 = vrot.lane.b32.xlu0 %v1528, 48
      %v1861 = vpop.permute.xlu0 %1860
      %1862 = vrot.lane.b32.xlu0 %v1529, 48
      %v1863 = vpop.permute.xlu0 %1862
      %1864 = vrot.lane.b32.xlu0 %v1530, 48
      %v1865 = vpop.permute.xlu0 %1864
      %1866 = vrot.lane.b32.xlu0 %v1531, 48
      %v1867 = vpop.permute.xlu0 %1866
      %1870 = vrot.lane.b32.xlu0 %v1498, 64
      %v1871 = vpop.permute.xlu0 %1870
      %1872 = vrot.lane.b32.xlu0 %v1499, 64
      %v1873 = vpop.permute.xlu0 %1872
      %1874 = vrot.lane.b32.xlu0 %v1500, 64
      %v1875 = vpop.permute.xlu0 %1874
      %1876 = vrot.lane.b32.xlu0 %v1501, 64
      %v1877 = vpop.permute.xlu0 %1876
      %1878 = vrot.lane.b32.xlu0 %v1502, 64
      %v1879 = vpop.permute.xlu0 %1878
      %1880 = vrot.lane.b32.xlu0 %v1503, 64
      %v1881 = vpop.permute.xlu0 %1880
      %1882 = vrot.lane.b32.xlu0 %v1504, 64
      %v1883 = vpop.permute.xlu0 %1882
      %1884 = vrot.lane.b32.xlu0 %v1505, 64
      %v1885 = vpop.permute.xlu0 %1884
      %1886 = vrot.lane.b32.xlu0 %v1506, 64
      %v1887 = vpop.permute.xlu0 %1886
      %1888 = vrot.lane.b32.xlu0 %v1507, 64
      %v1889 = vpop.permute.xlu0 %1888
      %1890 = vrot.lane.b32.xlu0 %v1508, 64
      %v1891 = vpop.permute.xlu0 %1890
      %1892 = vrot.lane.b32.xlu0 %v1509, 64
      %v1893 = vpop.permute.xlu0 %1892
      %1894 = vrot.lane.b32.xlu0 %v1510, 64
      %v1895 = vpop.permute.xlu0 %1894
      %1896 = vrot.lane.b32.xlu0 %v1511, 64
      %v1897 = vpop.permute.xlu0 %1896
      %1898 = vrot.lane.b32.xlu0 %v1512, 64
      %v1899 = vpop.permute.xlu0 %1898
      %1900 = vrot.lane.b32.xlu0 %v1513, 64
      %v1901 = vpop.permute.xlu0 %1900
      %1902 = vrot.lane.b32.xlu0 %v1514, 64
      %v1903 = vpop.permute.xlu0 %1902
      %1904 = vrot.lane.b32.xlu0 %v1515, 64
      %v1905 = vpop.permute.xlu0 %1904
      %1906 = vrot.lane.b32.xlu0 %v1516, 64
      %v1907 = vpop.permute.xlu0 %1906
      %1908 = vrot.lane.b32.xlu0 %v1517, 64
      %v1909 = vpop.permute.xlu0 %1908
      %1910 = vrot.lane.b32.xlu0 %v1518, 64
      %v1911 = vpop.permute.xlu0 %1910
      %1912 = vrot.lane.b32.xlu0 %v1519, 64
      %v1913 = vpop.permute.xlu0 %1912
      %1914 = vrot.lane.b32.xlu0 %v1520, 64
      %v1915 = vpop.permute.xlu0 %1914
      %1916 = vrot.lane.b32.xlu0 %v1521, 64
      %v1917 = vpop.permute.xlu0 %1916
      %1918 = vrot.lane.b32.xlu0 %v1522, 64
      %v1919 = vpop.permute.xlu0 %1918
      %1920 = vrot.lane.b32.xlu0 %v1523, 64
      %v1921 = vpop.permute.xlu0 %1920
      %1922 = vrot.lane.b32.xlu0 %v1524, 64
      %v1923 = vpop.permute.xlu0 %1922
      %1924 = vrot.lane.b32.xlu0 %v1525, 64
      %v1925 = vpop.permute.xlu0 %1924
      %1926 = vrot.lane.b32.xlu0 %v1526, 64
      %v1927 = vpop.permute.xlu0 %1926
      %1928 = vrot.lane.b32.xlu0 %v1527, 64
      %v1929 = vpop.permute.xlu0 %1928
      %1930 = vrot.lane.b32.xlu0 %v1528, 64
      %v1931 = vpop.permute.xlu0 %1930
      %1932 = vrot.lane.b32.xlu0 %v1529, 64
      %v1933 = vpop.permute.xlu0 %1932
      %1934 = vrot.lane.b32.xlu0 %v1530, 64
      %v1935 = vpop.permute.xlu0 %1934
      %1936 = vrot.lane.b32.xlu0 %v1531, 64
      %v1937 = vpop.permute.xlu0 %1936
      %1938 = vrot.lane.b32.xlu0 %v1536, 64
      %v1939 = vpop.permute.xlu0 %1938
      %1940 = vrot.lane.b32.xlu0 %v1537, 64
      %v1941 = vpop.permute.xlu0 %1940
      %1944 = vrot.lane.b32.xlu0 %v1500, 80
      %v1945 = vpop.permute.xlu0 %1944
      %1946 = vrot.lane.b32.xlu0 %v1501, 80
      %v1947 = vpop.permute.xlu0 %1946
      %1948 = vrot.lane.b32.xlu0 %v1502, 80
      %v1949 = vpop.permute.xlu0 %1948
      %1950 = vrot.lane.b32.xlu0 %v1503, 80
      %v1951 = vpop.permute.xlu0 %1950
      %1952 = vrot.lane.b32.xlu0 %v1504, 80
      %v1953 = vpop.permute.xlu0 %1952
      %1954 = vrot.lane.b32.xlu0 %v1505, 80
      %v1955 = vpop.permute.xlu0 %1954
      %1956 = vrot.lane.b32.xlu0 %v1506, 80
      %v1957 = vpop.permute.xlu0 %1956
      %1958 = vrot.lane.b32.xlu0 %v1507, 80
      %v1959 = vpop.permute.xlu0 %1958
      %1960 = vrot.lane.b32.xlu0 %v1508, 80
      %v1961 = vpop.permute.xlu0 %1960
      %1962 = vrot.lane.b32.xlu0 %v1509, 80
      %v1963 = vpop.permute.xlu0 %1962
      %1964 = vrot.lane.b32.xlu0 %v1510, 80
      %v1965 = vpop.permute.xlu0 %1964
      %1966 = vrot.lane.b32.xlu0 %v1511, 80
      %v1967 = vpop.permute.xlu0 %1966
      %1968 = vrot.lane.b32.xlu0 %v1512, 80
      %v1969 = vpop.permute.xlu0 %1968
      %1970 = vrot.lane.b32.xlu0 %v1513, 80
      %v1971 = vpop.permute.xlu0 %1970
      %1972 = vrot.lane.b32.xlu0 %v1514, 80
      %v1973 = vpop.permute.xlu0 %1972
      %1974 = vrot.lane.b32.xlu0 %v1515, 80
      %v1975 = vpop.permute.xlu0 %1974
      %1976 = vrot.lane.b32.xlu0 %v1516, 80
      %v1977 = vpop.permute.xlu0 %1976
      %1978 = vrot.lane.b32.xlu0 %v1517, 80
      %v1979 = vpop.permute.xlu0 %1978
      %1980 = vrot.lane.b32.xlu0 %v1518, 80
      %v1981 = vpop.permute.xlu0 %1980
      %1982 = vrot.lane.b32.xlu0 %v1519, 80
      %v1983 = vpop.permute.xlu0 %1982
      %1984 = vrot.lane.b32.xlu0 %v1520, 80
      %v1985 = vpop.permute.xlu0 %1984
      %1986 = vrot.lane.b32.xlu0 %v1521, 80
      %v1987 = vpop.permute.xlu0 %1986
      %1988 = vrot.lane.b32.xlu0 %v1522, 80
      %v1989 = vpop.permute.xlu0 %1988
      %1990 = vrot.lane.b32.xlu0 %v1523, 80
      %v1991 = vpop.permute.xlu0 %1990
      %1992 = vrot.lane.b32.xlu0 %v1524, 80
      %v1993 = vpop.permute.xlu0 %1992
      %1994 = vrot.lane.b32.xlu0 %v1525, 80
      %v1995 = vpop.permute.xlu0 %1994
      %1996 = vrot.lane.b32.xlu0 %v1526, 80
      %v1997 = vpop.permute.xlu0 %1996
      %1998 = vrot.lane.b32.xlu0 %v1527, 80
      %v1999 = vpop.permute.xlu0 %1998
      %2000 = vrot.lane.b32.xlu0 %v1528, 80
      %v2001 = vpop.permute.xlu0 %2000
      %2002 = vrot.lane.b32.xlu0 %v1529, 80
      %v2003 = vpop.permute.xlu0 %2002
      %2004 = vrot.lane.b32.xlu0 %v1530, 80
      %v2005 = vpop.permute.xlu0 %2004
      %2006 = vrot.lane.b32.xlu0 %v1531, 80
      %v2007 = vpop.permute.xlu0 %2006
      %2008 = vrot.lane.b32.xlu0 %v1536, 80
      %v2009 = vpop.permute.xlu0 %2008
      %2010 = vrot.lane.b32.xlu0 %v1537, 80
      %v2011 = vpop.permute.xlu0 %2010
      %2012 = vrot.lane.b32.xlu0 %v1542, 80
      %v2013 = vpop.permute.xlu0 %2012
      %2014 = vrot.lane.b32.xlu0 %v1543, 80
      %v2015 = vpop.permute.xlu0 %2014
      %v2018 = vsel %vm828, %v1172, %v1581
      %v2021 = vsel %vm828, %v1173, %v1583
      %v2024 = vsel %vm828, %v1174, %v1585
      %v2027 = vsel %vm828, %v1175, %v1587
      %v2030 = vsel %vm828, %v1176, %v1589
      %v2033 = vsel %vm828, %v1177, %v1591
      %v2036 = vsel %vm828, %v1178, %v1593
      %v2039 = vsel %vm828, %v1179, %v1595
      %v2042 = vsel %vm828, %v1180, %v1597
      %v2045 = vsel %vm828, %v1181, %v1599
      %v2048 = vsel %vm828, %v1182, %v1601
      %v2051 = vsel %vm828, %v1183, %v1603
      %v2054 = vsel %vm828, %v1184, %v1605
      %v2057 = vsel %vm828, %v1185, %v1607
      %v2060 = vsel %vm828, %v1186, %v1609
      %v2063 = vsel %vm828, %v1187, %v1611
      %v2066 = vsel %vm828, %v1188, %v1613
      %v2069 = vsel %vm828, %v1189, %v1615
      %v2072 = vsel %vm828, %v1190, %v1617
      %v2075 = vsel %vm828, %v1191, %v1619
      %v2078 = vsel %vm828, %v1192, %v1621
      %v2081 = vsel %vm828, %v1193, %v1623
      %v2084 = vsel %vm828, %v1194, %v1625
      %v2087 = vsel %vm828, %v1195, %v1627
      %v2090 = vsel %vm828, %v1196, %v1629
      %v2093 = vsel %vm828, %v1197, %v1631
      %v2096 = vsel %vm828, %v1198, %v1633
      %v2099 = vsel %vm828, %v1199, %v1635
      %v2102 = vsel %vm828, %v1200, %v1637
      %v2105 = vsel %vm828, %v1201, %v1639
      %v2108 = vsel %vm828, %v1202, %v1641
      %v2111 = vsel %vm828, %v1203, %v1643
      %v2114 = vsel %vm828, %v1204, %v1645
      %v2117 = vsel %vm828, %v1205, %v1647
      %v2120 = vsel %vm828, %v1206, %v1649
      %v2123 = vsel %vm828, %v1207, %v1651
      %vm2124 = vcmask 261120
      %v2126 = vsel %vm2124, %v2018, %v1689
      %v2128 = vsel %vm2124, %v2021, %v1691
      %v2130 = vsel %vm2124, %v2024, %v1693
      %v2132 = vsel %vm2124, %v2027, %v1695
      %v2134 = vsel %vm2124, %v2030, %v1697
      %v2136 = vsel %vm2124, %v2033, %v1699
      %v2138 = vsel %vm2124, %v2036, %v1701
      %v2140 = vsel %vm2124, %v2039, %v1703
      %v2142 = vsel %vm2124, %v2042, %v1705
      %v2144 = vsel %vm2124, %v2045, %v1707
      %v2146 = vsel %vm2124, %v2048, %v1709
      %v2148 = vsel %vm2124, %v2051, %v1711
      %v2150 = vsel %vm2124, %v2054, %v1713
      %v2152 = vsel %vm2124, %v2057, %v1715
      %v2154 = vsel %vm2124, %v2060, %v1717
      %v2156 = vsel %vm2124, %v2063, %v1719
      %v2158 = vsel %vm2124, %v2066, %v1721
      %v2160 = vsel %vm2124, %v2069, %v1723
      %v2162 = vsel %vm2124, %v2072, %v1725
      %v2164 = vsel %vm2124, %v2075, %v1727
      %v2166 = vsel %vm2124, %v2078, %v1729
      %v2168 = vsel %vm2124, %v2081, %v1731
      %v2170 = vsel %vm2124, %v2084, %v1733
      %v2172 = vsel %vm2124, %v2087, %v1735
      %v2174 = vsel %vm2124, %v2090, %v1737
      %v2176 = vsel %vm2124, %v2093, %v1739
      %v2178 = vsel %vm2124, %v2096, %v1741
      %v2180 = vsel %vm2124, %v2099, %v1743
      %v2182 = vsel %vm2124, %v2102, %v1745
      %v2184 = vsel %vm2124, %v2105, %v1747
      %v2186 = vsel %vm2124, %v2108, %v1749
      %v2188 = vsel %vm2124, %v2111, %v1751
      %v2190 = vsel %vm2124, %v2114, %v1753
      %v2192 = vsel %vm2124, %v2117, %v1755
      %v2194 = vsel %vm2124, %v2120, %v1757
      %v2196 = vsel %vm2124, %v2123, %v1759
      %vm2197 = vcmask 392192
      %v2199 = vsel %vm2197, %v2126, %v1797
      %v2201 = vsel %vm2197, %v2128, %v1799
      %v2203 = vsel %vm2197, %v2130, %v1801
      %v2205 = vsel %vm2197, %v2132, %v1803
      %v2207 = vsel %vm2197, %v2134, %v1805
      %v2209 = vsel %vm2197, %v2136, %v1807
      %v2211 = vsel %vm2197, %v2138, %v1809
      %v2213 = vsel %vm2197, %v2140, %v1811
      %v2215 = vsel %vm2197, %v2142, %v1813
      %v2217 = vsel %vm2197, %v2144, %v1815
      %v2219 = vsel %vm2197, %v2146, %v1817
      %v2221 = vsel %vm2197, %v2148, %v1819
      %v2223 = vsel %vm2197, %v2150, %v1821
      %v2225 = vsel %vm2197, %v2152, %v1823
      %v2227 = vsel %vm2197, %v2154, %v1825
      %v2229 = vsel %vm2197, %v2156, %v1827
      %v2231 = vsel %vm2197, %v2158, %v1829
      %v2233 = vsel %vm2197, %v2160, %v1831
      %v2235 = vsel %vm2197, %v2162, %v1833
      %v2237 = vsel %vm2197, %v2164, %v1835
      %v2239 = vsel %vm2197, %v2166, %v1837
      %v2241 = vsel %vm2197, %v2168, %v1839
      %v2243 = vsel %vm2197, %v2170, %v1841
      %v2245 = vsel %vm2197, %v2172, %v1843
      %v2247 = vsel %vm2197, %v2174, %v1845
      %v2249 = vsel %vm2197, %v2176, %v1847
      %v2251 = vsel %vm2197, %v2178, %v1849
      %v2253 = vsel %vm2197, %v2180, %v1851
      %v2255 = vsel %vm2197, %v2182, %v1853
      %v2257 = vsel %vm2197, %v2184, %v1855
      %v2259 = vsel %vm2197, %v2186, %v1857
      %v2261 = vsel %vm2197, %v2188, %v1859
      %v2263 = vsel %vm2197, %v2190, %v1861
      %v2265 = vsel %vm2197, %v2192, %v1863
      %v2267 = vsel %vm2197, %v2194, %v1865
      %v2269 = vsel %vm2197, %v2196, %v1867
      %vm2270 = vcmask 523264
      %v2272 = vsel %vm2270, %v2199, %v1871
      %v2274 = vsel %vm2270, %v2201, %v1873
      %v2276 = vsel %vm2270, %v2203, %v1875
      %v2278 = vsel %vm2270, %v2205, %v1877
      %v2280 = vsel %vm2270, %v2207, %v1879
      %v2282 = vsel %vm2270, %v2209, %v1881
      %v2284 = vsel %vm2270, %v2211, %v1883
      %v2286 = vsel %vm2270, %v2213, %v1885
      %v2288 = vsel %vm2270, %v2215, %v1887
      %v2290 = vsel %vm2270, %v2217, %v1889
      %v2292 = vsel %vm2270, %v2219, %v1891
      %v2294 = vsel %vm2270, %v2221, %v1893
      %v2296 = vsel %vm2270, %v2223, %v1895
      %v2298 = vsel %vm2270, %v2225, %v1897
      %v2300 = vsel %vm2270, %v2227, %v1899
      %v2302 = vsel %vm2270, %v2229, %v1901
      %v2304 = vsel %vm2270, %v2231, %v1903
      %v2306 = vsel %vm2270, %v2233, %v1905
      %v2308 = vsel %vm2270, %v2235, %v1907
      %v2310 = vsel %vm2270, %v2237, %v1909
      %v2312 = vsel %vm2270, %v2239, %v1911
      %v2314 = vsel %vm2270, %v2241, %v1913
      %v2316 = vsel %vm2270, %v2243, %v1915
      %v2318 = vsel %vm2270, %v2245, %v1917
      %v2320 = vsel %vm2270, %v2247, %v1919
      %v2322 = vsel %vm2270, %v2249, %v1921
      %v2324 = vsel %vm2270, %v2251, %v1923
      %v2326 = vsel %vm2270, %v2253, %v1925
      %v2328 = vsel %vm2270, %v2255, %v1927
      %v2330 = vsel %vm2270, %v2257, %v1929
      %v2332 = vsel %vm2270, %v2259, %v1931
      %v2334 = vsel %vm2270, %v2261, %v1933
      %v2336 = vsel %vm2270, %v2263, %v1935
      %v2338 = vsel %vm2270, %v2265, %v1937
      %v2340 = vsel %vm2270, %v2267, %v1939
      %v2342 = vsel %vm2270, %v2269, %v1941
      %vm2343 = vcmask 654336
      %v2345 = vsel %vm2343, %v2272, %v1945
      %v2347 = vsel %vm2343, %v2274, %v1947
      %v2349 = vsel %vm2343, %v2276, %v1949
      %v2351 = vsel %vm2343, %v2278, %v1951
      %v2353 = vsel %vm2343, %v2280, %v1953
      %v2355 = vsel %vm2343, %v2282, %v1955
      %v2357 = vsel %vm2343, %v2284, %v1957
      %v2359 = vsel %vm2343, %v2286, %v1959
      %v2361 = vsel %vm2343, %v2288, %v1961
      %v2363 = vsel %vm2343, %v2290, %v1963
      %v2365 = vsel %vm2343, %v2292, %v1965
      %v2367 = vsel %vm2343, %v2294, %v1967
      %v2369 = vsel %vm2343, %v2296, %v1969
      %v2371 = vsel %vm2343, %v2298, %v1971
      %v2373 = vsel %vm2343, %v2300, %v1973
      %v2375 = vsel %vm2343, %v2302, %v1975
      %v2377 = vsel %vm2343, %v2304, %v1977
      %v2379 = vsel %vm2343, %v2306, %v1979
      %v2381 = vsel %vm2343, %v2308, %v1981
      %v2383 = vsel %vm2343, %v2310, %v1983
      %v2385 = vsel %vm2343, %v2312, %v1985
      %v2387 = vsel %vm2343, %v2314, %v1987
      %v2389 = vsel %vm2343, %v2316, %v1989
      %v2391 = vsel %vm2343, %v2318, %v1991
      %v2393 = vsel %vm2343, %v2320, %v1993
      %v2395 = vsel %vm2343, %v2322, %v1995
      %v2397 = vsel %vm2343, %v2324, %v1997
      %v2399 = vsel %vm2343, %v2326, %v1999
      %v2401 = vsel %vm2343, %v2328, %v2001
      %v2403 = vsel %vm2343, %v2330, %v2003
      %v2405 = vsel %vm2343, %v2332, %v2005
      %v2407 = vsel %vm2343, %v2334, %v2007
      %v2409 = vsel %vm2343, %v2336, %v2009
      %v2411 = vsel %vm2343, %v2338, %v2011
      %v2413 = vsel %vm2343, %v2340, %v2013
      %v2415 = vsel %vm2343, %v2342, %v2015
      %v2416 = vld [vmem:[#allocation3 + $0x288] sm:$0xff]
      %v2417 = vld [vmem:[#allocation3 + $0x290] sm:$0xff]
      %v2418 = vld [vmem:[#allocation3 + $0x298] sm:$0xff]
      %v2419 = vld [vmem:[#allocation3 + $0x2a0] sm:$0xff]
      %v2420 = vpack.c.bf16 %v2417, %v2416
      %v2421 = vpack.c.bf16 %v2419, %v2418
      %v2422 = vld [vmem:[#allocation3 + $0x69] sm:$0xff]
      %v2423 = vld [vmem:[#allocation3 + $0x71] sm:$0xff]
      %v2424 = vld [vmem:[#allocation3 + $0x79] sm:$0xff]
      %v2425 = vld [vmem:[#allocation3 + $0x81] sm:$0xff]
      %v2426 = vld [vmem:[#allocation3 + $0x89] sm:$0xff]
      %v2427 = vld [vmem:[#allocation3 + $0x91] sm:$0xff]
      %v2428 = vld [vmem:[#allocation3 + $0x99] sm:$0xff]
      %v2429 = vld [vmem:[#allocation3 + $0xa1] sm:$0xff]
      %v2430 = vld [vmem:[#allocation3 + $0xa9] sm:$0xff]
      %v2431 = vld [vmem:[#allocation3 + $0xb1] sm:$0xff]
      %v2432 = vld [vmem:[#allocation3 + $0xb9] sm:$0xff]
      %v2433 = vld [vmem:[#allocation3 + $0xc1] sm:$0xff]
      %v2434 = vld [vmem:[#allocation3 + $0xc9] sm:$0xff]
      %v2435 = vld [vmem:[#allocation3 + $0xd1] sm:$0xff]
      %v2436 = vld [vmem:[#allocation3 + $0xd9] sm:$0xff]
      %v2437 = vld [vmem:[#allocation3 + $0xe1] sm:$0xff]
      %v2438 = vld [vmem:[#allocation3 + $0xe9] sm:$0xff]
      %v2439 = vld [vmem:[#allocation3 + $0xf1] sm:$0xff]
      %v2440 = vld [vmem:[#allocation3 + $0xf9] sm:$0xff]
      %v2441 = vld [vmem:[#allocation3 + $0x101] sm:$0xff]
      %v2442 = vld [vmem:[#allocation3 + $0x109] sm:$0xff]
      %v2443 = vld [vmem:[#allocation3 + $0x111] sm:$0xff]
      %v2444 = vld [vmem:[#allocation3 + $0x119] sm:$0xff]
      %v2445 = vld [vmem:[#allocation3 + $0x121] sm:$0xff]
      %v2446 = vld [vmem:[#allocation3 + $0x129] sm:$0xff]
      %v2447 = vld [vmem:[#allocation3 + $0x131] sm:$0xff]
      %v2448 = vld [vmem:[#allocation3 + $0x139] sm:$0xff]
      %v2449 = vld [vmem:[#allocation3 + $0x141] sm:$0xff]
      %v2450 = vld [vmem:[#allocation3 + $0x149] sm:$0xff]
      %v2451 = vld [vmem:[#allocation3 + $0x151] sm:$0xff]
      %v2452 = vld [vmem:[#allocation3 + $0x159] sm:$0xff]
      %v2453 = vld [vmem:[#allocation3 + $0x161] sm:$0xff]
      %v2454 = vld [vmem:[#allocation3 + $0x169] sm:$0xff]
      %v2455 = vld [vmem:[#allocation3 + $0x171] sm:$0xff]
      %v2456 = vld [vmem:[#allocation3 + $0x179] sm:$0xff]
      %v2457 = vld [vmem:[#allocation3 + $0x181] sm:$0xff]
      %v2458 = vld [vmem:[#allocation3 + $0x189] sm:$0xff]
      %v2459 = vld [vmem:[#allocation3 + $0x191] sm:$0xff]
      %v2460 = vld [vmem:[#allocation3 + $0x199] sm:$0xff]
      %v2461 = vld [vmem:[#allocation3 + $0x1a1] sm:$0xff]
      %v2462 = vld [vmem:[#allocation3 + $0x1a9] sm:$0xff]
      %v2463 = vld [vmem:[#allocation3 + $0x1b1] sm:$0xff]
      %v2464 = vld [vmem:[#allocation3 + $0x1b9] sm:$0xff]
      %v2465 = vld [vmem:[#allocation3 + $0x1c1] sm:$0xff]
      %v2466 = vld [vmem:[#allocation3 + $0x1c9] sm:$0xff]
      %v2467 = vld [vmem:[#allocation3 + $0x1d1] sm:$0xff]
      %v2468 = vld [vmem:[#allocation3 + $0x1d9] sm:$0xff]
      %v2469 = vld [vmem:[#allocation3 + $0x1e1] sm:$0xff]
      %v2470 = vld [vmem:[#allocation3 + $0x1e9] sm:$0xff]
      %v2471 = vld [vmem:[#allocation3 + $0x1f1] sm:$0xff]
      %v2472 = vld [vmem:[#allocation3 + $0x1f9] sm:$0xff]
      %v2473 = vld [vmem:[#allocation3 + $0x201] sm:$0xff]
      %v2474 = vld [vmem:[#allocation3 + $0x209] sm:$0xff]
      %v2475 = vld [vmem:[#allocation3 + $0x211] sm:$0xff]
      %v2476 = vld [vmem:[#allocation3 + $0x219] sm:$0xff]
      %v2477 = vld [vmem:[#allocation3 + $0x221] sm:$0xff]
      %v2478 = vld [vmem:[#allocation3 + $0x229] sm:$0xff]
      %v2479 = vld [vmem:[#allocation3 + $0x231] sm:$0xff]
      %v2480 = vld [vmem:[#allocation3 + $0x239] sm:$0xff]
      %v2481 = vld [vmem:[#allocation3 + $0x241] sm:$0xff]
      %v2482 = vld [vmem:[#allocation3 + $0x249] sm:$0xff]
      %v2483 = vld [vmem:[#allocation3 + $0x251] sm:$0xff]
      %v2484 = vld [vmem:[#allocation3 + $0x259] sm:$0xff]
      %v2485 = vld [vmem:[#allocation3 + $0x261] sm:$0xff]
      %v2486 = vld [vmem:[#allocation3 + $0x269] sm:$0xff]
      %v2487 = vld [vmem:[#allocation3 + $0x271] sm:$0xff]
      %v2488 = vld [vmem:[#allocation3 + $0x279] sm:$0xff]
      %v2489 = vld [vmem:[#allocation3 + $0x281] sm:$0xff]
      %v2490 = vld [vmem:[#allocation3 + $0x289] sm:$0xff]
      %v2491 = vld [vmem:[#allocation3 + $0x291] sm:$0xff]
      %v2492 = vld [vmem:[#allocation3 + $0x299] sm:$0xff]
      %v2493 = vld [vmem:[#allocation3 + $0x2a1] sm:$0xff]
      %v2494 = vpack.c.bf16 %v2423, %v2422
      %v2495 = vpack.c.bf16 %v2425, %v2424
      %v2496 = vpack.c.bf16 %v2427, %v2426
      %v2497 = vpack.c.bf16 %v2429, %v2428
      %v2498 = vpack.c.bf16 %v2431, %v2430
      %v2499 = vpack.c.bf16 %v2433, %v2432
      %v2500 = vpack.c.bf16 %v2435, %v2434
      %v2501 = vpack.c.bf16 %v2437, %v2436
      %v2502 = vpack.c.bf16 %v2439, %v2438
      %v2503 = vpack.c.bf16 %v2441, %v2440
      %v2504 = vpack.c.bf16 %v2443, %v2442
      %v2505 = vpack.c.bf16 %v2445, %v2444
      %v2506 = vpack.c.bf16 %v2447, %v2446
      %v2507 = vpack.c.bf16 %v2449, %v2448
      %v2508 = vpack.c.bf16 %v2451, %v2450
      %v2509 = vpack.c.bf16 %v2453, %v2452
      %v2510 = vpack.c.bf16 %v2455, %v2454
      %v2511 = vpack.c.bf16 %v2457, %v2456
      %v2512 = vpack.c.bf16 %v2459, %v2458
      %v2513 = vpack.c.bf16 %v2461, %v2460
      %v2514 = vpack.c.bf16 %v2463, %v2462
      %v2515 = vpack.c.bf16 %v2465, %v2464
      %v2516 = vpack.c.bf16 %v2467, %v2466
      %v2517 = vpack.c.bf16 %v2469, %v2468
      %v2518 = vpack.c.bf16 %v2471, %v2470
      %v2519 = vpack.c.bf16 %v2473, %v2472
      %v2520 = vpack.c.bf16 %v2475, %v2474
      %v2521 = vpack.c.bf16 %v2477, %v2476
      %v2522 = vpack.c.bf16 %v2479, %v2478
      %v2523 = vpack.c.bf16 %v2481, %v2480
      %v2524 = vpack.c.bf16 %v2483, %v2482
      %v2525 = vpack.c.bf16 %v2485, %v2484
      %v2526 = vpack.c.bf16 %v2487, %v2486
      %v2527 = vpack.c.bf16 %v2489, %v2488
      %v2528 = vpack.c.bf16 %v2491, %v2490
      %v2529 = vpack.c.bf16 %v2493, %v2492
      %v2530 = vld [vmem:[#allocation3 + $0x6a] sm:$0xff]
      %v2531 = vld [vmem:[#allocation3 + $0x72] sm:$0xff]
      %v2532 = vld [vmem:[#allocation3 + $0x7a] sm:$0xff]
      %v2533 = vld [vmem:[#allocation3 + $0x82] sm:$0xff]
      %v2534 = vld [vmem:[#allocation3 + $0x8a] sm:$0xff]
      %v2535 = vld [vmem:[#allocation3 + $0x92] sm:$0xff]
      %v2536 = vld [vmem:[#allocation3 + $0x9a] sm:$0xff]
      %v2537 = vld [vmem:[#allocation3 + $0xa2] sm:$0xff]
      %v2538 = vld [vmem:[#allocation3 + $0xaa] sm:$0xff]
      %v2539 = vld [vmem:[#allocation3 + $0xb2] sm:$0xff]
      %v2540 = vld [vmem:[#allocation3 + $0xba] sm:$0xff]
      %v2541 = vld [vmem:[#allocation3 + $0xc2] sm:$0xff]
      %v2542 = vld [vmem:[#allocation3 + $0xca] sm:$0xff]
      %v2543 = vld [vmem:[#allocation3 + $0xd2] sm:$0xff]
      %v2544 = vld [vmem:[#allocation3 + $0xda] sm:$0xff]
      %v2545 = vld [vmem:[#allocation3 + $0xe2] sm:$0xff]
      %v2546 = vld [vmem:[#allocation3 + $0xea] sm:$0xff]
      %v2547 = vld [vmem:[#allocation3 + $0xf2] sm:$0xff]
      %v2548 = vld [vmem:[#allocation3 + $0xfa] sm:$0xff]
      %v2549 = vld [vmem:[#allocation3 + $0x102] sm:$0xff]
      %v2550 = vld [vmem:[#allocation3 + $0x10a] sm:$0xff]
      %v2551 = vld [vmem:[#allocation3 + $0x112] sm:$0xff]
      %v2552 = vld [vmem:[#allocation3 + $0x11a] sm:$0xff]
      %v2553 = vld [vmem:[#allocation3 + $0x122] sm:$0xff]
      %v2554 = vld [vmem:[#allocation3 + $0x12a] sm:$0xff]
      %v2555 = vld [vmem:[#allocation3 + $0x132] sm:$0xff]
      %v2556 = vld [vmem:[#allocation3 + $0x13a] sm:$0xff]
      %v2557 = vld [vmem:[#allocation3 + $0x142] sm:$0xff]
      %v2558 = vld [vmem:[#allocation3 + $0x14a] sm:$0xff]
      %v2559 = vld [vmem:[#allocation3 + $0x152] sm:$0xff]
      %v2560 = vld [vmem:[#allocation3 + $0x15a] sm:$0xff]
      %v2561 = vld [vmem:[#allocation3 + $0x162] sm:$0xff]
      %v2562 = vld [vmem:[#allocation3 + $0x16a] sm:$0xff]
      %v2563 = vld [vmem:[#allocation3 + $0x172] sm:$0xff]
      %v2564 = vld [vmem:[#allocation3 + $0x17a] sm:$0xff]
      %v2565 = vld [vmem:[#allocation3 + $0x182] sm:$0xff]
      %v2566 = vld [vmem:[#allocation3 + $0x18a] sm:$0xff]
      %v2567 = vld [vmem:[#allocation3 + $0x192] sm:$0xff]
      %v2568 = vld [vmem:[#allocation3 + $0x19a] sm:$0xff]
      %v2569 = vld [vmem:[#allocation3 + $0x1a2] sm:$0xff]
      %v2570 = vld [vmem:[#allocation3 + $0x1aa] sm:$0xff]
      %v2571 = vld [vmem:[#allocation3 + $0x1b2] sm:$0xff]
      %v2572 = vld [vmem:[#allocation3 + $0x1ba] sm:$0xff]
      %v2573 = vld [vmem:[#allocation3 + $0x1c2] sm:$0xff]
      %v2574 = vld [vmem:[#allocation3 + $0x1ca] sm:$0xff]
      %v2575 = vld [vmem:[#allocation3 + $0x1d2] sm:$0xff]
      %v2576 = vld [vmem:[#allocation3 + $0x1da] sm:$0xff]
      %v2577 = vld [vmem:[#allocation3 + $0x1e2] sm:$0xff]
      %v2578 = vld [vmem:[#allocation3 + $0x1ea] sm:$0xff]
      %v2579 = vld [vmem:[#allocation3 + $0x1f2] sm:$0xff]
      %v2580 = vld [vmem:[#allocation3 + $0x1fa] sm:$0xff]
      %v2581 = vld [vmem:[#allocation3 + $0x202] sm:$0xff]
      %v2582 = vld [vmem:[#allocation3 + $0x20a] sm:$0xff]
      %v2583 = vld [vmem:[#allocation3 + $0x212] sm:$0xff]
      %v2584 = vld [vmem:[#allocation3 + $0x21a] sm:$0xff]
      %v2585 = vld [vmem:[#allocation3 + $0x222] sm:$0xff]
      %v2586 = vld [vmem:[#allocation3 + $0x22a] sm:$0xff]
      %v2587 = vld [vmem:[#allocation3 + $0x232] sm:$0xff]
      %v2588 = vld [vmem:[#allocation3 + $0x23a] sm:$0xff]
      %v2589 = vld [vmem:[#allocation3 + $0x242] sm:$0xff]
      %v2590 = vld [vmem:[#allocation3 + $0x24a] sm:$0xff]
      %v2591 = vld [vmem:[#allocation3 + $0x252] sm:$0xff]
      %v2592 = vld [vmem:[#allocation3 + $0x25a] sm:$0xff]
      %v2593 = vld [vmem:[#allocation3 + $0x262] sm:$0xff]
      %v2594 = vld [vmem:[#allocation3 + $0x26a] sm:$0xff]
      %v2595 = vld [vmem:[#allocation3 + $0x272] sm:$0xff]
      %v2596 = vld [vmem:[#allocation3 + $0x27a] sm:$0xff]
      %v2597 = vld [vmem:[#allocation3 + $0x282] sm:$0xff]
      %v2598 = vld [vmem:[#allocation3 + $0x28a] sm:$0xff]
      %v2599 = vld [vmem:[#allocation3 + $0x292] sm:$0xff]
      %v2600 = vld [vmem:[#allocation3 + $0x29a] sm:$0xff]
      %v2601 = vld [vmem:[#allocation3 + $0x2a2] sm:$0xff]
      %v2602 = vpack.c.bf16 %v2531, %v2530
      %v2603 = vpack.c.bf16 %v2533, %v2532
      %v2604 = vpack.c.bf16 %v2535, %v2534
      %v2605 = vpack.c.bf16 %v2537, %v2536
      %v2606 = vpack.c.bf16 %v2539, %v2538
      %v2607 = vpack.c.bf16 %v2541, %v2540
      %v2608 = vpack.c.bf16 %v2543, %v2542
      %v2609 = vpack.c.bf16 %v2545, %v2544
      %v2610 = vpack.c.bf16 %v2547, %v2546
      %v2611 = vpack.c.bf16 %v2549, %v2548
      %v2612 = vpack.c.bf16 %v2551, %v2550
      %v2613 = vpack.c.bf16 %v2553, %v2552
      %v2614 = vpack.c.bf16 %v2555, %v2554
      %v2615 = vpack.c.bf16 %v2557, %v2556
      %v2616 = vpack.c.bf16 %v2559, %v2558
      %v2617 = vpack.c.bf16 %v2561, %v2560
      %v2618 = vpack.c.bf16 %v2563, %v2562
      %v2619 = vpack.c.bf16 %v2565, %v2564
      %v2620 = vpack.c.bf16 %v2567, %v2566
      %v2621 = vpack.c.bf16 %v2569, %v2568
      %v2622 = vpack.c.bf16 %v2571, %v2570
      %v2623 = vpack.c.bf16 %v2573, %v2572
      %v2624 = vpack.c.bf16 %v2575, %v2574
      %v2625 = vpack.c.bf16 %v2577, %v2576
      %v2626 = vpack.c.bf16 %v2579, %v2578
      %v2627 = vpack.c.bf16 %v2581, %v2580
      %v2628 = vpack.c.bf16 %v2583, %v2582
      %v2629 = vpack.c.bf16 %v2585, %v2584
      %v2630 = vpack.c.bf16 %v2587, %v2586
      %v2631 = vpack.c.bf16 %v2589, %v2588
      %v2632 = vpack.c.bf16 %v2591, %v2590
      %v2633 = vpack.c.bf16 %v2593, %v2592
      %v2634 = vpack.c.bf16 %v2595, %v2594
      %v2635 = vpack.c.bf16 %v2597, %v2596
      %v2636 = vpack.c.bf16 %v2599, %v2598
      %v2637 = vpack.c.bf16 %v2601, %v2600
      %v2638 = vld [vmem:[#allocation3 + $0x287] sm:$0xff]
      %v2639 = vld [vmem:[#allocation3 + $0x28f] sm:$0xff]
      %v2640 = vld [vmem:[#allocation3 + $0x297] sm:$0xff]
      %v2641 = vld [vmem:[#allocation3 + $0x29f] sm:$0xff]
      %v2642 = vpack.c.bf16 %v2639, %v2638
      %v2643 = vpack.c.bf16 %v2641, %v2640
      %v2644 = vld [vmem:[#allocation3 + $0x2a7] sm:$0xff]
      %v2645 = vld [vmem:[#allocation3 + $0x2af] sm:$0xff]
      %v2646 = vld [vmem:[#allocation3 + $0x2b7] sm:$0xff]
      %v2647 = vld [vmem:[#allocation3 + $0x2bf] sm:$0xff]
      %v2648 = vpack.c.bf16 %v2645, %v2644
      %v2649 = vpack.c.bf16 %v2647, %v2646
      %v2650 = vld [vmem:[#allocation3 + $0x2c7] sm:$0xff]
      %v2651 = vld [vmem:[#allocation3 + $0x2cf] sm:$0xff]
      %v2652 = vld [vmem:[#allocation3 + $0x2d7] sm:$0xff]
      %v2653 = vld [vmem:[#allocation3 + $0x2df] sm:$0xff]
      %v2654 = vpack.c.bf16 %v2651, %v2650
      %v2655 = vpack.c.bf16 %v2653, %v2652
      %2692 = vrot.lane.b32.xlu0 %v2494, 16
      %v2693 = vpop.permute.xlu0 %2692
      %2694 = vrot.lane.b32.xlu0 %v2495, 16
      %v2695 = vpop.permute.xlu0 %2694
      %2696 = vrot.lane.b32.xlu0 %v2496, 16
      %v2697 = vpop.permute.xlu0 %2696
      %2698 = vrot.lane.b32.xlu0 %v2497, 16
      %v2699 = vpop.permute.xlu0 %2698
      %2700 = vrot.lane.b32.xlu0 %v2498, 16
      %v2701 = vpop.permute.xlu0 %2700
      %2702 = vrot.lane.b32.xlu0 %v2499, 16
      %v2703 = vpop.permute.xlu0 %2702
      %2704 = vrot.lane.b32.xlu0 %v2500, 16
      %v2705 = vpop.permute.xlu0 %2704
      %2706 = vrot.lane.b32.xlu0 %v2501, 16
      %v2707 = vpop.permute.xlu0 %2706
      %2708 = vrot.lane.b32.xlu0 %v2502, 16
      %v2709 = vpop.permute.xlu0 %2708
      %2710 = vrot.lane.b32.xlu0 %v2503, 16
      %v2711 = vpop.permute.xlu0 %2710
      %2712 = vrot.lane.b32.xlu0 %v2504, 16
      %v2713 = vpop.permute.xlu0 %2712
      %2714 = vrot.lane.b32.xlu0 %v2505, 16
      %v2715 = vpop.permute.xlu0 %2714
      %2716 = vrot.lane.b32.xlu0 %v2506, 16
      %v2717 = vpop.permute.xlu0 %2716
      %2718 = vrot.lane.b32.xlu0 %v2507, 16
      %v2719 = vpop.permute.xlu0 %2718
      %2720 = vrot.lane.b32.xlu0 %v2508, 16
      %v2721 = vpop.permute.xlu0 %2720
      %2722 = vrot.lane.b32.xlu0 %v2509, 16
      %v2723 = vpop.permute.xlu0 %2722
      %2724 = vrot.lane.b32.xlu0 %v2510, 16
      %v2725 = vpop.permute.xlu0 %2724
      %2726 = vrot.lane.b32.xlu0 %v2511, 16
      %v2727 = vpop.permute.xlu0 %2726
      %2728 = vrot.lane.b32.xlu0 %v2512, 16
      %v2729 = vpop.permute.xlu0 %2728
      %2730 = vrot.lane.b32.xlu0 %v2513, 16
      %v2731 = vpop.permute.xlu0 %2730
      %2732 = vrot.lane.b32.xlu0 %v2514, 16
      %v2733 = vpop.permute.xlu0 %2732
      %2734 = vrot.lane.b32.xlu0 %v2515, 16
      %v2735 = vpop.permute.xlu0 %2734
      %2736 = vrot.lane.b32.xlu0 %v2516, 16
      %v2737 = vpop.permute.xlu0 %2736
      %2738 = vrot.lane.b32.xlu0 %v2517, 16
      %v2739 = vpop.permute.xlu0 %2738
      %2740 = vrot.lane.b32.xlu0 %v2518, 16
      %v2741 = vpop.permute.xlu0 %2740
      %2742 = vrot.lane.b32.xlu0 %v2519, 16
      %v2743 = vpop.permute.xlu0 %2742
      %2744 = vrot.lane.b32.xlu0 %v2520, 16
      %v2745 = vpop.permute.xlu0 %2744
      %2746 = vrot.lane.b32.xlu0 %v2521, 16
      %v2747 = vpop.permute.xlu0 %2746
      %2748 = vrot.lane.b32.xlu0 %v2522, 16
      %v2749 = vpop.permute.xlu0 %2748
      %2750 = vrot.lane.b32.xlu0 %v2523, 16
      %v2751 = vpop.permute.xlu0 %2750
      %2752 = vrot.lane.b32.xlu0 %v2524, 16
      %v2753 = vpop.permute.xlu0 %2752
      %2754 = vrot.lane.b32.xlu0 %v2525, 16
      %v2755 = vpop.permute.xlu0 %2754
      %2756 = vrot.lane.b32.xlu0 %v2526, 16
      %v2757 = vpop.permute.xlu0 %2756
      %2758 = vrot.lane.b32.xlu0 %v2527, 16
      %v2759 = vpop.permute.xlu0 %2758
      %2760 = vrot.lane.b32.xlu0 %v2528, 16
      %v2761 = vpop.permute.xlu0 %2760
      %2762 = vrot.lane.b32.xlu0 %v2529, 16
      %v2763 = vpop.permute.xlu0 %2762
      %2800 = vrot.lane.b32.xlu0 %v2602, 32
      %v2801 = vpop.permute.xlu0 %2800
      %2802 = vrot.lane.b32.xlu0 %v2603, 32
      %v2803 = vpop.permute.xlu0 %2802
      %2804 = vrot.lane.b32.xlu0 %v2604, 32
      %v2805 = vpop.permute.xlu0 %2804
      %2806 = vrot.lane.b32.xlu0 %v2605, 32
      %v2807 = vpop.permute.xlu0 %2806
      %2808 = vrot.lane.b32.xlu0 %v2606, 32
      %v2809 = vpop.permute.xlu0 %2808
      %2810 = vrot.lane.b32.xlu0 %v2607, 32
      %v2811 = vpop.permute.xlu0 %2810
      %2812 = vrot.lane.b32.xlu0 %v2608, 32
      %v2813 = vpop.permute.xlu0 %2812
      %2814 = vrot.lane.b32.xlu0 %v2609, 32
      %v2815 = vpop.permute.xlu0 %2814
      %2816 = vrot.lane.b32.xlu0 %v2610, 32
      %v2817 = vpop.permute.xlu0 %2816
      %2818 = vrot.lane.b32.xlu0 %v2611, 32
      %v2819 = vpop.permute.xlu0 %2818
      %2820 = vrot.lane.b32.xlu0 %v2612, 32
      %v2821 = vpop.permute.xlu0 %2820
      %2822 = vrot.lane.b32.xlu0 %v2613, 32
      %v2823 = vpop.permute.xlu0 %2822
      %2824 = vrot.lane.b32.xlu0 %v2614, 32
      %v2825 = vpop.permute.xlu0 %2824
      %2826 = vrot.lane.b32.xlu0 %v2615, 32
      %v2827 = vpop.permute.xlu0 %2826
      %2828 = vrot.lane.b32.xlu0 %v2616, 32
      %v2829 = vpop.permute.xlu0 %2828
      %2830 = vrot.lane.b32.xlu0 %v2617, 32
      %v2831 = vpop.permute.xlu0 %2830
      %2832 = vrot.lane.b32.xlu0 %v2618, 32
      %v2833 = vpop.permute.xlu0 %2832
      %2834 = vrot.lane.b32.xlu0 %v2619, 32
      %v2835 = vpop.permute.xlu0 %2834
      %2836 = vrot.lane.b32.xlu0 %v2620, 32
      %v2837 = vpop.permute.xlu0 %2836
      %2838 = vrot.lane.b32.xlu0 %v2621, 32
      %v2839 = vpop.permute.xlu0 %2838
      %2840 = vrot.lane.b32.xlu0 %v2622, 32
      %v2841 = vpop.permute.xlu0 %2840
      %2842 = vrot.lane.b32.xlu0 %v2623, 32
      %v2843 = vpop.permute.xlu0 %2842
      %2844 = vrot.lane.b32.xlu0 %v2624, 32
      %v2845 = vpop.permute.xlu0 %2844
      %2846 = vrot.lane.b32.xlu0 %v2625, 32
      %v2847 = vpop.permute.xlu0 %2846
      %2848 = vrot.lane.b32.xlu0 %v2626, 32
      %v2849 = vpop.permute.xlu0 %2848
      %2850 = vrot.lane.b32.xlu0 %v2627, 32
      %v2851 = vpop.permute.xlu0 %2850
      %2852 = vrot.lane.b32.xlu0 %v2628, 32
      %v2853 = vpop.permute.xlu0 %2852
      %2854 = vrot.lane.b32.xlu0 %v2629, 32
      %v2855 = vpop.permute.xlu0 %2854
      %2856 = vrot.lane.b32.xlu0 %v2630, 32
      %v2857 = vpop.permute.xlu0 %2856
      %2858 = vrot.lane.b32.xlu0 %v2631, 32
      %v2859 = vpop.permute.xlu0 %2858
      %2860 = vrot.lane.b32.xlu0 %v2632, 32
      %v2861 = vpop.permute.xlu0 %2860
      %2862 = vrot.lane.b32.xlu0 %v2633, 32
      %v2863 = vpop.permute.xlu0 %2862
      %2864 = vrot.lane.b32.xlu0 %v2634, 32
      %v2865 = vpop.permute.xlu0 %2864
      %2866 = vrot.lane.b32.xlu0 %v2635, 32
      %v2867 = vpop.permute.xlu0 %2866
      %2868 = vrot.lane.b32.xlu0 %v2636, 32
      %v2869 = vpop.permute.xlu0 %2868
      %2870 = vrot.lane.b32.xlu0 %v2637, 32
      %v2871 = vpop.permute.xlu0 %2870
      %2874 = vrot.lane.b32.xlu0 %v1390, 48
      %v2875 = vpop.permute.xlu0 %2874
      %2876 = vrot.lane.b32.xlu0 %v1391, 48
      %v2877 = vpop.permute.xlu0 %2876
      %2878 = vrot.lane.b32.xlu0 %v1392, 48
      %v2879 = vpop.permute.xlu0 %2878
      %2880 = vrot.lane.b32.xlu0 %v1393, 48
      %v2881 = vpop.permute.xlu0 %2880
      %2882 = vrot.lane.b32.xlu0 %v1394, 48
      %v2883 = vpop.permute.xlu0 %2882
      %2884 = vrot.lane.b32.xlu0 %v1395, 48
      %v2885 = vpop.permute.xlu0 %2884
      %2886 = vrot.lane.b32.xlu0 %v1396, 48
      %v2887 = vpop.permute.xlu0 %2886
      %2888 = vrot.lane.b32.xlu0 %v1397, 48
      %v2889 = vpop.permute.xlu0 %2888
      %2890 = vrot.lane.b32.xlu0 %v1398, 48
      %v2891 = vpop.permute.xlu0 %2890
      %2892 = vrot.lane.b32.xlu0 %v1399, 48
      %v2893 = vpop.permute.xlu0 %2892
      %2894 = vrot.lane.b32.xlu0 %v1400, 48
      %v2895 = vpop.permute.xlu0 %2894
      %2896 = vrot.lane.b32.xlu0 %v1401, 48
      %v2897 = vpop.permute.xlu0 %2896
      %2898 = vrot.lane.b32.xlu0 %v1402, 48
      %v2899 = vpop.permute.xlu0 %2898
      %2900 = vrot.lane.b32.xlu0 %v1403, 48
      %v2901 = vpop.permute.xlu0 %2900
      %2902 = vrot.lane.b32.xlu0 %v1404, 48
      %v2903 = vpop.permute.xlu0 %2902
      %2904 = vrot.lane.b32.xlu0 %v1405, 48
      %v2905 = vpop.permute.xlu0 %2904
      %2906 = vrot.lane.b32.xlu0 %v1406, 48
      %v2907 = vpop.permute.xlu0 %2906
      %2908 = vrot.lane.b32.xlu0 %v1407, 48
      %v2909 = vpop.permute.xlu0 %2908
      %2910 = vrot.lane.b32.xlu0 %v1408, 48
      %v2911 = vpop.permute.xlu0 %2910
      %2912 = vrot.lane.b32.xlu0 %v1409, 48
      %v2913 = vpop.permute.xlu0 %2912
      %2914 = vrot.lane.b32.xlu0 %v1410, 48
      %v2915 = vpop.permute.xlu0 %2914
      %2916 = vrot.lane.b32.xlu0 %v1411, 48
      %v2917 = vpop.permute.xlu0 %2916
      %2918 = vrot.lane.b32.xlu0 %v1412, 48
      %v2919 = vpop.permute.xlu0 %2918
      %2920 = vrot.lane.b32.xlu0 %v1413, 48
      %v2921 = vpop.permute.xlu0 %2920
      %2922 = vrot.lane.b32.xlu0 %v1414, 48
      %v2923 = vpop.permute.xlu0 %2922
      %2924 = vrot.lane.b32.xlu0 %v1415, 48
      %v2925 = vpop.permute.xlu0 %2924
      %2926 = vrot.lane.b32.xlu0 %v1416, 48
      %v2927 = vpop.permute.xlu0 %2926
      %2928 = vrot.lane.b32.xlu0 %v1417, 48
      %v2929 = vpop.permute.xlu0 %2928
      %2930 = vrot.lane.b32.xlu0 %v1418, 48
      %v2931 = vpop.permute.xlu0 %2930
      %2932 = vrot.lane.b32.xlu0 %v1419, 48
      %v2933 = vpop.permute.xlu0 %2932
      %2934 = vrot.lane.b32.xlu0 %v1420, 48
      %v2935 = vpop.permute.xlu0 %2934
      %2936 = vrot.lane.b32.xlu0 %v1421, 48
      %v2937 = vpop.permute.xlu0 %2936
      %2938 = vrot.lane.b32.xlu0 %v1422, 48
      %v2939 = vpop.permute.xlu0 %2938
      %2940 = vrot.lane.b32.xlu0 %v1423, 48
      %v2941 = vpop.permute.xlu0 %2940
      %2942 = vrot.lane.b32.xlu0 %v2642, 48
      %v2943 = vpop.permute.xlu0 %2942
      %2944 = vrot.lane.b32.xlu0 %v2643, 48
      %v2945 = vpop.permute.xlu0 %2944
      %2948 = vrot.lane.b32.xlu0 %v1392, 64
      %v2949 = vpop.permute.xlu0 %2948
      %2950 = vrot.lane.b32.xlu0 %v1393, 64
      %v2951 = vpop.permute.xlu0 %2950
      %2952 = vrot.lane.b32.xlu0 %v1394, 64
      %v2953 = vpop.permute.xlu0 %2952
      %2954 = vrot.lane.b32.xlu0 %v1395, 64
      %v2955 = vpop.permute.xlu0 %2954
      %2956 = vrot.lane.b32.xlu0 %v1396, 64
      %v2957 = vpop.permute.xlu0 %2956
      %2958 = vrot.lane.b32.xlu0 %v1397, 64
      %v2959 = vpop.permute.xlu0 %2958
      %2960 = vrot.lane.b32.xlu0 %v1398, 64
      %v2961 = vpop.permute.xlu0 %2960
      %2962 = vrot.lane.b32.xlu0 %v1399, 64
      %v2963 = vpop.permute.xlu0 %2962
      %2964 = vrot.lane.b32.xlu0 %v1400, 64
      %v2965 = vpop.permute.xlu0 %2964
      %2966 = vrot.lane.b32.xlu0 %v1401, 64
      %v2967 = vpop.permute.xlu0 %2966
      %2968 = vrot.lane.b32.xlu0 %v1402, 64
      %v2969 = vpop.permute.xlu0 %2968
      %2970 = vrot.lane.b32.xlu0 %v1403, 64
      %v2971 = vpop.permute.xlu0 %2970
      %2972 = vrot.lane.b32.xlu0 %v1404, 64
      %v2973 = vpop.permute.xlu0 %2972
      %2974 = vrot.lane.b32.xlu0 %v1405, 64
      %v2975 = vpop.permute.xlu0 %2974
      %2976 = vrot.lane.b32.xlu0 %v1406, 64
      %v2977 = vpop.permute.xlu0 %2976
      %2978 = vrot.lane.b32.xlu0 %v1407, 64
      %v2979 = vpop.permute.xlu0 %2978
      %2980 = vrot.lane.b32.xlu0 %v1408, 64
      %v2981 = vpop.permute.xlu0 %2980
      %2982 = vrot.lane.b32.xlu0 %v1409, 64
      %v2983 = vpop.permute.xlu0 %2982
      %2984 = vrot.lane.b32.xlu0 %v1410, 64
      %v2985 = vpop.permute.xlu0 %2984
      %2986 = vrot.lane.b32.xlu0 %v1411, 64
      %v2987 = vpop.permute.xlu0 %2986
      %2988 = vrot.lane.b32.xlu0 %v1412, 64
      %v2989 = vpop.permute.xlu0 %2988
      %2990 = vrot.lane.b32.xlu0 %v1413, 64
      %v2991 = vpop.permute.xlu0 %2990
      %2992 = vrot.lane.b32.xlu0 %v1414, 64
      %v2993 = vpop.permute.xlu0 %2992
      %2994 = vrot.lane.b32.xlu0 %v1415, 64
      %v2995 = vpop.permute.xlu0 %2994
      %2996 = vrot.lane.b32.xlu0 %v1416, 64
      %v2997 = vpop.permute.xlu0 %2996
      %2998 = vrot.lane.b32.xlu0 %v1417, 64
      %v2999 = vpop.permute.xlu0 %2998
      %3000 = vrot.lane.b32.xlu0 %v1418, 64
      %v3001 = vpop.permute.xlu0 %3000
      %3002 = vrot.lane.b32.xlu0 %v1419, 64
      %v3003 = vpop.permute.xlu0 %3002
      %3004 = vrot.lane.b32.xlu0 %v1420, 64
      %v3005 = vpop.permute.xlu0 %3004
      %3006 = vrot.lane.b32.xlu0 %v1421, 64
      %v3007 = vpop.permute.xlu0 %3006
      %3008 = vrot.lane.b32.xlu0 %v1422, 64
      %v3009 = vpop.permute.xlu0 %3008
      %3010 = vrot.lane.b32.xlu0 %v1423, 64
      %v3011 = vpop.permute.xlu0 %3010
      %3012 = vrot.lane.b32.xlu0 %v2642, 64
      %v3013 = vpop.permute.xlu0 %3012
      %3014 = vrot.lane.b32.xlu0 %v2643, 64
      %v3015 = vpop.permute.xlu0 %3014
      %3016 = vrot.lane.b32.xlu0 %v2648, 64
      %v3017 = vpop.permute.xlu0 %3016
      %3018 = vrot.lane.b32.xlu0 %v2649, 64
      %v3019 = vpop.permute.xlu0 %3018
      %3022 = vrot.lane.b32.xlu0 %v1394, 80
      %v3023 = vpop.permute.xlu0 %3022
      %3024 = vrot.lane.b32.xlu0 %v1395, 80
      %v3025 = vpop.permute.xlu0 %3024
      %3026 = vrot.lane.b32.xlu0 %v1396, 80
      %v3027 = vpop.permute.xlu0 %3026
      %3028 = vrot.lane.b32.xlu0 %v1397, 80
      %v3029 = vpop.permute.xlu0 %3028
      %3030 = vrot.lane.b32.xlu0 %v1398, 80
      %v3031 = vpop.permute.xlu0 %3030
      %3032 = vrot.lane.b32.xlu0 %v1399, 80
      %v3033 = vpop.permute.xlu0 %3032
      %3034 = vrot.lane.b32.xlu0 %v1400, 80
      %v3035 = vpop.permute.xlu0 %3034
      %3036 = vrot.lane.b32.xlu0 %v1401, 80
      %v3037 = vpop.permute.xlu0 %3036
      %3038 = vrot.lane.b32.xlu0 %v1402, 80
      %v3039 = vpop.permute.xlu0 %3038
      %3040 = vrot.lane.b32.xlu0 %v1403, 80
      %v3041 = vpop.permute.xlu0 %3040
      %3042 = vrot.lane.b32.xlu0 %v1404, 80
      %v3043 = vpop.permute.xlu0 %3042
      %3044 = vrot.lane.b32.xlu0 %v1405, 80
      %v3045 = vpop.permute.xlu0 %3044
      %3046 = vrot.lane.b32.xlu0 %v1406, 80
      %v3047 = vpop.permute.xlu0 %3046
      %3048 = vrot.lane.b32.xlu0 %v1407, 80
      %v3049 = vpop.permute.xlu0 %3048
      %3050 = vrot.lane.b32.xlu0 %v1408, 80
      %v3051 = vpop.permute.xlu0 %3050
      %3052 = vrot.lane.b32.xlu0 %v1409, 80
      %v3053 = vpop.permute.xlu0 %3052
      %3054 = vrot.lane.b32.xlu0 %v1410, 80
      %v3055 = vpop.permute.xlu0 %3054
      %3056 = vrot.lane.b32.xlu0 %v1411, 80
      %v3057 = vpop.permute.xlu0 %3056
      %3058 = vrot.lane.b32.xlu0 %v1412, 80
      %v3059 = vpop.permute.xlu0 %3058
      %3060 = vrot.lane.b32.xlu0 %v1413, 80
      %v3061 = vpop.permute.xlu0 %3060
      %3062 = vrot.lane.b32.xlu0 %v1414, 80
      %v3063 = vpop.permute.xlu0 %3062
      %3064 = vrot.lane.b32.xlu0 %v1415, 80
      %v3065 = vpop.permute.xlu0 %3064
      %3066 = vrot.lane.b32.xlu0 %v1416, 80
      %v3067 = vpop.permute.xlu0 %3066
      %3068 = vrot.lane.b32.xlu0 %v1417, 80
      %v3069 = vpop.permute.xlu0 %3068
      %3070 = vrot.lane.b32.xlu0 %v1418, 80
      %v3071 = vpop.permute.xlu0 %3070
      %3072 = vrot.lane.b32.xlu0 %v1419, 80
      %v3073 = vpop.permute.xlu0 %3072
      %3074 = vrot.lane.b32.xlu0 %v1420, 80
      %v3075 = vpop.permute.xlu0 %3074
      %3076 = vrot.lane.b32.xlu0 %v1421, 80
      %v3077 = vpop.permute.xlu0 %3076
      %3078 = vrot.lane.b32.xlu0 %v1422, 80
      %v3079 = vpop.permute.xlu0 %3078
      %3080 = vrot.lane.b32.xlu0 %v1423, 80
      %v3081 = vpop.permute.xlu0 %3080
      %3082 = vrot.lane.b32.xlu0 %v2642, 80
      %v3083 = vpop.permute.xlu0 %3082
      %3084 = vrot.lane.b32.xlu0 %v2643, 80
      %v3085 = vpop.permute.xlu0 %3084
      %3086 = vrot.lane.b32.xlu0 %v2648, 80
      %v3087 = vpop.permute.xlu0 %3086
      %3088 = vrot.lane.b32.xlu0 %v2649, 80
      %v3089 = vpop.permute.xlu0 %3088
      %3090 = vrot.lane.b32.xlu0 %v2654, 80
      %v3091 = vpop.permute.xlu0 %3090
      %3092 = vrot.lane.b32.xlu0 %v2655, 80
      %v3093 = vpop.permute.xlu0 %3092
      %v3096 = vsel %vm828, %v1502, %v2693
      %v3099 = vsel %vm828, %v1503, %v2695
      %v3102 = vsel %vm828, %v1504, %v2697
      %v3105 = vsel %vm828, %v1505, %v2699
      %v3108 = vsel %vm828, %v1506, %v2701
      %v3111 = vsel %vm828, %v1507, %v2703
      %v3114 = vsel %vm828, %v1508, %v2705
      %v3117 = vsel %vm828, %v1509, %v2707
      %v3120 = vsel %vm828, %v1510, %v2709
      %v3123 = vsel %vm828, %v1511, %v2711
      %v3126 = vsel %vm828, %v1512, %v2713
      %v3129 = vsel %vm828, %v1513, %v2715
      %v3132 = vsel %vm828, %v1514, %v2717
      %v3135 = vsel %vm828, %v1515, %v2719
      %v3138 = vsel %vm828, %v1516, %v2721
      %v3141 = vsel %vm828, %v1517, %v2723
      %v3144 = vsel %vm828, %v1518, %v2725
      %v3147 = vsel %vm828, %v1519, %v2727
      %v3150 = vsel %vm828, %v1520, %v2729
      %v3153 = vsel %vm828, %v1521, %v2731
      %v3156 = vsel %vm828, %v1522, %v2733
      %v3159 = vsel %vm828, %v1523, %v2735
      %v3162 = vsel %vm828, %v1524, %v2737
      %v3165 = vsel %vm828, %v1525, %v2739
      %v3168 = vsel %vm828, %v1526, %v2741
      %v3171 = vsel %vm828, %v1527, %v2743
      %v3174 = vsel %vm828, %v1528, %v2745
      %v3177 = vsel %vm828, %v1529, %v2747
      %v3180 = vsel %vm828, %v1530, %v2749
      %v3183 = vsel %vm828, %v1531, %v2751
      %v3186 = vsel %vm828, %v1536, %v2753
      %v3189 = vsel %vm828, %v1537, %v2755
      %v3192 = vsel %vm828, %v1542, %v2757
      %v3195 = vsel %vm828, %v1543, %v2759
      %v3198 = vsel %vm828, %v2420, %v2761
      %v3201 = vsel %vm828, %v2421, %v2763
      %v3203 = vsel %vm2124, %v3096, %v2801
      %v3205 = vsel %vm2124, %v3099, %v2803
      %v3207 = vsel %vm2124, %v3102, %v2805
      %v3209 = vsel %vm2124, %v3105, %v2807
      %v3211 = vsel %vm2124, %v3108, %v2809
      %v3213 = vsel %vm2124, %v3111, %v2811
      %v3215 = vsel %vm2124, %v3114, %v2813
      %v3217 = vsel %vm2124, %v3117, %v2815
      %v3219 = vsel %vm2124, %v3120, %v2817
      %v3221 = vsel %vm2124, %v3123, %v2819
      %v3223 = vsel %vm2124, %v3126, %v2821
      %v3225 = vsel %vm2124, %v3129, %v2823
      %v3227 = vsel %vm2124, %v3132, %v2825
      %v3229 = vsel %vm2124, %v3135, %v2827
      %v3231 = vsel %vm2124, %v3138, %v2829
      %v3233 = vsel %vm2124, %v3141, %v2831
      %v3235 = vsel %vm2124, %v3144, %v2833
      %v3237 = vsel %vm2124, %v3147, %v2835
      %v3239 = vsel %vm2124, %v3150, %v2837
      %v3241 = vsel %vm2124, %v3153, %v2839
      %v3243 = vsel %vm2124, %v3156, %v2841
      %v3245 = vsel %vm2124, %v3159, %v2843
      %v3247 = vsel %vm2124, %v3162, %v2845
      %v3249 = vsel %vm2124, %v3165, %v2847
      %v3251 = vsel %vm2124, %v3168, %v2849
      %v3253 = vsel %vm2124, %v3171, %v2851
      %v3255 = vsel %vm2124, %v3174, %v2853
      %v3257 = vsel %vm2124, %v3177, %v2855
      %v3259 = vsel %vm2124, %v3180, %v2857
      %v3261 = vsel %vm2124, %v3183, %v2859
      %v3263 = vsel %vm2124, %v3186, %v2861
      %v3265 = vsel %vm2124, %v3189, %v2863
      %v3267 = vsel %vm2124, %v3192, %v2865
      %v3269 = vsel %vm2124, %v3195, %v2867
      %v3271 = vsel %vm2124, %v3198, %v2869
      %v3273 = vsel %vm2124, %v3201, %v2871
      %v3275 = vsel %vm2197, %v3203, %v2875
      %v3277 = vsel %vm2197, %v3205, %v2877
      %v3279 = vsel %vm2197, %v3207, %v2879
      %v3281 = vsel %vm2197, %v3209, %v2881
      %v3283 = vsel %vm2197, %v3211, %v2883
      %v3285 = vsel %vm2197, %v3213, %v2885
      %v3287 = vsel %vm2197, %v3215, %v2887
      %v3289 = vsel %vm2197, %v3217, %v2889
      %v3291 = vsel %vm2197, %v3219, %v2891
      %v3293 = vsel %vm2197, %v3221, %v2893
      %v3295 = vsel %vm2197, %v3223, %v2895
      %v3297 = vsel %vm2197, %v3225, %v2897
      %v3299 = vsel %vm2197, %v3227, %v2899
      %v3301 = vsel %vm2197, %v3229, %v2901
      %v3303 = vsel %vm2197, %v3231, %v2903
      %v3305 = vsel %vm2197, %v3233, %v2905
      %v3307 = vsel %vm2197, %v3235, %v2907
      %v3309 = vsel %vm2197, %v3237, %v2909
      %v3311 = vsel %vm2197, %v3239, %v2911
      %v3313 = vsel %vm2197, %v3241, %v2913
      %v3315 = vsel %vm2197, %v3243, %v2915
      %v3317 = vsel %vm2197, %v3245, %v2917
      %v3319 = vsel %vm2197, %v3247, %v2919
      %v3321 = vsel %vm2197, %v3249, %v2921
      %v3323 = vsel %vm2197, %v3251, %v2923
      %v3325 = vsel %vm2197, %v3253, %v2925
      %v3327 = vsel %vm2197, %v3255, %v2927
      %v3329 = vsel %vm2197, %v3257, %v2929
      %v3331 = vsel %vm2197, %v3259, %v2931
      %v3333 = vsel %vm2197, %v3261, %v2933
      %v3335 = vsel %vm2197, %v3263, %v2935
      %v3337 = vsel %vm2197, %v3265, %v2937
      %v3339 = vsel %vm2197, %v3267, %v2939
      %v3341 = vsel %vm2197, %v3269, %v2941
      %v3343 = vsel %vm2197, %v3271, %v2943
      %v3345 = vsel %vm2197, %v3273, %v2945
      %v3347 = vsel %vm2270, %v3275, %v2949
      %v3349 = vsel %vm2270, %v3277, %v2951
      %v3351 = vsel %vm2270, %v3279, %v2953
      %v3353 = vsel %vm2270, %v3281, %v2955
      %v3355 = vsel %vm2270, %v3283, %v2957
      %v3357 = vsel %vm2270, %v3285, %v2959
      %v3359 = vsel %vm2270, %v3287, %v2961
      %v3361 = vsel %vm2270, %v3289, %v2963
      %v3363 = vsel %vm2270, %v3291, %v2965
      %v3365 = vsel %vm2270, %v3293, %v2967
      %v3367 = vsel %vm2270, %v3295, %v2969
      %v3369 = vsel %vm2270, %v3297, %v2971
      %v3371 = vsel %vm2270, %v3299, %v2973
      %v3373 = vsel %vm2270, %v3301, %v2975
      %v3375 = vsel %vm2270, %v3303, %v2977
      %v3377 = vsel %vm2270, %v3305, %v2979
      %v3379 = vsel %vm2270, %v3307, %v2981
      %v3381 = vsel %vm2270, %v3309, %v2983
      %v3383 = vsel %vm2270, %v3311, %v2985
      %v3385 = vsel %vm2270, %v3313, %v2987
      %v3387 = vsel %vm2270, %v3315, %v2989
      %v3389 = vsel %vm2270, %v3317, %v2991
      %v3391 = vsel %vm2270, %v3319, %v2993
      %v3393 = vsel %vm2270, %v3321, %v2995
      %v3395 = vsel %vm2270, %v3323, %v2997
      %v3397 = vsel %vm2270, %v3325, %v2999
      %v3399 = vsel %vm2270, %v3327, %v3001
      %v3401 = vsel %vm2270, %v3329, %v3003
      %v3403 = vsel %vm2270, %v3331, %v3005
      %v3405 = vsel %vm2270, %v3333, %v3007
      %v3407 = vsel %vm2270, %v3335, %v3009
      %v3409 = vsel %vm2270, %v3337, %v3011
      %v3411 = vsel %vm2270, %v3339, %v3013
      %v3413 = vsel %vm2270, %v3341, %v3015
      %v3415 = vsel %vm2270, %v3343, %v3017
      %v3417 = vsel %vm2270, %v3345, %v3019
      %v3419 = vsel %vm2343, %v3347, %v3023
      %v3421 = vsel %vm2343, %v3349, %v3025
      %v3423 = vsel %vm2343, %v3351, %v3027
      %v3425 = vsel %vm2343, %v3353, %v3029
      %v3427 = vsel %vm2343, %v3355, %v3031
      %v3429 = vsel %vm2343, %v3357, %v3033
      %v3431 = vsel %vm2343, %v3359, %v3035
      %v3433 = vsel %vm2343, %v3361, %v3037
      %v3435 = vsel %vm2343, %v3363, %v3039
      %v3437 = vsel %vm2343, %v3365, %v3041
      %v3439 = vsel %vm2343, %v3367, %v3043
      %v3441 = vsel %vm2343, %v3369, %v3045
      %v3443 = vsel %vm2343, %v3371, %v3047
      %v3445 = vsel %vm2343, %v3373, %v3049
      %v3447 = vsel %vm2343, %v3375, %v3051
      %v3449 = vsel %vm2343, %v3377, %v3053
      %v3451 = vsel %vm2343, %v3379, %v3055
      %v3453 = vsel %vm2343, %v3381, %v3057
      %v3455 = vsel %vm2343, %v3383, %v3059
      %v3457 = vsel %vm2343, %v3385, %v3061
      %v3459 = vsel %vm2343, %v3387, %v3063
      %v3461 = vsel %vm2343, %v3389, %v3065
      %v3463 = vsel %vm2343, %v3391, %v3067
      %v3465 = vsel %vm2343, %v3393, %v3069
      %v3467 = vsel %vm2343, %v3395, %v3071
      %v3469 = vsel %vm2343, %v3397, %v3073
      %v3471 = vsel %vm2343, %v3399, %v3075
      %v3473 = vsel %vm2343, %v3401, %v3077
      %v3475 = vsel %vm2343, %v3403, %v3079
      %v3477 = vsel %vm2343, %v3405, %v3081
      %v3479 = vsel %vm2343, %v3407, %v3083
      %v3481 = vsel %vm2343, %v3409, %v3085
      %v3483 = vsel %vm2343, %v3411, %v3087
      %v3485 = vsel %vm2343, %v3413, %v3089
      %v3487 = vsel %vm2343, %v3415, %v3091
      %v3489 = vsel %vm2343, %v3417, %v3093
      %v3490 = vld [vmem:[%s3] sm:$0xf]
      %v3491 = vld [vmem:[%s3 + $0x4] sm:$0xf]
      %v3492 = vld [vmem:[%s3 + $0x8] sm:$0xf]
      %v3493 = vld [vmem:[%s3 + $0xc] sm:$0xf]
      %v3494 = vld [vmem:[%s3 + $0x10] sm:$0xf]
      %v3495 = vld [vmem:[%s3 + $0x14] sm:$0xf]
      %v3496 = vld [vmem:[%s3 + $0x18] sm:$0xf]
      %v3497 = vld [vmem:[%s3 + $0x1c] sm:$0xf]
      %v3498 = vld [vmem:[%s3 + $0x20] sm:$0xf]
      %v3499 = vld [vmem:[%s3 + $0x24] sm:$0xf]
      %v3500 = vld [vmem:[%s3 + $0x28] sm:$0xf]
      %v3501 = vld [vmem:[%s3 + $0x2c] sm:$0xf]
      %v3514 = vunpack.c.l.b16 %v3490
      %v3515 = vunpack.c.l.b16 %v3491
      %v3516 = vunpack.c.l.b16 %v3492
      %v3517 = vunpack.c.l.b16 %v3493
      %v3518 = vunpack.c.l.b16 %v3494
      %v3519 = vunpack.c.l.b16 %v3495
      %v3520 = vunpack.c.l.b16 %v3496
      %v3521 = vunpack.c.l.b16 %v3497
      %v3522 = vunpack.c.l.b16 %v3498
      %v3523 = vunpack.c.l.b16 %v3499
      %v3524 = vunpack.c.l.b16 %v3500
      %v3525 = vunpack.c.l.b16 %v3501
      %v3526 = vpack.c.b16 %v3515, %v3514
      %v3527 = vpack.c.b16 %v3517, %v3516
      %v3528 = vpack.c.b16 %v3519, %v3518
      %v3529 = vpack.c.b16 %v3521, %v3520
      %v3530 = vpack.c.b16 %v3523, %v3522
      %v3531 = vpack.c.b16 %v3525, %v3524
      %vm3538 = vcmask 785408
      %v3539 = vsel %vm3538, %v2345, 0
      %v3541 = vsel %vm3538, %v2347, 0
      %v3543 = vsel %vm3538, %v2349, 0
      %v3545 = vsel %vm3538, %v2351, 0
      %v3547 = vsel %vm3538, %v2353, 0
      %v3549 = vsel %vm3538, %v2355, 0
      %v3551 = vsel %vm3538, %v2357, 0
      %v3553 = vsel %vm3538, %v2359, 0
      %v3555 = vsel %vm3538, %v2361, 0
      %v3557 = vsel %vm3538, %v2363, 0
      %v3559 = vsel %vm3538, %v2365, 0
      %v3561 = vsel %vm3538, %v2367, 0
      %v3563 = vsel %vm3538, %v2369, 0
      %v3565 = vsel %vm3538, %v2371, 0
      %v3567 = vsel %vm3538, %v2373, 0
      %v3569 = vsel %vm3538, %v2375, 0
      %v3571 = vsel %vm3538, %v2377, 0
      %v3573 = vsel %vm3538, %v2379, 0
      %v3575 = vsel %vm3538, %v2381, 0
      %v3577 = vsel %vm3538, %v2383, 0
      %v3579 = vsel %vm3538, %v2385, 0
      %v3581 = vsel %vm3538, %v2387, 0
      %v3583 = vsel %vm3538, %v2389, 0
      %v3585 = vsel %vm3538, %v2391, 0
      %v3587 = vsel %vm3538, %v2393, 0
      %v3589 = vsel %vm3538, %v2395, 0
      %v3591 = vsel %vm3538, %v2397, 0
      %v3593 = vsel %vm3538, %v2399, 0
      %v3595 = vsel %vm3538, %v2401, 0
      %v3597 = vsel %vm3538, %v2403, 0
      %v3599 = vsel %vm3538, %v2405, 0
      %v3601 = vsel %vm3538, %v2407, 0
      %v3603 = vsel %vm3538, %v2409, 0
      %v3605 = vsel %vm3538, %v2411, 0
      %v3607 = vsel %vm3538, %v2413, 0
      %v3609 = vsel %vm3538, %v2415, 0
      %v3611 = vsel %vm3538, %v3419, 0
      %v3613 = vsel %vm3538, %v3421, 0
      %v3615 = vsel %vm3538, %v3423, 0
      %v3617 = vsel %vm3538, %v3425, 0
      %v3619 = vsel %vm3538, %v3427, 0
      %v3621 = vsel %vm3538, %v3429, 0
      %v3623 = vsel %vm3538, %v3431, 0
      %v3625 = vsel %vm3538, %v3433, 0
      %v3627 = vsel %vm3538, %v3435, 0
      %v3629 = vsel %vm3538, %v3437, 0
      %v3631 = vsel %vm3538, %v3439, 0
      %v3633 = vsel %vm3538, %v3441, 0
      %v3635 = vsel %vm3538, %v3443, 0
      %v3637 = vsel %vm3538, %v3445, 0
      %v3639 = vsel %vm3538, %v3447, 0
      %v3641 = vsel %vm3538, %v3449, 0
      %v3643 = vsel %vm3538, %v3451, 0
      %v3645 = vsel %vm3538, %v3453, 0
      %v3647 = vsel %vm3538, %v3455, 0
      %v3649 = vsel %vm3538, %v3457, 0
      %v3651 = vsel %vm3538, %v3459, 0
      %v3653 = vsel %vm3538, %v3461, 0
      %v3655 = vsel %vm3538, %v3463, 0
      %v3657 = vsel %vm3538, %v3465, 0
      %v3659 = vsel %vm3538, %v3467, 0
      %v3661 = vsel %vm3538, %v3469, 0
      %v3663 = vsel %vm3538, %v3471, 0
      %v3665 = vsel %vm3538, %v3473, 0
      %v3667 = vsel %vm3538, %v3475, 0
      %v3669 = vsel %vm3538, %v3477, 0
      %v3671 = vsel %vm3538, %v3479, 0
      %v3673 = vsel %vm3538, %v3481, 0
      %v3675 = vsel %vm3538, %v3483, 0
      %v3677 = vsel %vm3538, %v3485, 0
      %v3679 = vsel %vm3538, %v3487, 0
      %v3681 = vsel %vm3538, %v3489, 0
      %3683 = vmatprep.subr.bf16.mxu0 0
      %3684 = vmatpush1.bf16.msra.mxu0 %v3526
      %3685 = vmatprep.subr.bf16.mxu0 0
      %3686 = vmatpush1.bf16.msra.mxu0 %v3527
      %3687 = vmatprep.subr.bf16.mxu0 0
      %3688 = vmatpush1.bf16.msra.mxu0 %v3528
      %3689 = vmatprep.subr.bf16.mxu0 0
      %3690 = vmatpush1.bf16.msra.mxu0 %v3529
      %3691 = vmatprep.subr.bf16.mxu0 0
      %3692 = vmatpush1.bf16.msra.mxu0 %v3530
      %3693 = vmatprep.subr.bf16.mxu0 0
      %3694 = vmatpush1.bf16.msra.mxu0 %v3531
      %3695 = vmatprep.subr.bf16.mxu0 0
      %3696 = vmatpush1.bf16.msra.mxu0 0
      %3697 = vmatprep.subr.bf16.mxu0 0
      %3698 = vmatpush1.bf16.msra.mxu0 0
      %3699 = vmatprep.subr.bf16.mxu0 0
      %3700 = vmatpush1.bf16.msra.mxu0 0
      %3701 = vmatprep.subr.bf16.mxu0 0
      %3702 = vmatpush1.bf16.msra.mxu0 0
      %3703 = vmatprep.subr.bf16.mxu0 0
      %3704 = vmatpush1.bf16.msra.mxu0 0
      %3705 = vmatprep.subr.bf16.mxu0 0
      %3706 = vmatpush1.bf16.msra.mxu0 0
      %3707 = vmatprep.subr.bf16.mxu0 0
      %3708 = vmatpush1.bf16.msra.mxu0 0
      %3709 = vmatprep.subr.bf16.mxu0 0
      %3710 = vmatpush1.bf16.msra.mxu0 0
      %3711 = vmatprep.subr.bf16.mxu0 0
      %3712 = vmatpush1.bf16.msra.mxu0 0
      %3713 = vmatprep.subr.bf16.mxu0 0
      %3714 = vmatpush1.bf16.msra.mxu0 0
      %3715 = vmatprep.mubr.bf16.mxu0 0
      %3716 = vmatmul.mubr.bf16.gmra.mrb[0].mxu0 %v3539
      %v3717 = vpop.f32.mrb[0].mxu0
      %v3718 = vadd.f32 0.0, %v3717
      %v3719 = vpop.f32.mrb[0].mxu0
      %v3720 = vpop.f32.mrb[0].mxu0
      %v3721 = vadd.f32 0.0, %v3720
      %v3722 = vpop.f32.mrb[0].mxu0
      %3723 = vmatprep.mubr.bf16.mxu0 0
      %3724 = vmatmul.mubr.bf16.gmra.mrb[0].mxu0 %v3541
      %v3725 = vpop.f32.mrb[0].mxu0
      %v3726 = vadd.f32 0.0, %v3725
      %v3727 = vpop.f32.mrb[0].mxu0
      %v3728 = vpop.f32.mrb[0].mxu0
      %v3729 = vadd.f32 0.0, %v3728
      %v3730 = vpop.f32.mrb[0].mxu0
      %3731 = vmatprep.mubr.bf16.mxu0 0
      %3732 = vmatmul.mubr.bf16.gmra.mrb[0].mxu0 %v3543
      %v3733 = vpop.f32.mrb[0].mxu0
      %v3734 = vadd.f32 0.0, %v3733
      %v3735 = vpop.f32.mrb[0].mxu0
      %v3736 = vpop.f32.mrb[0].mxu0
      %v3737 = vadd.f32 0.0, %v3736
      %v3738 = vpop.f32.mrb[0].mxu0
      %3739 = vmatprep.mubr.bf16.mxu0 0
      %3740 = vmatmul.mubr.bf16.gmra.mrb[0].mxu0 %v3545
      %v3741 = vpop.f32.mrb[0].mxu0
      %v3742 = vadd.f32 0.0, %v3741
      %v3743 = vpop.f32.mrb[0].mxu0
      %v3744 = vpop.f32.mrb[0].mxu0
      %v3745 = vadd.f32 0.0, %v3744
      %v3746 = vpop.f32.mrb[0].mxu0
      %3747 = vmatprep.mubr.bf16.mxu0 0
      %3748 = vmatmul.mubr.bf16.gmra.mrb[0].mxu0 %v3547
      %v3749 = vpop.f32.mrb[0].mxu0
      %v3750 = vadd.f32 0.0, %v3749
      %v3751 = vpop.f32.mrb[0].mxu0
      %v3752 = vpop.f32.mrb[0].mxu0
      %v3753 = vadd.f32 0.0, %v3752
      %v3754 = vpop.f32.mrb[0].mxu0
      %3755 = vmatprep.mubr.bf16.mxu0 0
      %3756 = vmatmul.mubr.bf16.gmra.mrb[0].mxu0 %v3549
      %v3757 = vpop.f32.mrb[0].mxu0
      %v3758 = vadd.f32 0.0, %v3757
      %v3759 = vpop.f32.mrb[0].mxu0
      %v3760 = vpop.f32.mrb[0].mxu0
      %v3761 = vadd.f32 0.0, %v3760
      %v3762 = vpop.f32.mrb[0].mxu0
      %3763 = vmatprep.mubr.bf16.mxu0 0
      %3764 = vmatmul.mubr.bf16.gmra.mrb[0].mxu0 %v3551
      %v3765 = vpop.f32.mrb[0].mxu0
      %v3766 = vadd.f32 0.0, %v3765
      %v3767 = vpop.f32.mrb[0].mxu0
      %v3768 = vpop.f32.mrb[0].mxu0
      %v3769 = vadd.f32 0.0, %v3768
      %v3770 = vpop.f32.mrb[0].mxu0
      %3771 = vmatprep.mubr.bf16.mxu0 0
      %3772 = vmatmul.mubr.bf16.gmra.mrb[0].mxu0 %v3553
      %v3773 = vpop.f32.mrb[0].mxu0
      %v3774 = vadd.f32 0.0, %v3773
      %v3775 = vpop.f32.mrb[0].mxu0
      %v3776 = vpop.f32.mrb[0].mxu0
      %v3777 = vadd.f32 0.0, %v3776
      %v3778 = vpop.f32.mrb[0].mxu0
      %3779 = vmatprep.mubr.bf16.mxu0 0
      %3780 = vmatmul.mubr.bf16.gmra.mrb[0].mxu0 %v3555
      %v3781 = vpop.f32.mrb[0].mxu0
      %v3782 = vadd.f32 0.0, %v3781
      %v3783 = vpop.f32.mrb[0].mxu0
      %v3784 = vpop.f32.mrb[0].mxu0
      %v3785 = vadd.f32 0.0, %v3784
      %v3786 = vpop.f32.mrb[0].mxu0
      %3787 = vmatprep.mubr.bf16.mxu0 0
      %3788 = vmatmul.mubr.bf16.gmra.mrb[0].mxu0 %v3557
      %v3789 = vpop.f32.mrb[0].mxu0
      %v3790 = vadd.f32 0.0, %v3789
      %v3791 = vpop.f32.mrb[0].mxu0
      %v3792 = vpop.f32.mrb[0].mxu0
      %v3793 = vadd.f32 0.0, %v3792
      %v3794 = vpop.f32.mrb[0].mxu0
      %3795 = vmatprep.mubr.bf16.mxu0 0
      %3796 = vmatmul.mubr.bf16.gmra.mrb[0].mxu0 %v3559
      %v3797 = vpop.f32.mrb[0].mxu0
      %v3798 = vadd.f32 0.0, %v3797
      %v3799 = vpop.f32.mrb[0].mxu0
      %v3800 = vpop.f32.mrb[0].mxu0
      %v3801 = vadd.f32 0.0, %v3800
      %v3802 = vpop.f32.mrb[0].mxu0
      %3803 = vmatprep.mubr.bf16.mxu0 0
      %3804 = vmatmul.mubr.bf16.gmra.mrb[0].mxu0 %v3561
      %v3805 = vpop.f32.mrb[0].mxu0
      %v3806 = vadd.f32 0.0, %v3805
      %v3807 = vpop.f32.mrb[0].mxu0
      %v3808 = vpop.f32.mrb[0].mxu0
      %v3809 = vadd.f32 0.0, %v3808
      %v3810 = vpop.f32.mrb[0].mxu0
      %3811 = vmatprep.mubr.bf16.mxu0 0
      %3812 = vmatmul.mubr.bf16.gmra.mrb[0].mxu0 %v3563
      %v3813 = vpop.f32.mrb[0].mxu0
      %v3814 = vadd.f32 0.0, %v3813
      %v3815 = vpop.f32.mrb[0].mxu0
      %v3816 = vpop.f32.mrb[0].mxu0
      %v3817 = vadd.f32 0.0, %v3816
      %v3818 = vpop.f32.mrb[0].mxu0
      %3819 = vmatprep.mubr.bf16.mxu0 0
      %3820 = vmatmul.mubr.bf16.gmra.mrb[0].mxu0 %v3565
      %v3821 = vpop.f32.mrb[0].mxu0
      %v3822 = vadd.f32 0.0, %v3821
      %v3823 = vpop.f32.mrb[0].mxu0
      %v3824 = vpop.f32.mrb[0].mxu0
      %v3825 = vadd.f32 0.0, %v3824
      %v3826 = vpop.f32.mrb[0].mxu0
      %3827 = vmatprep.mubr.bf16.mxu0 0
      %3828 = vmatmul.mubr.bf16.gmra.mrb[0].mxu0 %v3567
      %v3829 = vpop.f32.mrb[0].mxu0
      %v3830 = vadd.f32 0.0, %v3829
      %v3831 = vpop.f32.mrb[0].mxu0
      %v3832 = vpop.f32.mrb[0].mxu0
      %v3833 = vadd.f32 0.0, %v3832
      %v3834 = vpop.f32.mrb[0].mxu0
      %3835 = vmatprep.mubr.bf16.mxu0 0
      %3836 = vmatmul.mubr.bf16.gmra.mrb[0].mxu0 %v3569
      %v3837 = vpop.f32.mrb[0].mxu0
      %v3838 = vadd.f32 0.0, %v3837
      %v3839 = vpop.f32.mrb[0].mxu0
      %v3840 = vpop.f32.mrb[0].mxu0
      %v3841 = vadd.f32 0.0, %v3840
      %v3842 = vpop.f32.mrb[0].mxu0
      %3843 = vmatprep.mubr.bf16.mxu0 0
      %3844 = vmatmul.mubr.bf16.gmra.mrb[0].mxu0 %v3571
      %v3845 = vpop.f32.mrb[0].mxu0
      %v3846 = vadd.f32 0.0, %v3845
      %v3847 = vpop.f32.mrb[0].mxu0
      %v3848 = vpop.f32.mrb[0].mxu0
      %v3849 = vadd.f32 0.0, %v3848
      %v3850 = vpop.f32.mrb[0].mxu0
      %3851 = vmatprep.mubr.bf16.mxu0 0
      %3852 = vmatmul.mubr.bf16.gmra.mrb[0].mxu0 %v3573
      %v3853 = vpop.f32.mrb[0].mxu0
      %v3854 = vadd.f32 0.0, %v3853
      %v3855 = vpop.f32.mrb[0].mxu0
      %v3856 = vpop.f32.mrb[0].mxu0
      %v3857 = vadd.f32 0.0, %v3856
      %v3858 = vpop.f32.mrb[0].mxu0
      %3859 = vmatprep.mubr.bf16.mxu0 0
      %3860 = vmatmul.mubr.bf16.gmra.mrb[0].mxu0 %v3575
      %v3861 = vpop.f32.mrb[0].mxu0
      %v3862 = vadd.f32 0.0, %v3861
      %v3863 = vpop.f32.mrb[0].mxu0
      %v3864 = vpop.f32.mrb[0].mxu0
      %v3865 = vadd.f32 0.0, %v3864
      %v3866 = vpop.f32.mrb[0].mxu0
      %3867 = vmatprep.mubr.bf16.mxu0 0
      %3868 = vmatmul.mubr.bf16.gmra.mrb[0].mxu0 %v3577
      %v3869 = vpop.f32.mrb[0].mxu0
      %v3870 = vadd.f32 0.0, %v3869
      %v3871 = vpop.f32.mrb[0].mxu0
      %v3872 = vpop.f32.mrb[0].mxu0
      %v3873 = vadd.f32 0.0, %v3872
      %v3874 = vpop.f32.mrb[0].mxu0
      %3875 = vmatprep.mubr.bf16.mxu0 0
      %3876 = vmatmul.mubr.bf16.gmra.mrb[0].mxu0 %v3579
      %v3877 = vpop.f32.mrb[0].mxu0
      %v3878 = vadd.f32 0.0, %v3877
      %v3879 = vpop.f32.mrb[0].mxu0
      %v3880 = vpop.f32.mrb[0].mxu0
      %v3881 = vadd.f32 0.0, %v3880
      %v3882 = vpop.f32.mrb[0].mxu0
      %3883 = vmatprep.mubr.bf16.mxu0 0
      %3884 = vmatmul.mubr.bf16.gmra.mrb[0].mxu0 %v3581
      %v3885 = vpop.f32.mrb[0].mxu0
      %v3886 = vadd.f32 0.0, %v3885
      %v3887 = vpop.f32.mrb[0].mxu0
      %v3888 = vpop.f32.mrb[0].mxu0
      %v3889 = vadd.f32 0.0, %v3888
      %v3890 = vpop.f32.mrb[0].mxu0
      %3891 = vmatprep.mubr.bf16.mxu0 0
      %3892 = vmatmul.mubr.bf16.gmra.mrb[0].mxu0 %v3583
      %v3893 = vpop.f32.mrb[0].mxu0
      %v3894 = vadd.f32 0.0, %v3893
      %v3895 = vpop.f32.mrb[0].mxu0
      %v3896 = vpop.f32.mrb[0].mxu0
      %v3897 = vadd.f32 0.0, %v3896
      %v3898 = vpop.f32.mrb[0].mxu0
      %3899 = vmatprep.mubr.bf16.mxu0 0
      %3900 = vmatmul.mubr.bf16.gmra.mrb[0].mxu0 %v3585
      %v3901 = vpop.f32.mrb[0].mxu0
      %v3902 = vadd.f32 0.0, %v3901
      %v3903 = vpop.f32.mrb[0].mxu0
      %v3904 = vpop.f32.mrb[0].mxu0
      %v3905 = vadd.f32 0.0, %v3904
      %v3906 = vpop.f32.mrb[0].mxu0
      %3907 = vmatprep.mubr.bf16.mxu0 0
      %3908 = vmatmul.mubr.bf16.gmra.mrb[0].mxu0 %v3587
      %v3909 = vpop.f32.mrb[0].mxu0
      %v3910 = vadd.f32 0.0, %v3909
      %v3911 = vpop.f32.mrb[0].mxu0
      %v3912 = vpop.f32.mrb[0].mxu0
      %v3913 = vadd.f32 0.0, %v3912
      %v3914 = vpop.f32.mrb[0].mxu0
      %3915 = vmatprep.mubr.bf16.mxu0 0
      %3916 = vmatmul.mubr.bf16.gmra.mrb[0].mxu0 %v3589
      %v3917 = vpop.f32.mrb[0].mxu0
      %v3918 = vadd.f32 0.0, %v3917
      %v3919 = vpop.f32.mrb[0].mxu0
      %v3920 = vpop.f32.mrb[0].mxu0
      %v3921 = vadd.f32 0.0, %v3920
      %v3922 = vpop.f32.mrb[0].mxu0
      %3923 = vmatprep.mubr.bf16.mxu0 0
      %3924 = vmatmul.mubr.bf16.gmra.mrb[0].mxu0 %v3591
      %v3925 = vpop.f32.mrb[0].mxu0
      %v3926 = vadd.f32 0.0, %v3925
      %v3927 = vpop.f32.mrb[0].mxu0
      %v3928 = vpop.f32.mrb[0].mxu0
      %v3929 = vadd.f32 0.0, %v3928
      %v3930 = vpop.f32.mrb[0].mxu0
      %3931 = vmatprep.mubr.bf16.mxu0 0
      %3932 = vmatmul.mubr.bf16.gmra.mrb[0].mxu0 %v3593
      %v3933 = vpop.f32.mrb[0].mxu0
      %v3934 = vadd.f32 0.0, %v3933
      %v3935 = vpop.f32.mrb[0].mxu0
      %v3936 = vpop.f32.mrb[0].mxu0
      %v3937 = vadd.f32 0.0, %v3936
      %v3938 = vpop.f32.mrb[0].mxu0
      %3939 = vmatprep.mubr.bf16.mxu0 0
      %3940 = vmatmul.mubr.bf16.gmra.mrb[0].mxu0 %v3595
      %v3941 = vpop.f32.mrb[0].mxu0
      %v3942 = vadd.f32 0.0, %v3941
      %v3943 = vpop.f32.mrb[0].mxu0
      %v3944 = vpop.f32.mrb[0].mxu0
      %v3945 = vadd.f32 0.0, %v3944
      %v3946 = vpop.f32.mrb[0].mxu0
      %3947 = vmatprep.mubr.bf16.mxu0 0
      %3948 = vmatmul.mubr.bf16.gmra.mrb[0].mxu0 %v3597
      %v3949 = vpop.f32.mrb[0].mxu0
      %v3950 = vadd.f32 0.0, %v3949
      %v3951 = vpop.f32.mrb[0].mxu0
      %v3952 = vpop.f32.mrb[0].mxu0
      %v3953 = vadd.f32 0.0, %v3952
      %v3954 = vpop.f32.mrb[0].mxu0
      %3955 = vmatprep.mubr.bf16.mxu0 0
      %3956 = vmatmul.mubr.bf16.gmra.mrb[0].mxu0 %v3599
      %v3957 = vpop.f32.mrb[0].mxu0
      %v3958 = vadd.f32 0.0, %v3957
      %v3959 = vpop.f32.mrb[0].mxu0
      %v3960 = vpop.f32.mrb[0].mxu0
      %v3961 = vadd.f32 0.0, %v3960
      %v3962 = vpop.f32.mrb[0].mxu0
      %3963 = vmatprep.mubr.bf16.mxu0 0
      %3964 = vmatmul.mubr.bf16.gmra.mrb[0].mxu0 %v3601
      %v3965 = vpop.f32.mrb[0].mxu0
      %v3966 = vadd.f32 0.0, %v3965
      %v3967 = vpop.f32.mrb[0].mxu0
      %v3968 = vpop.f32.mrb[0].mxu0
      %v3969 = vadd.f32 0.0, %v3968
      %v3970 = vpop.f32.mrb[0].mxu0
      %3971 = vmatprep.mubr.bf16.mxu0 0
      %3972 = vmatmul.mubr.bf16.gmra.mrb[0].mxu0 %v3603
      %v3973 = vpop.f32.mrb[0].mxu0
      %v3974 = vadd.f32 0.0, %v3973
      %v3975 = vpop.f32.mrb[0].mxu0
      %v3976 = vpop.f32.mrb[0].mxu0
      %v3977 = vadd.f32 0.0, %v3976
      %v3978 = vpop.f32.mrb[0].mxu0
      %3979 = vmatprep.mubr.bf16.mxu0 0
      %3980 = vmatmul.mubr.bf16.gmra.mrb[0].mxu0 %v3605
      %v3981 = vpop.f32.mrb[0].mxu0
      %v3982 = vadd.f32 0.0, %v3981
      %v3983 = vpop.f32.mrb[0].mxu0
      %v3984 = vpop.f32.mrb[0].mxu0
      %v3985 = vadd.f32 0.0, %v3984
      %v3986 = vpop.f32.mrb[0].mxu0
      %3987 = vmatprep.mubr.bf16.mxu0 0
      %3988 = vmatmul.mubr.bf16.gmra.mrb[0].mxu0 %v3607
      %v3989 = vpop.f32.mrb[0].mxu0
      %v3990 = vadd.f32 0.0, %v3989
      %v3991 = vpop.f32.mrb[0].mxu0
      %v3992 = vpop.f32.mrb[0].mxu0
      %v3993 = vpop.f32.mrb[0].mxu0
      %3994 = vmatprep.mubr.bf16.mxu0 0
      %3995 = vmatmul.mubr.bf16.gmra.mrb[0].mxu0 %v3609
      %v3996 = vpop.f32.mrb[0].mxu0
      %v3997 = vpop.f32.mrb[0].mxu0
      %v3998 = vpop.f32.mrb[0].mxu0
      %v3999 = vpop.f32.mrb[0].mxu0
      %4000 = vmatprep.mubr.bf16.mxu0 0
      %4001 = vmatmul.mubr.bf16.gmra.mrb[0].mxu0 %v3611
      %v4002 = vpop.f32.mrb[0].mxu0
      %v4003 = vadd.f32 0.0, %v4002
      %v4004 = vpop.f32.mrb[0].mxu0
      %v4005 = vpop.f32.mrb[0].mxu0
      %v4006 = vadd.f32 0.0, %v4005
      %v4007 = vpop.f32.mrb[0].mxu0
      %4008 = vmatprep.mubr.bf16.mxu0 0
      %4009 = vmatmul.mubr.bf16.gmra.mrb[0].mxu0 %v3613
      %v4010 = vpop.f32.mrb[0].mxu0
      %v4011 = vadd.f32 0.0, %v4010
      %v4012 = vpop.f32.mrb[0].mxu0
      %v4013 = vpop.f32.mrb[0].mxu0
      %v4014 = vadd.f32 0.0, %v4013
      %v4015 = vpop.f32.mrb[0].mxu0
      %4016 = vmatprep.mubr.bf16.mxu0 0
      %4017 = vmatmul.mubr.bf16.gmra.mrb[0].mxu0 %v3615
      %v4018 = vpop.f32.mrb[0].mxu0
      %v4019 = vadd.f32 0.0, %v4018
      %v4020 = vpop.f32.mrb[0].mxu0
      %v4021 = vpop.f32.mrb[0].mxu0
      %v4022 = vadd.f32 0.0, %v4021
      %v4023 = vpop.f32.mrb[0].mxu0
      %4024 = vmatprep.mubr.bf16.mxu0 0
      %4025 = vmatmul.mubr.bf16.gmra.mrb[0].mxu0 %v3617
      %v4026 = vpop.f32.mrb[0].mxu0
      %v4027 = vadd.f32 0.0, %v4026
      %v4028 = vpop.f32.mrb[0].mxu0
      %v4029 = vpop.f32.mrb[0].mxu0
      %v4030 = vadd.f32 0.0, %v4029
      %v4031 = vpop.f32.mrb[0].mxu0
      %4032 = vmatprep.mubr.bf16.mxu0 0
      %4033 = vmatmul.mubr.bf16.gmra.mrb[0].mxu0 %v3619
      %v4034 = vpop.f32.mrb[0].mxu0
      %v4035 = vadd.f32 0.0, %v4034
      %v4036 = vpop.f32.mrb[0].mxu0
      %v4037 = vpop.f32.mrb[0].mxu0
      %v4038 = vadd.f32 0.0, %v4037
      %v4039 = vpop.f32.mrb[0].mxu0
      %4040 = vmatprep.mubr.bf16.mxu0 0
      %4041 = vmatmul.mubr.bf16.gmra.mrb[0].mxu0 %v3621
      %v4042 = vpop.f32.mrb[0].mxu0
      %v4043 = vadd.f32 0.0, %v4042
      %v4044 = vpop.f32.mrb[0].mxu0
      %v4045 = vpop.f32.mrb[0].mxu0
      %v4046 = vadd.f32 0.0, %v4045
      %v4047 = vpop.f32.mrb[0].mxu0
      %4048 = vmatprep.mubr.bf16.mxu0 0
      %4049 = vmatmul.mubr.bf16.gmra.mrb[0].mxu0 %v3623
      %v4050 = vpop.f32.mrb[0].mxu0
      %v4051 = vadd.f32 0.0, %v4050
      %v4052 = vpop.f32.mrb[0].mxu0
      %v4053 = vpop.f32.mrb[0].mxu0
      %v4054 = vadd.f32 0.0, %v4053
      %v4055 = vpop.f32.mrb[0].mxu0
      %4056 = vmatprep.mubr.bf16.mxu0 0
      %4057 = vmatmul.mubr.bf16.gmra.mrb[0].mxu0 %v3625
      %v4058 = vpop.f32.mrb[0].mxu0
      %v4059 = vadd.f32 0.0, %v4058
      %v4060 = vpop.f32.mrb[0].mxu0
      %v4061 = vpop.f32.mrb[0].mxu0
      %v4062 = vadd.f32 0.0, %v4061
      %v4063 = vpop.f32.mrb[0].mxu0
      %4064 = vmatprep.mubr.bf16.mxu0 0
      %4065 = vmatmul.mubr.bf16.gmra.mrb[0].mxu0 %v3627
      %v4066 = vpop.f32.mrb[0].mxu0
      %v4067 = vadd.f32 0.0, %v4066
      %v4068 = vpop.f32.mrb[0].mxu0
      %v4069 = vpop.f32.mrb[0].mxu0
      %v4070 = vadd.f32 0.0, %v4069
      %v4071 = vpop.f32.mrb[0].mxu0
      %4072 = vmatprep.mubr.bf16.mxu0 0
      %4073 = vmatmul.mubr.bf16.gmra.mrb[0].mxu0 %v3629
      %v4074 = vpop.f32.mrb[0].mxu0
      %v4075 = vadd.f32 0.0, %v4074
      %v4076 = vpop.f32.mrb[0].mxu0
      %v4077 = vpop.f32.mrb[0].mxu0
      %v4078 = vadd.f32 0.0, %v4077
      %v4079 = vpop.f32.mrb[0].mxu0
      %4080 = vmatprep.mubr.bf16.mxu0 0
      %4081 = vmatmul.mubr.bf16.gmra.mrb[0].mxu0 %v3631
      %v4082 = vpop.f32.mrb[0].mxu0
      %v4083 = vadd.f32 0.0, %v4082
      %v4084 = vpop.f32.mrb[0].mxu0
      %v4085 = vpop.f32.mrb[0].mxu0
      %v4086 = vadd.f32 0.0, %v4085
      %v4087 = vpop.f32.mrb[0].mxu0
      %4088 = vmatprep.mubr.bf16.mxu0 0
      %4089 = vmatmul.mubr.bf16.gmra.mrb[0].mxu0 %v3633
      %v4090 = vpop.f32.mrb[0].mxu0
      %v4091 = vadd.f32 0.0, %v4090
      %v4092 = vpop.f32.mrb[0].mxu0
      %v4093 = vpop.f32.mrb[0].mxu0
      %v4094 = vadd.f32 0.0, %v4093
      %v4095 = vpop.f32.mrb[0].mxu0
      %4096 = vmatprep.mubr.bf16.mxu0 0
      %4097 = vmatmul.mubr.bf16.gmra.mrb[0].mxu0 %v3635
      %v4098 = vpop.f32.mrb[0].mxu0
      %v4099 = vadd.f32 0.0, %v4098
      %v4100 = vpop.f32.mrb[0].mxu0
      %v4101 = vpop.f32.mrb[0].mxu0
      %v4102 = vadd.f32 0.0, %v4101
      %v4103 = vpop.f32.mrb[0].mxu0
      %4104 = vmatprep.mubr.bf16.mxu0 0
      %4105 = vmatmul.mubr.bf16.gmra.mrb[0].mxu0 %v3637
      %v4106 = vpop.f32.mrb[0].mxu0
      %v4107 = vadd.f32 0.0, %v4106
      %v4108 = vpop.f32.mrb[0].mxu0
      %v4109 = vpop.f32.mrb[0].mxu0
      %v4110 = vadd.f32 0.0, %v4109
      %v4111 = vpop.f32.mrb[0].mxu0
      %4112 = vmatprep.mubr.bf16.mxu0 0
      %4113 = vmatmul.mubr.bf16.gmra.mrb[0].mxu0 %v3639
      %v4114 = vpop.f32.mrb[0].mxu0
      %v4115 = vadd.f32 0.0, %v4114
      %v4116 = vpop.f32.mrb[0].mxu0
      %v4117 = vpop.f32.mrb[0].mxu0
      %v4118 = vadd.f32 0.0, %v4117
      %v4119 = vpop.f32.mrb[0].mxu0
      %4120 = vmatprep.mubr.bf16.mxu0 0
      %4121 = vmatmul.mubr.bf16.gmra.mrb[0].mxu0 %v3641
      %v4122 = vpop.f32.mrb[0].mxu0
      %v4123 = vadd.f32 0.0, %v4122
      %v4124 = vpop.f32.mrb[0].mxu0
      %v4125 = vpop.f32.mrb[0].mxu0
      %v4126 = vadd.f32 0.0, %v4125
      %v4127 = vpop.f32.mrb[0].mxu0
      %4128 = vmatprep.mubr.bf16.mxu0 0
      %4129 = vmatmul.mubr.bf16.gmra.mrb[0].mxu0 %v3643
      %v4130 = vpop.f32.mrb[0].mxu0
      %v4131 = vadd.f32 0.0, %v4130
      %v4132 = vpop.f32.mrb[0].mxu0
      %v4133 = vpop.f32.mrb[0].mxu0
      %v4134 = vadd.f32 0.0, %v4133
      %v4135 = vpop.f32.mrb[0].mxu0
      %4136 = vmatprep.mubr.bf16.mxu0 0
      %4137 = vmatmul.mubr.bf16.gmra.mrb[0].mxu0 %v3645
      %v4138 = vpop.f32.mrb[0].mxu0
      %v4139 = vadd.f32 0.0, %v4138
      %v4140 = vpop.f32.mrb[0].mxu0
      %v4141 = vpop.f32.mrb[0].mxu0
      %v4142 = vadd.f32 0.0, %v4141
      %v4143 = vpop.f32.mrb[0].mxu0
      %4144 = vmatprep.mubr.bf16.mxu0 0
      %4145 = vmatmul.mubr.bf16.gmra.mrb[0].mxu0 %v3647
      %v4146 = vpop.f32.mrb[0].mxu0
      %v4147 = vadd.f32 0.0, %v4146
      %v4148 = vpop.f32.mrb[0].mxu0
      %v4149 = vpop.f32.mrb[0].mxu0
      %v4150 = vadd.f32 0.0, %v4149
      %v4151 = vpop.f32.mrb[0].mxu0
      %4152 = vmatprep.mubr.bf16.mxu0 0
      %4153 = vmatmul.mubr.bf16.gmra.mrb[0].mxu0 %v3649
      %v4154 = vpop.f32.mrb[0].mxu0
      %v4155 = vadd.f32 0.0, %v4154
      %v4156 = vpop.f32.mrb[0].mxu0
      %v4157 = vpop.f32.mrb[0].mxu0
      %v4158 = vadd.f32 0.0, %v4157
      %v4159 = vpop.f32.mrb[0].mxu0
      %4160 = vmatprep.mubr.bf16.mxu0 0
      %4161 = vmatmul.mubr.bf16.gmra.mrb[0].mxu0 %v3651
      %v4162 = vpop.f32.mrb[0].mxu0
      %v4163 = vadd.f32 0.0, %v4162
      %v4164 = vpop.f32.mrb[0].mxu0
      %v4165 = vpop.f32.mrb[0].mxu0
      %v4166 = vadd.f32 0.0, %v4165
      %v4167 = vpop.f32.mrb[0].mxu0
      %4168 = vmatprep.mubr.bf16.mxu0 0
      %4169 = vmatmul.mubr.bf16.gmra.mrb[0].mxu0 %v3653
      %v4170 = vpop.f32.mrb[0].mxu0
      %v4171 = vadd.f32 0.0, %v4170
      %v4172 = vpop.f32.mrb[0].mxu0
      %v4173 = vpop.f32.mrb[0].mxu0
      %v4174 = vadd.f32 0.0, %v4173
      %v4175 = vpop.f32.mrb[0].mxu0
      %4176 = vmatprep.mubr.bf16.mxu0 0
      %4177 = vmatmul.mubr.bf16.gmra.mrb[0].mxu0 %v3655
      %v4178 = vpop.f32.mrb[0].mxu0
      %v4179 = vadd.f32 0.0, %v4178
      %v4180 = vpop.f32.mrb[0].mxu0
      %v4181 = vpop.f32.mrb[0].mxu0
      %v4182 = vadd.f32 0.0, %v4181
      %v4183 = vpop.f32.mrb[0].mxu0
      %4184 = vmatprep.mubr.bf16.mxu0 0
      %4185 = vmatmul.mubr.bf16.gmra.mrb[0].mxu0 %v3657
      %v4186 = vpop.f32.mrb[0].mxu0
      %v4187 = vadd.f32 0.0, %v4186
      %v4188 = vpop.f32.mrb[0].mxu0
      %v4189 = vpop.f32.mrb[0].mxu0
      %v4190 = vadd.f32 0.0, %v4189
      %v4191 = vpop.f32.mrb[0].mxu0
      %4192 = vmatprep.mubr.bf16.mxu0 0
      %4193 = vmatmul.mubr.bf16.gmra.mrb[0].mxu0 %v3659
      %v4194 = vpop.f32.mrb[0].mxu0
      %v4195 = vadd.f32 0.0, %v4194
      %v4196 = vpop.f32.mrb[0].mxu0
      %v4197 = vpop.f32.mrb[0].mxu0
      %v4198 = vadd.f32 0.0, %v4197
      %v4199 = vpop.f32.mrb[0].mxu0
      %4200 = vmatprep.mubr.bf16.mxu0 0
      %4201 = vmatmul.mubr.bf16.gmra.mrb[0].mxu0 %v3661
      %v4202 = vpop.f32.mrb[0].mxu0
      %v4203 = vadd.f32 0.0, %v4202
      %v4204 = vpop.f32.mrb[0].mxu0
      %v4205 = vpop.f32.mrb[0].mxu0
      %v4206 = vadd.f32 0.0, %v4205
      %v4207 = vpop.f32.mrb[0].mxu0
      %4208 = vmatprep.mubr.bf16.mxu0 0
      %4209 = vmatmul.mubr.bf16.gmra.mrb[0].mxu0 %v3663
      %v4210 = vpop.f32.mrb[0].mxu0
      %v4211 = vadd.f32 0.0, %v4210
      %v4212 = vpop.f32.mrb[0].mxu0
      %v4213 = vpop.f32.mrb[0].mxu0
      %v4214 = vadd.f32 0.0, %v4213
      %v4215 = vpop.f32.mrb[0].mxu0
      %4216 = vmatprep.mubr.bf16.mxu0 0
      %4217 = vmatmul.mubr.bf16.gmra.mrb[0].mxu0 %v3665
      %v4218 = vpop.f32.mrb[0].mxu0
      %v4219 = vadd.f32 0.0, %v4218
      %v4220 = vpop.f32.mrb[0].mxu0
      %v4221 = vpop.f32.mrb[0].mxu0
      %v4222 = vadd.f32 0.0, %v4221
      %v4223 = vpop.f32.mrb[0].mxu0
      %4224 = vmatprep.mubr.bf16.mxu0 0
      %4225 = vmatmul.mubr.bf16.gmra.mrb[0].mxu0 %v3667
      %v4226 = vpop.f32.mrb[0].mxu0
      %v4227 = vadd.f32 0.0, %v4226
      %v4228 = vpop.f32.mrb[0].mxu0
      %v4229 = vpop.f32.mrb[0].mxu0
      %v4230 = vadd.f32 0.0, %v4229
      %v4231 = vpop.f32.mrb[0].mxu0
      %4232 = vmatprep.mubr.bf16.mxu0 0
      %4233 = vmatmul.mubr.bf16.gmra.mrb[0].mxu0 %v3669
      %v4234 = vpop.f32.mrb[0].mxu0
      %v4235 = vadd.f32 0.0, %v4234
      %v4236 = vpop.f32.mrb[0].mxu0
      %v4237 = vpop.f32.mrb[0].mxu0
      %v4238 = vadd.f32 0.0, %v4237
      %v4239 = vpop.f32.mrb[0].mxu0
      %4240 = vmatprep.mubr.bf16.mxu0 0
      %4241 = vmatmul.mubr.bf16.gmra.mrb[0].mxu0 %v3671
      %v4242 = vpop.f32.mrb[0].mxu0
      %v4243 = vadd.f32 0.0, %v4242
      %v4244 = vpop.f32.mrb[0].mxu0
      %v4245 = vpop.f32.mrb[0].mxu0
      %v4246 = vadd.f32 0.0, %v4245
      %v4247 = vpop.f32.mrb[0].mxu0
      %4248 = vmatprep.mubr.bf16.mxu0 0
      %4249 = vmatmul.mubr.bf16.gmra.mrb[0].mxu0 %v3673
      %v4250 = vpop.f32.mrb[0].mxu0
      %v4251 = vadd.f32 0.0, %v4250
      %v4252 = vpop.f32.mrb[0].mxu0
      %v4253 = vpop.f32.mrb[0].mxu0
      %v4254 = vadd.f32 0.0, %v4253
      %v4255 = vpop.f32.mrb[0].mxu0
      %4256 = vmatprep.mubr.bf16.mxu0 0
      %4257 = vmatmul.mubr.bf16.gmra.mrb[0].mxu0 %v3675
      %v4258 = vpop.f32.mrb[0].mxu0
      %v4259 = vadd.f32 0.0, %v4258
      %v4260 = vpop.f32.mrb[0].mxu0
      %v4261 = vpop.f32.mrb[0].mxu0
      %v4262 = vadd.f32 0.0, %v4261
      %v4263 = vpop.f32.mrb[0].mxu0
      %4264 = vmatprep.mubr.bf16.mxu0 0
      %4265 = vmatmul.mubr.bf16.gmra.mrb[0].mxu0 %v3677
      %v4266 = vpop.f32.mrb[0].mxu0
      %v4267 = vadd.f32 0.0, %v4266
      %v4268 = vpop.f32.mrb[0].mxu0
      %v4269 = vpop.f32.mrb[0].mxu0
      %v4270 = vadd.f32 0.0, %v4269
      %v4271 = vpop.f32.mrb[0].mxu0
      %4272 = vmatprep.mubr.bf16.mxu0 0
      %4273 = vmatmul.mubr.bf16.gmra.mrb[0].mxu0 %v3679
      %v4274 = vpop.f32.mrb[0].mxu0
      %v4275 = vadd.f32 0.0, %v4274
      %v4276 = vpop.f32.mrb[0].mxu0
      %v4277 = vpop.f32.mrb[0].mxu0
      %v4278 = vpop.f32.mrb[0].mxu0
      %4279 = vmatprep.mubr.bf16.mxu0 0
      %4280 = vmatmul.mubr.bf16.gmra.mrb[0].mxu0 %v3681
      %v4281 = vpop.f32.mrb[0].mxu0
      %v4282 = vpop.f32.mrb[0].mxu0
      %v4283 = vpop.f32.mrb[0].mxu0
      %v4284 = vpop.f32.mrb[0].mxu0
      %4285 = vdwg.mxu0
      %4355 = vrot.lane.b32.xlu0 %v4003, 8
      %v4356 = vpop.permute.xlu0 %4355
      %4357 = vrot.lane.b32.xlu0 %v4006, 8
      %v4358 = vpop.permute.xlu0 %4357
      %4359 = vrot.lane.b32.xlu0 %v4011, 8
      %v4360 = vpop.permute.xlu0 %4359
      %4361 = vrot.lane.b32.xlu0 %v4014, 8
      %v4362 = vpop.permute.xlu0 %4361
      %4363 = vrot.lane.b32.xlu0 %v4019, 8
      %v4364 = vpop.permute.xlu0 %4363
      %4365 = vrot.lane.b32.xlu0 %v4022, 8
      %v4366 = vpop.permute.xlu0 %4365
      %4367 = vrot.lane.b32.xlu0 %v4027, 8
      %v4368 = vpop.permute.xlu0 %4367
      %4369 = vrot.lane.b32.xlu0 %v4030, 8
      %v4370 = vpop.permute.xlu0 %4369
      %4371 = vrot.lane.b32.xlu0 %v4035, 8
      %v4372 = vpop.permute.xlu0 %4371
      %4373 = vrot.lane.b32.xlu0 %v4038, 8
      %v4374 = vpop.permute.xlu0 %4373
      %4375 = vrot.lane.b32.xlu0 %v4043, 8
      %v4376 = vpop.permute.xlu0 %4375
      %4377 = vrot.lane.b32.xlu0 %v4046, 8
      %v4378 = vpop.permute.xlu0 %4377
      %4379 = vrot.lane.b32.xlu0 %v4051, 8
      %v4380 = vpop.permute.xlu0 %4379
      %4381 = vrot.lane.b32.xlu0 %v4054, 8
      %v4382 = vpop.permute.xlu0 %4381
      %4383 = vrot.lane.b32.xlu0 %v4059, 8
      %v4384 = vpop.permute.xlu0 %4383
      %4385 = vrot.lane.b32.xlu0 %v4062, 8
      %v4386 = vpop.permute.xlu0 %4385
      %4387 = vrot.lane.b32.xlu0 %v4067, 8
      %v4388 = vpop.permute.xlu0 %4387
      %4389 = vrot.lane.b32.xlu0 %v4070, 8
      %v4390 = vpop.permute.xlu0 %4389
      %4391 = vrot.lane.b32.xlu0 %v4075, 8
      %v4392 = vpop.permute.xlu0 %4391
      %4393 = vrot.lane.b32.xlu0 %v4078, 8
      %v4394 = vpop.permute.xlu0 %4393
      %4395 = vrot.lane.b32.xlu0 %v4083, 8
      %v4396 = vpop.permute.xlu0 %4395
      %4397 = vrot.lane.b32.xlu0 %v4086, 8
      %v4398 = vpop.permute.xlu0 %4397
      %4399 = vrot.lane.b32.xlu0 %v4091, 8
      %v4400 = vpop.permute.xlu0 %4399
      %4401 = vrot.lane.b32.xlu0 %v4094, 8
      %v4402 = vpop.permute.xlu0 %4401
      %4403 = vrot.lane.b32.xlu0 %v4099, 8
      %v4404 = vpop.permute.xlu0 %4403
      %4405 = vrot.lane.b32.xlu0 %v4102, 8
      %v4406 = vpop.permute.xlu0 %4405
      %4407 = vrot.lane.b32.xlu0 %v4107, 8
      %v4408 = vpop.permute.xlu0 %4407
      %4409 = vrot.lane.b32.xlu0 %v4110, 8
      %v4410 = vpop.permute.xlu0 %4409
      %4411 = vrot.lane.b32.xlu0 %v4115, 8
      %v4412 = vpop.permute.xlu0 %4411
      %4413 = vrot.lane.b32.xlu0 %v4118, 8
      %v4414 = vpop.permute.xlu0 %4413
      %4415 = vrot.lane.b32.xlu0 %v4123, 8
      %v4416 = vpop.permute.xlu0 %4415
      %4417 = vrot.lane.b32.xlu0 %v4126, 8
      %v4418 = vpop.permute.xlu0 %4417
      %4419 = vrot.lane.b32.xlu0 %v4131, 8
      %v4420 = vpop.permute.xlu0 %4419
      %4421 = vrot.lane.b32.xlu0 %v4134, 8
      %v4422 = vpop.permute.xlu0 %4421
      %4423 = vrot.lane.b32.xlu0 %v4139, 8
      %v4424 = vpop.permute.xlu0 %4423
      %4425 = vrot.lane.b32.xlu0 %v4142, 8
      %v4426 = vpop.permute.xlu0 %4425
      %4427 = vrot.lane.b32.xlu0 %v4147, 8
      %v4428 = vpop.permute.xlu0 %4427
      %4429 = vrot.lane.b32.xlu0 %v4150, 8
      %v4430 = vpop.permute.xlu0 %4429
      %4431 = vrot.lane.b32.xlu0 %v4155, 8
      %v4432 = vpop.permute.xlu0 %4431
      %4433 = vrot.lane.b32.xlu0 %v4158, 8
      %v4434 = vpop.permute.xlu0 %4433
      %4435 = vrot.lane.b32.xlu0 %v4163, 8
      %v4436 = vpop.permute.xlu0 %4435
      %4437 = vrot.lane.b32.xlu0 %v4166, 8
      %v4438 = vpop.permute.xlu0 %4437
      %4439 = vrot.lane.b32.xlu0 %v4171, 8
      %v4440 = vpop.permute.xlu0 %4439
      %4441 = vrot.lane.b32.xlu0 %v4174, 8
      %v4442 = vpop.permute.xlu0 %4441
      %4443 = vrot.lane.b32.xlu0 %v4179, 8
      %v4444 = vpop.permute.xlu0 %4443
      %4445 = vrot.lane.b32.xlu0 %v4182, 8
      %v4446 = vpop.permute.xlu0 %4445
      %4447 = vrot.lane.b32.xlu0 %v4187, 8
      %v4448 = vpop.permute.xlu0 %4447
      %4449 = vrot.lane.b32.xlu0 %v4190, 8
      %v4450 = vpop.permute.xlu0 %4449
      %4451 = vrot.lane.b32.xlu0 %v4195, 8
      %v4452 = vpop.permute.xlu0 %4451
      %4453 = vrot.lane.b32.xlu0 %v4198, 8
      %v4454 = vpop.permute.xlu0 %4453
      %4455 = vrot.lane.b32.xlu0 %v4203, 8
      %v4456 = vpop.permute.xlu0 %4455
      %4457 = vrot.lane.b32.xlu0 %v4206, 8
      %v4458 = vpop.permute.xlu0 %4457
      %4459 = vrot.lane.b32.xlu0 %v4211, 8
      %v4460 = vpop.permute.xlu0 %4459
      %4461 = vrot.lane.b32.xlu0 %v4214, 8
      %v4462 = vpop.permute.xlu0 %4461
      %4463 = vrot.lane.b32.xlu0 %v4219, 8
      %v4464 = vpop.permute.xlu0 %4463
      %4465 = vrot.lane.b32.xlu0 %v4222, 8
      %v4466 = vpop.permute.xlu0 %4465
      %4467 = vrot.lane.b32.xlu0 %v4227, 8
      %v4468 = vpop.permute.xlu0 %4467
      %4469 = vrot.lane.b32.xlu0 %v4230, 8
      %v4470 = vpop.permute.xlu0 %4469
      %4471 = vrot.lane.b32.xlu0 %v4235, 8
      %v4472 = vpop.permute.xlu0 %4471
      %4473 = vrot.lane.b32.xlu0 %v4238, 8
      %v4474 = vpop.permute.xlu0 %4473
      %4475 = vrot.lane.b32.xlu0 %v4243, 8
      %v4476 = vpop.permute.xlu0 %4475
      %4477 = vrot.lane.b32.xlu0 %v4246, 8
      %v4478 = vpop.permute.xlu0 %4477
      %4479 = vrot.lane.b32.xlu0 %v4251, 8
      %v4480 = vpop.permute.xlu0 %4479
      %4481 = vrot.lane.b32.xlu0 %v4254, 8
      %v4482 = vpop.permute.xlu0 %4481
      %4483 = vrot.lane.b32.xlu0 %v4259, 8
      %v4484 = vpop.permute.xlu0 %4483
      %4485 = vrot.lane.b32.xlu0 %v4262, 8
      %v4486 = vpop.permute.xlu0 %4485
      %4487 = vrot.lane.b32.xlu0 %v4267, 8
      %v4488 = vpop.permute.xlu0 %4487
      %4489 = vrot.lane.b32.xlu0 %v4270, 8
      %v4490 = vpop.permute.xlu0 %4489
      %4491 = vrot.lane.b32.xlu0 %v4275, 8
      %v4492 = vpop.permute.xlu0 %4491
      %v4562 = vsel %vm390, %v3718, %v4356
      %v4563 = vsel %vm390, %v3721, %v4358
      %v4564 = vsel %vm390, %v3726, %v4360
      %v4565 = vsel %vm390, %v3729, %v4362
      %v4566 = vsel %vm390, %v3734, %v4364
      %v4567 = vsel %vm390, %v3737, %v4366
      %v4568 = vsel %vm390, %v3742, %v4368
      %v4569 = vsel %vm390, %v3745, %v4370
      %v4570 = vsel %vm390, %v3750, %v4372
      %v4571 = vsel %vm390, %v3753, %v4374
      %v4572 = vsel %vm390, %v3758, %v4376
      %v4573 = vsel %vm390, %v3761, %v4378
      %v4574 = vsel %vm390, %v3766, %v4380
      %v4575 = vsel %vm390, %v3769, %v4382
      %v4576 = vsel %vm390, %v3774, %v4384
      %v4577 = vsel %vm390, %v3777, %v4386
      %v4578 = vsel %vm390, %v3782, %v4388
      %v4579 = vsel %vm390, %v3785, %v4390
      %v4580 = vsel %vm390, %v3790, %v4392
      %v4581 = vsel %vm390, %v3793, %v4394
      %v4582 = vsel %vm390, %v3798, %v4396
      %v4583 = vsel %vm390, %v3801, %v4398
      %v4584 = vsel %vm390, %v3806, %v4400
      %v4585 = vsel %vm390, %v3809, %v4402
      %v4586 = vsel %vm390, %v3814, %v4404
      %v4587 = vsel %vm390, %v3817, %v4406
      %v4588 = vsel %vm390, %v3822, %v4408
      %v4589 = vsel %vm390, %v3825, %v4410
      %v4590 = vsel %vm390, %v3830, %v4412
      %v4591 = vsel %vm390, %v3833, %v4414
      %v4592 = vsel %vm390, %v3838, %v4416
      %v4593 = vsel %vm390, %v3841, %v4418
      %v4594 = vsel %vm390, %v3846, %v4420
      %v4595 = vsel %vm390, %v3849, %v4422
      %v4596 = vsel %vm390, %v3854, %v4424
      %v4597 = vsel %vm390, %v3857, %v4426
      %v4598 = vsel %vm390, %v3862, %v4428
      %v4599 = vsel %vm390, %v3865, %v4430
      %v4600 = vsel %vm390, %v3870, %v4432
      %v4601 = vsel %vm390, %v3873, %v4434
      %v4602 = vsel %vm390, %v3878, %v4436
      %v4603 = vsel %vm390, %v3881, %v4438
      %v4604 = vsel %vm390, %v3886, %v4440
      %v4605 = vsel %vm390, %v3889, %v4442
      %v4606 = vsel %vm390, %v3894, %v4444
      %v4607 = vsel %vm390, %v3897, %v4446
      %v4608 = vsel %vm390, %v3902, %v4448
      %v4609 = vsel %vm390, %v3905, %v4450
      %v4610 = vsel %vm390, %v3910, %v4452
      %v4611 = vsel %vm390, %v3913, %v4454
      %v4612 = vsel %vm390, %v3918, %v4456
      %v4613 = vsel %vm390, %v3921, %v4458
      %v4614 = vsel %vm390, %v3926, %v4460
      %v4615 = vsel %vm390, %v3929, %v4462
      %v4616 = vsel %vm390, %v3934, %v4464
      %v4617 = vsel %vm390, %v3937, %v4466
      %v4618 = vsel %vm390, %v3942, %v4468
      %v4619 = vsel %vm390, %v3945, %v4470
      %v4620 = vsel %vm390, %v3950, %v4472
      %v4621 = vsel %vm390, %v3953, %v4474
      %v4622 = vsel %vm390, %v3958, %v4476
      %v4623 = vsel %vm390, %v3961, %v4478
      %v4624 = vsel %vm390, %v3966, %v4480
      %v4625 = vsel %vm390, %v3969, %v4482
      %v4626 = vsel %vm390, %v3974, %v4484
      %v4627 = vsel %vm390, %v3977, %v4486
      %v4628 = vsel %vm390, %v3982, %v4488
      %v4629 = vsel %vm390, %v3985, %v4490
      %v4630 = vsel %vm390, %v3990, %v4492
      %v4631 = vld [vmem:[%s4] sm:$0x1]
      %v4633 = vlaneseq
      %v4634 = vshrl.u32 %v4633, 7
      %v4635 = vsub.s32 0, %v4634
      %v4636 = vrot.slane %v4631, %v4635
      %v4638 = vadd.f32 %v4562, %v4636
      %v4639 = vadd.f32 %v4563, %v4636
      %v4640 = vadd.f32 %v4564, %v4636
      %v4641 = vadd.f32 %v4565, %v4636
      %v4642 = vadd.f32 %v4566, %v4636
      %v4643 = vadd.f32 %v4567, %v4636
      %v4644 = vadd.f32 %v4568, %v4636
      %v4645 = vadd.f32 %v4569, %v4636
      %v4646 = vadd.f32 %v4570, %v4636
      %v4647 = vadd.f32 %v4571, %v4636
      %v4648 = vadd.f32 %v4572, %v4636
      %v4649 = vadd.f32 %v4573, %v4636
      %v4650 = vadd.f32 %v4574, %v4636
      %v4651 = vadd.f32 %v4575, %v4636
      %v4652 = vadd.f32 %v4576, %v4636
      %v4653 = vadd.f32 %v4577, %v4636
      %v4654 = vadd.f32 %v4578, %v4636
      %v4655 = vadd.f32 %v4579, %v4636
      %v4656 = vadd.f32 %v4580, %v4636
      %v4657 = vadd.f32 %v4581, %v4636
      %v4658 = vadd.f32 %v4582, %v4636
      %v4659 = vadd.f32 %v4583, %v4636
      %v4660 = vadd.f32 %v4584, %v4636
      %v4661 = vadd.f32 %v4585, %v4636
      %v4662 = vadd.f32 %v4586, %v4636
      %v4663 = vadd.f32 %v4587, %v4636
      %v4664 = vadd.f32 %v4588, %v4636
      %v4665 = vadd.f32 %v4589, %v4636
      %v4666 = vadd.f32 %v4590, %v4636
      %v4667 = vadd.f32 %v4591, %v4636
      %v4668 = vadd.f32 %v4592, %v4636
      %v4669 = vadd.f32 %v4593, %v4636
      %v4670 = vadd.f32 %v4594, %v4636
      %v4671 = vadd.f32 %v4595, %v4636
      %v4672 = vadd.f32 %v4596, %v4636
      %v4673 = vadd.f32 %v4597, %v4636
      %v4674 = vadd.f32 %v4598, %v4636
      %v4675 = vadd.f32 %v4599, %v4636
      %v4676 = vadd.f32 %v4600, %v4636
      %v4677 = vadd.f32 %v4601, %v4636
      %v4678 = vadd.f32 %v4602, %v4636
      %v4679 = vadd.f32 %v4603, %v4636
      %v4680 = vadd.f32 %v4604, %v4636
      %v4681 = vadd.f32 %v4605, %v4636
      %v4682 = vadd.f32 %v4606, %v4636
      %v4683 = vadd.f32 %v4607, %v4636
      %v4684 = vadd.f32 %v4608, %v4636
      %v4685 = vadd.f32 %v4609, %v4636
      %v4686 = vadd.f32 %v4610, %v4636
      %v4687 = vadd.f32 %v4611, %v4636
      %v4688 = vadd.f32 %v4612, %v4636
      %v4689 = vadd.f32 %v4613, %v4636
      %v4690 = vadd.f32 %v4614, %v4636
      %v4691 = vadd.f32 %v4615, %v4636
      %v4692 = vadd.f32 %v4616, %v4636
      %v4693 = vadd.f32 %v4617, %v4636
      %v4694 = vadd.f32 %v4618, %v4636
      %v4695 = vadd.f32 %v4619, %v4636
      %v4696 = vadd.f32 %v4620, %v4636
      %v4697 = vadd.f32 %v4621, %v4636
      %v4698 = vadd.f32 %v4622, %v4636
      %v4699 = vadd.f32 %v4623, %v4636
      %v4700 = vadd.f32 %v4624, %v4636
      %v4701 = vadd.f32 %v4625, %v4636
      %v4702 = vadd.f32 %v4626, %v4636
      %v4703 = vadd.f32 %v4627, %v4636
      %v4704 = vadd.f32 %v4628, %v4636
      %v4705 = vadd.f32 %v4629, %v4636
      %v4706 = vadd.f32 %v4630, %v4636
      %v4707 = vxor.u32 %v4638, 2147483648
      %v4708 = vxor.u32 %v4639, 2147483648
      %v4709 = vxor.u32 %v4640, 2147483648
      %v4710 = vxor.u32 %v4641, 2147483648
      %v4711 = vxor.u32 %v4642, 2147483648
      %v4712 = vxor.u32 %v4643, 2147483648
      %v4713 = vxor.u32 %v4644, 2147483648
      %v4714 = vxor.u32 %v4645, 2147483648
      %v4715 = vxor.u32 %v4646, 2147483648
      %v4716 = vxor.u32 %v4647, 2147483648
      %v4717 = vxor.u32 %v4648, 2147483648
      %v4718 = vxor.u32 %v4649, 2147483648
      %v4719 = vxor.u32 %v4650, 2147483648
      %v4720 = vxor.u32 %v4651, 2147483648
      %v4721 = vxor.u32 %v4652, 2147483648
      %v4722 = vxor.u32 %v4653, 2147483648
      %v4723 = vxor.u32 %v4654, 2147483648
      %v4724 = vxor.u32 %v4655, 2147483648
      %v4725 = vxor.u32 %v4656, 2147483648
      %v4726 = vxor.u32 %v4657, 2147483648
      %v4727 = vxor.u32 %v4658, 2147483648
      %v4728 = vxor.u32 %v4659, 2147483648
      %v4729 = vxor.u32 %v4660, 2147483648
      %v4730 = vxor.u32 %v4661, 2147483648
      %v4731 = vxor.u32 %v4662, 2147483648
      %v4732 = vxor.u32 %v4663, 2147483648
      %v4733 = vxor.u32 %v4664, 2147483648
      %v4734 = vxor.u32 %v4665, 2147483648
      %v4735 = vxor.u32 %v4666, 2147483648
      %v4736 = vxor.u32 %v4667, 2147483648
      %v4737 = vxor.u32 %v4668, 2147483648
      %v4738 = vxor.u32 %v4669, 2147483648
      %v4739 = vxor.u32 %v4670, 2147483648
      %v4740 = vxor.u32 %v4671, 2147483648
      %v4741 = vxor.u32 %v4672, 2147483648
      %v4742 = vxor.u32 %v4673, 2147483648
      %v4743 = vxor.u32 %v4674, 2147483648
      %v4744 = vxor.u32 %v4675, 2147483648
      %v4745 = vxor.u32 %v4676, 2147483648
      %v4746 = vxor.u32 %v4677, 2147483648
      %v4747 = vxor.u32 %v4678, 2147483648
      %v4748 = vxor.u32 %v4679, 2147483648
      %v4749 = vxor.u32 %v4680, 2147483648
      %v4750 = vxor.u32 %v4681, 2147483648
      %v4751 = vxor.u32 %v4682, 2147483648
      %v4752 = vxor.u32 %v4683, 2147483648
      %v4753 = vxor.u32 %v4684, 2147483648
      %v4754 = vxor.u32 %v4685, 2147483648
      %v4755 = vxor.u32 %v4686, 2147483648
      %v4756 = vxor.u32 %v4687, 2147483648
      %v4757 = vxor.u32 %v4688, 2147483648
      %v4758 = vxor.u32 %v4689, 2147483648
      %v4759 = vxor.u32 %v4690, 2147483648
      %v4760 = vxor.u32 %v4691, 2147483648
      %v4761 = vxor.u32 %v4692, 2147483648
      %v4762 = vxor.u32 %v4693, 2147483648
      %v4763 = vxor.u32 %v4694, 2147483648
      %v4764 = vxor.u32 %v4695, 2147483648
      %v4765 = vxor.u32 %v4696, 2147483648
      %v4766 = vxor.u32 %v4697, 2147483648
      %v4767 = vxor.u32 %v4698, 2147483648
      %v4768 = vxor.u32 %v4699, 2147483648
      %v4769 = vxor.u32 %v4700, 2147483648
      %v4770 = vxor.u32 %v4701, 2147483648
      %v4771 = vxor.u32 %v4702, 2147483648
      %v4772 = vxor.u32 %v4703, 2147483648
      %v4773 = vxor.u32 %v4704, 2147483648
      %v4774 = vxor.u32 %v4705, 2147483648
      %v4775 = vxor.u32 %v4706, 2147483648
      %v4776 = vmul.f32 %v4707, 1.442695
      %v4777 = vpow.pop %v4776
      %v4778 = vmul.f32 %v4708, 1.442695
      %v4779 = vpow.pop %v4778
      %v4780 = vmul.f32 %v4709, 1.442695
      %v4781 = vpow.pop %v4780
      %v4782 = vmul.f32 %v4710, 1.442695
      %v4783 = vpow.pop %v4782
      %v4784 = vmul.f32 %v4711, 1.442695
      %v4785 = vpow.pop %v4784
      %v4786 = vmul.f32 %v4712, 1.442695
      %v4787 = vpow.pop %v4786
      %v4788 = vmul.f32 %v4713, 1.442695
      %v4789 = vpow.pop %v4788
      %v4790 = vmul.f32 %v4714, 1.442695
      %v4791 = vpow.pop %v4790
      %v4792 = vmul.f32 %v4715, 1.442695
      %v4793 = vpow.pop %v4792
      %v4794 = vmul.f32 %v4716, 1.442695
      %v4795 = vpow.pop %v4794
      %v4796 = vmul.f32 %v4717, 1.442695
      %v4797 = vpow.pop %v4796
      %v4798 = vmul.f32 %v4718, 1.442695
      %v4799 = vpow.pop %v4798
      %v4800 = vmul.f32 %v4719, 1.442695
      %v4801 = vpow.pop %v4800
      %v4802 = vmul.f32 %v4720, 1.442695
      %v4803 = vpow.pop %v4802
      %v4804 = vmul.f32 %v4721, 1.442695
      %v4805 = vpow.pop %v4804
      %v4806 = vmul.f32 %v4722, 1.442695
      %v4807 = vpow.pop %v4806
      %v4808 = vmul.f32 %v4723, 1.442695
      %v4809 = vpow.pop %v4808
      %v4810 = vmul.f32 %v4724, 1.442695
      %v4811 = vpow.pop %v4810
      %v4812 = vmul.f32 %v4725, 1.442695
      %v4813 = vpow.pop %v4812
      %v4814 = vmul.f32 %v4726, 1.442695
      %v4815 = vpow.pop %v4814
      %v4816 = vmul.f32 %v4727, 1.442695
      %v4817 = vpow.pop %v4816
      %v4818 = vmul.f32 %v4728, 1.442695
      %v4819 = vpow.pop %v4818
      %v4820 = vmul.f32 %v4729, 1.442695
      %v4821 = vpow.pop %v4820
      %v4822 = vmul.f32 %v4730, 1.442695
      %v4823 = vpow.pop %v4822
      %v4824 = vmul.f32 %v4731, 1.442695
      %v4825 = vpow.pop %v4824
      %v4826 = vmul.f32 %v4732, 1.442695
      %v4827 = vpow.pop %v4826
      %v4828 = vmul.f32 %v4733, 1.442695
      %v4829 = vpow.pop %v4828
      %v4830 = vmul.f32 %v4734, 1.442695
      %v4831 = vpow.pop %v4830
      %v4832 = vmul.f32 %v4735, 1.442695
      %v4833 = vpow.pop %v4832
      %v4834 = vmul.f32 %v4736, 1.442695
      %v4835 = vpow.pop %v4834
      %v4836 = vmul.f32 %v4737, 1.442695
      %v4837 = vpow.pop %v4836
      %v4838 = vmul.f32 %v4738, 1.442695
      %v4839 = vpow.pop %v4838
      %v4840 = vmul.f32 %v4739, 1.442695
      %v4841 = vpow.pop %v4840
      %v4842 = vmul.f32 %v4740, 1.442695
      %v4843 = vpow.pop %v4842
      %v4844 = vmul.f32 %v4741, 1.442695
      %v4845 = vpow.pop %v4844
      %v4846 = vmul.f32 %v4742, 1.442695
      %v4847 = vpow.pop %v4846
      %v4848 = vmul.f32 %v4743, 1.442695
      %v4849 = vpow.pop %v4848
      %v4850 = vmul.f32 %v4744, 1.442695
      %v4851 = vpow.pop %v4850
      %v4852 = vmul.f32 %v4745, 1.442695
      %v4853 = vpow.pop %v4852
      %v4854 = vmul.f32 %v4746, 1.442695
      %v4855 = vpow.pop %v4854
      %v4856 = vmul.f32 %v4747, 1.442695
      %v4857 = vpow.pop %v4856
      %v4858 = vmul.f32 %v4748, 1.442695
      %v4859 = vpow.pop %v4858
      %v4860 = vmul.f32 %v4749, 1.442695
      %v4861 = vpow.pop %v4860
      %v4862 = vmul.f32 %v4750, 1.442695
      %v4863 = vpow.pop %v4862
      %v4864 = vmul.f32 %v4751, 1.442695
      %v4865 = vpow.pop %v4864
      %v4866 = vmul.f32 %v4752, 1.442695
      %v4867 = vpow.pop %v4866
      %v4868 = vmul.f32 %v4753, 1.442695
      %v4869 = vpow.pop %v4868
      %v4870 = vmul.f32 %v4754, 1.442695
      %v4871 = vpow.pop %v4870
      %v4872 = vmul.f32 %v4755, 1.442695
      %v4873 = vpow.pop %v4872
      %v4874 = vmul.f32 %v4756, 1.442695
      %v4875 = vpow.pop %v4874
      %v4876 = vmul.f32 %v4757, 1.442695
      %v4877 = vpow.pop %v4876
      %v4878 = vmul.f32 %v4758, 1.442695
      %v4879 = vpow.pop %v4878
      %v4880 = vmul.f32 %v4759, 1.442695
      %v4881 = vpow.pop %v4880
      %v4882 = vmul.f32 %v4760, 1.442695
      %v4883 = vpow.pop %v4882
      %v4884 = vmul.f32 %v4761, 1.442695
      %v4885 = vpow.pop %v4884
      %v4886 = vmul.f32 %v4762, 1.442695
      %v4887 = vpow.pop %v4886
      %v4888 = vmul.f32 %v4763, 1.442695
      %v4889 = vpow.pop %v4888
      %v4890 = vmul.f32 %v4764, 1.442695
      %v4891 = vpow.pop %v4890
      %v4892 = vmul.f32 %v4765, 1.442695
      %v4893 = vpow.pop %v4892
      %v4894 = vmul.f32 %v4766, 1.442695
      %v4895 = vpow.pop %v4894
      %v4896 = vmul.f32 %v4767, 1.442695
      %v4897 = vpow.pop %v4896
      %v4898 = vmul.f32 %v4768, 1.442695
      %v4899 = vpow.pop %v4898
      %v4900 = vmul.f32 %v4769, 1.442695
      %v4901 = vpow.pop %v4900
      %v4902 = vmul.f32 %v4770, 1.442695
      %v4903 = vpow.pop %v4902
      %v4904 = vmul.f32 %v4771, 1.442695
      %v4905 = vpow.pop %v4904
      %v4906 = vmul.f32 %v4772, 1.442695
      %v4907 = vpow.pop %v4906
      %v4908 = vmul.f32 %v4773, 1.442695
      %v4909 = vpow.pop %v4908
      %v4910 = vmul.f32 %v4774, 1.442695
      %v4911 = vpow.pop %v4910
      %v4912 = vmul.f32 %v4775, 1.442695
      %v4913 = vpow.pop %v4912
      %v4914 = vadd.f32 %v4777, 1.0
      %v4915 = vadd.f32 %v4779, 1.0
      %v4916 = vadd.f32 %v4781, 1.0
      %v4917 = vadd.f32 %v4783, 1.0
      %v4918 = vadd.f32 %v4785, 1.0
      %v4919 = vadd.f32 %v4787, 1.0
      %v4920 = vadd.f32 %v4789, 1.0
      %v4921 = vadd.f32 %v4791, 1.0
      %v4922 = vadd.f32 %v4793, 1.0
      %v4923 = vadd.f32 %v4795, 1.0
      %v4924 = vadd.f32 %v4797, 1.0
      %v4925 = vadd.f32 %v4799, 1.0
      %v4926 = vadd.f32 %v4801, 1.0
      %v4927 = vadd.f32 %v4803, 1.0
      %v4928 = vadd.f32 %v4805, 1.0
      %v4929 = vadd.f32 %v4807, 1.0
      %v4930 = vadd.f32 %v4809, 1.0
      %v4931 = vadd.f32 %v4811, 1.0
      %v4932 = vadd.f32 %v4813, 1.0
      %v4933 = vadd.f32 %v4815, 1.0
      %v4934 = vadd.f32 %v4817, 1.0
      %v4935 = vadd.f32 %v4819, 1.0
      %v4936 = vadd.f32 %v4821, 1.0
      %v4937 = vadd.f32 %v4823, 1.0
      %v4938 = vadd.f32 %v4825, 1.0
      %v4939 = vadd.f32 %v4827, 1.0
      %v4940 = vadd.f32 %v4829, 1.0
      %v4941 = vadd.f32 %v4831, 1.0
      %v4942 = vadd.f32 %v4833, 1.0
      %v4943 = vadd.f32 %v4835, 1.0
      %v4944 = vadd.f32 %v4837, 1.0
      %v4945 = vadd.f32 %v4839, 1.0
      %v4946 = vadd.f32 %v4841, 1.0
      %v4947 = vadd.f32 %v4843, 1.0
      %v4948 = vadd.f32 %v4845, 1.0
      %v4949 = vadd.f32 %v4847, 1.0
      %v4950 = vadd.f32 %v4849, 1.0
      %v4951 = vadd.f32 %v4851, 1.0
      %v4952 = vadd.f32 %v4853, 1.0
      %v4953 = vadd.f32 %v4855, 1.0
      %v4954 = vadd.f32 %v4857, 1.0
      %v4955 = vadd.f32 %v4859, 1.0
      %v4956 = vadd.f32 %v4861, 1.0
      %v4957 = vadd.f32 %v4863, 1.0
      %v4958 = vadd.f32 %v4865, 1.0
      %v4959 = vadd.f32 %v4867, 1.0
      %v4960 = vadd.f32 %v4869, 1.0
      %v4961 = vadd.f32 %v4871, 1.0
      %v4962 = vadd.f32 %v4873, 1.0
      %v4963 = vadd.f32 %v4875, 1.0
      %v4964 = vadd.f32 %v4877, 1.0
      %v4965 = vadd.f32 %v4879, 1.0
      %v4966 = vadd.f32 %v4881, 1.0
      %v4967 = vadd.f32 %v4883, 1.0
      %v4968 = vadd.f32 %v4885, 1.0
      %v4969 = vadd.f32 %v4887, 1.0
      %v4970 = vadd.f32 %v4889, 1.0
      %v4971 = vadd.f32 %v4891, 1.0
      %v4972 = vadd.f32 %v4893, 1.0
      %v4973 = vadd.f32 %v4895, 1.0
      %v4974 = vadd.f32 %v4897, 1.0
      %v4975 = vadd.f32 %v4899, 1.0
      %v4976 = vadd.f32 %v4901, 1.0
      %v4977 = vadd.f32 %v4903, 1.0
      %v4978 = vadd.f32 %v4905, 1.0
      %v4979 = vadd.f32 %v4907, 1.0
      %v4980 = vadd.f32 %v4909, 1.0
      %v4981 = vadd.f32 %v4911, 1.0
      %v4982 = vadd.f32 %v4913, 1.0
      %v4983 = vrcp.pop %v4914
      %v4984 = vmul.f32 1.0, %v4983
      %v4985 = vrcp.pop %v4915
      %v4986 = vmul.f32 1.0, %v4985
      %v4987 = vrcp.pop %v4916
      %v4988 = vmul.f32 1.0, %v4987
      %v4989 = vrcp.pop %v4917
      %v4990 = vmul.f32 1.0, %v4989
      %v4991 = vrcp.pop %v4918
      %v4992 = vmul.f32 1.0, %v4991
      %v4993 = vrcp.pop %v4919
      %v4994 = vmul.f32 1.0, %v4993
      %v4995 = vrcp.pop %v4920
      %v4996 = vmul.f32 1.0, %v4995
      %v4997 = vrcp.pop %v4921
      %v4998 = vmul.f32 1.0, %v4997
      %v4999 = vrcp.pop %v4922
      %v5000 = vmul.f32 1.0, %v4999
      %v5001 = vrcp.pop %v4923
      %v5002 = vmul.f32 1.0, %v5001
      %v5003 = vrcp.pop %v4924
      %v5004 = vmul.f32 1.0, %v5003
      %v5005 = vrcp.pop %v4925
      %v5006 = vmul.f32 1.0, %v5005
      %v5007 = vrcp.pop %v4926
      %v5008 = vmul.f32 1.0, %v5007
      %v5009 = vrcp.pop %v4927
      %v5010 = vmul.f32 1.0, %v5009
      %v5011 = vrcp.pop %v4928
      %v5012 = vmul.f32 1.0, %v5011
      %v5013 = vrcp.pop %v4929
      %v5014 = vmul.f32 1.0, %v5013
      %v5015 = vrcp.pop %v4930
      %v5016 = vmul.f32 1.0, %v5015
      %v5017 = vrcp.pop %v4931
      %v5018 = vmul.f32 1.0, %v5017
      %v5019 = vrcp.pop %v4932
      %v5020 = vmul.f32 1.0, %v5019
      %v5021 = vrcp.pop %v4933
      %v5022 = vmul.f32 1.0, %v5021
      %v5023 = vrcp.pop %v4934
      %v5024 = vmul.f32 1.0, %v5023
      %v5025 = vrcp.pop %v4935
      %v5026 = vmul.f32 1.0, %v5025
      %v5027 = vrcp.pop %v4936
      %v5028 = vmul.f32 1.0, %v5027
      %v5029 = vrcp.pop %v4937
      %v5030 = vmul.f32 1.0, %v5029
      %v5031 = vrcp.pop %v4938
      %v5032 = vmul.f32 1.0, %v5031
      %v5033 = vrcp.pop %v4939
      %v5034 = vmul.f32 1.0, %v5033
      %v5035 = vrcp.pop %v4940
      %v5036 = vmul.f32 1.0, %v5035
      %v5037 = vrcp.pop %v4941
      %v5038 = vmul.f32 1.0, %v5037
      %v5039 = vrcp.pop %v4942
      %v5040 = vmul.f32 1.0, %v5039
      %v5041 = vrcp.pop %v4943
      %v5042 = vmul.f32 1.0, %v5041
      %v5043 = vrcp.pop %v4944
      %v5044 = vmul.f32 1.0, %v5043
      %v5045 = vrcp.pop %v4945
      %v5046 = vmul.f32 1.0, %v5045
      %v5047 = vrcp.pop %v4946
      %v5048 = vmul.f32 1.0, %v5047
      %v5049 = vrcp.pop %v4947
      %v5050 = vmul.f32 1.0, %v5049
      %v5051 = vrcp.pop %v4948
      %v5052 = vmul.f32 1.0, %v5051
      %v5053 = vrcp.pop %v4949
      %v5054 = vmul.f32 1.0, %v5053
      %v5055 = vrcp.pop %v4950
      %v5056 = vmul.f32 1.0, %v5055
      %v5057 = vrcp.pop %v4951
      %v5058 = vmul.f32 1.0, %v5057
      %v5059 = vrcp.pop %v4952
      %v5060 = vmul.f32 1.0, %v5059
      %v5061 = vrcp.pop %v4953
      %v5062 = vmul.f32 1.0, %v5061
      %v5063 = vrcp.pop %v4954
      %v5064 = vmul.f32 1.0, %v5063
      %v5065 = vrcp.pop %v4955
      %v5066 = vmul.f32 1.0, %v5065
      %v5067 = vrcp.pop %v4956
      %v5068 = vmul.f32 1.0, %v5067
      %v5069 = vrcp.pop %v4957
      %v5070 = vmul.f32 1.0, %v5069
      %v5071 = vrcp.pop %v4958
      %v5072 = vmul.f32 1.0, %v5071
      %v5073 = vrcp.pop %v4959
      %v5074 = vmul.f32 1.0, %v5073
      %v5075 = vrcp.pop %v4960
      %v5076 = vmul.f32 1.0, %v5075
      %v5077 = vrcp.pop %v4961
      %v5078 = vmul.f32 1.0, %v5077
      %v5079 = vrcp.pop %v4962
      %v5080 = vmul.f32 1.0, %v5079
      %v5081 = vrcp.pop %v4963
      %v5082 = vmul.f32 1.0, %v5081
      %v5083 = vrcp.pop %v4964
      %v5084 = vmul.f32 1.0, %v5083
      %v5085 = vrcp.pop %v4965
      %v5086 = vmul.f32 1.0, %v5085
      %v5087 = vrcp.pop %v4966
      %v5088 = vmul.f32 1.0, %v5087
      %v5089 = vrcp.pop %v4967
      %v5090 = vmul.f32 1.0, %v5089
      %v5091 = vrcp.pop %v4968
      %v5092 = vmul.f32 1.0, %v5091
      %v5093 = vrcp.pop %v4969
      %v5094 = vmul.f32 1.0, %v5093
      %v5095 = vrcp.pop %v4970
      %v5096 = vmul.f32 1.0, %v5095
      %v5097 = vrcp.pop %v4971
      %v5098 = vmul.f32 1.0, %v5097
      %v5099 = vrcp.pop %v4972
      %v5100 = vmul.f32 1.0, %v5099
      %v5101 = vrcp.pop %v4973
      %v5102 = vmul.f32 1.0, %v5101
      %v5103 = vrcp.pop %v4974
      %v5104 = vmul.f32 1.0, %v5103
      %v5105 = vrcp.pop %v4975
      %v5106 = vmul.f32 1.0, %v5105
      %v5107 = vrcp.pop %v4976
      %v5108 = vmul.f32 1.0, %v5107
      %v5109 = vrcp.pop %v4977
      %v5110 = vmul.f32 1.0, %v5109
      %v5111 = vrcp.pop %v4978
      %v5112 = vmul.f32 1.0, %v5111
      %v5113 = vrcp.pop %v4979
      %v5114 = vmul.f32 1.0, %v5113
      %v5115 = vrcp.pop %v4980
      %v5116 = vmul.f32 1.0, %v5115
      %v5117 = vrcp.pop %v4981
      %v5118 = vmul.f32 1.0, %v5117
      %v5119 = vrcp.pop %v4982
      %v5120 = vmul.f32 1.0, %v5119
      %v5121 = vmul.f32 %v4638, %v4984
      %v5122 = vmul.f32 %v4639, %v4986
      %v5123 = vmul.f32 %v4640, %v4988
      %v5124 = vmul.f32 %v4641, %v4990
      %v5125 = vmul.f32 %v4642, %v4992
      %v5126 = vmul.f32 %v4643, %v4994
      %v5127 = vmul.f32 %v4644, %v4996
      %v5128 = vmul.f32 %v4645, %v4998
      %v5129 = vmul.f32 %v4646, %v5000
      %v5130 = vmul.f32 %v4647, %v5002
      %v5131 = vmul.f32 %v4648, %v5004
      %v5132 = vmul.f32 %v4649, %v5006
      %v5133 = vmul.f32 %v4650, %v5008
      %v5134 = vmul.f32 %v4651, %v5010
      %v5135 = vmul.f32 %v4652, %v5012
      %v5136 = vmul.f32 %v4653, %v5014
      %v5137 = vmul.f32 %v4654, %v5016
      %v5138 = vmul.f32 %v4655, %v5018
      %v5139 = vmul.f32 %v4656, %v5020
      %v5140 = vmul.f32 %v4657, %v5022
      %v5141 = vmul.f32 %v4658, %v5024
      %v5142 = vmul.f32 %v4659, %v5026
      %v5143 = vmul.f32 %v4660, %v5028
      %v5144 = vmul.f32 %v4661, %v5030
      %v5145 = vmul.f32 %v4662, %v5032
      %v5146 = vmul.f32 %v4663, %v5034
      %v5147 = vmul.f32 %v4664, %v5036
      %v5148 = vmul.f32 %v4665, %v5038
      %v5149 = vmul.f32 %v4666, %v5040
      %v5150 = vmul.f32 %v4667, %v5042
      %v5151 = vmul.f32 %v4668, %v5044
      %v5152 = vmul.f32 %v4669, %v5046
      %v5153 = vmul.f32 %v4670, %v5048
      %v5154 = vmul.f32 %v4671, %v5050
      %v5155 = vmul.f32 %v4672, %v5052
      %v5156 = vmul.f32 %v4673, %v5054
      %v5157 = vmul.f32 %v4674, %v5056
      %v5158 = vmul.f32 %v4675, %v5058
      %v5159 = vmul.f32 %v4676, %v5060
      %v5160 = vmul.f32 %v4677, %v5062
      %v5161 = vmul.f32 %v4678, %v5064
      %v5162 = vmul.f32 %v4679, %v5066
      %v5163 = vmul.f32 %v4680, %v5068
      %v5164 = vmul.f32 %v4681, %v5070
      %v5165 = vmul.f32 %v4682, %v5072
      %v5166 = vmul.f32 %v4683, %v5074
      %v5167 = vmul.f32 %v4684, %v5076
      %v5168 = vmul.f32 %v4685, %v5078
      %v5169 = vmul.f32 %v4686, %v5080
      %v5170 = vmul.f32 %v4687, %v5082
      %v5171 = vmul.f32 %v4688, %v5084
      %v5172 = vmul.f32 %v4689, %v5086
      %v5173 = vmul.f32 %v4690, %v5088
      %v5174 = vmul.f32 %v4691, %v5090
      %v5175 = vmul.f32 %v4692, %v5092
      %v5176 = vmul.f32 %v4693, %v5094
      %v5177 = vmul.f32 %v4694, %v5096
      %v5178 = vmul.f32 %v4695, %v5098
      %v5179 = vmul.f32 %v4696, %v5100
      %v5180 = vmul.f32 %v4697, %v5102
      %v5181 = vmul.f32 %v4698, %v5104
      %v5182 = vmul.f32 %v4699, %v5106
      %v5183 = vmul.f32 %v4700, %v5108
      %v5184 = vmul.f32 %v4701, %v5110
      %v5185 = vmul.f32 %v4702, %v5112
      %v5186 = vmul.f32 %v4703, %v5114
      %v5187 = vmul.f32 %v4704, %v5116
      %v5188 = vmul.f32 %v4705, %v5118
      %v5189 = vmul.f32 %v4706, %v5120
      %vm5255 = vcmask 1046528
      %v5256 = vrot.slane %v5121, 1
      %v5257 = vrot.slane %v5122, 1
      %v5258 = vsel %vm5255, %v5256, %v5257
      %v5259 = vrot.slane %v5123, 1
      %v5260 = vsel %vm5255, %v5257, %v5259
      %v5261 = vrot.slane %v5124, 1
      %v5262 = vsel %vm5255, %v5259, %v5261
      %v5263 = vrot.slane %v5125, 1
      %v5264 = vsel %vm5255, %v5261, %v5263
      %v5265 = vrot.slane %v5126, 1
      %v5266 = vsel %vm5255, %v5263, %v5265
      %v5267 = vrot.slane %v5127, 1
      %v5268 = vsel %vm5255, %v5265, %v5267
      %v5269 = vrot.slane %v5128, 1
      %v5270 = vsel %vm5255, %v5267, %v5269
      %v5271 = vrot.slane %v5129, 1
      %v5272 = vsel %vm5255, %v5269, %v5271
      %v5273 = vrot.slane %v5130, 1
      %v5274 = vsel %vm5255, %v5271, %v5273
      %v5275 = vrot.slane %v5131, 1
      %v5276 = vsel %vm5255, %v5273, %v5275
      %v5277 = vrot.slane %v5132, 1
      %v5278 = vsel %vm5255, %v5275, %v5277
      %v5279 = vrot.slane %v5133, 1
      %v5280 = vsel %vm5255, %v5277, %v5279
      %v5281 = vrot.slane %v5134, 1
      %v5282 = vsel %vm5255, %v5279, %v5281
      %v5283 = vrot.slane %v5135, 1
      %v5284 = vsel %vm5255, %v5281, %v5283
      %v5285 = vrot.slane %v5136, 1
      %v5286 = vsel %vm5255, %v5283, %v5285
      %v5287 = vrot.slane %v5137, 1
      %v5288 = vsel %vm5255, %v5285, %v5287
      %v5289 = vrot.slane %v5138, 1
      %v5290 = vsel %vm5255, %v5287, %v5289
      %v5291 = vrot.slane %v5139, 1
      %v5292 = vsel %vm5255, %v5289, %v5291
      %v5293 = vrot.slane %v5140, 1
      %v5294 = vsel %vm5255, %v5291, %v5293
      %v5295 = vrot.slane %v5141, 1
      %v5296 = vsel %vm5255, %v5293, %v5295
      %v5297 = vrot.slane %v5142, 1
      %v5298 = vsel %vm5255, %v5295, %v5297
      %v5299 = vrot.slane %v5143, 1
      %v5300 = vsel %vm5255, %v5297, %v5299
      %v5301 = vrot.slane %v5144, 1
      %v5302 = vsel %vm5255, %v5299, %v5301
      %v5303 = vrot.slane %v5145, 1
      %v5304 = vsel %vm5255, %v5301, %v5303
      %v5305 = vrot.slane %v5146, 1
      %v5306 = vsel %vm5255, %v5303, %v5305
      %v5307 = vrot.slane %v5147, 1
      %v5308 = vsel %vm5255, %v5305, %v5307
      %v5309 = vrot.slane %v5148, 1
      %v5310 = vsel %vm5255, %v5307, %v5309
      %v5311 = vrot.slane %v5149, 1
      %v5312 = vsel %vm5255, %v5309, %v5311
      %v5313 = vrot.slane %v5150, 1
      %v5314 = vsel %vm5255, %v5311, %v5313
      %v5315 = vrot.slane %v5151, 1
      %v5316 = vsel %vm5255, %v5313, %v5315
      %v5317 = vrot.slane %v5152, 1
      %v5318 = vsel %vm5255, %v5315, %v5317
      %v5319 = vrot.slane %v5153, 1
      %v5320 = vsel %vm5255, %v5317, %v5319
      %v5321 = vrot.slane %v5154, 1
      %v5322 = vsel %vm5255, %v5319, %v5321
      %v5323 = vrot.slane %v5155, 1
      %v5324 = vsel %vm5255, %v5321, %v5323
      %v5325 = vrot.slane %v5156, 1
      %v5326 = vsel %vm5255, %v5323, %v5325
      %v5327 = vrot.slane %v5157, 1
      %v5328 = vsel %vm5255, %v5325, %v5327
      %v5329 = vrot.slane %v5158, 1
      %v5330 = vsel %vm5255, %v5327, %v5329
      %v5331 = vrot.slane %v5159, 1
      %v5332 = vsel %vm5255, %v5329, %v5331
      %v5333 = vrot.slane %v5160, 1
      %v5334 = vsel %vm5255, %v5331, %v5333
      %v5335 = vrot.slane %v5161, 1
      %v5336 = vsel %vm5255, %v5333, %v5335
      %v5337 = vrot.slane %v5162, 1
      %v5338 = vsel %vm5255, %v5335, %v5337
      %v5339 = vrot.slane %v5163, 1
      %v5340 = vsel %vm5255, %v5337, %v5339
      %v5341 = vrot.slane %v5164, 1
      %v5342 = vsel %vm5255, %v5339, %v5341
      %v5343 = vrot.slane %v5165, 1
      %v5344 = vsel %vm5255, %v5341, %v5343
      %v5345 = vrot.slane %v5166, 1
      %v5346 = vsel %vm5255, %v5343, %v5345
      %v5347 = vrot.slane %v5167, 1
      %v5348 = vsel %vm5255, %v5345, %v5347
      %v5349 = vrot.slane %v5168, 1
      %v5350 = vsel %vm5255, %v5347, %v5349
      %v5351 = vrot.slane %v5169, 1
      %v5352 = vsel %vm5255, %v5349, %v5351
      %v5353 = vrot.slane %v5170, 1
      %v5354 = vsel %vm5255, %v5351, %v5353
      %v5355 = vrot.slane %v5171, 1
      %v5356 = vsel %vm5255, %v5353, %v5355
      %v5357 = vrot.slane %v5172, 1
      %v5358 = vsel %vm5255, %v5355, %v5357
      %v5359 = vrot.slane %v5173, 1
      %v5360 = vsel %vm5255, %v5357, %v5359
      %v5361 = vrot.slane %v5174, 1
      %v5362 = vsel %vm5255, %v5359, %v5361
      %v5363 = vrot.slane %v5175, 1
      %v5364 = vsel %vm5255, %v5361, %v5363
      %v5365 = vrot.slane %v5176, 1
      %v5366 = vsel %vm5255, %v5363, %v5365
      %v5367 = vrot.slane %v5177, 1
      %v5368 = vsel %vm5255, %v5365, %v5367
      %v5369 = vrot.slane %v5178, 1
      %v5370 = vsel %vm5255, %v5367, %v5369
      %v5371 = vrot.slane %v5179, 1
      %v5372 = vsel %vm5255, %v5369, %v5371
      %v5373 = vrot.slane %v5180, 1
      %v5374 = vsel %vm5255, %v5371, %v5373
      %v5375 = vrot.slane %v5181, 1
      %v5376 = vsel %vm5255, %v5373, %v5375
      %v5377 = vrot.slane %v5182, 1
      %v5378 = vsel %vm5255, %v5375, %v5377
      %v5379 = vrot.slane %v5183, 1
      %v5380 = vsel %vm5255, %v5377, %v5379
      %v5381 = vrot.slane %v5184, 1
      %v5382 = vsel %vm5255, %v5379, %v5381
      %v5383 = vrot.slane %v5185, 1
      %v5384 = vsel %vm5255, %v5381, %v5383
      %5385 = vrot.lane.b32.xlu0 %v5258, 16
      %v5386 = vpop.permute.xlu0 %5385
      %5387 = vrot.lane.b32.xlu0 %v5260, 16
      %v5388 = vpop.permute.xlu0 %5387
      %5389 = vrot.lane.b32.xlu0 %v5262, 16
      %v5390 = vpop.permute.xlu0 %5389
      %5391 = vrot.lane.b32.xlu0 %v5264, 16
      %v5392 = vpop.permute.xlu0 %5391
      %5393 = vrot.lane.b32.xlu0 %v5266, 16
      %v5394 = vpop.permute.xlu0 %5393
      %5395 = vrot.lane.b32.xlu0 %v5268, 16
      %v5396 = vpop.permute.xlu0 %5395
      %5397 = vrot.lane.b32.xlu0 %v5270, 16
      %v5398 = vpop.permute.xlu0 %5397
      %5399 = vrot.lane.b32.xlu0 %v5272, 16
      %v5400 = vpop.permute.xlu0 %5399
      %5401 = vrot.lane.b32.xlu0 %v5274, 16
      %v5402 = vpop.permute.xlu0 %5401
      %5403 = vrot.lane.b32.xlu0 %v5276, 16
      %v5404 = vpop.permute.xlu0 %5403
      %5405 = vrot.lane.b32.xlu0 %v5278, 16
      %v5406 = vpop.permute.xlu0 %5405
      %5407 = vrot.lane.b32.xlu0 %v5280, 16
      %v5408 = vpop.permute.xlu0 %5407
      %5409 = vrot.lane.b32.xlu0 %v5282, 16
      %v5410 = vpop.permute.xlu0 %5409
      %5411 = vrot.lane.b32.xlu0 %v5284, 16
      %v5412 = vpop.permute.xlu0 %5411
      %5413 = vrot.lane.b32.xlu0 %v5286, 16
      %v5414 = vpop.permute.xlu0 %5413
      %5415 = vrot.lane.b32.xlu0 %v5288, 16
      %v5416 = vpop.permute.xlu0 %5415
      %5417 = vrot.lane.b32.xlu0 %v5290, 16
      %v5418 = vpop.permute.xlu0 %5417
      %5419 = vrot.lane.b32.xlu0 %v5292, 16
      %v5420 = vpop.permute.xlu0 %5419
      %5421 = vrot.lane.b32.xlu0 %v5294, 16
      %v5422 = vpop.permute.xlu0 %5421
      %5423 = vrot.lane.b32.xlu0 %v5296, 16
      %v5424 = vpop.permute.xlu0 %5423
      %5425 = vrot.lane.b32.xlu0 %v5298, 16
      %v5426 = vpop.permute.xlu0 %5425
      %5427 = vrot.lane.b32.xlu0 %v5300, 16
      %v5428 = vpop.permute.xlu0 %5427
      %5429 = vrot.lane.b32.xlu0 %v5302, 16
      %v5430 = vpop.permute.xlu0 %5429
      %5431 = vrot.lane.b32.xlu0 %v5304, 16
      %v5432 = vpop.permute.xlu0 %5431
      %5433 = vrot.lane.b32.xlu0 %v5306, 16
      %v5434 = vpop.permute.xlu0 %5433
      %5435 = vrot.lane.b32.xlu0 %v5308, 16
      %v5436 = vpop.permute.xlu0 %5435
      %5437 = vrot.lane.b32.xlu0 %v5310, 16
      %v5438 = vpop.permute.xlu0 %5437
      %5439 = vrot.lane.b32.xlu0 %v5312, 16
      %v5440 = vpop.permute.xlu0 %5439
      %5441 = vrot.lane.b32.xlu0 %v5314, 16
      %v5442 = vpop.permute.xlu0 %5441
      %5443 = vrot.lane.b32.xlu0 %v5316, 16
      %v5444 = vpop.permute.xlu0 %5443
      %5445 = vrot.lane.b32.xlu0 %v5318, 16
      %v5446 = vpop.permute.xlu0 %5445
      %5447 = vrot.lane.b32.xlu0 %v5320, 16
      %v5448 = vpop.permute.xlu0 %5447
      %5449 = vrot.lane.b32.xlu0 %v5322, 16
      %v5450 = vpop.permute.xlu0 %5449
      %5451 = vrot.lane.b32.xlu0 %v5324, 16
      %v5452 = vpop.permute.xlu0 %5451
      %5453 = vrot.lane.b32.xlu0 %v5326, 16
      %v5454 = vpop.permute.xlu0 %5453
      %5455 = vrot.lane.b32.xlu0 %v5328, 16
      %v5456 = vpop.permute.xlu0 %5455
      %5457 = vrot.lane.b32.xlu0 %v5330, 16
      %v5458 = vpop.permute.xlu0 %5457
      %5459 = vrot.lane.b32.xlu0 %v5332, 16
      %v5460 = vpop.permute.xlu0 %5459
      %5461 = vrot.lane.b32.xlu0 %v5334, 16
      %v5462 = vpop.permute.xlu0 %5461
      %5463 = vrot.lane.b32.xlu0 %v5336, 16
      %v5464 = vpop.permute.xlu0 %5463
      %5465 = vrot.lane.b32.xlu0 %v5338, 16
      %v5466 = vpop.permute.xlu0 %5465
      %5467 = vrot.lane.b32.xlu0 %v5340, 16
      %v5468 = vpop.permute.xlu0 %5467
      %5469 = vrot.lane.b32.xlu0 %v5342, 16
      %v5470 = vpop.permute.xlu0 %5469
      %5471 = vrot.lane.b32.xlu0 %v5344, 16
      %v5472 = vpop.permute.xlu0 %5471
      %5473 = vrot.lane.b32.xlu0 %v5346, 16
      %v5474 = vpop.permute.xlu0 %5473
      %5475 = vrot.lane.b32.xlu0 %v5348, 16
      %v5476 = vpop.permute.xlu0 %5475
      %5477 = vrot.lane.b32.xlu0 %v5350, 16
      %v5478 = vpop.permute.xlu0 %5477
      %5479 = vrot.lane.b32.xlu0 %v5352, 16
      %v5480 = vpop.permute.xlu0 %5479
      %5481 = vrot.lane.b32.xlu0 %v5354, 16
      %v5482 = vpop.permute.xlu0 %5481
      %5483 = vrot.lane.b32.xlu0 %v5356, 16
      %v5484 = vpop.permute.xlu0 %5483
      %5485 = vrot.lane.b32.xlu0 %v5358, 16
      %v5486 = vpop.permute.xlu0 %5485
      %5487 = vrot.lane.b32.xlu0 %v5360, 16
      %v5488 = vpop.permute.xlu0 %5487
      %5489 = vrot.lane.b32.xlu0 %v5362, 16
      %v5490 = vpop.permute.xlu0 %5489
      %5491 = vrot.lane.b32.xlu0 %v5364, 16
      %v5492 = vpop.permute.xlu0 %5491
      %5493 = vrot.lane.b32.xlu0 %v5366, 16
      %v5494 = vpop.permute.xlu0 %5493
      %5495 = vrot.lane.b32.xlu0 %v5368, 16
      %v5496 = vpop.permute.xlu0 %5495
      %5497 = vrot.lane.b32.xlu0 %v5370, 16
      %v5498 = vpop.permute.xlu0 %5497
      %5499 = vrot.lane.b32.xlu0 %v5372, 16
      %v5500 = vpop.permute.xlu0 %5499
      %5501 = vrot.lane.b32.xlu0 %v5374, 16
      %v5502 = vpop.permute.xlu0 %5501
      %5503 = vrot.lane.b32.xlu0 %v5376, 16
      %v5504 = vpop.permute.xlu0 %5503
      %5505 = vrot.lane.b32.xlu0 %v5378, 16
      %v5506 = vpop.permute.xlu0 %5505
      %5507 = vrot.lane.b32.xlu0 %v5380, 16
      %v5508 = vpop.permute.xlu0 %5507
      %5509 = vrot.lane.b32.xlu0 %v5382, 16
      %v5510 = vpop.permute.xlu0 %5509
      %5511 = vrot.lane.b32.xlu0 %v5384, 16
      %v5512 = vpop.permute.xlu0 %5511
      %5580 = vrot.lane.b32.xlu0 %v5125, 32
      %v5581 = vpop.permute.xlu0 %5580
      %5582 = vrot.lane.b32.xlu0 %v5126, 32
      %v5583 = vpop.permute.xlu0 %5582
      %5584 = vrot.lane.b32.xlu0 %v5127, 32
      %v5585 = vpop.permute.xlu0 %5584
      %5586 = vrot.lane.b32.xlu0 %v5128, 32
      %v5587 = vpop.permute.xlu0 %5586
      %5588 = vrot.lane.b32.xlu0 %v5129, 32
      %v5589 = vpop.permute.xlu0 %5588
      %5590 = vrot.lane.b32.xlu0 %v5130, 32
      %v5591 = vpop.permute.xlu0 %5590
      %5592 = vrot.lane.b32.xlu0 %v5131, 32
      %v5593 = vpop.permute.xlu0 %5592
      %5594 = vrot.lane.b32.xlu0 %v5132, 32
      %v5595 = vpop.permute.xlu0 %5594
      %5596 = vrot.lane.b32.xlu0 %v5133, 32
      %v5597 = vpop.permute.xlu0 %5596
      %5598 = vrot.lane.b32.xlu0 %v5134, 32
      %v5599 = vpop.permute.xlu0 %5598
      %5600 = vrot.lane.b32.xlu0 %v5135, 32
      %v5601 = vpop.permute.xlu0 %5600
      %5602 = vrot.lane.b32.xlu0 %v5136, 32
      %v5603 = vpop.permute.xlu0 %5602
      %5604 = vrot.lane.b32.xlu0 %v5137, 32
      %v5605 = vpop.permute.xlu0 %5604
      %5606 = vrot.lane.b32.xlu0 %v5138, 32
      %v5607 = vpop.permute.xlu0 %5606
      %5608 = vrot.lane.b32.xlu0 %v5139, 32
      %v5609 = vpop.permute.xlu0 %5608
      %5610 = vrot.lane.b32.xlu0 %v5140, 32
      %v5611 = vpop.permute.xlu0 %5610
      %5612 = vrot.lane.b32.xlu0 %v5141, 32
      %v5613 = vpop.permute.xlu0 %5612
      %5614 = vrot.lane.b32.xlu0 %v5142, 32
      %v5615 = vpop.permute.xlu0 %5614
      %5616 = vrot.lane.b32.xlu0 %v5143, 32
      %v5617 = vpop.permute.xlu0 %5616
      %5618 = vrot.lane.b32.xlu0 %v5144, 32
      %v5619 = vpop.permute.xlu0 %5618
      %5620 = vrot.lane.b32.xlu0 %v5145, 32
      %v5621 = vpop.permute.xlu0 %5620
      %5622 = vrot.lane.b32.xlu0 %v5146, 32
      %v5623 = vpop.permute.xlu0 %5622
      %5624 = vrot.lane.b32.xlu0 %v5147, 32
      %v5625 = vpop.permute.xlu0 %5624
      %5626 = vrot.lane.b32.xlu0 %v5148, 32
      %v5627 = vpop.permute.xlu0 %5626
      %5628 = vrot.lane.b32.xlu0 %v5149, 32
      %v5629 = vpop.permute.xlu0 %5628
      %5630 = vrot.lane.b32.xlu0 %v5150, 32
      %v5631 = vpop.permute.xlu0 %5630
      %5632 = vrot.lane.b32.xlu0 %v5151, 32
      %v5633 = vpop.permute.xlu0 %5632
      %5634 = vrot.lane.b32.xlu0 %v5152, 32
      %v5635 = vpop.permute.xlu0 %5634
      %5636 = vrot.lane.b32.xlu0 %v5153, 32
      %v5637 = vpop.permute.xlu0 %5636
      %5638 = vrot.lane.b32.xlu0 %v5154, 32
      %v5639 = vpop.permute.xlu0 %5638
      %5640 = vrot.lane.b32.xlu0 %v5155, 32
      %v5641 = vpop.permute.xlu0 %5640
      %5642 = vrot.lane.b32.xlu0 %v5156, 32
      %v5643 = vpop.permute.xlu0 %5642
      %5644 = vrot.lane.b32.xlu0 %v5157, 32
      %v5645 = vpop.permute.xlu0 %5644
      %5646 = vrot.lane.b32.xlu0 %v5158, 32
      %v5647 = vpop.permute.xlu0 %5646
      %5648 = vrot.lane.b32.xlu0 %v5159, 32
      %v5649 = vpop.permute.xlu0 %5648
      %5650 = vrot.lane.b32.xlu0 %v5160, 32
      %v5651 = vpop.permute.xlu0 %5650
      %5652 = vrot.lane.b32.xlu0 %v5161, 32
      %v5653 = vpop.permute.xlu0 %5652
      %5654 = vrot.lane.b32.xlu0 %v5162, 32
      %v5655 = vpop.permute.xlu0 %5654
      %5656 = vrot.lane.b32.xlu0 %v5163, 32
      %v5657 = vpop.permute.xlu0 %5656
      %5658 = vrot.lane.b32.xlu0 %v5164, 32
      %v5659 = vpop.permute.xlu0 %5658
      %5660 = vrot.lane.b32.xlu0 %v5165, 32
      %v5661 = vpop.permute.xlu0 %5660
      %5662 = vrot.lane.b32.xlu0 %v5166, 32
      %v5663 = vpop.permute.xlu0 %5662
      %5664 = vrot.lane.b32.xlu0 %v5167, 32
      %v5665 = vpop.permute.xlu0 %5664
      %5666 = vrot.lane.b32.xlu0 %v5168, 32
      %v5667 = vpop.permute.xlu0 %5666
      %5668 = vrot.lane.b32.xlu0 %v5169, 32
      %v5669 = vpop.permute.xlu0 %5668
      %5670 = vrot.lane.b32.xlu0 %v5170, 32
      %v5671 = vpop.permute.xlu0 %5670
      %5672 = vrot.lane.b32.xlu0 %v5171, 32
      %v5673 = vpop.permute.xlu0 %5672
      %5674 = vrot.lane.b32.xlu0 %v5172, 32
      %v5675 = vpop.permute.xlu0 %5674
      %5676 = vrot.lane.b32.xlu0 %v5173, 32
      %v5677 = vpop.permute.xlu0 %5676
      %5678 = vrot.lane.b32.xlu0 %v5174, 32
      %v5679 = vpop.permute.xlu0 %5678
      %5680 = vrot.lane.b32.xlu0 %v5175, 32
      %v5681 = vpop.permute.xlu0 %5680
      %5682 = vrot.lane.b32.xlu0 %v5176, 32
      %v5683 = vpop.permute.xlu0 %5682
      %5684 = vrot.lane.b32.xlu0 %v5177, 32
      %v5685 = vpop.permute.xlu0 %5684
      %5686 = vrot.lane.b32.xlu0 %v5178, 32
      %v5687 = vpop.permute.xlu0 %5686
      %5688 = vrot.lane.b32.xlu0 %v5179, 32
      %v5689 = vpop.permute.xlu0 %5688
      %5690 = vrot.lane.b32.xlu0 %v5180, 32
      %v5691 = vpop.permute.xlu0 %5690
      %5692 = vrot.lane.b32.xlu0 %v5181, 32
      %v5693 = vpop.permute.xlu0 %5692
      %5694 = vrot.lane.b32.xlu0 %v5182, 32
      %v5695 = vpop.permute.xlu0 %5694
      %5696 = vrot.lane.b32.xlu0 %v5183, 32
      %v5697 = vpop.permute.xlu0 %5696
      %5698 = vrot.lane.b32.xlu0 %v5184, 32
      %v5699 = vpop.permute.xlu0 %5698
      %5700 = vrot.lane.b32.xlu0 %v5185, 32
      %v5701 = vpop.permute.xlu0 %5700
      %5702 = vrot.lane.b32.xlu0 %v5186, 32
      %v5703 = vpop.permute.xlu0 %5702
      %5704 = vrot.lane.b32.xlu0 %v5187, 32
      %v5705 = vpop.permute.xlu0 %5704
      %5706 = vrot.lane.b32.xlu0 %v5188, 32
      %v5707 = vpop.permute.xlu0 %5706
      %v5773 = vrot.slane %v5186, 1
      %v5774 = vsel %vm5255, %v5383, %v5773
      %v5775 = vrot.slane %v5187, 1
      %v5776 = vsel %vm5255, %v5773, %v5775
      %v5777 = vrot.slane %v5188, 1
      %v5778 = vsel %vm5255, %v5775, %v5777
      %v5779 = vrot.slane %v5189, 1
      %v5780 = vsel %vm5255, %v5777, %v5779
      %5781 = vrot.lane.b32.xlu0 %v5266, 48
      %v5782 = vpop.permute.xlu0 %5781
      %5783 = vrot.lane.b32.xlu0 %v5268, 48
      %v5784 = vpop.permute.xlu0 %5783
      %5785 = vrot.lane.b32.xlu0 %v5270, 48
      %v5786 = vpop.permute.xlu0 %5785
      %5787 = vrot.lane.b32.xlu0 %v5272, 48
      %v5788 = vpop.permute.xlu0 %5787
      %5789 = vrot.lane.b32.xlu0 %v5274, 48
      %v5790 = vpop.permute.xlu0 %5789
      %5791 = vrot.lane.b32.xlu0 %v5276, 48
      %v5792 = vpop.permute.xlu0 %5791
      %5793 = vrot.lane.b32.xlu0 %v5278, 48
      %v5794 = vpop.permute.xlu0 %5793
      %5795 = vrot.lane.b32.xlu0 %v5280, 48
      %v5796 = vpop.permute.xlu0 %5795
      %5797 = vrot.lane.b32.xlu0 %v5282, 48
      %v5798 = vpop.permute.xlu0 %5797
      %5799 = vrot.lane.b32.xlu0 %v5284, 48
      %v5800 = vpop.permute.xlu0 %5799
      %5801 = vrot.lane.b32.xlu0 %v5286, 48
      %v5802 = vpop.permute.xlu0 %5801
      %5803 = vrot.lane.b32.xlu0 %v5288, 48
      %v5804 = vpop.permute.xlu0 %5803
      %5805 = vrot.lane.b32.xlu0 %v5290, 48
      %v5806 = vpop.permute.xlu0 %5805
      %5807 = vrot.lane.b32.xlu0 %v5292, 48
      %v5808 = vpop.permute.xlu0 %5807
      %5809 = vrot.lane.b32.xlu0 %v5294, 48
      %v5810 = vpop.permute.xlu0 %5809
      %5811 = vrot.lane.b32.xlu0 %v5296, 48
      %v5812 = vpop.permute.xlu0 %5811
      %5813 = vrot.lane.b32.xlu0 %v5298, 48
      %v5814 = vpop.permute.xlu0 %5813
      %5815 = vrot.lane.b32.xlu0 %v5300, 48
      %v5816 = vpop.permute.xlu0 %5815
      %5817 = vrot.lane.b32.xlu0 %v5302, 48
      %v5818 = vpop.permute.xlu0 %5817
      %5819 = vrot.lane.b32.xlu0 %v5304, 48
      %v5820 = vpop.permute.xlu0 %5819
      %5821 = vrot.lane.b32.xlu0 %v5306, 48
      %v5822 = vpop.permute.xlu0 %5821
      %5823 = vrot.lane.b32.xlu0 %v5308, 48
      %v5824 = vpop.permute.xlu0 %5823
      %5825 = vrot.lane.b32.xlu0 %v5310, 48
      %v5826 = vpop.permute.xlu0 %5825
      %5827 = vrot.lane.b32.xlu0 %v5312, 48
      %v5828 = vpop.permute.xlu0 %5827
      %5829 = vrot.lane.b32.xlu0 %v5314, 48
      %v5830 = vpop.permute.xlu0 %5829
      %5831 = vrot.lane.b32.xlu0 %v5316, 48
      %v5832 = vpop.permute.xlu0 %5831
      %5833 = vrot.lane.b32.xlu0 %v5318, 48
      %v5834 = vpop.permute.xlu0 %5833
      %5835 = vrot.lane.b32.xlu0 %v5320, 48
      %v5836 = vpop.permute.xlu0 %5835
      %5837 = vrot.lane.b32.xlu0 %v5322, 48
      %v5838 = vpop.permute.xlu0 %5837
      %5839 = vrot.lane.b32.xlu0 %v5324, 48
      %v5840 = vpop.permute.xlu0 %5839
      %5841 = vrot.lane.b32.xlu0 %v5326, 48
      %v5842 = vpop.permute.xlu0 %5841
      %5843 = vrot.lane.b32.xlu0 %v5328, 48
      %v5844 = vpop.permute.xlu0 %5843
      %5845 = vrot.lane.b32.xlu0 %v5330, 48
      %v5846 = vpop.permute.xlu0 %5845
      %5847 = vrot.lane.b32.xlu0 %v5332, 48
      %v5848 = vpop.permute.xlu0 %5847
      %5849 = vrot.lane.b32.xlu0 %v5334, 48
      %v5850 = vpop.permute.xlu0 %5849
      %5851 = vrot.lane.b32.xlu0 %v5336, 48
      %v5852 = vpop.permute.xlu0 %5851
      %5853 = vrot.lane.b32.xlu0 %v5338, 48
      %v5854 = vpop.permute.xlu0 %5853
      %5855 = vrot.lane.b32.xlu0 %v5340, 48
      %v5856 = vpop.permute.xlu0 %5855
      %5857 = vrot.lane.b32.xlu0 %v5342, 48
      %v5858 = vpop.permute.xlu0 %5857
      %5859 = vrot.lane.b32.xlu0 %v5344, 48
      %v5860 = vpop.permute.xlu0 %5859
      %5861 = vrot.lane.b32.xlu0 %v5346, 48
      %v5862 = vpop.permute.xlu0 %5861
      %5863 = vrot.lane.b32.xlu0 %v5348, 48
      %v5864 = vpop.permute.xlu0 %5863
      %5865 = vrot.lane.b32.xlu0 %v5350, 48
      %v5866 = vpop.permute.xlu0 %5865
      %5867 = vrot.lane.b32.xlu0 %v5352, 48
      %v5868 = vpop.permute.xlu0 %5867
      %5869 = vrot.lane.b32.xlu0 %v5354, 48
      %v5870 = vpop.permute.xlu0 %5869
      %5871 = vrot.lane.b32.xlu0 %v5356, 48
      %v5872 = vpop.permute.xlu0 %5871
      %5873 = vrot.lane.b32.xlu0 %v5358, 48
      %v5874 = vpop.permute.xlu0 %5873
      %5875 = vrot.lane.b32.xlu0 %v5360, 48
      %v5876 = vpop.permute.xlu0 %5875
      %5877 = vrot.lane.b32.xlu0 %v5362, 48
      %v5878 = vpop.permute.xlu0 %5877
      %5879 = vrot.lane.b32.xlu0 %v5364, 48
      %v5880 = vpop.permute.xlu0 %5879
      %5881 = vrot.lane.b32.xlu0 %v5366, 48
      %v5882 = vpop.permute.xlu0 %5881
      %5883 = vrot.lane.b32.xlu0 %v5368, 48
      %v5884 = vpop.permute.xlu0 %5883
      %5885 = vrot.lane.b32.xlu0 %v5370, 48
      %v5886 = vpop.permute.xlu0 %5885
      %5887 = vrot.lane.b32.xlu0 %v5372, 48
      %v5888 = vpop.permute.xlu0 %5887
      %5889 = vrot.lane.b32.xlu0 %v5374, 48
      %v5890 = vpop.permute.xlu0 %5889
      %5891 = vrot.lane.b32.xlu0 %v5376, 48
      %v5892 = vpop.permute.xlu0 %5891
      %5893 = vrot.lane.b32.xlu0 %v5378, 48
      %v5894 = vpop.permute.xlu0 %5893
      %5895 = vrot.lane.b32.xlu0 %v5380, 48
      %v5896 = vpop.permute.xlu0 %5895
      %5897 = vrot.lane.b32.xlu0 %v5382, 48
      %v5898 = vpop.permute.xlu0 %5897
      %5899 = vrot.lane.b32.xlu0 %v5384, 48
      %v5900 = vpop.permute.xlu0 %5899
      %5901 = vrot.lane.b32.xlu0 %v5774, 48
      %v5902 = vpop.permute.xlu0 %5901
      %5903 = vrot.lane.b32.xlu0 %v5776, 48
      %v5904 = vpop.permute.xlu0 %5903
      %5905 = vrot.lane.b32.xlu0 %v5778, 48
      %v5906 = vpop.permute.xlu0 %5905
      %5907 = vrot.lane.b32.xlu0 %v5780, 48
      %v5908 = vpop.permute.xlu0 %5907
      %v5973 = vsel %vm828, %v5121, %v5386
      %v5974 = vsel %vm828, %v5122, %v5388
      %v5975 = vsel %vm828, %v5123, %v5390
      %v5976 = vsel %vm828, %v5124, %v5392
      %v5977 = vsel %vm828, %v5125, %v5394
      %v5978 = vsel %vm828, %v5126, %v5396
      %v5979 = vsel %vm828, %v5127, %v5398
      %v5980 = vsel %vm828, %v5128, %v5400
      %v5981 = vsel %vm828, %v5129, %v5402
      %v5982 = vsel %vm828, %v5130, %v5404
      %v5983 = vsel %vm828, %v5131, %v5406
      %v5984 = vsel %vm828, %v5132, %v5408
      %v5985 = vsel %vm828, %v5133, %v5410
      %v5986 = vsel %vm828, %v5134, %v5412
      %v5987 = vsel %vm828, %v5135, %v5414
      %v5988 = vsel %vm828, %v5136, %v5416
      %v5989 = vsel %vm828, %v5137, %v5418
      %v5990 = vsel %vm828, %v5138, %v5420
      %v5991 = vsel %vm828, %v5139, %v5422
      %v5992 = vsel %vm828, %v5140, %v5424
      %v5993 = vsel %vm828, %v5141, %v5426
      %v5994 = vsel %vm828, %v5142, %v5428
      %v5995 = vsel %vm828, %v5143, %v5430
      %v5996 = vsel %vm828, %v5144, %v5432
      %v5997 = vsel %vm828, %v5145, %v5434
      %v5998 = vsel %vm828, %v5146, %v5436
      %v5999 = vsel %vm828, %v5147, %v5438
      %v6000 = vsel %vm828, %v5148, %v5440
      %v6001 = vsel %vm828, %v5149, %v5442
      %v6002 = vsel %vm828, %v5150, %v5444
      %v6003 = vsel %vm828, %v5151, %v5446
      %v6004 = vsel %vm828, %v5152, %v5448
      %v6005 = vsel %vm828, %v5153, %v5450
      %v6006 = vsel %vm828, %v5154, %v5452
      %v6007 = vsel %vm828, %v5155, %v5454
      %v6008 = vsel %vm828, %v5156, %v5456
      %v6009 = vsel %vm828, %v5157, %v5458
      %v6010 = vsel %vm828, %v5158, %v5460
      %v6011 = vsel %vm828, %v5159, %v5462
      %v6012 = vsel %vm828, %v5160, %v5464
      %v6013 = vsel %vm828, %v5161, %v5466
      %v6014 = vsel %vm828, %v5162, %v5468
      %v6015 = vsel %vm828, %v5163, %v5470
      %v6016 = vsel %vm828, %v5164, %v5472
      %v6017 = vsel %vm828, %v5165, %v5474
      %v6018 = vsel %vm828, %v5166, %v5476
      %v6019 = vsel %vm828, %v5167, %v5478
      %v6020 = vsel %vm828, %v5168, %v5480
      %v6021 = vsel %vm828, %v5169, %v5482
      %v6022 = vsel %vm828, %v5170, %v5484
      %v6023 = vsel %vm828, %v5171, %v5486
      %v6024 = vsel %vm828, %v5172, %v5488
      %v6025 = vsel %vm828, %v5173, %v5490
      %v6026 = vsel %vm828, %v5174, %v5492
      %v6027 = vsel %vm828, %v5175, %v5494
      %v6028 = vsel %vm828, %v5176, %v5496
      %v6029 = vsel %vm828, %v5177, %v5498
      %v6030 = vsel %vm828, %v5178, %v5500
      %v6031 = vsel %vm828, %v5179, %v5502
      %v6032 = vsel %vm828, %v5180, %v5504
      %v6033 = vsel %vm828, %v5181, %v5506
      %v6034 = vsel %vm828, %v5182, %v5508
      %v6035 = vsel %vm828, %v5183, %v5510
      %v6036 = vsel %vm828, %v5184, %v5512
      %v6037 = vsel %vm2124, %v5973, %v5581
      %v6038 = vsel %vm2124, %v5974, %v5583
      %v6039 = vsel %vm2124, %v5975, %v5585
      %v6040 = vsel %vm2124, %v5976, %v5587
      %v6041 = vsel %vm2124, %v5977, %v5589
      %v6042 = vsel %vm2124, %v5978, %v5591
      %v6043 = vsel %vm2124, %v5979, %v5593
      %v6044 = vsel %vm2124, %v5980, %v5595
      %v6045 = vsel %vm2124, %v5981, %v5597
      %v6046 = vsel %vm2124, %v5982, %v5599
      %v6047 = vsel %vm2124, %v5983, %v5601
      %v6048 = vsel %vm2124, %v5984, %v5603
      %v6049 = vsel %vm2124, %v5985, %v5605
      %v6050 = vsel %vm2124, %v5986, %v5607
      %v6051 = vsel %vm2124, %v5987, %v5609
      %v6052 = vsel %vm2124, %v5988, %v5611
      %v6053 = vsel %vm2124, %v5989, %v5613
      %v6054 = vsel %vm2124, %v5990, %v5615
      %v6055 = vsel %vm2124, %v5991, %v5617
      %v6056 = vsel %vm2124, %v5992, %v5619
      %v6057 = vsel %vm2124, %v5993, %v5621
      %v6058 = vsel %vm2124, %v5994, %v5623
      %v6059 = vsel %vm2124, %v5995, %v5625
      %v6060 = vsel %vm2124, %v5996, %v5627
      %v6061 = vsel %vm2124, %v5997, %v5629
      %v6062 = vsel %vm2124, %v5998, %v5631
      %v6063 = vsel %vm2124, %v5999, %v5633
      %v6064 = vsel %vm2124, %v6000, %v5635
      %v6065 = vsel %vm2124, %v6001, %v5637
      %v6066 = vsel %vm2124, %v6002, %v5639
      %v6067 = vsel %vm2124, %v6003, %v5641
      %v6068 = vsel %vm2124, %v6004, %v5643
      %v6069 = vsel %vm2124, %v6005, %v5645
      %v6070 = vsel %vm2124, %v6006, %v5647
      %v6071 = vsel %vm2124, %v6007, %v5649
      %v6072 = vsel %vm2124, %v6008, %v5651
      %v6073 = vsel %vm2124, %v6009, %v5653
      %v6074 = vsel %vm2124, %v6010, %v5655
      %v6075 = vsel %vm2124, %v6011, %v5657
      %v6076 = vsel %vm2124, %v6012, %v5659
      %v6077 = vsel %vm2124, %v6013, %v5661
      %v6078 = vsel %vm2124, %v6014, %v5663
      %v6079 = vsel %vm2124, %v6015, %v5665
      %v6080 = vsel %vm2124, %v6016, %v5667
      %v6081 = vsel %vm2124, %v6017, %v5669
      %v6082 = vsel %vm2124, %v6018, %v5671
      %v6083 = vsel %vm2124, %v6019, %v5673
      %v6084 = vsel %vm2124, %v6020, %v5675
      %v6085 = vsel %vm2124, %v6021, %v5677
      %v6086 = vsel %vm2124, %v6022, %v5679
      %v6087 = vsel %vm2124, %v6023, %v5681
      %v6088 = vsel %vm2124, %v6024, %v5683
      %v6089 = vsel %vm2124, %v6025, %v5685
      %v6090 = vsel %vm2124, %v6026, %v5687
      %v6091 = vsel %vm2124, %v6027, %v5689
      %v6092 = vsel %vm2124, %v6028, %v5691
      %v6093 = vsel %vm2124, %v6029, %v5693
      %v6094 = vsel %vm2124, %v6030, %v5695
      %v6095 = vsel %vm2124, %v6031, %v5697
      %v6096 = vsel %vm2124, %v6032, %v5699
      %v6097 = vsel %vm2124, %v6033, %v5701
      %v6098 = vsel %vm2124, %v6034, %v5703
      %v6099 = vsel %vm2124, %v6035, %v5705
      %v6100 = vsel %vm2124, %v6036, %v5707
      %v6101 = vsel %vm2197, %v6037, %v5782
      %v6102 = vsel %vm2197, %v6038, %v5784
      %v6103 = vsel %vm2197, %v6039, %v5786
      %v6104 = vsel %vm2197, %v6040, %v5788
      %v6105 = vsel %vm2197, %v6041, %v5790
      %v6106 = vsel %vm2197, %v6042, %v5792
      %v6107 = vsel %vm2197, %v6043, %v5794
      %v6108 = vsel %vm2197, %v6044, %v5796
      %v6109 = vsel %vm2197, %v6045, %v5798
      %v6110 = vsel %vm2197, %v6046, %v5800
      %v6111 = vsel %vm2197, %v6047, %v5802
      %v6112 = vsel %vm2197, %v6048, %v5804
      %v6113 = vsel %vm2197, %v6049, %v5806
      %v6114 = vsel %vm2197, %v6050, %v5808
      %v6115 = vsel %vm2197, %v6051, %v5810
      %v6116 = vsel %vm2197, %v6052, %v5812
      %v6117 = vsel %vm2197, %v6053, %v5814
      %v6118 = vsel %vm2197, %v6054, %v5816
      %v6119 = vsel %vm2197, %v6055, %v5818
      %v6120 = vsel %vm2197, %v6056, %v5820
      %v6121 = vsel %vm2197, %v6057, %v5822
      %v6122 = vsel %vm2197, %v6058, %v5824
      %v6123 = vsel %vm2197, %v6059, %v5826
      %v6124 = vsel %vm2197, %v6060, %v5828
      %v6125 = vsel %vm2197, %v6061, %v5830
      %v6126 = vsel %vm2197, %v6062, %v5832
      %v6127 = vsel %vm2197, %v6063, %v5834
      %v6128 = vsel %vm2197, %v6064, %v5836
      %v6129 = vsel %vm2197, %v6065, %v5838
      %v6130 = vsel %vm2197, %v6066, %v5840
      %v6131 = vsel %vm2197, %v6067, %v5842
      %v6132 = vsel %vm2197, %v6068, %v5844
      %v6133 = vsel %vm2197, %v6069, %v5846
      %v6134 = vsel %vm2197, %v6070, %v5848
      %v6135 = vsel %vm2197, %v6071, %v5850
      %v6136 = vsel %vm2197, %v6072, %v5852
      %v6137 = vsel %vm2197, %v6073, %v5854
      %v6138 = vsel %vm2197, %v6074, %v5856
      %v6139 = vsel %vm2197, %v6075, %v5858
      %v6140 = vsel %vm2197, %v6076, %v5860
      %v6141 = vsel %vm2197, %v6077, %v5862
      %v6142 = vsel %vm2197, %v6078, %v5864
      %v6143 = vsel %vm2197, %v6079, %v5866
      %v6144 = vsel %vm2197, %v6080, %v5868
      %v6145 = vsel %vm2197, %v6081, %v5870
      %v6146 = vsel %vm2197, %v6082, %v5872
      %v6147 = vsel %vm2197, %v6083, %v5874
      %v6148 = vsel %vm2197, %v6084, %v5876
      %v6149 = vsel %vm2197, %v6085, %v5878
      %v6150 = vsel %vm2197, %v6086, %v5880
      %v6151 = vsel %vm2197, %v6087, %v5882
      %v6152 = vsel %vm2197, %v6088, %v5884
      %v6153 = vsel %vm2197, %v6089, %v5886
      %v6154 = vsel %vm2197, %v6090, %v5888
      %v6155 = vsel %vm2197, %v6091, %v5890
      %v6156 = vsel %vm2197, %v6092, %v5892
      %v6157 = vsel %vm2197, %v6093, %v5894
      %v6158 = vsel %vm2197, %v6094, %v5896
      %v6159 = vsel %vm2197, %v6095, %v5898
      %v6160 = vsel %vm2197, %v6096, %v5900
      %v6161 = vsel %vm2197, %v6097, %v5902
      %v6162 = vsel %vm2197, %v6098, %v5904
      %v6163 = vsel %vm2197, %v6099, %v5906
      %v6164 = vsel %vm2197, %v6100, %v5908
      %v6165 = vpack.c.bf16 %v6102, %v6101
      %v6166 = vpack.c.bf16 %v6104, %v6103
      %v6167 = vpack.c.bf16 %v6106, %v6105
      %v6168 = vpack.c.bf16 %v6108, %v6107
      %v6169 = vpack.c.bf16 %v6110, %v6109
      %v6170 = vpack.c.bf16 %v6112, %v6111
      %v6171 = vpack.c.bf16 %v6114, %v6113
      %v6172 = vpack.c.bf16 %v6116, %v6115
      %v6173 = vpack.c.bf16 %v6118, %v6117
      %v6174 = vpack.c.bf16 %v6120, %v6119
      %v6175 = vpack.c.bf16 %v6122, %v6121
      %v6176 = vpack.c.bf16 %v6124, %v6123
      %v6177 = vpack.c.bf16 %v6126, %v6125
      %v6178 = vpack.c.bf16 %v6128, %v6127
      %v6179 = vpack.c.bf16 %v6130, %v6129
      %v6180 = vpack.c.bf16 %v6132, %v6131
      %v6181 = vpack.c.bf16 %v6134, %v6133
      %v6182 = vpack.c.bf16 %v6136, %v6135
      %v6183 = vpack.c.bf16 %v6138, %v6137
      %v6184 = vpack.c.bf16 %v6140, %v6139
      %v6185 = vpack.c.bf16 %v6142, %v6141
      %v6186 = vpack.c.bf16 %v6144, %v6143
      %v6187 = vpack.c.bf16 %v6146, %v6145
      %v6188 = vpack.c.bf16 %v6148, %v6147
      %v6189 = vpack.c.bf16 %v6150, %v6149
      %v6190 = vpack.c.bf16 %v6152, %v6151
      %v6191 = vpack.c.bf16 %v6154, %v6153
      %v6192 = vpack.c.bf16 %v6156, %v6155
      %v6193 = vpack.c.bf16 %v6158, %v6157
      %v6194 = vpack.c.bf16 %v6160, %v6159
      %v6195 = vpack.c.bf16 %v6162, %v6161
      %v6196 = vpack.c.bf16 %v6164, %v6163
      %v6197 = vld [vmem:[%s5] sm:$0xf]
      %v6198 = vld [vmem:[%s5 + $0x4] sm:$0xf]
      %v6199 = vld [vmem:[%s5 + $0x8] sm:$0xf]
      %v6200 = vld [vmem:[%s5 + $0xc] sm:$0xf]
      %v6201 = vld [vmem:[%s5 + $0x10] sm:$0xf]
      %v6202 = vld [vmem:[%s5 + $0x14] sm:$0xf]
      %v6203 = vld [vmem:[%s5 + $0x18] sm:$0xf]
      %v6204 = vld [vmem:[%s5 + $0x1c] sm:$0xf]
      %v6205 = vld [vmem:[%s6] sm:$0x1]
      %v6207 = vlaneseq
      %v6208 = vshrl.u32 %v6207, 7
      %v6209 = vsub.s32 0, %v6208
      %v6210 = vrot.slane %v6205, %v6209
      %v6220 = vunpack.c.l.b16 %v6197
      %v6221 = vunpack.c.l.b16 %v6198
      %v6222 = vunpack.c.l.b16 %v6199
      %v6223 = vunpack.c.l.b16 %v6200
      %v6224 = vunpack.c.l.b16 %v6201
      %v6225 = vunpack.c.l.b16 %v6202
      %v6226 = vunpack.c.l.b16 %v6203
      %v6227 = vunpack.c.l.b16 %v6204
      %v6228 = vpack.c.b16 %v6221, %v6220
      %v6229 = vpack.c.b16 %v6223, %v6222
      %v6230 = vpack.c.b16 %v6225, %v6224
      %v6231 = vpack.c.b16 %v6227, %v6226
      %v6237 = vsel %vm2270, %v6165, 0
      %v6240 = vsel %vm2270, %v6166, 0
      %v6243 = vsel %vm2270, %v6167, 0
      %v6246 = vsel %vm2270, %v6168, 0
      %v6249 = vsel %vm2270, %v6169, 0
      %v6252 = vsel %vm2270, %v6170, 0
      %v6255 = vsel %vm2270, %v6171, 0
      %v6258 = vsel %vm2270, %v6172, 0
      %v6261 = vsel %vm2270, %v6173, 0
      %v6264 = vsel %vm2270, %v6174, 0
      %v6267 = vsel %vm2270, %v6175, 0
      %v6270 = vsel %vm2270, %v6176, 0
      %v6273 = vsel %vm2270, %v6177, 0
      %v6276 = vsel %vm2270, %v6178, 0
      %v6279 = vsel %vm2270, %v6179, 0
      %v6282 = vsel %vm2270, %v6180, 0
      %v6285 = vsel %vm2270, %v6181, 0
      %v6288 = vsel %vm2270, %v6182, 0
      %v6291 = vsel %vm2270, %v6183, 0
      %v6294 = vsel %vm2270, %v6184, 0
      %v6297 = vsel %vm2270, %v6185, 0
      %v6300 = vsel %vm2270, %v6186, 0
      %v6303 = vsel %vm2270, %v6187, 0
      %v6306 = vsel %vm2270, %v6188, 0
      %v6309 = vsel %vm2270, %v6189, 0
      %v6312 = vsel %vm2270, %v6190, 0
      %v6315 = vsel %vm2270, %v6191, 0
      %v6318 = vsel %vm2270, %v6192, 0
      %v6321 = vsel %vm2270, %v6193, 0
      %v6324 = vsel %vm2270, %v6194, 0
      %v6327 = vsel %vm2270, %v6195, 0
      %v6330 = vsel %vm2270, %v6196, 0
      %6332 = vmatprep.subr.bf16.mxu0 0
      %6333 = vmatpush1.bf16.msra.mxu0 %v6228
      %6334 = vmatprep.subr.bf16.mxu0 0
      %6335 = vmatpush1.bf16.msra.mxu0 %v6229
      %6336 = vmatprep.subr.bf16.mxu0 0
      %6337 = vmatpush1.bf16.msra.mxu0 %v6230
      %6338 = vmatprep.subr.bf16.mxu0 0
      %6339 = vmatpush1.bf16.msra.mxu0 %v6231
      %6340 = vmatprep.subr.bf16.mxu0 0
      %6341 = vmatpush1.bf16.msra.mxu0 0
      %6342 = vmatprep.subr.bf16.mxu0 0
      %6343 = vmatpush1.bf16.msra.mxu0 0
      %6344 = vmatprep.subr.bf16.mxu0 0
      %6345 = vmatpush1.bf16.msra.mxu0 0
      %6346 = vmatprep.subr.bf16.mxu0 0
      %6347 = vmatpush1.bf16.msra.mxu0 0
      %6348 = vmatprep.subr.bf16.mxu0 0
      %6349 = vmatpush1.bf16.msra.mxu0 0
      %6350 = vmatprep.subr.bf16.mxu0 0
      %6351 = vmatpush1.bf16.msra.mxu0 0
      %6352 = vmatprep.subr.bf16.mxu0 0
      %6353 = vmatpush1.bf16.msra.mxu0 0
      %6354 = vmatprep.subr.bf16.mxu0 0
      %6355 = vmatpush1.bf16.msra.mxu0 0
      %6356 = vmatprep.subr.bf16.mxu0 0
      %6357 = vmatpush1.bf16.msra.mxu0 0
      %6358 = vmatprep.subr.bf16.mxu0 0
      %6359 = vmatpush1.bf16.msra.mxu0 0
      %6360 = vmatprep.subr.bf16.mxu0 0
      %6361 = vmatpush1.bf16.msra.mxu0 0
      %6362 = vmatprep.subr.bf16.mxu0 0
      %6363 = vmatpush1.bf16.msra.mxu0 0
      %6364 = vmatprep.mubr.bf16.mxu0 0
      %6365 = vmatmul.mubr.bf16.gmra.mrb[0].mxu0 %v6237
      %v6366 = vpop.f32.mrb[0].mxu0
      %v6367 = vadd.f32 %v6210, %v6366
      %v6368 = vpop.f32.mrb[0].mxu0
      %v6369 = vpop.f32.mrb[0].mxu0
      %v6370 = vadd.f32 %v6210, %v6369
      %v6371 = vpop.f32.mrb[0].mxu0
      %6372 = vmatprep.mubr.bf16.mxu0 0
      %6373 = vmatmul.mubr.bf16.gmra.mrb[0].mxu0 %v6240
      %v6374 = vpop.f32.mrb[0].mxu0
      %v6375 = vpop.f32.mrb[0].mxu0
      %v6376 = vpop.f32.mrb[0].mxu0
      %v6377 = vpop.f32.mrb[0].mxu0
      %6378 = vmatprep.mubr.bf16.mxu0 0
      %6379 = vmatmul.mubr.bf16.gmra.mrb[0].mxu0 %v6243
      %v6380 = vpop.f32.mrb[0].mxu0
      %v6381 = vadd.f32 %v6210, %v6380
      %v6382 = vpop.f32.mrb[0].mxu0
      %v6383 = vpop.f32.mrb[0].mxu0
      %v6384 = vadd.f32 %v6210, %v6383
      %v6385 = vpop.f32.mrb[0].mxu0
      %6386 = vmatprep.mubr.bf16.mxu0 0
      %6387 = vmatmul.mubr.bf16.gmra.mrb[0].mxu0 %v6246
      %v6388 = vpop.f32.mrb[0].mxu0
      %v6389 = vpop.f32.mrb[0].mxu0
      %v6390 = vpop.f32.mrb[0].mxu0
      %v6391 = vpop.f32.mrb[0].mxu0
      %6392 = vmatprep.mubr.bf16.mxu0 0
      %6393 = vmatmul.mubr.bf16.gmra.mrb[0].mxu0 %v6249
      %v6394 = vpop.f32.mrb[0].mxu0
      %v6395 = vadd.f32 %v6210, %v6394
      %v6396 = vpop.f32.mrb[0].mxu0
      %v6397 = vpop.f32.mrb[0].mxu0
      %v6398 = vadd.f32 %v6210, %v6397
      %v6399 = vpop.f32.mrb[0].mxu0
      %6400 = vmatprep.mubr.bf16.mxu0 0
      %6401 = vmatmul.mubr.bf16.gmra.mrb[0].mxu0 %v6252
      %v6402 = vpop.f32.mrb[0].mxu0
      %v6403 = vpop.f32.mrb[0].mxu0
      %v6404 = vpop.f32.mrb[0].mxu0
      %v6405 = vpop.f32.mrb[0].mxu0
      %6406 = vmatprep.mubr.bf16.mxu0 0
      %6407 = vmatmul.mubr.bf16.gmra.mrb[0].mxu0 %v6255
      %v6408 = vpop.f32.mrb[0].mxu0
      %v6409 = vadd.f32 %v6210, %v6408
      %v6410 = vpop.f32.mrb[0].mxu0
      %v6411 = vpop.f32.mrb[0].mxu0
      %v6412 = vadd.f32 %v6210, %v6411
      %v6413 = vpop.f32.mrb[0].mxu0
      %6414 = vmatprep.mubr.bf16.mxu0 0
      %6415 = vmatmul.mubr.bf16.gmra.mrb[0].mxu0 %v6258
      %v6416 = vpop.f32.mrb[0].mxu0
      %v6417 = vpop.f32.mrb[0].mxu0
      %v6418 = vpop.f32.mrb[0].mxu0
      %v6419 = vpop.f32.mrb[0].mxu0
      %6420 = vmatprep.mubr.bf16.mxu0 0
      %6421 = vmatmul.mubr.bf16.gmra.mrb[0].mxu0 %v6261
      %v6422 = vpop.f32.mrb[0].mxu0
      %v6423 = vadd.f32 %v6210, %v6422
      %v6424 = vpop.f32.mrb[0].mxu0
      %v6425 = vpop.f32.mrb[0].mxu0
      %v6426 = vadd.f32 %v6210, %v6425
      %v6427 = vpop.f32.mrb[0].mxu0
      %6428 = vmatprep.mubr.bf16.mxu0 0
      %6429 = vmatmul.mubr.bf16.gmra.mrb[0].mxu0 %v6264
      %v6430 = vpop.f32.mrb[0].mxu0
      %v6431 = vpop.f32.mrb[0].mxu0
      %v6432 = vpop.f32.mrb[0].mxu0
      %v6433 = vpop.f32.mrb[0].mxu0
      %6434 = vmatprep.mubr.bf16.mxu0 0
      %6435 = vmatmul.mubr.bf16.gmra.mrb[0].mxu0 %v6267
      %v6436 = vpop.f32.mrb[0].mxu0
      %v6437 = vadd.f32 %v6210, %v6436
      %v6438 = vpop.f32.mrb[0].mxu0
      %v6439 = vpop.f32.mrb[0].mxu0
      %v6440 = vadd.f32 %v6210, %v6439
      %v6441 = vpop.f32.mrb[0].mxu0
      %6442 = vmatprep.mubr.bf16.mxu0 0
      %6443 = vmatmul.mubr.bf16.gmra.mrb[0].mxu0 %v6270
      %v6444 = vpop.f32.mrb[0].mxu0
      %v6445 = vpop.f32.mrb[0].mxu0
      %v6446 = vpop.f32.mrb[0].mxu0
      %v6447 = vpop.f32.mrb[0].mxu0
      %6448 = vmatprep.mubr.bf16.mxu0 0
      %6449 = vmatmul.mubr.bf16.gmra.mrb[0].mxu0 %v6273
      %v6450 = vpop.f32.mrb[0].mxu0
      %v6451 = vadd.f32 %v6210, %v6450
      %v6452 = vpop.f32.mrb[0].mxu0
      %v6453 = vpop.f32.mrb[0].mxu0
      %v6454 = vadd.f32 %v6210, %v6453
      %v6455 = vpop.f32.mrb[0].mxu0
      %6456 = vmatprep.mubr.bf16.mxu0 0
      %6457 = vmatmul.mubr.bf16.gmra.mrb[0].mxu0 %v6276
      %v6458 = vpop.f32.mrb[0].mxu0
      %v6459 = vpop.f32.mrb[0].mxu0
      %v6460 = vpop.f32.mrb[0].mxu0
      %v6461 = vpop.f32.mrb[0].mxu0
      %6462 = vmatprep.mubr.bf16.mxu0 0
      %6463 = vmatmul.mubr.bf16.gmra.mrb[0].mxu0 %v6279
      %v6464 = vpop.f32.mrb[0].mxu0
      %v6465 = vadd.f32 %v6210, %v6464
      %v6466 = vpop.f32.mrb[0].mxu0
      %v6467 = vpop.f32.mrb[0].mxu0
      %v6468 = vadd.f32 %v6210, %v6467
      %v6469 = vpop.f32.mrb[0].mxu0
      %6470 = vmatprep.mubr.bf16.mxu0 0
      %6471 = vmatmul.mubr.bf16.gmra.mrb[0].mxu0 %v6282
      %v6472 = vpop.f32.mrb[0].mxu0
      %v6473 = vpop.f32.mrb[0].mxu0
      %v6474 = vpop.f32.mrb[0].mxu0
      %v6475 = vpop.f32.mrb[0].mxu0
      %6476 = vmatprep.mubr.bf16.mxu0 0
      %6477 = vmatmul.mubr.bf16.gmra.mrb[0].mxu0 %v6285
      %v6478 = vpop.f32.mrb[0].mxu0
      %v6479 = vadd.f32 %v6210, %v6478
      %v6480 = vpop.f32.mrb[0].mxu0
      %v6481 = vpop.f32.mrb[0].mxu0
      %v6482 = vadd.f32 %v6210, %v6481
      %v6483 = vpop.f32.mrb[0].mxu0
      %6484 = vmatprep.mubr.bf16.mxu0 0
      %6485 = vmatmul.mubr.bf16.gmra.mrb[0].mxu0 %v6288
      %v6486 = vpop.f32.mrb[0].mxu0
      %v6487 = vpop.f32.mrb[0].mxu0
      %v6488 = vpop.f32.mrb[0].mxu0
      %v6489 = vpop.f32.mrb[0].mxu0
      %6490 = vmatprep.mubr.bf16.mxu0 0
      %6491 = vmatmul.mubr.bf16.gmra.mrb[0].mxu0 %v6291
      %v6492 = vpop.f32.mrb[0].mxu0
      %v6493 = vadd.f32 %v6210, %v6492
      %v6494 = vpop.f32.mrb[0].mxu0
      %v6495 = vpop.f32.mrb[0].mxu0
      %v6496 = vadd.f32 %v6210, %v6495
      %v6497 = vpop.f32.mrb[0].mxu0
      %6498 = vmatprep.mubr.bf16.mxu0 0
      %6499 = vmatmul.mubr.bf16.gmra.mrb[0].mxu0 %v6294
      %v6500 = vpop.f32.mrb[0].mxu0
      %v6501 = vpop.f32.mrb[0].mxu0
      %v6502 = vpop.f32.mrb[0].mxu0
      %v6503 = vpop.f32.mrb[0].mxu0
      %6504 = vmatprep.mubr.bf16.mxu0 0
      %6505 = vmatmul.mubr.bf16.gmra.mrb[0].mxu0 %v6297
      %v6506 = vpop.f32.mrb[0].mxu0
      %v6507 = vadd.f32 %v6210, %v6506
      %v6508 = vpop.f32.mrb[0].mxu0
      %v6509 = vpop.f32.mrb[0].mxu0
      %v6510 = vadd.f32 %v6210, %v6509
      %v6511 = vpop.f32.mrb[0].mxu0
      %6512 = vmatprep.mubr.bf16.mxu0 0
      %6513 = vmatmul.mubr.bf16.gmra.mrb[0].mxu0 %v6300
      %v6514 = vpop.f32.mrb[0].mxu0
      %v6515 = vpop.f32.mrb[0].mxu0
      %v6516 = vpop.f32.mrb[0].mxu0
      %v6517 = vpop.f32.mrb[0].mxu0
      %6518 = vmatprep.mubr.bf16.mxu0 0
      %6519 = vmatmul.mubr.bf16.gmra.mrb[0].mxu0 %v6303
      %v6520 = vpop.f32.mrb[0].mxu0
      %v6521 = vadd.f32 %v6210, %v6520
      %v6522 = vpop.f32.mrb[0].mxu0
      %v6523 = vpop.f32.mrb[0].mxu0
      %v6524 = vadd.f32 %v6210, %v6523
      %v6525 = vpop.f32.mrb[0].mxu0
      %6526 = vmatprep.mubr.bf16.mxu0 0
      %6527 = vmatmul.mubr.bf16.gmra.mrb[0].mxu0 %v6306
      %v6528 = vpop.f32.mrb[0].mxu0
      %v6529 = vpop.f32.mrb[0].mxu0
      %v6530 = vpop.f32.mrb[0].mxu0
      %v6531 = vpop.f32.mrb[0].mxu0
      %6532 = vmatprep.mubr.bf16.mxu0 0
      %6533 = vmatmul.mubr.bf16.gmra.mrb[0].mxu0 %v6309
      %v6534 = vpop.f32.mrb[0].mxu0
      %v6535 = vadd.f32 %v6210, %v6534
      %v6536 = vpop.f32.mrb[0].mxu0
      %v6537 = vpop.f32.mrb[0].mxu0
      %v6538 = vadd.f32 %v6210, %v6537
      %v6539 = vpop.f32.mrb[0].mxu0
      %6540 = vmatprep.mubr.bf16.mxu0 0
      %6541 = vmatmul.mubr.bf16.gmra.mrb[0].mxu0 %v6312
      %v6542 = vpop.f32.mrb[0].mxu0
      %v6543 = vpop.f32.mrb[0].mxu0
      %v6544 = vpop.f32.mrb[0].mxu0
      %v6545 = vpop.f32.mrb[0].mxu0
      %6546 = vmatprep.mubr.bf16.mxu0 0
      %6547 = vmatmul.mubr.bf16.gmra.mrb[0].mxu0 %v6315
      %v6548 = vpop.f32.mrb[0].mxu0
      %v6549 = vadd.f32 %v6210, %v6548
      %v6550 = vpop.f32.mrb[0].mxu0
      %v6551 = vpop.f32.mrb[0].mxu0
      %v6552 = vadd.f32 %v6210, %v6551
      %v6553 = vpop.f32.mrb[0].mxu0
      %6554 = vmatprep.mubr.bf16.mxu0 0
      %6555 = vmatmul.mubr.bf16.gmra.mrb[0].mxu0 %v6318
      %v6556 = vpop.f32.mrb[0].mxu0
      %v6557 = vpop.f32.mrb[0].mxu0
      %v6558 = vpop.f32.mrb[0].mxu0
      %v6559 = vpop.f32.mrb[0].mxu0
      %6560 = vmatprep.mubr.bf16.mxu0 0
      %6561 = vmatmul.mubr.bf16.gmra.mrb[0].mxu0 %v6321
      %v6562 = vpop.f32.mrb[0].mxu0
      %v6563 = vadd.f32 %v6210, %v6562
      %v6564 = vpop.f32.mrb[0].mxu0
      %v6565 = vpop.f32.mrb[0].mxu0
      %v6566 = vadd.f32 %v6210, %v6565
      %v6567 = vpop.f32.mrb[0].mxu0
      %6568 = vmatprep.mubr.bf16.mxu0 0
      %6569 = vmatmul.mubr.bf16.gmra.mrb[0].mxu0 %v6324
      %v6570 = vpop.f32.mrb[0].mxu0
      %v6571 = vpop.f32.mrb[0].mxu0
      %v6572 = vpop.f32.mrb[0].mxu0
      %v6573 = vpop.f32.mrb[0].mxu0
      %6574 = vmatprep.mubr.bf16.mxu0 0
      %6575 = vmatmul.mubr.bf16.gmra.mrb[0].mxu0 %v6327
      %v6576 = vpop.f32.mrb[0].mxu0
      %v6577 = vadd.f32 %v6210, %v6576
      %v6578 = vpop.f32.mrb[0].mxu0
      %v6579 = vpop.f32.mrb[0].mxu0
      %v6580 = vadd.f32 %v6210, %v6579
      %v6581 = vpop.f32.mrb[0].mxu0
      %6582 = vmatprep.mubr.bf16.mxu0 0
      %6583 = vmatmul.mubr.bf16.gmra.mrb[0].mxu0 %v6330
      %v6584 = vpop.f32.mrb[0].mxu0
      %v6585 = vpop.f32.mrb[0].mxu0
      %v6586 = vpop.f32.mrb[0].mxu0
      %v6587 = vpop.f32.mrb[0].mxu0
      %6588 = vdwg.mxu0
      %v6589 = vxor.u32 %v6367, 2147483648
      %v6590 = vxor.u32 %v6370, 2147483648
      %v6591 = vxor.u32 %v6381, 2147483648
      %v6592 = vxor.u32 %v6384, 2147483648
      %v6593 = vxor.u32 %v6395, 2147483648
      %v6594 = vxor.u32 %v6398, 2147483648
      %v6595 = vxor.u32 %v6409, 2147483648
      %v6596 = vxor.u32 %v6412, 2147483648
      %v6597 = vxor.u32 %v6423, 2147483648
      %v6598 = vxor.u32 %v6426, 2147483648
      %v6599 = vxor.u32 %v6437, 2147483648
      %v6600 = vxor.u32 %v6440, 2147483648
      %v6601 = vxor.u32 %v6451, 2147483648
      %v6602 = vxor.u32 %v6454, 2147483648
      %v6603 = vxor.u32 %v6465, 2147483648
      %v6604 = vxor.u32 %v6468, 2147483648
      %v6605 = vxor.u32 %v6479, 2147483648
      %v6606 = vxor.u32 %v6482, 2147483648
      %v6607 = vxor.u32 %v6493, 2147483648
      %v6608 = vxor.u32 %v6496, 2147483648
      %v6609 = vxor.u32 %v6507, 2147483648
      %v6610 = vxor.u32 %v6510, 2147483648
      %v6611 = vxor.u32 %v6521, 2147483648
      %v6612 = vxor.u32 %v6524, 2147483648
      %v6613 = vxor.u32 %v6535, 2147483648
      %v6614 = vxor.u32 %v6538, 2147483648
      %v6615 = vxor.u32 %v6549, 2147483648
      %v6616 = vxor.u32 %v6552, 2147483648
      %v6617 = vxor.u32 %v6563, 2147483648
      %v6618 = vxor.u32 %v6566, 2147483648
      %v6619 = vxor.u32 %v6577, 2147483648
      %v6620 = vxor.u32 %v6580, 2147483648
      %v6621 = vmul.f32 %v6589, 1.442695
      %v6622 = vpow.pop %v6621
      %v6623 = vmul.f32 %v6590, 1.442695
      %v6624 = vpow.pop %v6623
      %v6625 = vmul.f32 %v6591, 1.442695
      %v6626 = vpow.pop %v6625
      %v6627 = vmul.f32 %v6592, 1.442695
      %v6628 = vpow.pop %v6627
      %v6629 = vmul.f32 %v6593, 1.442695
      %v6630 = vpow.pop %v6629
      %v6631 = vmul.f32 %v6594, 1.442695
      %v6632 = vpow.pop %v6631
      %v6633 = vmul.f32 %v6595, 1.442695
      %v6634 = vpow.pop %v6633
      %v6635 = vmul.f32 %v6596, 1.442695
      %v6636 = vpow.pop %v6635
      %v6637 = vmul.f32 %v6597, 1.442695
      %v6638 = vpow.pop %v6637
      %v6639 = vmul.f32 %v6598, 1.442695
      %v6640 = vpow.pop %v6639
      %v6641 = vmul.f32 %v6599, 1.442695
      %v6642 = vpow.pop %v6641
      %v6643 = vmul.f32 %v6600, 1.442695
      %v6644 = vpow.pop %v6643
      %v6645 = vmul.f32 %v6601, 1.442695
      %v6646 = vpow.pop %v6645
      %v6647 = vmul.f32 %v6602, 1.442695
      %v6648 = vpow.pop %v6647
      %v6649 = vmul.f32 %v6603, 1.442695
      %v6650 = vpow.pop %v6649
      %v6651 = vmul.f32 %v6604, 1.442695
      %v6652 = vpow.pop %v6651
      %v6653 = vmul.f32 %v6605, 1.442695
      %v6654 = vpow.pop %v6653
      %v6655 = vmul.f32 %v6606, 1.442695
      %v6656 = vpow.pop %v6655
      %v6657 = vmul.f32 %v6607, 1.442695
      %v6658 = vpow.pop %v6657
      %v6659 = vmul.f32 %v6608, 1.442695
      %v6660 = vpow.pop %v6659
      %v6661 = vmul.f32 %v6609, 1.442695
      %v6662 = vpow.pop %v6661
      %v6663 = vmul.f32 %v6610, 1.442695
      %v6664 = vpow.pop %v6663
      %v6665 = vmul.f32 %v6611, 1.442695
      %v6666 = vpow.pop %v6665
      %v6667 = vmul.f32 %v6612, 1.442695
      %v6668 = vpow.pop %v6667
      %v6669 = vmul.f32 %v6613, 1.442695
      %v6670 = vpow.pop %v6669
      %v6671 = vmul.f32 %v6614, 1.442695
      %v6672 = vpow.pop %v6671
      %v6673 = vmul.f32 %v6615, 1.442695
      %v6674 = vpow.pop %v6673
      %v6675 = vmul.f32 %v6616, 1.442695
      %v6676 = vpow.pop %v6675
      %v6677 = vmul.f32 %v6617, 1.442695
      %v6678 = vpow.pop %v6677
      %v6679 = vmul.f32 %v6618, 1.442695
      %v6680 = vpow.pop %v6679
      %v6681 = vmul.f32 %v6619, 1.442695
      %v6682 = vpow.pop %v6681
      %v6683 = vmul.f32 %v6620, 1.442695
      %v6684 = vpow.pop %v6683
      %v6685 = vadd.f32 %v6622, 1.0
      %v6686 = vadd.f32 %v6624, 1.0
      %v6687 = vadd.f32 %v6626, 1.0
      %v6688 = vadd.f32 %v6628, 1.0
      %v6689 = vadd.f32 %v6630, 1.0
      %v6690 = vadd.f32 %v6632, 1.0
      %v6691 = vadd.f32 %v6634, 1.0
      %v6692 = vadd.f32 %v6636, 1.0
      %v6693 = vadd.f32 %v6638, 1.0
      %v6694 = vadd.f32 %v6640, 1.0
      %v6695 = vadd.f32 %v6642, 1.0
      %v6696 = vadd.f32 %v6644, 1.0
      %v6697 = vadd.f32 %v6646, 1.0
      %v6698 = vadd.f32 %v6648, 1.0
      %v6699 = vadd.f32 %v6650, 1.0
      %v6700 = vadd.f32 %v6652, 1.0
      %v6701 = vadd.f32 %v6654, 1.0
      %v6702 = vadd.f32 %v6656, 1.0
      %v6703 = vadd.f32 %v6658, 1.0
      %v6704 = vadd.f32 %v6660, 1.0
      %v6705 = vadd.f32 %v6662, 1.0
      %v6706 = vadd.f32 %v6664, 1.0
      %v6707 = vadd.f32 %v6666, 1.0
      %v6708 = vadd.f32 %v6668, 1.0
      %v6709 = vadd.f32 %v6670, 1.0
      %v6710 = vadd.f32 %v6672, 1.0
      %v6711 = vadd.f32 %v6674, 1.0
      %v6712 = vadd.f32 %v6676, 1.0
      %v6713 = vadd.f32 %v6678, 1.0
      %v6714 = vadd.f32 %v6680, 1.0
      %v6715 = vadd.f32 %v6682, 1.0
      %v6716 = vadd.f32 %v6684, 1.0
      %v6717 = vrcp.pop %v6685
      %v6718 = vmul.f32 1.0, %v6717
      %v6719 = vrcp.pop %v6686
      %v6720 = vmul.f32 1.0, %v6719
      %v6721 = vrcp.pop %v6687
      %v6722 = vmul.f32 1.0, %v6721
      %v6723 = vrcp.pop %v6688
      %v6724 = vmul.f32 1.0, %v6723
      %v6725 = vrcp.pop %v6689
      %v6726 = vmul.f32 1.0, %v6725
      %v6727 = vrcp.pop %v6690
      %v6728 = vmul.f32 1.0, %v6727
      %v6729 = vrcp.pop %v6691
      %v6730 = vmul.f32 1.0, %v6729
      %v6731 = vrcp.pop %v6692
      %v6732 = vmul.f32 1.0, %v6731
      %v6733 = vrcp.pop %v6693
      %v6734 = vmul.f32 1.0, %v6733
      %v6735 = vrcp.pop %v6694
      %v6736 = vmul.f32 1.0, %v6735
      %v6737 = vrcp.pop %v6695
      %v6738 = vmul.f32 1.0, %v6737
      %v6739 = vrcp.pop %v6696
      %v6740 = vmul.f32 1.0, %v6739
      %v6741 = vrcp.pop %v6697
      %v6742 = vmul.f32 1.0, %v6741
      %v6743 = vrcp.pop %v6698
      %v6744 = vmul.f32 1.0, %v6743
      %v6745 = vrcp.pop %v6699
      %v6746 = vmul.f32 1.0, %v6745
      %v6747 = vrcp.pop %v6700
      %v6748 = vmul.f32 1.0, %v6747
      %v6749 = vrcp.pop %v6701
      %v6750 = vmul.f32 1.0, %v6749
      %v6751 = vrcp.pop %v6702
      %v6752 = vmul.f32 1.0, %v6751
      %v6753 = vrcp.pop %v6703
      %v6754 = vmul.f32 1.0, %v6753
      %v6755 = vrcp.pop %v6704
      %v6756 = vmul.f32 1.0, %v6755
      %v6757 = vrcp.pop %v6705
      %v6758 = vmul.f32 1.0, %v6757
      %v6759 = vrcp.pop %v6706
      %v6760 = vmul.f32 1.0, %v6759
      %v6761 = vrcp.pop %v6707
      %v6762 = vmul.f32 1.0, %v6761
      %v6763 = vrcp.pop %v6708
      %v6764 = vmul.f32 1.0, %v6763
      %v6765 = vrcp.pop %v6709
      %v6766 = vmul.f32 1.0, %v6765
      %v6767 = vrcp.pop %v6710
      %v6768 = vmul.f32 1.0, %v6767
      %v6769 = vrcp.pop %v6711
      %v6770 = vmul.f32 1.0, %v6769
      %v6771 = vrcp.pop %v6712
      %v6772 = vmul.f32 1.0, %v6771
      %v6773 = vrcp.pop %v6713
      %v6774 = vmul.f32 1.0, %v6773
      %v6775 = vrcp.pop %v6714
      %v6776 = vmul.f32 1.0, %v6775
      %v6777 = vrcp.pop %v6715
      %v6778 = vmul.f32 1.0, %v6777
      %v6779 = vrcp.pop %v6716
      %v6780 = vmul.f32 1.0, %v6779
      %v6781 = vmul.f32 %v6367, %v6718
      %v6782 = vmul.f32 %v6370, %v6720
      %v6783 = vmul.f32 %v6381, %v6722
      %v6784 = vmul.f32 %v6384, %v6724
      %v6785 = vmul.f32 %v6395, %v6726
      %v6786 = vmul.f32 %v6398, %v6728
      %v6787 = vmul.f32 %v6409, %v6730
      %v6788 = vmul.f32 %v6412, %v6732
      %v6789 = vmul.f32 %v6423, %v6734
      %v6790 = vmul.f32 %v6426, %v6736
      %v6791 = vmul.f32 %v6437, %v6738
      %v6792 = vmul.f32 %v6440, %v6740
      %v6793 = vmul.f32 %v6451, %v6742
      %v6794 = vmul.f32 %v6454, %v6744
      %v6795 = vmul.f32 %v6465, %v6746
      %v6796 = vmul.f32 %v6468, %v6748
      %v6797 = vmul.f32 %v6479, %v6750
      %v6798 = vmul.f32 %v6482, %v6752
      %v6799 = vmul.f32 %v6493, %v6754
      %v6800 = vmul.f32 %v6496, %v6756
      %v6801 = vmul.f32 %v6507, %v6758
      %v6802 = vmul.f32 %v6510, %v6760
      %v6803 = vmul.f32 %v6521, %v6762
      %v6804 = vmul.f32 %v6524, %v6764
      %v6805 = vmul.f32 %v6535, %v6766
      %v6806 = vmul.f32 %v6538, %v6768
      %v6807 = vmul.f32 %v6549, %v6770
      %v6808 = vmul.f32 %v6552, %v6772
      %v6809 = vmul.f32 %v6563, %v6774
      %v6810 = vmul.f32 %v6566, %v6776
      %v6811 = vmul.f32 %v6577, %v6778
      %v6812 = vmul.f32 %v6580, %v6780
      %6845 = vrot.lane.b32.xlu0 %v6781, 32
      %v6846 = vpop.permute.xlu0 %6845
      %6847 = vrot.lane.b32.xlu0 %v6782, 32
      %v6848 = vpop.permute.xlu0 %6847
      %6849 = vrot.lane.b32.xlu0 %v6783, 32
      %v6850 = vpop.permute.xlu0 %6849
      %6851 = vrot.lane.b32.xlu0 %v6784, 32
      %v6852 = vpop.permute.xlu0 %6851
      %6853 = vrot.lane.b32.xlu0 %v6785, 32
      %v6854 = vpop.permute.xlu0 %6853
      %6855 = vrot.lane.b32.xlu0 %v6786, 32
      %v6856 = vpop.permute.xlu0 %6855
      %6857 = vrot.lane.b32.xlu0 %v6787, 32
      %v6858 = vpop.permute.xlu0 %6857
      %6859 = vrot.lane.b32.xlu0 %v6788, 32
      %v6860 = vpop.permute.xlu0 %6859
      %6861 = vrot.lane.b32.xlu0 %v6789, 32
      %v6862 = vpop.permute.xlu0 %6861
      %6863 = vrot.lane.b32.xlu0 %v6790, 32
      %v6864 = vpop.permute.xlu0 %6863
      %6865 = vrot.lane.b32.xlu0 %v6791, 32
      %v6866 = vpop.permute.xlu0 %6865
      %6867 = vrot.lane.b32.xlu0 %v6792, 32
      %v6868 = vpop.permute.xlu0 %6867
      %6869 = vrot.lane.b32.xlu0 %v6793, 32
      %v6870 = vpop.permute.xlu0 %6869
      %6871 = vrot.lane.b32.xlu0 %v6794, 32
      %v6872 = vpop.permute.xlu0 %6871
      %6873 = vrot.lane.b32.xlu0 %v6795, 32
      %v6874 = vpop.permute.xlu0 %6873
      %6875 = vrot.lane.b32.xlu0 %v6796, 32
      %v6876 = vpop.permute.xlu0 %6875
      %6877 = vrot.lane.b32.xlu0 %v6797, 32
      %v6878 = vpop.permute.xlu0 %6877
      %6879 = vrot.lane.b32.xlu0 %v6798, 32
      %v6880 = vpop.permute.xlu0 %6879
      %6881 = vrot.lane.b32.xlu0 %v6799, 32
      %v6882 = vpop.permute.xlu0 %6881
      %6883 = vrot.lane.b32.xlu0 %v6800, 32
      %v6884 = vpop.permute.xlu0 %6883
      %6885 = vrot.lane.b32.xlu0 %v6801, 32
      %v6886 = vpop.permute.xlu0 %6885
      %6887 = vrot.lane.b32.xlu0 %v6802, 32
      %v6888 = vpop.permute.xlu0 %6887
      %6889 = vrot.lane.b32.xlu0 %v6803, 32
      %v6890 = vpop.permute.xlu0 %6889
      %6891 = vrot.lane.b32.xlu0 %v6804, 32
      %v6892 = vpop.permute.xlu0 %6891
      %6893 = vrot.lane.b32.xlu0 %v6805, 32
      %v6894 = vpop.permute.xlu0 %6893
      %6895 = vrot.lane.b32.xlu0 %v6806, 32
      %v6896 = vpop.permute.xlu0 %6895
      %6897 = vrot.lane.b32.xlu0 %v6807, 32
      %v6898 = vpop.permute.xlu0 %6897
      %6899 = vrot.lane.b32.xlu0 %v6808, 32
      %v6900 = vpop.permute.xlu0 %6899
      %6901 = vrot.lane.b32.xlu0 %v6809, 32
      %v6902 = vpop.permute.xlu0 %6901
      %6903 = vrot.lane.b32.xlu0 %v6810, 32
      %v6904 = vpop.permute.xlu0 %6903
      %6905 = vrot.lane.b32.xlu0 %v6811, 32
      %v6906 = vpop.permute.xlu0 %6905
      %6907 = vrot.lane.b32.xlu0 %v6812, 32
      %v6908 = vpop.permute.xlu0 %6907
      %v6941 = vsel %vm2124, %v796, %v6846
      %v6942 = vsel %vm2124, %v797, %v6848
      %v6943 = vsel %vm2124, %v798, %v6850
      %v6944 = vsel %vm2124, %v799, %v6852
      %v6945 = vsel %vm2124, %v800, %v6854
      %v6946 = vsel %vm2124, %v801, %v6856
      %v6947 = vsel %vm2124, %v802, %v6858
      %v6948 = vsel %vm2124, %v803, %v6860
      %v6949 = vsel %vm2124, %v804, %v6862
      %v6950 = vsel %vm2124, %v805, %v6864
      %v6951 = vsel %vm2124, %v806, %v6866
      %v6952 = vsel %vm2124, %v807, %v6868
      %v6953 = vsel %vm2124, %v808, %v6870
      %v6954 = vsel %vm2124, %v809, %v6872
      %v6955 = vsel %vm2124, %v810, %v6874
      %v6956 = vsel %vm2124, %v811, %v6876
      %v6957 = vsel %vm2124, %v812, %v6878
      %v6958 = vsel %vm2124, %v813, %v6880
      %v6959 = vsel %vm2124, %v814, %v6882
      %v6960 = vsel %vm2124, %v815, %v6884
      %v6961 = vsel %vm2124, %v816, %v6886
      %v6962 = vsel %vm2124, %v817, %v6888
      %v6963 = vsel %vm2124, %v818, %v6890
      %v6964 = vsel %vm2124, %v819, %v6892
      %v6965 = vsel %vm2124, %v820, %v6894
      %v6966 = vsel %vm2124, %v821, %v6896
      %v6967 = vsel %vm2124, %v822, %v6898
      %v6968 = vsel %vm2124, %v823, %v6900
      %v6969 = vsel %vm2124, %v824, %v6902
      %v6970 = vsel %vm2124, %v825, %v6904
      %v6971 = vsel %vm2124, %v826, %v6906
      %v6972 = vsel %vm2124, %v827, %v6908
      %v6973 = vld [vmem:[%s7] sm:$0xf]
      %v6974 = vld [vmem:[%s7 + $0x4] sm:$0xf]
      %v6975 = vld [vmem:[%s7 + $0x8] sm:$0xf]
      %v6976 = vld [vmem:[%s7 + $0xc] sm:$0xf]
      %v6977 = vpack.c.bf16 %v6942, %v6941
      %v6978 = vpack.c.bf16 %v6944, %v6943
      %v6979 = vpack.c.bf16 %v6946, %v6945
      %v6980 = vpack.c.bf16 %v6948, %v6947
      %v6981 = vpack.c.bf16 %v6950, %v6949
      %v6982 = vpack.c.bf16 %v6952, %v6951
      %v6983 = vpack.c.bf16 %v6954, %v6953
      %v6984 = vpack.c.bf16 %v6956, %v6955
      %v6985 = vpack.c.bf16 %v6958, %v6957
      %v6986 = vpack.c.bf16 %v6960, %v6959
      %v6987 = vpack.c.bf16 %v6962, %v6961
      %v6988 = vpack.c.bf16 %v6964, %v6963
      %v6989 = vpack.c.bf16 %v6966, %v6965
      %v6990 = vpack.c.bf16 %v6968, %v6967
      %v6991 = vpack.c.bf16 %v6970, %v6969
      %v6992 = vpack.c.bf16 %v6972, %v6971
      %v6993 = vld [vmem:[%s8] sm:$0xff]
      %v6994 = vld [vmem:[%s8 + $0x8] sm:$0xff]
      %v6995 = vld [vmem:[%s8 + $0x10] sm:$0xff]
      %v6996 = vld [vmem:[%s8 + $0x18] sm:$0xff]
      %6998 = vset.pattern.permute.xlu0 0
      %6999 = vperm.xlu0 %6998, %v6993
      %v7000 = vpop.permute.xlu0 %6999
      %7003 = vset.pattern.permute.xlu0 0
      %7004 = vperm.xlu0 %7003, %v6994
      %v7005 = vpop.permute.xlu0 %7004
      %7008 = vset.pattern.permute.xlu0 0
      %7009 = vperm.xlu0 %7008, %v6995
      %v7010 = vpop.permute.xlu0 %7009
      %7013 = vset.pattern.permute.xlu0 0
      %7014 = vperm.xlu0 %7013, %v6996
      %v7015 = vpop.permute.xlu0 %7014
      %v7021 = vunpack.c.l.b16 %v6973
      %v7022 = vunpack.c.l.b16 %v6974
      %v7023 = vunpack.c.l.b16 %v6975
      %v7024 = vunpack.c.l.b16 %v6976
      %v7025 = vpack.c.b16 %v7022, %v7021
      %v7026 = vpack.c.b16 %v7024, %v7023
      %v7028 = vsel %vm2197, %v7025, 0
      %v7031 = vsel %vm2197, %v7026, 0
      %v7034 = vsel %vm2197, %v6977, 0
      %v7037 = vsel %vm2197, %v6978, 0
      %v7040 = vsel %vm2197, %v6979, 0
      %v7043 = vsel %vm2197, %v6980, 0
      %v7046 = vsel %vm2197, %v6981, 0
      %v7049 = vsel %vm2197, %v6982, 0
      %v7052 = vsel %vm2197, %v6983, 0
      %v7055 = vsel %vm2197, %v6984, 0
      %v7058 = vsel %vm2197, %v6985, 0
      %v7061 = vsel %vm2197, %v6986, 0
      %v7064 = vsel %vm2197, %v6987, 0
      %v7067 = vsel %vm2197, %v6988, 0
      %v7070 = vsel %vm2197, %v6989, 0
      %v7073 = vsel %vm2197, %v6990, 0
      %v7076 = vsel %vm2197, %v6991, 0
      %v7079 = vsel %vm2197, %v6992, 0
      %7081 = vmatprep.subr.bf16.mxu0 0
      %7082 = vmatpush1.bf16.xpose.msra.mxu0 %v7034
      %7083 = vmatprep.subr.bf16.mxu0 0
      %7084 = vmatpush1.bf16.xpose.msra.mxu0 %v7037
      %7085 = vmatprep.subr.bf16.mxu0 0
      %7086 = vmatpush1.bf16.xpose.msra.mxu0 %v7040
      %7087 = vmatprep.subr.bf16.mxu0 0
      %7088 = vmatpush1.bf16.xpose.msra.mxu0 %v7043
      %7089 = vmatprep.subr.bf16.mxu0 0
      %7090 = vmatpush1.bf16.xpose.msra.mxu0 %v7046
      %7091 = vmatprep.subr.bf16.mxu0 0
      %7092 = vmatpush1.bf16.xpose.msra.mxu0 %v7049
      %7093 = vmatprep.subr.bf16.mxu0 0
      %7094 = vmatpush1.bf16.xpose.msra.mxu0 %v7052
      %7095 = vmatprep.subr.bf16.mxu0 0
      %7096 = vmatpush1.bf16.xpose.msra.mxu0 %v7055
      %7097 = vmatprep.subr.bf16.mxu0 0
      %7098 = vmatpush1.bf16.xpose.msra.mxu0 %v7058
      %7099 = vmatprep.subr.bf16.mxu0 0
      %7100 = vmatpush1.bf16.xpose.msra.mxu0 %v7061
      %7101 = vmatprep.subr.bf16.mxu0 0
      %7102 = vmatpush1.bf16.xpose.msra.mxu0 %v7064
      %7103 = vmatprep.subr.bf16.mxu0 0
      %7104 = vmatpush1.bf16.xpose.msra.mxu0 %v7067
      %7105 = vmatprep.subr.bf16.mxu0 0
      %7106 = vmatpush1.bf16.xpose.msra.mxu0 %v7070
      %7107 = vmatprep.subr.bf16.mxu0 0
      %7108 = vmatpush1.bf16.xpose.msra.mxu0 %v7073
      %7109 = vmatprep.subr.bf16.mxu0 0
      %7110 = vmatpush1.bf16.xpose.msra.mxu0 %v7076
      %7111 = vmatprep.subr.bf16.mxu0 0
      %7112 = vmatpush1.bf16.xpose.msra.mxu0 %v7079
      %7113 = vmatprep.mubr.bf16.mxu0 0
      %7114 = vmatmul.mubr.bf16.gmra.mrb[0].mxu0 %v7028
      %v7115 = vpop.f32.mrb[0].mxu0
      %v7116 = vadd.f32 %v7000, %v7115
      %v7117 = vpop.f32.mrb[0].mxu0
      %v7118 = vadd.f32 %v7000, %v7117
      %v7119 = vpop.f32.mrb[0].mxu0
      %v7120 = vadd.f32 %v7005, %v7119
      %v7121 = vpop.f32.mrb[0].mxu0
      %v7122 = vadd.f32 %v7005, %v7121
      %7123 = vmatprep.mubr.bf16.mxu0 0
      %7124 = vmatmul.mubr.bf16.gmra.mrb[0].mxu0 %v7031
      %v7125 = vpop.f32.mrb[0].mxu0
      %v7126 = vadd.f32 %v7010, %v7125
      %v7127 = vpop.f32.mrb[0].mxu0
      %v7128 = vadd.f32 %v7010, %v7127
      %v7129 = vpop.f32.mrb[0].mxu0
      %v7130 = vadd.f32 %v7015, %v7129
      %v7131 = vpop.f32.mrb[0].mxu0
      %v7132 = vadd.f32 %v7015, %v7131
      %7133 = vdwg.mxu0
      %v7134 = vxor.u32 %v7116, 2147483648
      %v7135 = vxor.u32 %v7118, 2147483648
      %v7136 = vxor.u32 %v7120, 2147483648
      %v7137 = vxor.u32 %v7122, 2147483648
      %v7138 = vxor.u32 %v7126, 2147483648
      %v7139 = vxor.u32 %v7128, 2147483648
      %v7140 = vxor.u32 %v7130, 2147483648
      %v7141 = vxor.u32 %v7132, 2147483648
      %v7142 = vmul.f32 %v7134, 1.442695
      %v7143 = vpow.pop %v7142
      %v7144 = vmul.f32 %v7135, 1.442695
      %v7145 = vpow.pop %v7144
      %v7146 = vmul.f32 %v7136, 1.442695
      %v7147 = vpow.pop %v7146
      %v7148 = vmul.f32 %v7137, 1.442695
      %v7149 = vpow.pop %v7148
      %v7150 = vmul.f32 %v7138, 1.442695
      %v7151 = vpow.pop %v7150
      %v7152 = vmul.f32 %v7139, 1.442695
      %v7153 = vpow.pop %v7152
      %v7154 = vmul.f32 %v7140, 1.442695
      %v7155 = vpow.pop %v7154
      %v7156 = vmul.f32 %v7141, 1.442695
      %v7157 = vpow.pop %v7156
      %v7158 = vadd.f32 %v7143, 1.0
      %v7159 = vadd.f32 %v7145, 1.0
      %v7160 = vadd.f32 %v7147, 1.0
      %v7161 = vadd.f32 %v7149, 1.0
      %v7162 = vadd.f32 %v7151, 1.0
      %v7163 = vadd.f32 %v7153, 1.0
      %v7164 = vadd.f32 %v7155, 1.0
      %v7165 = vadd.f32 %v7157, 1.0
      %v7166 = vrcp.pop %v7158
      %v7167 = vmul.f32 1.0, %v7166
      %v7168 = vrcp.pop %v7159
      %v7169 = vmul.f32 1.0, %v7168
      %v7170 = vrcp.pop %v7160
      %v7171 = vmul.f32 1.0, %v7170
      %v7172 = vrcp.pop %v7161
      %v7173 = vmul.f32 1.0, %v7172
      %v7174 = vrcp.pop %v7162
      %v7175 = vmul.f32 1.0, %v7174
      %v7176 = vrcp.pop %v7163
      %v7177 = vmul.f32 1.0, %v7176
      %v7178 = vrcp.pop %v7164
      %v7179 = vmul.f32 1.0, %v7178
      %v7180 = vrcp.pop %v7165
      %v7181 = vmul.f32 1.0, %v7180
      %v7182 = vmul.f32 %v7116, %v7167
      %v7183 = vmul.f32 %v7118, %v7169
      %v7184 = vmul.f32 %v7120, %v7171
      %v7185 = vmul.f32 %v7122, %v7173
      %v7186 = vmul.f32 %v7126, %v7175
      %v7187 = vmul.f32 %v7128, %v7177
      %v7188 = vmul.f32 %v7130, %v7179
      %v7189 = vmul.f32 %v7132, %v7181
      %7190 = vst [vmem:[%s332] sm:$0xff] %v7182
      %7191 = vst [vmem:[%s332 + $0x8] sm:$0xff] %v7183
      %7192 = vst [vmem:[%s332 + $0x10] sm:$0xff] %v7184
      %7193 = vst [vmem:[%s332 + $0x18] sm:$0xff] %v7185
      %7194 = vst [vmem:[%s332 + $0x20] sm:$0xff] %v7186
      %7195 = vst [vmem:[%s332 + $0x28] sm:$0xff] %v7187
      %7196 = vst [vmem:[%s332 + $0x30] sm:$0xff] %v7188
      %7197 = vst [vmem:[%s332 + $0x38] sm:$0xff] %v7189
      %p7198 = scmp.lt.s32.totalorder %s20, 1
      %s7199 = scalar_select %p7198, %s20, 1
      %s7200 = smul.addr %s7199, 8
      %s7201 = smul.addr %s7200, 8
      %s7202 = scalar_lea.vmem %s9, %s7201
      // Predicated region
      $region64: #{c2f_psconv_forward.1} parent=55 // pred_check
        %p7203 = pneg %p232
      $region65: #{c2f_psconv_forward.1} parent=55 // pred_check_branch
        %7205 = sbr.rel (%p7203) target = $region67
      $region66: #{c2f_psconv_forward.1} parent=55 // pred_region
        _
      $region67: #{c2f_psconv_forward.1} parent=55 // pred_fallthru
        _
    $region56: #{c2f_psconv_forward.1} parent=5 // pred_fallthru
      _
    %p7206 = scmp.le.s32.totalorder 2, %s15
    // Predicated region
    $region68: #{c2f_psconv_forward.1} parent=5 // pred_check
      %p7207 = pneg %p7206
    $region69: #{c2f_psconv_forward.1} parent=5 // pred_check_branch
      %7209 = sbr.rel (%p7207) target = $region71
    $region70: #{c2f_psconv_forward.1} parent=5 // pred_region
      %s7210 = ssub.s32 %s15, 2
      // Predicated region
      $region72: #{c2f_psconv_forward.1} parent=70 // pred_check
        %p7211 = pneg %p238
      $region73: #{c2f_psconv_forward.1} parent=70 // pred_check_branch
        %7213 = sbr.rel (%p7211) target = $region75
      $region74: #{c2f_psconv_forward.1} parent=70 // pred_region
        %p7214 = scmp.lt.s32.totalorder %s21, 1
        %s7215 = scalar_select %p7214, %s21, 1
        %s7216 = smul.addr %s7215, 8
        %s7217 = smul.addr %s7216, 8
        %s7218 = scalar_lea.vmem %s9, %s7217
      $region75: #{c2f_psconv_forward.1} parent=70 // pred_fallthru
        _
    $region71: #{c2f_psconv_forward.1} parent=5 // pred_fallthru
      _
  $region6: #{c2f_psconv_forward.1} parent=0 // loop_footer
    %s19 = sadd.s32 1, %s15
  $region7: #{c2f_psconv_forward.1} parent=0 // loop_footer_branch
    %14 = sbr.rel target = $region3
  $region8: #{c2f_psconv_forward.1} parent=0 // loop_exit
    _

</llo_original>
